<compile_context>
chip_gen: v7x
topology: tpu7x:2x2x1
jax: 0.10.0
libtpu: 0.0.40
codegen_flags: <defaults>
</compile_context>

<pallas_src>
import math
import functools

import jax
import jax.numpy as jnp
from jax.experimental import pallas as pl
from jax.experimental.pallas import tpu as pltpu


def _vmem_capacity_bytes():
    try:
        return int(pltpu.get_tpu_info().vmem_capacity_bytes)
    except Exception:
        return 64 * 1024 * 1024  # conservative: v7x per-TensorCore VMEM


# -----------------------------------------------------------------------------
# Fast path: embedding table resident in VMEM, in-kernel row gather.
# -----------------------------------------------------------------------------
def _embed_vmem_kernel(ids_ref, lut_ref, out_ref, *, token_tile, scale):
    """ids_ref: (n_pad,) int32 in SMEM (scalar prefetch)
    lut_ref: (vocab, d_pad) full table, resident in VMEM (constant index_map)
    out_ref: (token_tile, d_pad) VMEM output block
    """
    base = pl.program_id(0) * token_tile
    for r in range(token_tile):
        tok = ids_ref[base + r]
        row = lut_ref[pl.ds(tok, 1)]                       # (1, d_pad) dyn load
        out_ref[pl.ds(r, 1)] = (row.astype(jnp.float32) * scale
                                ).astype(out_ref.dtype)


# -----------------------------------------------------------------------------
# Large-vocab path: table in HBM, per-row DMA gather straight into out block.
# -----------------------------------------------------------------------------
def _embed_hbm_gather_kernel(ids_ref, lut_hbm, out_ref, sem, *,
                             token_tile, chunk, scale):
    """ids_ref: (n_pad,) int32 in SMEM (scalar prefetch)
    lut_hbm: (vocab, d_pad) table resident in HBM (memory_space=pl.ANY)
    out_ref: (token_tile, d_pad) VMEM output block (also the gather target)
    sem:     (2,) DMA semaphores -- one per in-flight chunk slot
    """
    base = pl.program_id(0) * token_tile
    num_chunks = token_tile // chunk

    def issue(c):
        slot = c % 2
        off = c * chunk
        for r in range(chunk):
            tok = ids_ref[base + off + r]
            pltpu.make_async_copy(
                lut_hbm.at[pl.ds(tok, 1)],        # (1, d_pad) row in HBM
                out_ref.at[pl.ds(off + r, 1)],    # straight into the out block
                sem.at[slot],
            ).start()

    issue(0)                                      # prime chunk 0
    for c in range(num_chunks):
        if c + 1 < num_chunks:
            issue(c + 1)                          # overlap next chunk's gather
        off = c * chunk
        # One aggregate wait: every row copy of this chunk signals sem[c%2]
        # with an identical byte count, so a single descriptor sized to the
        # whole chunk waits for all of them at once.
        pltpu.make_async_copy(
            lut_hbm.at[pl.ds(0, chunk)],
            out_ref.at[pl.ds(off, chunk)],
            sem.at[c % 2],
        ).wait()
        rows = out_ref[pl.ds(off, chunk), :]
        out_ref[pl.ds(off, chunk), :] = (rows.astype(jnp.float32) * scale
                                         ).astype(out_ref.dtype)


def embeddings_forward(x, lut, *, token_tile=256, chunk=64,
                       force_hbm_gather=False):
    """Pallas equivalent of Embeddings.forward: lut[x] * sqrt(d_model).

    x:   (batch, seq) integer token ids
    lut: (vocab, d_model) embedding table
    """
    batch, seq = x.shape
    vocab, d_model = lut.shape
    n = batch * seq

    token_tile = max(8, int(token_tile))
    chunk = max(1, min(int(chunk), token_tile))
    if token_tile % chunk:
        chunk = token_tile
    n_pad = -(-n // token_tile) * token_tile

    # Lane-dense feature axis: pad to a multiple of 128, sliced off below.
    d_pad = -(-d_model // 128) * 128
    lut_p = lut if d_pad == d_model else jnp.pad(
        lut, ((0, 0), (0, d_pad - d_model)))

    # Clamp (PyTorch raises on OOB ids; an OOB gather must never happen), pad.
    ids = jnp.clip(x.reshape(n).astype(jnp.int32), 0, vocab - 1)
    ids = jnp.pad(ids, (0, n_pad - n))

    scale = float(math.sqrt(d_model))
    itemsize = jnp.dtype(lut.dtype).itemsize
    table_bytes = vocab * d_pad * itemsize
    tile_bytes = token_tile * d_pad * itemsize

    capacity = _vmem_capacity_bytes()
    # Fast path if table (double-buffer-safe) + output buffers fit in half of
    # VMEM: ~16 MiB tables on v7x (64 MiB VMEM), larger on v5e/v6e (128 MiB).
    use_vmem_table = (not force_hbm_gather and
                      2 * table_bytes + 4 * tile_bytes + (2 << 20)
                      <= capacity // 2)

    grid = (n_pad // token_tile,)
    out_spec = pl.BlockSpec((token_tile, d_pad), lambda i, ids: (i, 0))

    if use_vmem_table:
        kernel = functools.partial(_embed_vmem_kernel,
                                   token_tile=token_tile, scale=scale)
        in_specs = [pl.BlockSpec((vocab, d_pad), lambda i, ids: (0, 0))]
        scratch_shapes = []
        need = 2 * table_bytes + 4 * tile_bytes + (4 << 20)
    else:
        kernel = functools.partial(_embed_hbm_gather_kernel,
                                   token_tile=token_tile, chunk=chunk,
                                   scale=scale)
        in_specs = [pl.BlockSpec(memory_space=pl.ANY)]
        scratch_shapes = [pltpu.SemaphoreType.DMA((2,))]
        need = 4 * tile_bytes + (4 << 20)

    vmem_limit_bytes = int(min(capacity, max(8 << 20, need)))

    out_flat = pl.pallas_call(
        kernel,
        out_shape=jax.ShapeDtypeStruct((n_pad, d_pad), lut.dtype),
        grid_spec=pltpu.PrefetchScalarGridSpec(
            num_scalar_prefetch=1,            # ids -> SMEM
            grid=grid,
            in_specs=in_specs,
            out_specs=out_spec,
            scratch_shapes=scratch_shapes,
        ),
        compiler_params=pltpu.CompilerParams(
            # Steps are stateless, so "parallel" is megacore-safe on v7x.
            dimension_semantics=("parallel",),
            vmem_limit_bytes=vmem_limit_bytes,
        ),
    )(ids, lut_p)

    return out_flat[:n, :d_model].reshape(batch, seq, d_model)


if __name__ == "__main__":
    # Small deterministic config consistent with Embeddings(d_model, vocab).
    # d_model=128 keeps stores lane-dense; n=384 tokens -> padded to 512,
    # exercising two grid steps and the padded tail with token_tile=256.
    batch, seq = 2, 192
    vocab, d_model = 1000, 128

    key = jax.random.PRNGKey(0)
    k_lut, k_ids = jax.random.split(key)

    # nn.Embedding default init: N(0, 1)
    lut = jax.random.normal(k_lut, (vocab, d_model), dtype=jnp.float32)
    x = jax.random.randint(k_ids, (batch, seq), 0, vocab, dtype=jnp.int32)

    ref = lut[x] * math.sqrt(d_model)

    # Auto-dispatch: 512 KB table -> VMEM-resident fast path.
    out_fast = jax.block_until_ready(embeddings_forward(x, lut))
    assert out_fast.shape == (batch, seq, d_model)
    assert jnp.allclose(out_fast, ref, atol=1e-5, rtol=1e-5)

    # Also exercise the large-vocab HBM row-gather path.
    out_hbm = jax.block_until_ready(
        embeddings_forward(x, lut, force_hbm_gather=True))
    assert jnp.allclose(out_hbm, ref, atol=1e-5, rtol=1e-5)

    print("KERNEL_OK")
</pallas_src>

<mosaic_0001>
module attributes {stable_mosaic.version = 11 : i64} {
  func.func @_embed_vmem_kernel(%arg0: i32, %arg1: memref<512xi32, #tpu.memory_space<smem>>, %arg2: memref<1000x128xf32, #tpu.memory_space<vmem>>, %arg3: memref<256x128xf32, #tpu.memory_space<vmem>>) attributes {dimension_semantics = [#tpu.dimension_semantics<parallel>], iteration_bounds = array<i64: 2>, scalar_prefetch = 1 : i64, scratch_operands = 0 : i64, tpu.core_type = #tpu.core_type<tc>, window_params = [{pipeline_mode = #tpu.pipeline_mode<synchronous>, transform_indices = @transform_0, window_bounds = array<i64: 1000, 128>}, {transform_indices = @transform_1, window_bounds = array<i64: 256, 128>}]} {
    %c256_i32 = arith.constant 256 : i32
    %0 = arith.muli %arg0, %c256_i32 : i32
    %c0_i32 = arith.constant 0 : i32
    %1 = arith.addi %0, %c0_i32 : i32
    %2 = arith.index_cast %1 : i32 to index
    %3 = memref.load %arg1[%2] : memref<512xi32, #tpu.memory_space<smem>>
    %4 = arith.index_cast %3 : i32 to index
    %c0 = arith.constant 0 : index
    %5 = vector.load %arg2[%4, %c0] : memref<1000x128xf32, #tpu.memory_space<vmem>>, vector<1x128xf32>
    %cst = arith.constant 11.3137083 : f32
    %6 = vector.broadcast %cst : f32 to vector<1x128xf32>
    %7 = arith.mulf %5, %6 : vector<1x128xf32>
    %c0_0 = arith.constant 0 : index
    %c0_1 = arith.constant 0 : index
    %8 = vector.load %arg3[%c0_0, %c0_1] : memref<256x128xf32, #tpu.memory_space<vmem>>, vector<1x128xf32>
    tpu.vector_store %arg3[%c0_0, %c0_1], %7 {strides = array<i32>} : memref<256x128xf32, #tpu.memory_space<vmem>>, vector<1x128xf32>,
    %c1_i32 = arith.constant 1 : i32
    %9 = arith.addi %0, %c1_i32 : i32
    %10 = arith.index_cast %9 : i32 to index
    %11 = memref.load %arg1[%10] : memref<512xi32, #tpu.memory_space<smem>>
    %12 = arith.index_cast %11 : i32 to index
    %c0_2 = arith.constant 0 : index
    %13 = vector.load %arg2[%12, %c0_2] : memref<1000x128xf32, #tpu.memory_space<vmem>>, vector<1x128xf32>
    %cst_3 = arith.constant 11.3137083 : f32
    %14 = vector.broadcast %cst_3 : f32 to vector<1x128xf32>
    %15 = arith.mulf %13, %14 : vector<1x128xf32>
    %c1 = arith.constant 1 : index
    %c0_4 = arith.constant 0 : index
    %16 = vector.load %arg3[%c1, %c0_4] : memref<256x128xf32, #tpu.memory_space<vmem>>, vector<1x128xf32>
    tpu.vector_store %arg3[%c1, %c0_4], %15 {strides = array<i32>} : memref<256x128xf32, #tpu.memory_space<vmem>>, vector<1x128xf32>,
    %c2_i32 = arith.constant 2 : i32
    %17 = arith.addi %0, %c2_i32 : i32
    %18 = arith.index_cast %17 : i32 to index
    %19 = memref.load %arg1[%18] : memref<512xi32, #tpu.memory_space<smem>>
    %20 = arith.index_cast %19 : i32 to index
    %c0_5 = arith.constant 0 : index
    %21 = vector.load %arg2[%20, %c0_5] : memref<1000x128xf32, #tpu.memory_space<vmem>>, vector<1x128xf32>
    %cst_6 = arith.constant 11.3137083 : f32
    %22 = vector.broadcast %cst_6 : f32 to vector<1x128xf32>
    %23 = arith.mulf %21, %22 : vector<1x128xf32>
    %c2 = arith.constant 2 : index
    %c0_7 = arith.constant 0 : index
    %24 = vector.load %arg3[%c2, %c0_7] : memref<256x128xf32, #tpu.memory_space<vmem>>, vector<1x128xf32>
    tpu.vector_store %arg3[%c2, %c0_7], %23 {strides = array<i32>} : memref<256x128xf32, #tpu.memory_space<vmem>>, vector<1x128xf32>,
    %c3_i32 = arith.constant 3 : i32
    %25 = arith.addi %0, %c3_i32 : i32
    %26 = arith.index_cast %25 : i32 to index
    %27 = memref.load %arg1[%26] : memref<512xi32, #tpu.memory_space<smem>>
    %28 = arith.index_cast %27 : i32 to index
    %c0_8 = arith.constant 0 : index
    %29 = vector.load %arg2[%28, %c0_8] : memref<1000x128xf32, #tpu.memory_space<vmem>>, vector<1x128xf32>
    %cst_9 = arith.constant 11.3137083 : f32
    %30 = vector.broadcast %cst_9 : f32 to vector<1x128xf32>
    %31 = arith.mulf %29, %30 : vector<1x128xf32>
    %c3 = arith.constant 3 : index
    %c0_10 = arith.constant 0 : index
    %32 = vector.load %arg3[%c3, %c0_10] : memref<256x128xf32, #tpu.memory_space<vmem>>, vector<1x128xf32>
    tpu.vector_store %arg3[%c3, %c0_10], %31 {strides = array<i32>} : memref<256x128xf32, #tpu.memory_space<vmem>>, vector<1x128xf32>,
    %c4_i32 = arith.constant 4 : i32
    %33 = arith.addi %0, %c4_i32 : i32
    %34 = arith.index_cast %33 : i32 to index
    %35 = memref.load %arg1[%34] : memref<512xi32, #tpu.memory_space<smem>>
    %36 = arith.index_cast %35 : i32 to index
    %c0_11 = arith.constant 0 : index
    %37 = vector.load %arg2[%36, %c0_11] : memref<1000x128xf32, #tpu.memory_space<vmem>>, vector<1x128xf32>
    %cst_12 = arith.constant 11.3137083 : f32
    %38 = vector.broadcast %cst_12 : f32 to vector<1x128xf32>
    %39 = arith.mulf %37, %38 : vector<1x128xf32>
    %c4 = arith.constant 4 : index
    %c0_13 = arith.constant 0 : index
    %40 = vector.load %arg3[%c4, %c0_13] : memref<256x128xf32, #tpu.memory_space<vmem>>, vector<1x128xf32>
    tpu.vector_store %arg3[%c4, %c0_13], %39 {strides = array<i32>} : memref<256x128xf32, #tpu.memory_space<vmem>>, vector<1x128xf32>,
    %c5_i32 = arith.constant 5 : i32
    %41 = arith.addi %0, %c5_i32 : i32
    %42 = arith.index_cast %41 : i32 to index
    %43 = memref.load %arg1[%42] : memref<512xi32, #tpu.memory_space<smem>>
    %44 = arith.index_cast %43 : i32 to index
    %c0_14 = arith.constant 0 : index
    %45 = vector.load %arg2[%44, %c0_14] : memref<1000x128xf32, #tpu.memory_space<vmem>>, vector<1x128xf32>
    %cst_15 = arith.constant 11.3137083 : f32
    %46 = vector.broadcast %cst_15 : f32 to vector<1x128xf32>
    %47 = arith.mulf %45, %46 : vector<1x128xf32>
    %c5 = arith.constant 5 : index
    %c0_16 = arith.constant 0 : index
    %48 = vector.load %arg3[%c5, %c0_16] : memref<256x128xf32, #tpu.memory_space<vmem>>, vector<1x128xf32>
    tpu.vector_store %arg3[%c5, %c0_16], %47 {strides = array<i32>} : memref<256x128xf32, #tpu.memory_space<vmem>>, vector<1x128xf32>,
    %c6_i32 = arith.constant 6 : i32
    %49 = arith.addi %0, %c6_i32 : i32
    %50 = arith.index_cast %49 : i32 to index
    %51 = memref.load %arg1[%50] : memref<512xi32, #tpu.memory_space<smem>>
    %52 = arith.index_cast %51 : i32 to index
    %c0_17 = arith.constant 0 : index
    %53 = vector.load %arg2[%52, %c0_17] : memref<1000x128xf32, #tpu.memory_space<vmem>>, vector<1x128xf32>
    %cst_18 = arith.constant 11.3137083 : f32
    %54 = vector.broadcast %cst_18 : f32 to vector<1x128xf32>
    %55 = arith.mulf %53, %54 : vector<1x128xf32>
    %c6 = arith.constant 6 : index
    %c0_19 = arith.constant 0 : index
    %56 = vector.load %arg3[%c6, %c0_19] : memref<256x128xf32, #tpu.memory_space<vmem>>, vector<1x128xf32>
    tpu.vector_store %arg3[%c6, %c0_19], %55 {strides = array<i32>} : memref<256x128xf32, #tpu.memory_space<vmem>>, vector<1x128xf32>,
    %c7_i32 = arith.constant 7 : i32
    %57 = arith.addi %0, %c7_i32 : i32
    %58 = arith.index_cast %57 : i32 to index
    %59 = memref.load %arg1[%58] : memref<512xi32, #tpu.memory_space<smem>>
    %60 = arith.index_cast %59 : i32 to index
    %c0_20 = arith.constant 0 : index
    %61 = vector.load %arg2[%60, %c0_20] : memref<1000x128xf32, #tpu.memory_space<vmem>>, vector<1x128xf32>
    %cst_21 = arith.constant 11.3137083 : f32
    %62 = vector.broadcast %cst_21 : f32 to vector<1x128xf32>
    %63 = arith.mulf %61, %62 : vector<1x128xf32>
    %c7 = arith.constant 7 : index
    %c0_22 = arith.constant 0 : index
    %64 = vector.load %arg3[%c7, %c0_22] : memref<256x128xf32, #tpu.memory_space<vmem>>, vector<1x128xf32>
    tpu.vector_store %arg3[%c7, %c0_22], %63 {strides = array<i32>} : memref<256x128xf32, #tpu.memory_space<vmem>>, vector<1x128xf32>,
    %c8_i32 = arith.constant 8 : i32
    %65 = arith.addi %0, %c8_i32 : i32
    %66 = arith.index_cast %65 : i32 to index
    %67 = memref.load %arg1[%66] : memref<512xi32, #tpu.memory_space<smem>>
    %68 = arith.index_cast %67 : i32 to index
    %c0_23 = arith.constant 0 : index
    %69 = vector.load %arg2[%68, %c0_23] : memref<1000x128xf32, #tpu.memory_space<vmem>>, vector<1x128xf32>
    %cst_24 = arith.constant 11.3137083 : f32
    %70 = vector.broadcast %cst_24 : f32 to vector<1x128xf32>
    %71 = arith.mulf %69, %70 : vector<1x128xf32>
    %c8 = arith.constant 8 : index
    %c0_25 = arith.constant 0 : index
    %72 = vector.load %arg3[%c8, %c0_25] : memref<256x128xf32, #tpu.memory_space<vmem>>, vector<1x128xf32>
    tpu.vector_store %arg3[%c8, %c0_25], %71 {strides = array<i32>} : memref<256x128xf32, #tpu.memory_space<vmem>>, vector<1x128xf32>,
    %c9_i32 = arith.constant 9 : i32
    %73 = arith.addi %0, %c9_i32 : i32
    %74 = arith.index_cast %73 : i32 to index
    %75 = memref.load %arg1[%74] : memref<512xi32, #tpu.memory_space<smem>>
    %76 = arith.index_cast %75 : i32 to index
    %c0_26 = arith.constant 0 : index
    %77 = vector.load %arg2[%76, %c0_26] : memref<1000x128xf32, #tpu.memory_space<vmem>>, vector<1x128xf32>
    %cst_27 = arith.constant 11.3137083 : f32
    %78 = vector.broadcast %cst_27 : f32 to vector<1x128xf32>
    %79 = arith.mulf %77, %78 : vector<1x128xf32>
    %c9 = arith.constant 9 : index
    %c0_28 = arith.constant 0 : index
    %80 = vector.load %arg3[%c9, %c0_28] : memref<256x128xf32, #tpu.memory_space<vmem>>, vector<1x128xf32>
    tpu.vector_store %arg3[%c9, %c0_28], %79 {strides = array<i32>} : memref<256x128xf32, #tpu.memory_space<vmem>>, vector<1x128xf32>,
    %c10_i32 = arith.constant 10 : i32
    %81 = arith.addi %0, %c10_i32 : i32
    %82 = arith.index_cast %81 : i32 to index
    %83 = memref.load %arg1[%82] : memref<512xi32, #tpu.memory_space<smem>>
    %84 = arith.index_cast %83 : i32 to index
    %c0_29 = arith.constant 0 : index
    %85 = vector.load %arg2[%84, %c0_29] : memref<1000x128xf32, #tpu.memory_space<vmem>>, vector<1x128xf32>
    %cst_30 = arith.constant 11.3137083 : f32
    %86 = vector.broadcast %cst_30 : f32 to vector<1x128xf32>
    %87 = arith.mulf %85, %86 : vector<1x128xf32>
    %c10 = arith.constant 10 : index
    %c0_31 = arith.constant 0 : index
    %88 = vector.load %arg3[%c10, %c0_31] : memref<256x128xf32, #tpu.memory_space<vmem>>, vector<1x128xf32>
    tpu.vector_store %arg3[%c10, %c0_31], %87 {strides = array<i32>} : memref<256x128xf32, #tpu.memory_space<vmem>>, vector<1x128xf32>,
    %c11_i32 = arith.constant 11 : i32
    %89 = arith.addi %0, %c11_i32 : i32
    %90 = arith.index_cast %89 : i32 to index
    %91 = memref.load %arg1[%90] : memref<512xi32, #tpu.memory_space<smem>>
    %92 = arith.index_cast %91 : i32 to index
    %c0_32 = arith.constant 0 : index
    %93 = vector.load %arg2[%92, %c0_32] : memref<1000x128xf32, #tpu.memory_space<vmem>>, vector<1x128xf32>
    %cst_33 = arith.constant 11.3137083 : f32
    %94 = vector.broadcast %cst_33 : f32 to vector<1x128xf32>
    %95 = arith.mulf %93, %94 : vector<1x128xf32>
    %c11 = arith.constant 11 : index
    %c0_34 = arith.constant 0 : index
    %96 = vector.load %arg3[%c11, %c0_34] : memref<256x128xf32, #tpu.memory_space<vmem>>, vector<1x128xf32>
    tpu.vector_store %arg3[%c11, %c0_34], %95 {strides = array<i32>} : memref<256x128xf32, #tpu.memory_space<vmem>>, vector<1x128xf32>,
    %c12_i32 = arith.constant 12 : i32
    %97 = arith.addi %0, %c12_i32 : i32
    %98 = arith.index_cast %97 : i32 to index
    %99 = memref.load %arg1[%98] : memref<512xi32, #tpu.memory_space<smem>>
    %100 = arith.index_cast %99 : i32 to index
    %c0_35 = arith.constant 0 : index
    %101 = vector.load %arg2[%100, %c0_35] : memref<1000x128xf32, #tpu.memory_space<vmem>>, vector<1x128xf32>
    %cst_36 = arith.constant 11.3137083 : f32
    %102 = vector.broadcast %cst_36 : f32 to vector<1x128xf32>
    %103 = arith.mulf %101, %102 : vector<1x128xf32>
    %c12 = arith.constant 12 : index
    %c0_37 = arith.constant 0 : index
    %104 = vector.load %arg3[%c12, %c0_37] : memref<256x128xf32, #tpu.memory_space<vmem>>, vector<1x128xf32>
    tpu.vector_store %arg3[%c12, %c0_37], %103 {strides = array<i32>} : memref<256x128xf32, #tpu.memory_space<vmem>>, vector<1x128xf32>,
    %c13_i32 = arith.constant 13 : i32
    %105 = arith.addi %0, %c13_i32 : i32
    %106 = arith.index_cast %105 : i32 to index
    %107 = memref.load %arg1[%106] : memref<512xi32, #tpu.memory_space<smem>>
    %108 = arith.index_cast %107 : i32 to index
    %c0_38 = arith.constant 0 : index
    %109 = vector.load %arg2[%108, %c0_38] : memref<1000x128xf32, #tpu.memory_space<vmem>>, vector<1x128xf32>
    %cst_39 = arith.constant 11.3137083 : f32
    %110 = vector.broadcast %cst_39 : f32 to vector<1x128xf32>
    %111 = arith.mulf %109, %110 : vector<1x128xf32>
    %c13 = arith.constant 13 : index
    %c0_40 = arith.constant 0 : index
    %112 = vector.load %arg3[%c13, %c0_40] : memref<256x128xf32, #tpu.memory_space<vmem>>, vector<1x128xf32>
    tpu.vector_store %arg3[%c13, %c0_40], %111 {strides = array<i32>} : memref<256x128xf32, #tpu.memory_space<vmem>>, vector<1x128xf32>,
    %c14_i32 = arith.constant 14 : i32
    %113 = arith.addi %0, %c14_i32 : i32
    %114 = arith.index_cast %113 : i32 to index
    %115 = memref.load %arg1[%114] : memref<512xi32, #tpu.memory_space<smem>>
    %116 = arith.index_cast %115 : i32 to index
    %c0_41 = arith.constant 0 : index
    %117 = vector.load %arg2[%116, %c0_41] : memref<1000x128xf32, #tpu.memory_space<vmem>>, vector<1x128xf32>
    %cst_42 = arith.constant 11.3137083 : f32
    %118 = vector.broadcast %cst_42 : f32 to vector<1x128xf32>
    %119 = arith.mulf %117, %118 : vector<1x128xf32>
    %c14 = arith.constant 14 : index
    %c0_43 = arith.constant 0 : index
    %120 = vector.load %arg3[%c14, %c0_43] : memref<256x128xf32, #tpu.memory_space<vmem>>, vector<1x128xf32>
    tpu.vector_store %arg3[%c14, %c0_43], %119 {strides = array<i32>} : memref<256x128xf32, #tpu.memory_space<vmem>>, vector<1x128xf32>,
    %c15_i32 = arith.constant 15 : i32
    %121 = arith.addi %0, %c15_i32 : i32
    %122 = arith.index_cast %121 : i32 to index
    %123 = memref.load %arg1[%122] : memref<512xi32, #tpu.memory_space<smem>>
    %124 = arith.index_cast %123 : i32 to index
    %c0_44 = arith.constant 0 : index
    %125 = vector.load %arg2[%124, %c0_44] : memref<1000x128xf32, #tpu.memory_space<vmem>>, vector<1x128xf32>
    %cst_45 = arith.constant 11.3137083 : f32
    %126 = vector.broadcast %cst_45 : f32 to vector<1x128xf32>
    %127 = arith.mulf %125, %126 : vector<1x128xf32>
    %c15 = arith.constant 15 : index
    %c0_46 = arith.constant 0 : index
    %128 = vector.load %arg3[%c15, %c0_46] : memref<256x128xf32, #tpu.memory_space<vmem>>, vector<1x128xf32>
    tpu.vector_store %arg3[%c15, %c0_46], %127 {strides = array<i32>} : memref<256x128xf32, #tpu.memory_space<vmem>>, vector<1x128xf32>,
    %c16_i32 = arith.constant 16 : i32
    %129 = arith.addi %0, %c16_i32 : i32
    %130 = arith.index_cast %129 : i32 to index
    %131 = memref.load %arg1[%130] : memref<512xi32, #tpu.memory_space<smem>>
    %132 = arith.index_cast %131 : i32 to index
    %c0_47 = arith.constant 0 : index
    %133 = vector.load %arg2[%132, %c0_47] : memref<1000x128xf32, #tpu.memory_space<vmem>>, vector<1x128xf32>
    %cst_48 = arith.constant 11.3137083 : f32
    %134 = vector.broadcast %cst_48 : f32 to vector<1x128xf32>
    %135 = arith.mulf %133, %134 : vector<1x128xf32>
    %c16 = arith.constant 16 : index
    %c0_49 = arith.constant 0 : index
    %136 = vector.load %arg3[%c16, %c0_49] : memref<256x128xf32, #tpu.memory_space<vmem>>, vector<1x128xf32>
    tpu.vector_store %arg3[%c16, %c0_49], %135 {strides = array<i32>} : memref<256x128xf32, #tpu.memory_space<vmem>>, vector<1x128xf32>,
    %c17_i32 = arith.constant 17 : i32
    %137 = arith.addi %0, %c17_i32 : i32
    %138 = arith.index_cast %137 : i32 to index
    %139 = memref.load %arg1[%138] : memref<512xi32, #tpu.memory_space<smem>>
    %140 = arith.index_cast %139 : i32 to index
    %c0_50 = arith.constant 0 : index
    %141 = vector.load %arg2[%140, %c0_50] : memref<1000x128xf32, #tpu.memory_space<vmem>>, vector<1x128xf32>
    %cst_51 = arith.constant 11.3137083 : f32
    %142 = vector.broadcast %cst_51 : f32 to vector<1x128xf32>
    %143 = arith.mulf %141, %142 : vector<1x128xf32>
    %c17 = arith.constant 17 : index
    %c0_52 = arith.constant 0 : index
    %144 = vector.load %arg3[%c17, %c0_52] : memref<256x128xf32, #tpu.memory_space<vmem>>, vector<1x128xf32>
    tpu.vector_store %arg3[%c17, %c0_52], %143 {strides = array<i32>} : memref<256x128xf32, #tpu.memory_space<vmem>>, vector<1x128xf32>,
    %c18_i32 = arith.constant 18 : i32
    %145 = arith.addi %0, %c18_i32 : i32
    %146 = arith.index_cast %145 : i32 to index
    %147 = memref.load %arg1[%146] : memref<512xi32, #tpu.memory_space<smem>>
    %148 = arith.index_cast %147 : i32 to index
    %c0_53 = arith.constant 0 : index
    %149 = vector.load %arg2[%148, %c0_53] : memref<1000x128xf32, #tpu.memory_space<vmem>>, vector<1x128xf32>
    %cst_54 = arith.constant 11.3137083 : f32
    %150 = vector.broadcast %cst_54 : f32 to vector<1x128xf32>
    %151 = arith.mulf %149, %150 : vector<1x128xf32>
    %c18 = arith.constant 18 : index
    %c0_55 = arith.constant 0 : index
    %152 = vector.load %arg3[%c18, %c0_55] : memref<256x128xf32, #tpu.memory_space<vmem>>, vector<1x128xf32>
    tpu.vector_store %arg3[%c18, %c0_55], %151 {strides = array<i32>} : memref<256x128xf32, #tpu.memory_space<vmem>>, vector<1x128xf32>,
    %c19_i32 = arith.constant 19 : i32
    %153 = arith.addi %0, %c19_i32 : i32
    %154 = arith.index_cast %153 : i32 to index
    %155 = memref.load %arg1[%154] : memref<512xi32, #tpu.memory_space<smem>>
    %156 = arith.index_cast %155 : i32 to index
    %c0_56 = arith.constant 0 : index
    %157 = vector.load %arg2[%156, %c0_56] : memref<1000x128xf32, #tpu.memory_space<vmem>>, vector<1x128xf32>
    %cst_57 = arith.constant 11.3137083 : f32
    %158 = vector.broadcast %cst_57 : f32 to vector<1x128xf32>
    %159 = arith.mulf %157, %158 : vector<1x128xf32>
    %c19 = arith.constant 19 : index
    %c0_58 = arith.constant 0 : index
    %160 = vector.load %arg3[%c19, %c0_58] : memref<256x128xf32, #tpu.memory_space<vmem>>, vector<1x128xf32>
    tpu.vector_store %arg3[%c19, %c0_58], %159 {strides = array<i32>} : memref<256x128xf32, #tpu.memory_space<vmem>>, vector<1x128xf32>,
    %c20_i32 = arith.constant 20 : i32
    %161 = arith.addi %0, %c20_i32 : i32
    %162 = arith.index_cast %161 : i32 to index
    %163 = memref.load %arg1[%162] : memref<512xi32, #tpu.memory_space<smem>>
    %164 = arith.index_cast %163 : i32 to index
    %c0_59 = arith.constant 0 : index
    %165 = vector.load %arg2[%164, %c0_59] : memref<1000x128xf32, #tpu.memory_space<vmem>>, vector<1x128xf32>
    %cst_60 = arith.constant 11.3137083 : f32
    %166 = vector.broadcast %cst_60 : f32 to vector<1x128xf32>
    %167 = arith.mulf %165, %166 : vector<1x128xf32>
    %c20 = arith.constant 20 : index
    %c0_61 = arith.constant 0 : index
    %168 = vector.load %arg3[%c20, %c0_61] : memref<256x128xf32, #tpu.memory_space<vmem>>, vector<1x128xf32>
    tpu.vector_store %arg3[%c20, %c0_61], %167 {strides = array<i32>} : memref<256x128xf32, #tpu.memory_space<vmem>>, vector<1x128xf32>,
    %c21_i32 = arith.constant 21 : i32
    %169 = arith.addi %0, %c21_i32 : i32
    %170 = arith.index_cast %169 : i32 to index
    %171 = memref.load %arg1[%170] : memref<512xi32, #tpu.memory_space<smem>>
    %172 = arith.index_cast %171 : i32 to index
    %c0_62 = arith.constant 0 : index
    %173 = vector.load %arg2[%172, %c0_62] : memref<1000x128xf32, #tpu.memory_space<vmem>>, vector<1x128xf32>
    %cst_63 = arith.constant 11.3137083 : f32
    %174 = vector.broadcast %cst_63 : f32 to vector<1x128xf32>
    %175 = arith.mulf %173, %174 : vector<1x128xf32>
    %c21 = arith.constant 21 : index
    %c0_64 = arith.constant 0 : index
    %176 = vector.load %arg3[%c21, %c0_64] : memref<256x128xf32, #tpu.memory_space<vmem>>, vector<1x128xf32>
    tpu.vector_store %arg3[%c21, %c0_64], %175 {strides = array<i32>} : memref<256x128xf32, #tpu.memory_space<vmem>>, vector<1x128xf32>,
    %c22_i32 = arith.constant 22 : i32
    %177 = arith.addi %0, %c22_i32 : i32
    %178 = arith.index_cast %177 : i32 to index
    %179 = memref.load %arg1[%178] : memref<512xi32, #tpu.memory_space<smem>>
    %180 = arith.index_cast %179 : i32 to index
    %c0_65 = arith.constant 0 : index
    %181 = vector.load %arg2[%180, %c0_65] : memref<1000x128xf32, #tpu.memory_space<vmem>>, vector<1x128xf32>
    %cst_66 = arith.constant 11.3137083 : f32
    %182 = vector.broadcast %cst_66 : f32 to vector<1x128xf32>
    %183 = arith.mulf %181, %182 : vector<1x128xf32>
    %c22 = arith.constant 22 : index
    %c0_67 = arith.constant 0 : index
    %184 = vector.load %arg3[%c22, %c0_67] : memref<256x128xf32, #tpu.memory_space<vmem>>, vector<1x128xf32>
    tpu.vector_store %arg3[%c22, %c0_67], %183 {strides = array<i32>} : memref<256x128xf32, #tpu.memory_space<vmem>>, vector<1x128xf32>,
    %c23_i32 = arith.constant 23 : i32
    %185 = arith.addi %0, %c23_i32 : i32
    %186 = arith.index_cast %185 : i32 to index
    %187 = memref.load %arg1[%186] : memref<512xi32, #tpu.memory_space<smem>>
    %188 = arith.index_cast %187 : i32 to index
    %c0_68 = arith.constant 0 : index
    %189 = vector.load %arg2[%188, %c0_68] : memref<1000x128xf32, #tpu.memory_space<vmem>>, vector<1x128xf32>
    %cst_69 = arith.constant 11.3137083 : f32
    %190 = vector.broadcast %cst_69 : f32 to vector<1x128xf32>
    %191 = arith.mulf %189, %190 : vector<1x128xf32>
    %c23 = arith.constant 23 : index
    %c0_70 = arith.constant 0 : index
    %192 = vector.load %arg3[%c23, %c0_70] : memref<256x128xf32, #tpu.memory_space<vmem>>, vector<1x128xf32>
    tpu.vector_store %arg3[%c23, %c0_70], %191 {strides = array<i32>} : memref<256x128xf32, #tpu.memory_space<vmem>>, vector<1x128xf32>,
    %c24_i32 = arith.constant 24 : i32
    %193 = arith.addi %0, %c24_i32 : i32
    %194 = arith.index_cast %193 : i32 to index
    %195 = memref.load %arg1[%194] : memref<512xi32, #tpu.memory_space<smem>>
    %196 = arith.index_cast %195 : i32 to index
    %c0_71 = arith.constant 0 : index
    %197 = vector.load %arg2[%196, %c0_71] : memref<1000x128xf32, #tpu.memory_space<vmem>>, vector<1x128xf32>
    %cst_72 = arith.constant 11.3137083 : f32
    %198 = vector.broadcast %cst_72 : f32 to vector<1x128xf32>
    %199 = arith.mulf %197, %198 : vector<1x128xf32>
    %c24 = arith.constant 24 : index
    %c0_73 = arith.constant 0 : index
    %200 = vector.load %arg3[%c24, %c0_73] : memref<256x128xf32, #tpu.memory_space<vmem>>, vector<1x128xf32>
    tpu.vector_store %arg3[%c24, %c0_73], %199 {strides = array<i32>} : memref<256x128xf32, #tpu.memory_space<vmem>>, vector<1x128xf32>,
    %c25_i32 = arith.constant 25 : i32
    %201 = arith.addi %0, %c25_i32 : i32
    %202 = arith.index_cast %201 : i32 to index
    %203 = memref.load %arg1[%202] : memref<512xi32, #tpu.memory_space<smem>>
    %204 = arith.index_cast %203 : i32 to index
    %c0_74 = arith.constant 0 : index
    %205 = vector.load %arg2[%204, %c0_74] : memref<1000x128xf32, #tpu.memory_space<vmem>>, vector<1x128xf32>
    %cst_75 = arith.constant 11.3137083 : f32
    %206 = vector.broadcast %cst_75 : f32 to vector<1x128xf32>
    %207 = arith.mulf %205, %206 : vector<1x128xf32>
    %c25 = arith.constant 25 : index
    %c0_76 = arith.constant 0 : index
    %208 = vector.load %arg3[%c25, %c0_76] : memref<256x128xf32, #tpu.memory_space<vmem>>, vector<1x128xf32>
    tpu.vector_store %arg3[%c25, %c0_76], %207 {strides = array<i32>} : memref<256x128xf32, #tpu.memory_space<vmem>>, vector<1x128xf32>,
    %c26_i32 = arith.constant 26 : i32
    %209 = arith.addi %0, %c26_i32 : i32
    %210 = arith.index_cast %209 : i32 to index
    %211 = memref.load %arg1[%210] : memref<512xi32, #tpu.memory_space<smem>>
    %212 = arith.index_cast %211 : i32 to index
    %c0_77 = arith.constant 0 : index
    %213 = vector.load %arg2[%212, %c0_77] : memref<1000x128xf32, #tpu.memory_space<vmem>>, vector<1x128xf32>
    %cst_78 = arith.constant 11.3137083 : f32
    %214 = vector.broadcast %cst_78 : f32 to vector<1x128xf32>
    %215 = arith.mulf %213, %214 : vector<1x128xf32>
    %c26 = arith.constant 26 : index
    %c0_79 = arith.constant 0 : index
    %216 = vector.load %arg3[%c26, %c0_79] : memref<256x128xf32, #tpu.memory_space<vmem>>, vector<1x128xf32>
    tpu.vector_store %arg3[%c26, %c0_79], %215 {strides = array<i32>} : memref<256x128xf32, #tpu.memory_space<vmem>>, vector<1x128xf32>,
    %c27_i32 = arith.constant 27 : i32
    %217 = arith.addi %0, %c27_i32 : i32
    %218 = arith.index_cast %217 : i32 to index
    %219 = memref.load %arg1[%218] : memref<512xi32, #tpu.memory_space<smem>>
    %220 = arith.index_cast %219 : i32 to index
    %c0_80 = arith.constant 0 : index
    %221 = vector.load %arg2[%220, %c0_80] : memref<1000x128xf32, #tpu.memory_space<vmem>>, vector<1x128xf32>
    %cst_81 = arith.constant 11.3137083 : f32
    %222 = vector.broadcast %cst_81 : f32 to vector<1x128xf32>
    %223 = arith.mulf %221, %222 : vector<1x128xf32>
    %c27 = arith.constant 27 : index
    %c0_82 = arith.constant 0 : index
    %224 = vector.load %arg3[%c27, %c0_82] : memref<256x128xf32, #tpu.memory_space<vmem>>, vector<1x128xf32>
    tpu.vector_store %arg3[%c27, %c0_82], %223 {strides = array<i32>} : memref<256x128xf32, #tpu.memory_space<vmem>>, vector<1x128xf32>,
    %c28_i32 = arith.constant 28 : i32
    %225 = arith.addi %0, %c28_i32 : i32
    %226 = arith.index_cast %225 : i32 to index
    %227 = memref.load %arg1[%226] : memref<512xi32, #tpu.memory_space<smem>>
    %228 = arith.index_cast %227 : i32 to index
    %c0_83 = arith.constant 0 : index
    %229 = vector.load %arg2[%228, %c0_83] : memref<1000x128xf32, #tpu.memory_space<vmem>>, vector<1x128xf32>
    %cst_84 = arith.constant 11.3137083 : f32
    %230 = vector.broadcast %cst_84 : f32 to vector<1x128xf32>
    %231 = arith.mulf %229, %230 : vector<1x128xf32>
    %c28 = arith.constant 28 : index
    %c0_85 = arith.constant 0 : index
    %232 = vector.load %arg3[%c28, %c0_85] : memref<256x128xf32, #tpu.memory_space<vmem>>, vector<1x128xf32>
    tpu.vector_store %arg3[%c28, %c0_85], %231 {strides = array<i32>} : memref<256x128xf32, #tpu.memory_space<vmem>>, vector<1x128xf32>,
    %c29_i32 = arith.constant 29 : i32
    %233 = arith.addi %0, %c29_i32 : i32
    %234 = arith.index_cast %233 : i32 to index
    %235 = memref.load %arg1[%234] : memref<512xi32, #tpu.memory_space<smem>>
    %236 = arith.index_cast %235 : i32 to index
    %c0_86 = arith.constant 0 : index
    %237 = vector.load %arg2[%236, %c0_86] : memref<1000x128xf32, #tpu.memory_space<vmem>>, vector<1x128xf32>
    %cst_87 = arith.constant 11.3137083 : f32
    %238 = vector.broadcast %cst_87 : f32 to vector<1x128xf32>
    %239 = arith.mulf %237, %238 : vector<1x128xf32>
    %c29 = arith.constant 29 : index
    %c0_88 = arith.constant 0 : index
    %240 = vector.load %arg3[%c29, %c0_88] : memref<256x128xf32, #tpu.memory_space<vmem>>, vector<1x128xf32>
    tpu.vector_store %arg3[%c29, %c0_88], %239 {strides = array<i32>} : memref<256x128xf32, #tpu.memory_space<vmem>>, vector<1x128xf32>,
    %c30_i32 = arith.constant 30 : i32
    %241 = arith.addi %0, %c30_i32 : i32
    %242 = arith.index_cast %241 : i32 to index
    %243 = memref.load %arg1[%242] : memref<512xi32, #tpu.memory_space<smem>>
    %244 = arith.index_cast %243 : i32 to index
    %c0_89 = arith.constant 0 : index
    %245 = vector.load %arg2[%244, %c0_89] : memref<1000x128xf32, #tpu.memory_space<vmem>>, vector<1x128xf32>
    %cst_90 = arith.constant 11.3137083 : f32
    %246 = vector.broadcast %cst_90 : f32 to vector<1x128xf32>
    %247 = arith.mulf %245, %246 : vector<1x128xf32>
    %c30 = arith.constant 30 : index
    %c0_91 = arith.constant 0 : index
    %248 = vector.load %arg3[%c30, %c0_91] : memref<256x128xf32, #tpu.memory_space<vmem>>, vector<1x128xf32>
    tpu.vector_store %arg3[%c30, %c0_91], %247 {strides = array<i32>} : memref<256x128xf32, #tpu.memory_space<vmem>>, vector<1x128xf32>,
    %c31_i32 = arith.constant 31 : i32
    %249 = arith.addi %0, %c31_i32 : i32
    %250 = arith.index_cast %249 : i32 to index
    %251 = memref.load %arg1[%250] : memref<512xi32, #tpu.memory_space<smem>>
    %252 = arith.index_cast %251 : i32 to index
    %c0_92 = arith.constant 0 : index
    %253 = vector.load %arg2[%252, %c0_92] : memref<1000x128xf32, #tpu.memory_space<vmem>>, vector<1x128xf32>
    %cst_93 = arith.constant 11.3137083 : f32
    %254 = vector.broadcast %cst_93 : f32 to vector<1x128xf32>
    %255 = arith.mulf %253, %254 : vector<1x128xf32>
    %c31 = arith.constant 31 : index
    %c0_94 = arith.constant 0 : index
    %256 = vector.load %arg3[%c31, %c0_94] : memref<256x128xf32, #tpu.memory_space<vmem>>, vector<1x128xf32>
    tpu.vector_store %arg3[%c31, %c0_94], %255 {strides = array<i32>} : memref<256x128xf32, #tpu.memory_space<vmem>>, vector<1x128xf32>,
    %c32_i32 = arith.constant 32 : i32
    %257 = arith.addi %0, %c32_i32 : i32
    %258 = arith.index_cast %257 : i32 to index
    %259 = memref.load %arg1[%258] : memref<512xi32, #tpu.memory_space<smem>>
    %260 = arith.index_cast %259 : i32 to index
    %c0_95 = arith.constant 0 : index
    %261 = vector.load %arg2[%260, %c0_95] : memref<1000x128xf32, #tpu.memory_space<vmem>>, vector<1x128xf32>
    %cst_96 = arith.constant 11.3137083 : f32
    %262 = vector.broadcast %cst_96 : f32 to vector<1x128xf32>
    %263 = arith.mulf %261, %262 : vector<1x128xf32>
    %c32 = arith.constant 32 : index
    %c0_97 = arith.constant 0 : index
    %264 = vector.load %arg3[%c32, %c0_97] : memref<256x128xf32, #tpu.memory_space<vmem>>, vector<1x128xf32>
    tpu.vector_store %arg3[%c32, %c0_97], %263 {strides = array<i32>} : memref<256x128xf32, #tpu.memory_space<vmem>>, vector<1x128xf32>,
    %c33_i32 = arith.constant 33 : i32
    %265 = arith.addi %0, %c33_i32 : i32
    %266 = arith.index_cast %265 : i32 to index
    %267 = memref.load %arg1[%266] : memref<512xi32, #tpu.memory_space<smem>>
    %268 = arith.index_cast %267 : i32 to index
    %c0_98 = arith.constant 0 : index
    %269 = vector.load %arg2[%268, %c0_98] : memref<1000x128xf32, #tpu.memory_space<vmem>>, vector<1x128xf32>
    %cst_99 = arith.constant 11.3137083 : f32
    %270 = vector.broadcast %cst_99 : f32 to vector<1x128xf32>
    %271 = arith.mulf %269, %270 : vector<1x128xf32>
    %c33 = arith.constant 33 : index
    %c0_100 = arith.constant 0 : index
    %272 = vector.load %arg3[%c33, %c0_100] : memref<256x128xf32, #tpu.memory_space<vmem>>, vector<1x128xf32>
    tpu.vector_store %arg3[%c33, %c0_100], %271 {strides = array<i32>} : memref<256x128xf32, #tpu.memory_space<vmem>>, vector<1x128xf32>,
    %c34_i32 = arith.constant 34 : i32
    %273 = arith.addi %0, %c34_i32 : i32
    %274 = arith.index_cast %273 : i32 to index
    %275 = memref.load %arg1[%274] : memref<512xi32, #tpu.memory_space<smem>>
    %276 = arith.index_cast %275 : i32 to index
    %c0_101 = arith.constant 0 : index
    %277 = vector.load %arg2[%276, %c0_101] : memref<1000x128xf32, #tpu.memory_space<vmem>>, vector<1x128xf32>
    %cst_102 = arith.constant 11.3137083 : f32
    %278 = vector.broadcast %cst_102 : f32 to vector<1x128xf32>
    %279 = arith.mulf %277, %278 : vector<1x128xf32>
    %c34 = arith.constant 34 : index
    %c0_103 = arith.constant 0 : index
    %280 = vector.load %arg3[%c34, %c0_103] : memref<256x128xf32, #tpu.memory_space<vmem>>, vector<1x128xf32>
    tpu.vector_store %arg3[%c34, %c0_103], %279 {strides = array<i32>} : memref<256x128xf32, #tpu.memory_space<vmem>>, vector<1x128xf32>,
    %c35_i32 = arith.constant 35 : i32
    %281 = arith.addi %0, %c35_i32 : i32
    %282 = arith.index_cast %281 : i32 to index
    %283 = memref.load %arg1[%282] : memref<512xi32, #tpu.memory_space<smem>>
    %284 = arith.index_cast %283 : i32 to index
    %c0_104 = arith.constant 0 : index
    %285 = vector.load %arg2[%284, %c0_104] : memref<1000x128xf32, #tpu.memory_space<vmem>>, vector<1x128xf32>
    %cst_105 = arith.constant 11.3137083 : f32
    %286 = vector.broadcast %cst_105 : f32 to vector<1x128xf32>
    %287 = arith.mulf %285, %286 : vector<1x128xf32>
    %c35 = arith.constant 35 : index
    %c0_106 = arith.constant 0 : index
    %288 = vector.load %arg3[%c35, %c0_106] : memref<256x128xf32, #tpu.memory_space<vmem>>, vector<1x128xf32>
    tpu.vector_store %arg3[%c35, %c0_106], %287 {strides = array<i32>} : memref<256x128xf32, #tpu.memory_space<vmem>>, vector<1x128xf32>,
    %c36_i32 = arith.constant 36 : i32
    %289 = arith.addi %0, %c36_i32 : i32
    %290 = arith.index_cast %289 : i32 to index
    %291 = memref.load %arg1[%290] : memref<512xi32, #tpu.memory_space<smem>>
    %292 = arith.index_cast %291 : i32 to index
    %c0_107 = arith.constant 0 : index
    %293 = vector.load %arg2[%292, %c0_107] : memref<1000x128xf32, #tpu.memory_space<vmem>>, vector<1x128xf32>
    %cst_108 = arith.constant 11.3137083 : f32
    %294 = vector.broadcast %cst_108 : f32 to vector<1x128xf32>
    %295 = arith.mulf %293, %294 : vector<1x128xf32>
    %c36 = arith.constant 36 : index
    %c0_109 = arith.constant 0 : index
    %296 = vector.load %arg3[%c36, %c0_109] : memref<256x128xf32, #tpu.memory_space<vmem>>, vector<1x128xf32>
    tpu.vector_store %arg3[%c36, %c0_109], %295 {strides = array<i32>} : memref<256x128xf32, #tpu.memory_space<vmem>>, vector<1x128xf32>,
    %c37_i32 = arith.constant 37 : i32
    %297 = arith.addi %0, %c37_i32 : i32
    %298 = arith.index_cast %297 : i32 to index
    %299 = memref.load %arg1[%298] : memref<512xi32, #tpu.memory_space<smem>>
    %300 = arith.index_cast %299 : i32 to index
    %c0_110 = arith.constant 0 : index
    %301 = vector.load %arg2[%300, %c0_110] : memref<1000x128xf32, #tpu.memory_space<vmem>>, vector<1x128xf32>
    %cst_111 = arith.constant 11.3137083 : f32
    %302 = vector.broadcast %cst_111 : f32 to vector<1x128xf32>
    %303 = arith.mulf %301, %302 : vector<1x128xf32>
    %c37 = arith.constant 37 : index
    %c0_112 = arith.constant 0 : index
    %304 = vector.load %arg3[%c37, %c0_112] : memref<256x128xf32, #tpu.memory_space<vmem>>, vector<1x128xf32>
    tpu.vector_store %arg3[%c37, %c0_112], %303 {strides = array<i32>} : memref<256x128xf32, #tpu.memory_space<vmem>>, vector<1x128xf32>,
    %c38_i32 = arith.constant 38 : i32
    %305 = arith.addi %0, %c38_i32 : i32
    %306 = arith.index_cast %305 : i32 to index
    %307 = memref.load %arg1[%306] : memref<512xi32, #tpu.memory_space<smem>>
    %308 = arith.index_cast %307 : i32 to index
    %c0_113 = arith.constant 0 : index
    %309 = vector.load %arg2[%308, %c0_113] : memref<1000x128xf32, #tpu.memory_space<vmem>>, vector<1x128xf32>
    %cst_114 = arith.constant 11.3137083 : f32
    %310 = vector.broadcast %cst_114 : f32 to vector<1x128xf32>
    %311 = arith.mulf %309, %310 : vector<1x128xf32>
    %c38 = arith.constant 38 : index
    %c0_115 = arith.constant 0 : index
    %312 = vector.load %arg3[%c38, %c0_115] : memref<256x128xf32, #tpu.memory_space<vmem>>, vector<1x128xf32>
    tpu.vector_store %arg3[%c38, %c0_115], %311 {strides = array<i32>} : memref<256x128xf32, #tpu.memory_space<vmem>>, vector<1x128xf32>,
    %c39_i32 = arith.constant 39 : i32
    %313 = arith.addi %0, %c39_i32 : i32
    %314 = arith.index_cast %313 : i32 to index
    %315 = memref.load %arg1[%314] : memref<512xi32, #tpu.memory_space<smem>>
    %316 = arith.index_cast %315 : i32 to index
    %c0_116 = arith.constant 0 : index
    %317 = vector.load %arg2[%316, %c0_116] : memref<1000x128xf32, #tpu.memory_space<vmem>>, vector<1x128xf32>
    %cst_117 = arith.constant 11.3137083 : f32
    %318 = vector.broadcast %cst_117 : f32 to vector<1x128xf32>
    %319 = arith.mulf %317, %318 : vector<1x128xf32>
    %c39 = arith.constant 39 : index
    %c0_118 = arith.constant 0 : index
    %320 = vector.load %arg3[%c39, %c0_118] : memref<256x128xf32, #tpu.memory_space<vmem>>, vector<1x128xf32>
    tpu.vector_store %arg3[%c39, %c0_118], %319 {strides = array<i32>} : memref<256x128xf32, #tpu.memory_space<vmem>>, vector<1x128xf32>,
    %c40_i32 = arith.constant 40 : i32
    %321 = arith.addi %0, %c40_i32 : i32
    %322 = arith.index_cast %321 : i32 to index
    %323 = memref.load %arg1[%322] : memref<512xi32, #tpu.memory_space<smem>>
    %324 = arith.index_cast %323 : i32 to index
    %c0_119 = arith.constant 0 : index
    %325 = vector.load %arg2[%324, %c0_119] : memref<1000x128xf32, #tpu.memory_space<vmem>>, vector<1x128xf32>
    %cst_120 = arith.constant 11.3137083 : f32
    %326 = vector.broadcast %cst_120 : f32 to vector<1x128xf32>
    %327 = arith.mulf %325, %326 : vector<1x128xf32>
    %c40 = arith.constant 40 : index
    %c0_121 = arith.constant 0 : index
    %328 = vector.load %arg3[%c40, %c0_121] : memref<256x128xf32, #tpu.memory_space<vmem>>, vector<1x128xf32>
    tpu.vector_store %arg3[%c40, %c0_121], %327 {strides = array<i32>} : memref<256x128xf32, #tpu.memory_space<vmem>>, vector<1x128xf32>,
    %c41_i32 = arith.constant 41 : i32
    %329 = arith.addi %0, %c41_i32 : i32
    %330 = arith.index_cast %329 : i32 to index
    %331 = memref.load %arg1[%330] : memref<512xi32, #tpu.memory_space<smem>>
    %332 = arith.index_cast %331 : i32 to index
    %c0_122 = arith.constant 0 : index
    %333 = vector.load %arg2[%332, %c0_122] : memref<1000x128xf32, #tpu.memory_space<vmem>>, vector<1x128xf32>
    %cst_123 = arith.constant 11.3137083 : f32
    %334 = vector.broadcast %cst_123 : f32 to vector<1x128xf32>
    %335 = arith.mulf %333, %334 : vector<1x128xf32>
    %c41 = arith.constant 41 : index
    %c0_124 = arith.constant 0 : index
    %336 = vector.load %arg3[%c41, %c0_124] : memref<256x128xf32, #tpu.memory_space<vmem>>, vector<1x128xf32>
    tpu.vector_store %arg3[%c41, %c0_124], %335 {strides = array<i32>} : memref<256x128xf32, #tpu.memory_space<vmem>>, vector<1x128xf32>,
    %c42_i32 = arith.constant 42 : i32
    %337 = arith.addi %0, %c42_i32 : i32
    %338 = arith.index_cast %337 : i32 to index
    %339 = memref.load %arg1[%338] : memref<512xi32, #tpu.memory_space<smem>>
    %340 = arith.index_cast %339 : i32 to index
    %c0_125 = arith.constant 0 : index
    %341 = vector.load %arg2[%340, %c0_125] : memref<1000x128xf32, #tpu.memory_space<vmem>>, vector<1x128xf32>
    %cst_126 = arith.constant 11.3137083 : f32
    %342 = vector.broadcast %cst_126 : f32 to vector<1x128xf32>
    %343 = arith.mulf %341, %342 : vector<1x128xf32>
    %c42 = arith.constant 42 : index
    %c0_127 = arith.constant 0 : index
    %344 = vector.load %arg3[%c42, %c0_127] : memref<256x128xf32, #tpu.memory_space<vmem>>, vector<1x128xf32>
    tpu.vector_store %arg3[%c42, %c0_127], %343 {strides = array<i32>} : memref<256x128xf32, #tpu.memory_space<vmem>>, vector<1x128xf32>,
    %c43_i32 = arith.constant 43 : i32
    %345 = arith.addi %0, %c43_i32 : i32
    %346 = arith.index_cast %345 : i32 to index
    %347 = memref.load %arg1[%346] : memref<512xi32, #tpu.memory_space<smem>>
    %348 = arith.index_cast %347 : i32 to index
    %c0_128 = arith.constant 0 : index
    %349 = vector.load %arg2[%348, %c0_128] : memref<1000x128xf32, #tpu.memory_space<vmem>>, vector<1x128xf32>
    %cst_129 = arith.constant 11.3137083 : f32
    %350 = vector.broadcast %cst_129 : f32 to vector<1x128xf32>
    %351 = arith.mulf %349, %350 : vector<1x128xf32>
    %c43 = arith.constant 43 : index
    %c0_130 = arith.constant 0 : index
    %352 = vector.load %arg3[%c43, %c0_130] : memref<256x128xf32, #tpu.memory_space<vmem>>, vector<1x128xf32>
    tpu.vector_store %arg3[%c43, %c0_130], %351 {strides = array<i32>} : memref<256x128xf32, #tpu.memory_space<vmem>>, vector<1x128xf32>,
    %c44_i32 = arith.constant 44 : i32
    %353 = arith.addi %0, %c44_i32 : i32
    %354 = arith.index_cast %353 : i32 to index
    %355 = memref.load %arg1[%354] : memref<512xi32, #tpu.memory_space<smem>>
    %356 = arith.index_cast %355 : i32 to index
    %c0_131 = arith.constant 0 : index
    %357 = vector.load %arg2[%356, %c0_131] : memref<1000x128xf32, #tpu.memory_space<vmem>>, vector<1x128xf32>
    %cst_132 = arith.constant 11.3137083 : f32
    %358 = vector.broadcast %cst_132 : f32 to vector<1x128xf32>
    %359 = arith.mulf %357, %358 : vector<1x128xf32>
    %c44 = arith.constant 44 : index
    %c0_133 = arith.constant 0 : index
    %360 = vector.load %arg3[%c44, %c0_133] : memref<256x128xf32, #tpu.memory_space<vmem>>, vector<1x128xf32>
    tpu.vector_store %arg3[%c44, %c0_133], %359 {strides = array<i32>} : memref<256x128xf32, #tpu.memory_space<vmem>>, vector<1x128xf32>,
    %c45_i32 = arith.constant 45 : i32
    %361 = arith.addi %0, %c45_i32 : i32
    %362 = arith.index_cast %361 : i32 to index
    %363 = memref.load %arg1[%362] : memref<512xi32, #tpu.memory_space<smem>>
    %364 = arith.index_cast %363 : i32 to index
    %c0_134 = arith.constant 0 : index
    %365 = vector.load %arg2[%364, %c0_134] : memref<1000x128xf32, #tpu.memory_space<vmem>>, vector<1x128xf32>
    %cst_135 = arith.constant 11.3137083 : f32
    %366 = vector.broadcast %cst_135 : f32 to vector<1x128xf32>
    %367 = arith.mulf %365, %366 : vector<1x128xf32>
    %c45 = arith.constant 45 : index
    %c0_136 = arith.constant 0 : index
    %368 = vector.load %arg3[%c45, %c0_136] : memref<256x128xf32, #tpu.memory_space<vmem>>, vector<1x128xf32>
    tpu.vector_store %arg3[%c45, %c0_136], %367 {strides = array<i32>} : memref<256x128xf32, #tpu.memory_space<vmem>>, vector<1x128xf32>,
    %c46_i32 = arith.constant 46 : i32
    %369 = arith.addi %0, %c46_i32 : i32
    %370 = arith.index_cast %369 : i32 to index
    %371 = memref.load %arg1[%370] : memref<512xi32, #tpu.memory_space<smem>>
    %372 = arith.index_cast %371 : i32 to index
    %c0_137 = arith.constant 0 : index
    %373 = vector.load %arg2[%372, %c0_137] : memref<1000x128xf32, #tpu.memory_space<vmem>>, vector<1x128xf32>
    %cst_138 = arith.constant 11.3137083 : f32
    %374 = vector.broadcast %cst_138 : f32 to vector<1x128xf32>
    %375 = arith.mulf %373, %374 : vector<1x128xf32>
    %c46 = arith.constant 46 : index
    %c0_139 = arith.constant 0 : index
    %376 = vector.load %arg3[%c46, %c0_139] : memref<256x128xf32, #tpu.memory_space<vmem>>, vector<1x128xf32>
    tpu.vector_store %arg3[%c46, %c0_139], %375 {strides = array<i32>} : memref<256x128xf32, #tpu.memory_space<vmem>>, vector<1x128xf32>,
    %c47_i32 = arith.constant 47 : i32
    %377 = arith.addi %0, %c47_i32 : i32
    %378 = arith.index_cast %377 : i32 to index
    %379 = memref.load %arg1[%378] : memref<512xi32, #tpu.memory_space<smem>>
    %380 = arith.index_cast %379 : i32 to index
    %c0_140 = arith.constant 0 : index
    %381 = vector.load %arg2[%380, %c0_140] : memref<1000x128xf32, #tpu.memory_space<vmem>>, vector<1x128xf32>
    %cst_141 = arith.constant 11.3137083 : f32
    %382 = vector.broadcast %cst_141 : f32 to vector<1x128xf32>
    %383 = arith.mulf %381, %382 : vector<1x128xf32>
    %c47 = arith.constant 47 : index
    %c0_142 = arith.constant 0 : index
    %384 = vector.load %arg3[%c47, %c0_142] : memref<256x128xf32, #tpu.memory_space<vmem>>, vector<1x128xf32>
    tpu.vector_store %arg3[%c47, %c0_142], %383 {strides = array<i32>} : memref<256x128xf32, #tpu.memory_space<vmem>>, vector<1x128xf32>,
    %c48_i32 = arith.constant 48 : i32
    %385 = arith.addi %0, %c48_i32 : i32
    %386 = arith.index_cast %385 : i32 to index
    %387 = memref.load %arg1[%386] : memref<512xi32, #tpu.memory_space<smem>>
    %388 = arith.index_cast %387 : i32 to index
    %c0_143 = arith.constant 0 : index
    %389 = vector.load %arg2[%388, %c0_143] : memref<1000x128xf32, #tpu.memory_space<vmem>>, vector<1x128xf32>
    %cst_144 = arith.constant 11.3137083 : f32
    %390 = vector.broadcast %cst_144 : f32 to vector<1x128xf32>
    %391 = arith.mulf %389, %390 : vector<1x128xf32>
    %c48 = arith.constant 48 : index
    %c0_145 = arith.constant 0 : index
    %392 = vector.load %arg3[%c48, %c0_145] : memref<256x128xf32, #tpu.memory_space<vmem>>, vector<1x128xf32>
    tpu.vector_store %arg3[%c48, %c0_145], %391 {strides = array<i32>} : memref<256x128xf32, #tpu.memory_space<vmem>>, vector<1x128xf32>,
    %c49_i32 = arith.constant 49 : i32
    %393 = arith.addi %0, %c49_i32 : i32
    %394 = arith.index_cast %393 : i32 to index
    %395 = memref.load %arg1[%394] : memref<512xi32, #tpu.memory_space<smem>>
    %396 = arith.index_cast %395 : i32 to index
    %c0_146 = arith.constant 0 : index
    %397 = vector.load %arg2[%396, %c0_146] : memref<1000x128xf32, #tpu.memory_space<vmem>>, vector<1x128xf32>
    %cst_147 = arith.constant 11.3137083 : f32
    %398 = vector.broadcast %cst_147 : f32 to vector<1x128xf32>
    %399 = arith.mulf %397, %398 : vector<1x128xf32>
    %c49 = arith.constant 49 : index
    %c0_148 = arith.constant 0 : index
    %400 = vector.load %arg3[%c49, %c0_148] : memref<256x128xf32, #tpu.memory_space<vmem>>, vector<1x128xf32>
    tpu.vector_store %arg3[%c49, %c0_148], %399 {strides = array<i32>} : memref<256x128xf32, #tpu.memory_space<vmem>>, vector<1x128xf32>,
    %c50_i32 = arith.constant 50 : i32
    %401 = arith.addi %0, %c50_i32 : i32
    %402 = arith.index_cast %401 : i32 to index
    %403 = memref.load %arg1[%402] : memref<512xi32, #tpu.memory_space<smem>>
    %404 = arith.index_cast %403 : i32 to index
    %c0_149 = arith.constant 0 : index
    %405 = vector.load %arg2[%404, %c0_149] : memref<1000x128xf32, #tpu.memory_space<vmem>>, vector<1x128xf32>
    %cst_150 = arith.constant 11.3137083 : f32
    %406 = vector.broadcast %cst_150 : f32 to vector<1x128xf32>
    %407 = arith.mulf %405, %406 : vector<1x128xf32>
    %c50 = arith.constant 50 : index
    %c0_151 = arith.constant 0 : index
    %408 = vector.load %arg3[%c50, %c0_151] : memref<256x128xf32, #tpu.memory_space<vmem>>, vector<1x128xf32>
    tpu.vector_store %arg3[%c50, %c0_151], %407 {strides = array<i32>} : memref<256x128xf32, #tpu.memory_space<vmem>>, vector<1x128xf32>,
    %c51_i32 = arith.constant 51 : i32
    %409 = arith.addi %0, %c51_i32 : i32
    %410 = arith.index_cast %409 : i32 to index
    %411 = memref.load %arg1[%410] : memref<512xi32, #tpu.memory_space<smem>>
    %412 = arith.index_cast %411 : i32 to index
    %c0_152 = arith.constant 0 : index
    %413 = vector.load %arg2[%412, %c0_152] : memref<1000x128xf32, #tpu.memory_space<vmem>>, vector<1x128xf32>
    %cst_153 = arith.constant 11.3137083 : f32
    %414 = vector.broadcast %cst_153 : f32 to vector<1x128xf32>
    %415 = arith.mulf %413, %414 : vector<1x128xf32>
    %c51 = arith.constant 51 : index
    %c0_154 = arith.constant 0 : index
    %416 = vector.load %arg3[%c51, %c0_154] : memref<256x128xf32, #tpu.memory_space<vmem>>, vector<1x128xf32>
    tpu.vector_store %arg3[%c51, %c0_154], %415 {strides = array<i32>} : memref<256x128xf32, #tpu.memory_space<vmem>>, vector<1x128xf32>,
    %c52_i32 = arith.constant 52 : i32
    %417 = arith.addi %0, %c52_i32 : i32
    %418 = arith.index_cast %417 : i32 to index
    %419 = memref.load %arg1[%418] : memref<512xi32, #tpu.memory_space<smem>>
    %420 = arith.index_cast %419 : i32 to index
    %c0_155 = arith.constant 0 : index
    %421 = vector.load %arg2[%420, %c0_155] : memref<1000x128xf32, #tpu.memory_space<vmem>>, vector<1x128xf32>
    %cst_156 = arith.constant 11.3137083 : f32
    %422 = vector.broadcast %cst_156 : f32 to vector<1x128xf32>
    %423 = arith.mulf %421, %422 : vector<1x128xf32>
    %c52 = arith.constant 52 : index
    %c0_157 = arith.constant 0 : index
    %424 = vector.load %arg3[%c52, %c0_157] : memref<256x128xf32, #tpu.memory_space<vmem>>, vector<1x128xf32>
    tpu.vector_store %arg3[%c52, %c0_157], %423 {strides = array<i32>} : memref<256x128xf32, #tpu.memory_space<vmem>>, vector<1x128xf32>,
    %c53_i32 = arith.constant 53 : i32
    %425 = arith.addi %0, %c53_i32 : i32
    %426 = arith.index_cast %425 : i32 to index
    %427 = memref.load %arg1[%426] : memref<512xi32, #tpu.memory_space<smem>>
    %428 = arith.index_cast %427 : i32 to index
    %c0_158 = arith.constant 0 : index
    %429 = vector.load %arg2[%428, %c0_158] : memref<1000x128xf32, #tpu.memory_space<vmem>>, vector<1x128xf32>
    %cst_159 = arith.constant 11.3137083 : f32
    %430 = vector.broadcast %cst_159 : f32 to vector<1x128xf32>
    %431 = arith.mulf %429, %430 : vector<1x128xf32>
    %c53 = arith.constant 53 : index
    %c0_160 = arith.constant 0 : index
    %432 = vector.load %arg3[%c53, %c0_160] : memref<256x128xf32, #tpu.memory_space<vmem>>, vector<1x128xf32>
    tpu.vector_store %arg3[%c53, %c0_160], %431 {strides = array<i32>} : memref<256x128xf32, #tpu.memory_space<vmem>>, vector<1x128xf32>,
    %c54_i32 = arith.constant 54 : i32
    %433 = arith.addi %0, %c54_i32 : i32
    %434 = arith.index_cast %433 : i32 to index
    %435 = memref.load %arg1[%434] : memref<512xi32, #tpu.memory_space<smem>>
    %436 = arith.index_cast %435 : i32 to index
    %c0_161 = arith.constant 0 : index
    %437 = vector.load %arg2[%436, %c0_161] : memref<1000x128xf32, #tpu.memory_space<vmem>>, vector<1x128xf32>
    %cst_162 = arith.constant 11.3137083 : f32
    %438 = vector.broadcast %cst_162 : f32 to vector<1x128xf32>
    %439 = arith.mulf %437, %438 : vector<1x128xf32>
    %c54 = arith.constant 54 : index
    %c0_163 = arith.constant 0 : index
    %440 = vector.load %arg3[%c54, %c0_163] : memref<256x128xf32, #tpu.memory_space<vmem>>, vector<1x128xf32>
    tpu.vector_store %arg3[%c54, %c0_163], %439 {strides = array<i32>} : memref<256x128xf32, #tpu.memory_space<vmem>>, vector<1x128xf32>,
    %c55_i32 = arith.constant 55 : i32
    %441 = arith.addi %0, %c55_i32 : i32
    %442 = arith.index_cast %441 : i32 to index
    %443 = memref.load %arg1[%442] : memref<512xi32, #tpu.memory_space<smem>>
    %444 = arith.index_cast %443 : i32 to index
    %c0_164 = arith.constant 0 : index
    %445 = vector.load %arg2[%444, %c0_164] : memref<1000x128xf32, #tpu.memory_space<vmem>>, vector<1x128xf32>
    %cst_165 = arith.constant 11.3137083 : f32
    %446 = vector.broadcast %cst_165 : f32 to vector<1x128xf32>
    %447 = arith.mulf %445, %446 : vector<1x128xf32>
    %c55 = arith.constant 55 : index
    %c0_166 = arith.constant 0 : index
    %448 = vector.load %arg3[%c55, %c0_166] : memref<256x128xf32, #tpu.memory_space<vmem>>, vector<1x128xf32>
    tpu.vector_store %arg3[%c55, %c0_166], %447 {strides = array<i32>} : memref<256x128xf32, #tpu.memory_space<vmem>>, vector<1x128xf32>,
    %c56_i32 = arith.constant 56 : i32
    %449 = arith.addi %0, %c56_i32 : i32
    %450 = arith.index_cast %449 : i32 to index
    %451 = memref.load %arg1[%450] : memref<512xi32, #tpu.memory_space<smem>>
    %452 = arith.index_cast %451 : i32 to index
    %c0_167 = arith.constant 0 : index
    %453 = vector.load %arg2[%452, %c0_167] : memref<1000x128xf32, #tpu.memory_space<vmem>>, vector<1x128xf32>
    %cst_168 = arith.constant 11.3137083 : f32
    %454 = vector.broadcast %cst_168 : f32 to vector<1x128xf32>
    %455 = arith.mulf %453, %454 : vector<1x128xf32>
    %c56 = arith.constant 56 : index
    %c0_169 = arith.constant 0 : index
    %456 = vector.load %arg3[%c56, %c0_169] : memref<256x128xf32, #tpu.memory_space<vmem>>, vector<1x128xf32>
    tpu.vector_store %arg3[%c56, %c0_169], %455 {strides = array<i32>} : memref<256x128xf32, #tpu.memory_space<vmem>>, vector<1x128xf32>,
    %c57_i32 = arith.constant 57 : i32
    %457 = arith.addi %0, %c57_i32 : i32
    %458 = arith.index_cast %457 : i32 to index
    %459 = memref.load %arg1[%458] : memref<512xi32, #tpu.memory_space<smem>>
    %460 = arith.index_cast %459 : i32 to index
    %c0_170 = arith.constant 0 : index
    %461 = vector.load %arg2[%460, %c0_170] : memref<1000x128xf32, #tpu.memory_space<vmem>>, vector<1x128xf32>
    %cst_171 = arith.constant 11.3137083 : f32
    %462 = vector.broadcast %cst_171 : f32 to vector<1x128xf32>
    %463 = arith.mulf %461, %462 : vector<1x128xf32>
    %c57 = arith.constant 57 : index
    %c0_172 = arith.constant 0 : index
    %464 = vector.load %arg3[%c57, %c0_172] : memref<256x128xf32, #tpu.memory_space<vmem>>, vector<1x128xf32>
    tpu.vector_store %arg3[%c57, %c0_172], %463 {strides = array<i32>} : memref<256x128xf32, #tpu.memory_space<vmem>>, vector<1x128xf32>,
    %c58_i32 = arith.constant 58 : i32
    %465 = arith.addi %0, %c58_i32 : i32
    %466 = arith.index_cast %465 : i32 to index
    %467 = memref.load %arg1[%466] : memref<512xi32, #tpu.memory_space<smem>>
    %468 = arith.index_cast %467 : i32 to index
    %c0_173 = arith.constant 0 : index
    %469 = vector.load %arg2[%468, %c0_173] : memref<1000x128xf32, #tpu.memory_space<vmem>>, vector<1x128xf32>
    %cst_174 = arith.constant 11.3137083 : f32
    %470 = vector.broadcast %cst_174 : f32 to vector<1x128xf32>
    %471 = arith.mulf %469, %470 : vector<1x128xf32>
    %c58 = arith.constant 58 : index
    %c0_175 = arith.constant 0 : index
    %472 = vector.load %arg3[%c58, %c0_175] : memref<256x128xf32, #tpu.memory_space<vmem>>, vector<1x128xf32>
    tpu.vector_store %arg3[%c58, %c0_175], %471 {strides = array<i32>} : memref<256x128xf32, #tpu.memory_space<vmem>>, vector<1x128xf32>,
    %c59_i32 = arith.constant 59 : i32
    %473 = arith.addi %0, %c59_i32 : i32
    %474 = arith.index_cast %473 : i32 to index
    %475 = memref.load %arg1[%474] : memref<512xi32, #tpu.memory_space<smem>>
    %476 = arith.index_cast %475 : i32 to index
    %c0_176 = arith.constant 0 : index
    %477 = vector.load %arg2[%476, %c0_176] : memref<1000x128xf32, #tpu.memory_space<vmem>>, vector<1x128xf32>
    %cst_177 = arith.constant 11.3137083 : f32
    %478 = vector.broadcast %cst_177 : f32 to vector<1x128xf32>
    %479 = arith.mulf %477, %478 : vector<1x128xf32>
    %c59 = arith.constant 59 : index
    %c0_178 = arith.constant 0 : index
    %480 = vector.load %arg3[%c59, %c0_178] : memref<256x128xf32, #tpu.memory_space<vmem>>, vector<1x128xf32>
    tpu.vector_store %arg3[%c59, %c0_178], %479 {strides = array<i32>} : memref<256x128xf32, #tpu.memory_space<vmem>>, vector<1x128xf32>,
    %c60_i32 = arith.constant 60 : i32
    %481 = arith.addi %0, %c60_i32 : i32
    %482 = arith.index_cast %481 : i32 to index
    %483 = memref.load %arg1[%482] : memref<512xi32, #tpu.memory_space<smem>>
    %484 = arith.index_cast %483 : i32 to index
    %c0_179 = arith.constant 0 : index
    %485 = vector.load %arg2[%484, %c0_179] : memref<1000x128xf32, #tpu.memory_space<vmem>>, vector<1x128xf32>
    %cst_180 = arith.constant 11.3137083 : f32
    %486 = vector.broadcast %cst_180 : f32 to vector<1x128xf32>
    %487 = arith.mulf %485, %486 : vector<1x128xf32>
    %c60 = arith.constant 60 : index
    %c0_181 = arith.constant 0 : index
    %488 = vector.load %arg3[%c60, %c0_181] : memref<256x128xf32, #tpu.memory_space<vmem>>, vector<1x128xf32>
    tpu.vector_store %arg3[%c60, %c0_181], %487 {strides = array<i32>} : memref<256x128xf32, #tpu.memory_space<vmem>>, vector<1x128xf32>,
    %c61_i32 = arith.constant 61 : i32
    %489 = arith.addi %0, %c61_i32 : i32
    %490 = arith.index_cast %489 : i32 to index
    %491 = memref.load %arg1[%490] : memref<512xi32, #tpu.memory_space<smem>>
    %492 = arith.index_cast %491 : i32 to index
    %c0_182 = arith.constant 0 : index
    %493 = vector.load %arg2[%492, %c0_182] : memref<1000x128xf32, #tpu.memory_space<vmem>>, vector<1x128xf32>
    %cst_183 = arith.constant 11.3137083 : f32
    %494 = vector.broadcast %cst_183 : f32 to vector<1x128xf32>
    %495 = arith.mulf %493, %494 : vector<1x128xf32>
    %c61 = arith.constant 61 : index
    %c0_184 = arith.constant 0 : index
    %496 = vector.load %arg3[%c61, %c0_184] : memref<256x128xf32, #tpu.memory_space<vmem>>, vector<1x128xf32>
    tpu.vector_store %arg3[%c61, %c0_184], %495 {strides = array<i32>} : memref<256x128xf32, #tpu.memory_space<vmem>>, vector<1x128xf32>,
    %c62_i32 = arith.constant 62 : i32
    %497 = arith.addi %0, %c62_i32 : i32
    %498 = arith.index_cast %497 : i32 to index
    %499 = memref.load %arg1[%498] : memref<512xi32, #tpu.memory_space<smem>>
    %500 = arith.index_cast %499 : i32 to index
    %c0_185 = arith.constant 0 : index
    %501 = vector.load %arg2[%500, %c0_185] : memref<1000x128xf32, #tpu.memory_space<vmem>>, vector<1x128xf32>
    %cst_186 = arith.constant 11.3137083 : f32
    %502 = vector.broadcast %cst_186 : f32 to vector<1x128xf32>
    %503 = arith.mulf %501, %502 : vector<1x128xf32>
    %c62 = arith.constant 62 : index
    %c0_187 = arith.constant 0 : index
    %504 = vector.load %arg3[%c62, %c0_187] : memref<256x128xf32, #tpu.memory_space<vmem>>, vector<1x128xf32>
    tpu.vector_store %arg3[%c62, %c0_187], %503 {strides = array<i32>} : memref<256x128xf32, #tpu.memory_space<vmem>>, vector<1x128xf32>,
    %c63_i32 = arith.constant 63 : i32
    %505 = arith.addi %0, %c63_i32 : i32
    %506 = arith.index_cast %505 : i32 to index
    %507 = memref.load %arg1[%506] : memref<512xi32, #tpu.memory_space<smem>>
    %508 = arith.index_cast %507 : i32 to index
    %c0_188 = arith.constant 0 : index
    %509 = vector.load %arg2[%508, %c0_188] : memref<1000x128xf32, #tpu.memory_space<vmem>>, vector<1x128xf32>
    %cst_189 = arith.constant 11.3137083 : f32
    %510 = vector.broadcast %cst_189 : f32 to vector<1x128xf32>
    %511 = arith.mulf %509, %510 : vector<1x128xf32>
    %c63 = arith.constant 63 : index
    %c0_190 = arith.constant 0 : index
    %512 = vector.load %arg3[%c63, %c0_190] : memref<256x128xf32, #tpu.memory_space<vmem>>, vector<1x128xf32>
    tpu.vector_store %arg3[%c63, %c0_190], %511 {strides = array<i32>} : memref<256x128xf32, #tpu.memory_space<vmem>>, vector<1x128xf32>,
    %c64_i32 = arith.constant 64 : i32
    %513 = arith.addi %0, %c64_i32 : i32
    %514 = arith.index_cast %513 : i32 to index
    %515 = memref.load %arg1[%514] : memref<512xi32, #tpu.memory_space<smem>>
    %516 = arith.index_cast %515 : i32 to index
    %c0_191 = arith.constant 0 : index
    %517 = vector.load %arg2[%516, %c0_191] : memref<1000x128xf32, #tpu.memory_space<vmem>>, vector<1x128xf32>
    %cst_192 = arith.constant 11.3137083 : f32
    %518 = vector.broadcast %cst_192 : f32 to vector<1x128xf32>
    %519 = arith.mulf %517, %518 : vector<1x128xf32>
    %c64 = arith.constant 64 : index
    %c0_193 = arith.constant 0 : index
    %520 = vector.load %arg3[%c64, %c0_193] : memref<256x128xf32, #tpu.memory_space<vmem>>, vector<1x128xf32>
    tpu.vector_store %arg3[%c64, %c0_193], %519 {strides = array<i32>} : memref<256x128xf32, #tpu.memory_space<vmem>>, vector<1x128xf32>,
    %c65_i32 = arith.constant 65 : i32
    %521 = arith.addi %0, %c65_i32 : i32
    %522 = arith.index_cast %521 : i32 to index
    %523 = memref.load %arg1[%522] : memref<512xi32, #tpu.memory_space<smem>>
    %524 = arith.index_cast %523 : i32 to index
    %c0_194 = arith.constant 0 : index
    %525 = vector.load %arg2[%524, %c0_194] : memref<1000x128xf32, #tpu.memory_space<vmem>>, vector<1x128xf32>
    %cst_195 = arith.constant 11.3137083 : f32
    %526 = vector.broadcast %cst_195 : f32 to vector<1x128xf32>
    %527 = arith.mulf %525, %526 : vector<1x128xf32>
    %c65 = arith.constant 65 : index
    %c0_196 = arith.constant 0 : index
    %528 = vector.load %arg3[%c65, %c0_196] : memref<256x128xf32, #tpu.memory_space<vmem>>, vector<1x128xf32>
    tpu.vector_store %arg3[%c65, %c0_196], %527 {strides = array<i32>} : memref<256x128xf32, #tpu.memory_space<vmem>>, vector<1x128xf32>,
    %c66_i32 = arith.constant 66 : i32
    %529 = arith.addi %0, %c66_i32 : i32
    %530 = arith.index_cast %529 : i32 to index
    %531 = memref.load %arg1[%530] : memref<512xi32, #tpu.memory_space<smem>>
    %532 = arith.index_cast %531 : i32 to index
    %c0_197 = arith.constant 0 : index
    %533 = vector.load %arg2[%532, %c0_197] : memref<1000x128xf32, #tpu.memory_space<vmem>>, vector<1x128xf32>
    %cst_198 = arith.constant 11.3137083 : f32
    %534 = vector.broadcast %cst_198 : f32 to vector<1x128xf32>
    %535 = arith.mulf %533, %534 : vector<1x128xf32>
    %c66 = arith.constant 66 : index
    %c0_199 = arith.constant 0 : index
    %536 = vector.load %arg3[%c66, %c0_199] : memref<256x128xf32, #tpu.memory_space<vmem>>, vector<1x128xf32>
    tpu.vector_store %arg3[%c66, %c0_199], %535 {strides = array<i32>} : memref<256x128xf32, #tpu.memory_space<vmem>>, vector<1x128xf32>,
    %c67_i32 = arith.constant 67 : i32
    %537 = arith.addi %0, %c67_i32 : i32
    %538 = arith.index_cast %537 : i32 to index
    %539 = memref.load %arg1[%538] : memref<512xi32, #tpu.memory_space<smem>>
    %540 = arith.index_cast %539 : i32 to index
    %c0_200 = arith.constant 0 : index
    %541 = vector.load %arg2[%540, %c0_200] : memref<1000x128xf32, #tpu.memory_space<vmem>>, vector<1x128xf32>
    %cst_201 = arith.constant 11.3137083 : f32
    %542 = vector.broadcast %cst_201 : f32 to vector<1x128xf32>
    %543 = arith.mulf %541, %542 : vector<1x128xf32>
    %c67 = arith.constant 67 : index
    %c0_202 = arith.constant 0 : index
    %544 = vector.load %arg3[%c67, %c0_202] : memref<256x128xf32, #tpu.memory_space<vmem>>, vector<1x128xf32>
    tpu.vector_store %arg3[%c67, %c0_202], %543 {strides = array<i32>} : memref<256x128xf32, #tpu.memory_space<vmem>>, vector<1x128xf32>,
    %c68_i32 = arith.constant 68 : i32
    %545 = arith.addi %0, %c68_i32 : i32
    %546 = arith.index_cast %545 : i32 to index
    %547 = memref.load %arg1[%546] : memref<512xi32, #tpu.memory_space<smem>>
    %548 = arith.index_cast %547 : i32 to index
    %c0_203 = arith.constant 0 : index
    %549 = vector.load %arg2[%548, %c0_203] : memref<1000x128xf32, #tpu.memory_space<vmem>>, vector<1x128xf32>
    %cst_204 = arith.constant 11.3137083 : f32
    %550 = vector.broadcast %cst_204 : f32 to vector<1x128xf32>
    %551 = arith.mulf %549, %550 : vector<1x128xf32>
    %c68 = arith.constant 68 : index
    %c0_205 = arith.constant 0 : index
    %552 = vector.load %arg3[%c68, %c0_205] : memref<256x128xf32, #tpu.memory_space<vmem>>, vector<1x128xf32>
    tpu.vector_store %arg3[%c68, %c0_205], %551 {strides = array<i32>} : memref<256x128xf32, #tpu.memory_space<vmem>>, vector<1x128xf32>,
    %c69_i32 = arith.constant 69 : i32
    %553 = arith.addi %0, %c69_i32 : i32
    %554 = arith.index_cast %553 : i32 to index
    %555 = memref.load %arg1[%554] : memref<512xi32, #tpu.memory_space<smem>>
    %556 = arith.index_cast %555 : i32 to index
    %c0_206 = arith.constant 0 : index
    %557 = vector.load %arg2[%556, %c0_206] : memref<1000x128xf32, #tpu.memory_space<vmem>>, vector<1x128xf32>
    %cst_207 = arith.constant 11.3137083 : f32
    %558 = vector.broadcast %cst_207 : f32 to vector<1x128xf32>
    %559 = arith.mulf %557, %558 : vector<1x128xf32>
    %c69 = arith.constant 69 : index
    %c0_208 = arith.constant 0 : index
    %560 = vector.load %arg3[%c69, %c0_208] : memref<256x128xf32, #tpu.memory_space<vmem>>, vector<1x128xf32>
    tpu.vector_store %arg3[%c69, %c0_208], %559 {strides = array<i32>} : memref<256x128xf32, #tpu.memory_space<vmem>>, vector<1x128xf32>,
    %c70_i32 = arith.constant 70 : i32
    %561 = arith.addi %0, %c70_i32 : i32
    %562 = arith.index_cast %561 : i32 to index
    %563 = memref.load %arg1[%562] : memref<512xi32, #tpu.memory_space<smem>>
    %564 = arith.index_cast %563 : i32 to index
    %c0_209 = arith.constant 0 : index
    %565 = vector.load %arg2[%564, %c0_209] : memref<1000x128xf32, #tpu.memory_space<vmem>>, vector<1x128xf32>
    %cst_210 = arith.constant 11.3137083 : f32
    %566 = vector.broadcast %cst_210 : f32 to vector<1x128xf32>
    %567 = arith.mulf %565, %566 : vector<1x128xf32>
    %c70 = arith.constant 70 : index
    %c0_211 = arith.constant 0 : index
    %568 = vector.load %arg3[%c70, %c0_211] : memref<256x128xf32, #tpu.memory_space<vmem>>, vector<1x128xf32>
    tpu.vector_store %arg3[%c70, %c0_211], %567 {strides = array<i32>} : memref<256x128xf32, #tpu.memory_space<vmem>>, vector<1x128xf32>,
    %c71_i32 = arith.constant 71 : i32
    %569 = arith.addi %0, %c71_i32 : i32
    %570 = arith.index_cast %569 : i32 to index
    %571 = memref.load %arg1[%570] : memref<512xi32, #tpu.memory_space<smem>>
    %572 = arith.index_cast %571 : i32 to index
    %c0_212 = arith.constant 0 : index
    %573 = vector.load %arg2[%572, %c0_212] : memref<1000x128xf32, #tpu.memory_space<vmem>>, vector<1x128xf32>
    %cst_213 = arith.constant 11.3137083 : f32
    %574 = vector.broadcast %cst_213 : f32 to vector<1x128xf32>
    %575 = arith.mulf %573, %574 : vector<1x128xf32>
    %c71 = arith.constant 71 : index
    %c0_214 = arith.constant 0 : index
    %576 = vector.load %arg3[%c71, %c0_214] : memref<256x128xf32, #tpu.memory_space<vmem>>, vector<1x128xf32>
    tpu.vector_store %arg3[%c71, %c0_214], %575 {strides = array<i32>} : memref<256x128xf32, #tpu.memory_space<vmem>>, vector<1x128xf32>,
    %c72_i32 = arith.constant 72 : i32
    %577 = arith.addi %0, %c72_i32 : i32
    %578 = arith.index_cast %577 : i32 to index
    %579 = memref.load %arg1[%578] : memref<512xi32, #tpu.memory_space<smem>>
    %580 = arith.index_cast %579 : i32 to index
    %c0_215 = arith.constant 0 : index
    %581 = vector.load %arg2[%580, %c0_215] : memref<1000x128xf32, #tpu.memory_space<vmem>>, vector<1x128xf32>
    %cst_216 = arith.constant 11.3137083 : f32
    %582 = vector.broadcast %cst_216 : f32 to vector<1x128xf32>
    %583 = arith.mulf %581, %582 : vector<1x128xf32>
    %c72 = arith.constant 72 : index
    %c0_217 = arith.constant 0 : index
    %584 = vector.load %arg3[%c72, %c0_217] : memref<256x128xf32, #tpu.memory_space<vmem>>, vector<1x128xf32>
    tpu.vector_store %arg3[%c72, %c0_217], %583 {strides = array<i32>} : memref<256x128xf32, #tpu.memory_space<vmem>>, vector<1x128xf32>,
    %c73_i32 = arith.constant 73 : i32
    %585 = arith.addi %0, %c73_i32 : i32
    %586 = arith.index_cast %585 : i32 to index
    %587 = memref.load %arg1[%586] : memref<512xi32, #tpu.memory_space<smem>>
    %588 = arith.index_cast %587 : i32 to index
    %c0_218 = arith.constant 0 : index
    %589 = vector.load %arg2[%588, %c0_218] : memref<1000x128xf32, #tpu.memory_space<vmem>>, vector<1x128xf32>
    %cst_219 = arith.constant 11.3137083 : f32
    %590 = vector.broadcast %cst_219 : f32 to vector<1x128xf32>
    %591 = arith.mulf %589, %590 : vector<1x128xf32>
    %c73 = arith.constant 73 : index
    %c0_220 = arith.constant 0 : index
    %592 = vector.load %arg3[%c73, %c0_220] : memref<256x128xf32, #tpu.memory_space<vmem>>, vector<1x128xf32>
    tpu.vector_store %arg3[%c73, %c0_220], %591 {strides = array<i32>} : memref<256x128xf32, #tpu.memory_space<vmem>>, vector<1x128xf32>,
    %c74_i32 = arith.constant 74 : i32
    %593 = arith.addi %0, %c74_i32 : i32
    %594 = arith.index_cast %593 : i32 to index
    %595 = memref.load %arg1[%594] : memref<512xi32, #tpu.memory_space<smem>>
    %596 = arith.index_cast %595 : i32 to index
    %c0_221 = arith.constant 0 : index
    %597 = vector.load %arg2[%596, %c0_221] : memref<1000x128xf32, #tpu.memory_space<vmem>>, vector<1x128xf32>
    %cst_222 = arith.constant 11.3137083 : f32
    %598 = vector.broadcast %cst_222 : f32 to vector<1x128xf32>
    %599 = arith.mulf %597, %598 : vector<1x128xf32>
    %c74 = arith.constant 74 : index
    %c0_223 = arith.constant 0 : index
    %600 = vector.load %arg3[%c74, %c0_223] : memref<256x128xf32, #tpu.memory_space<vmem>>, vector<1x128xf32>
    tpu.vector_store %arg3[%c74, %c0_223], %599 {strides = array<i32>} : memref<256x128xf32, #tpu.memory_space<vmem>>, vector<1x128xf32>,
    %c75_i32 = arith.constant 75 : i32
    %601 = arith.addi %0, %c75_i32 : i32
    %602 = arith.index_cast %601 : i32 to index
    %603 = memref.load %arg1[%602] : memref<512xi32, #tpu.memory_space<smem>>
    %604 = arith.index_cast %603 : i32 to index
    %c0_224 = arith.constant 0 : index
    %605 = vector.load %arg2[%604, %c0_224] : memref<1000x128xf32, #tpu.memory_space<vmem>>, vector<1x128xf32>
    %cst_225 = arith.constant 11.3137083 : f32
    %606 = vector.broadcast %cst_225 : f32 to vector<1x128xf32>
    %607 = arith.mulf %605, %606 : vector<1x128xf32>
    %c75 = arith.constant 75 : index
    %c0_226 = arith.constant 0 : index
    %608 = vector.load %arg3[%c75, %c0_226] : memref<256x128xf32, #tpu.memory_space<vmem>>, vector<1x128xf32>
    tpu.vector_store %arg3[%c75, %c0_226], %607 {strides = array<i32>} : memref<256x128xf32, #tpu.memory_space<vmem>>, vector<1x128xf32>,
    %c76_i32 = arith.constant 76 : i32
    %609 = arith.addi %0, %c76_i32 : i32
    %610 = arith.index_cast %609 : i32 to index
    %611 = memref.load %arg1[%610] : memref<512xi32, #tpu.memory_space<smem>>
    %612 = arith.index_cast %611 : i32 to index
    %c0_227 = arith.constant 0 : index
    %613 = vector.load %arg2[%612, %c0_227] : memref<1000x128xf32, #tpu.memory_space<vmem>>, vector<1x128xf32>
    %cst_228 = arith.constant 11.3137083 : f32
    %614 = vector.broadcast %cst_228 : f32 to vector<1x128xf32>
    %615 = arith.mulf %613, %614 : vector<1x128xf32>
    %c76 = arith.constant 76 : index
    %c0_229 = arith.constant 0 : index
    %616 = vector.load %arg3[%c76, %c0_229] : memref<256x128xf32, #tpu.memory_space<vmem>>, vector<1x128xf32>
    tpu.vector_store %arg3[%c76, %c0_229], %615 {strides = array<i32>} : memref<256x128xf32, #tpu.memory_space<vmem>>, vector<1x128xf32>,
    %c77_i32 = arith.constant 77 : i32
    %617 = arith.addi %0, %c77_i32 : i32
    %618 = arith.index_cast %617 : i32 to index
    %619 = memref.load %arg1[%618] : memref<512xi32, #tpu.memory_space<smem>>
    %620 = arith.index_cast %619 : i32 to index
    %c0_230 = arith.constant 0 : index
    %621 = vector.load %arg2[%620, %c0_230] : memref<1000x128xf32, #tpu.memory_space<vmem>>, vector<1x128xf32>
    %cst_231 = arith.constant 11.3137083 : f32
    %622 = vector.broadcast %cst_231 : f32 to vector<1x128xf32>
    %623 = arith.mulf %621, %622 : vector<1x128xf32>
    %c77 = arith.constant 77 : index
    %c0_232 = arith.constant 0 : index
    %624 = vector.load %arg3[%c77, %c0_232] : memref<256x128xf32, #tpu.memory_space<vmem>>, vector<1x128xf32>
    tpu.vector_store %arg3[%c77, %c0_232], %623 {strides = array<i32>} : memref<256x128xf32, #tpu.memory_space<vmem>>, vector<1x128xf32>,
    %c78_i32 = arith.constant 78 : i32
    %625 = arith.addi %0, %c78_i32 : i32
    %626 = arith.index_cast %625 : i32 to index
    %627 = memref.load %arg1[%626] : memref<512xi32, #tpu.memory_space<smem>>
    %628 = arith.index_cast %627 : i32 to index
    %c0_233 = arith.constant 0 : index
    %629 = vector.load %arg2[%628, %c0_233] : memref<1000x128xf32, #tpu.memory_space<vmem>>, vector<1x128xf32>
    %cst_234 = arith.constant 11.3137083 : f32
    %630 = vector.broadcast %cst_234 : f32 to vector<1x128xf32>
    %631 = arith.mulf %629, %630 : vector<1x128xf32>
    %c78 = arith.constant 78 : index
    %c0_235 = arith.constant 0 : index
    %632 = vector.load %arg3[%c78, %c0_235] : memref<256x128xf32, #tpu.memory_space<vmem>>, vector<1x128xf32>
    tpu.vector_store %arg3[%c78, %c0_235], %631 {strides = array<i32>} : memref<256x128xf32, #tpu.memory_space<vmem>>, vector<1x128xf32>,
    %c79_i32 = arith.constant 79 : i32
    %633 = arith.addi %0, %c79_i32 : i32
    %634 = arith.index_cast %633 : i32 to index
    %635 = memref.load %arg1[%634] : memref<512xi32, #tpu.memory_space<smem>>
    %636 = arith.index_cast %635 : i32 to index
    %c0_236 = arith.constant 0 : index
    %637 = vector.load %arg2[%636, %c0_236] : memref<1000x128xf32, #tpu.memory_space<vmem>>, vector<1x128xf32>
    %cst_237 = arith.constant 11.3137083 : f32
    %638 = vector.broadcast %cst_237 : f32 to vector<1x128xf32>
    %639 = arith.mulf %637, %638 : vector<1x128xf32>
    %c79 = arith.constant 79 : index
    %c0_238 = arith.constant 0 : index
    %640 = vector.load %arg3[%c79, %c0_238] : memref<256x128xf32, #tpu.memory_space<vmem>>, vector<1x128xf32>
    tpu.vector_store %arg3[%c79, %c0_238], %639 {strides = array<i32>} : memref<256x128xf32, #tpu.memory_space<vmem>>, vector<1x128xf32>,
    %c80_i32 = arith.constant 80 : i32
    %641 = arith.addi %0, %c80_i32 : i32
    %642 = arith.index_cast %641 : i32 to index
    %643 = memref.load %arg1[%642] : memref<512xi32, #tpu.memory_space<smem>>
    %644 = arith.index_cast %643 : i32 to index
    %c0_239 = arith.constant 0 : index
    %645 = vector.load %arg2[%644, %c0_239] : memref<1000x128xf32, #tpu.memory_space<vmem>>, vector<1x128xf32>
    %cst_240 = arith.constant 11.3137083 : f32
    %646 = vector.broadcast %cst_240 : f32 to vector<1x128xf32>
    %647 = arith.mulf %645, %646 : vector<1x128xf32>
    %c80 = arith.constant 80 : index
    %c0_241 = arith.constant 0 : index
    %648 = vector.load %arg3[%c80, %c0_241] : memref<256x128xf32, #tpu.memory_space<vmem>>, vector<1x128xf32>
    tpu.vector_store %arg3[%c80, %c0_241], %647 {strides = array<i32>} : memref<256x128xf32, #tpu.memory_space<vmem>>, vector<1x128xf32>,
    %c81_i32 = arith.constant 81 : i32
    %649 = arith.addi %0, %c81_i32 : i32
    %650 = arith.index_cast %649 : i32 to index
    %651 = memref.load %arg1[%650] : memref<512xi32, #tpu.memory_space<smem>>
    %652 = arith.index_cast %651 : i32 to index
    %c0_242 = arith.constant 0 : index
    %653 = vector.load %arg2[%652, %c0_242] : memref<1000x128xf32, #tpu.memory_space<vmem>>, vector<1x128xf32>
    %cst_243 = arith.constant 11.3137083 : f32
    %654 = vector.broadcast %cst_243 : f32 to vector<1x128xf32>
    %655 = arith.mulf %653, %654 : vector<1x128xf32>
    %c81 = arith.constant 81 : index
    %c0_244 = arith.constant 0 : index
    %656 = vector.load %arg3[%c81, %c0_244] : memref<256x128xf32, #tpu.memory_space<vmem>>, vector<1x128xf32>
    tpu.vector_store %arg3[%c81, %c0_244], %655 {strides = array<i32>} : memref<256x128xf32, #tpu.memory_space<vmem>>, vector<1x128xf32>,
    %c82_i32 = arith.constant 82 : i32
    %657 = arith.addi %0, %c82_i32 : i32
    %658 = arith.index_cast %657 : i32 to index
    %659 = memref.load %arg1[%658] : memref<512xi32, #tpu.memory_space<smem>>
    %660 = arith.index_cast %659 : i32 to index
    %c0_245 = arith.constant 0 : index
    %661 = vector.load %arg2[%660, %c0_245] : memref<1000x128xf32, #tpu.memory_space<vmem>>, vector<1x128xf32>
    %cst_246 = arith.constant 11.3137083 : f32
    %662 = vector.broadcast %cst_246 : f32 to vector<1x128xf32>
    %663 = arith.mulf %661, %662 : vector<1x128xf32>
    %c82 = arith.constant 82 : index
    %c0_247 = arith.constant 0 : index
    %664 = vector.load %arg3[%c82, %c0_247] : memref<256x128xf32, #tpu.memory_space<vmem>>, vector<1x128xf32>
    tpu.vector_store %arg3[%c82, %c0_247], %663 {strides = array<i32>} : memref<256x128xf32, #tpu.memory_space<vmem>>, vector<1x128xf32>,
    %c83_i32 = arith.constant 83 : i32
    %665 = arith.addi %0, %c83_i32 : i32
    %666 = arith.index_cast %665 : i32 to index
    %667 = memref.load %arg1[%666] : memref<512xi32, #tpu.memory_space<smem>>
    %668 = arith.index_cast %667 : i32 to index
    %c0_248 = arith.constant 0 : index
    %669 = vector.load %arg2[%668, %c0_248] : memref<1000x128xf32, #tpu.memory_space<vmem>>, vector<1x128xf32>
    %cst_249 = arith.constant 11.3137083 : f32
    %670 = vector.broadcast %cst_249 : f32 to vector<1x128xf32>
    %671 = arith.mulf %669, %670 : vector<1x128xf32>
    %c83 = arith.constant 83 : index
    %c0_250 = arith.constant 0 : index
    %672 = vector.load %arg3[%c83, %c0_250] : memref<256x128xf32, #tpu.memory_space<vmem>>, vector<1x128xf32>
    tpu.vector_store %arg3[%c83, %c0_250], %671 {strides = array<i32>} : memref<256x128xf32, #tpu.memory_space<vmem>>, vector<1x128xf32>,
    %c84_i32 = arith.constant 84 : i32
    %673 = arith.addi %0, %c84_i32 : i32
    %674 = arith.index_cast %673 : i32 to index
    %675 = memref.load %arg1[%674] : memref<512xi32, #tpu.memory_space<smem>>
    %676 = arith.index_cast %675 : i32 to index
    %c0_251 = arith.constant 0 : index
    %677 = vector.load %arg2[%676, %c0_251] : memref<1000x128xf32, #tpu.memory_space<vmem>>, vector<1x128xf32>
    %cst_252 = arith.constant 11.3137083 : f32
    %678 = vector.broadcast %cst_252 : f32 to vector<1x128xf32>
    %679 = arith.mulf %677, %678 : vector<1x128xf32>
    %c84 = arith.constant 84 : index
    %c0_253 = arith.constant 0 : index
    %680 = vector.load %arg3[%c84, %c0_253] : memref<256x128xf32, #tpu.memory_space<vmem>>, vector<1x128xf32>
    tpu.vector_store %arg3[%c84, %c0_253], %679 {strides = array<i32>} : memref<256x128xf32, #tpu.memory_space<vmem>>, vector<1x128xf32>,
    %c85_i32 = arith.constant 85 : i32
    %681 = arith.addi %0, %c85_i32 : i32
    %682 = arith.index_cast %681 : i32 to index
    %683 = memref.load %arg1[%682] : memref<512xi32, #tpu.memory_space<smem>>
    %684 = arith.index_cast %683 : i32 to index
    %c0_254 = arith.constant 0 : index
    %685 = vector.load %arg2[%684, %c0_254] : memref<1000x128xf32, #tpu.memory_space<vmem>>, vector<1x128xf32>
    %cst_255 = arith.constant 11.3137083 : f32
    %686 = vector.broadcast %cst_255 : f32 to vector<1x128xf32>
    %687 = arith.mulf %685, %686 : vector<1x128xf32>
    %c85 = arith.constant 85 : index
    %c0_256 = arith.constant 0 : index
    %688 = vector.load %arg3[%c85, %c0_256] : memref<256x128xf32, #tpu.memory_space<vmem>>, vector<1x128xf32>
    tpu.vector_store %arg3[%c85, %c0_256], %687 {strides = array<i32>} : memref<256x128xf32, #tpu.memory_space<vmem>>, vector<1x128xf32>,
    %c86_i32 = arith.constant 86 : i32
    %689 = arith.addi %0, %c86_i32 : i32
    %690 = arith.index_cast %689 : i32 to index
    %691 = memref.load %arg1[%690] : memref<512xi32, #tpu.memory_space<smem>>
    %692 = arith.index_cast %691 : i32 to index
    %c0_257 = arith.constant 0 : index
    %693 = vector.load %arg2[%692, %c0_257] : memref<1000x128xf32, #tpu.memory_space<vmem>>, vector<1x128xf32>
    %cst_258 = arith.constant 11.3137083 : f32
    %694 = vector.broadcast %cst_258 : f32 to vector<1x128xf32>
    %695 = arith.mulf %693, %694 : vector<1x128xf32>
    %c86 = arith.constant 86 : index
    %c0_259 = arith.constant 0 : index
    %696 = vector.load %arg3[%c86, %c0_259] : memref<256x128xf32, #tpu.memory_space<vmem>>, vector<1x128xf32>
    tpu.vector_store %arg3[%c86, %c0_259], %695 {strides = array<i32>} : memref<256x128xf32, #tpu.memory_space<vmem>>, vector<1x128xf32>,
    %c87_i32 = arith.constant 87 : i32
    %697 = arith.addi %0, %c87_i32 : i32
    %698 = arith.index_cast %697 : i32 to index
    %699 = memref.load %arg1[%698] : memref<512xi32, #tpu.memory_space<smem>>
    %700 = arith.index_cast %699 : i32 to index
    %c0_260 = arith.constant 0 : index
    %701 = vector.load %arg2[%700, %c0_260] : memref<1000x128xf32, #tpu.memory_space<vmem>>, vector<1x128xf32>
    %cst_261 = arith.constant 11.3137083 : f32
    %702 = vector.broadcast %cst_261 : f32 to vector<1x128xf32>
    %703 = arith.mulf %701, %702 : vector<1x128xf32>
    %c87 = arith.constant 87 : index
    %c0_262 = arith.constant 0 : index
    %704 = vector.load %arg3[%c87, %c0_262] : memref<256x128xf32, #tpu.memory_space<vmem>>, vector<1x128xf32>
    tpu.vector_store %arg3[%c87, %c0_262], %703 {strides = array<i32>} : memref<256x128xf32, #tpu.memory_space<vmem>>, vector<1x128xf32>,
    %c88_i32 = arith.constant 88 : i32
    %705 = arith.addi %0, %c88_i32 : i32
    %706 = arith.index_cast %705 : i32 to index
    %707 = memref.load %arg1[%706] : memref<512xi32, #tpu.memory_space<smem>>
    %708 = arith.index_cast %707 : i32 to index
    %c0_263 = arith.constant 0 : index
    %709 = vector.load %arg2[%708, %c0_263] : memref<1000x128xf32, #tpu.memory_space<vmem>>, vector<1x128xf32>
    %cst_264 = arith.constant 11.3137083 : f32
    %710 = vector.broadcast %cst_264 : f32 to vector<1x128xf32>
    %711 = arith.mulf %709, %710 : vector<1x128xf32>
    %c88 = arith.constant 88 : index
    %c0_265 = arith.constant 0 : index
    %712 = vector.load %arg3[%c88, %c0_265] : memref<256x128xf32, #tpu.memory_space<vmem>>, vector<1x128xf32>
    tpu.vector_store %arg3[%c88, %c0_265], %711 {strides = array<i32>} : memref<256x128xf32, #tpu.memory_space<vmem>>, vector<1x128xf32>,
    %c89_i32 = arith.constant 89 : i32
    %713 = arith.addi %0, %c89_i32 : i32
    %714 = arith.index_cast %713 : i32 to index
    %715 = memref.load %arg1[%714] : memref<512xi32, #tpu.memory_space<smem>>
    %716 = arith.index_cast %715 : i32 to index
    %c0_266 = arith.constant 0 : index
    %717 = vector.load %arg2[%716, %c0_266] : memref<1000x128xf32, #tpu.memory_space<vmem>>, vector<1x128xf32>
    %cst_267 = arith.constant 11.3137083 : f32
    %718 = vector.broadcast %cst_267 : f32 to vector<1x128xf32>
    %719 = arith.mulf %717, %718 : vector<1x128xf32>
    %c89 = arith.constant 89 : index
    %c0_268 = arith.constant 0 : index
    %720 = vector.load %arg3[%c89, %c0_268] : memref<256x128xf32, #tpu.memory_space<vmem>>, vector<1x128xf32>
    tpu.vector_store %arg3[%c89, %c0_268], %719 {strides = array<i32>} : memref<256x128xf32, #tpu.memory_space<vmem>>, vector<1x128xf32>,
    %c90_i32 = arith.constant 90 : i32
    %721 = arith.addi %0, %c90_i32 : i32
    %722 = arith.index_cast %721 : i32 to index
    %723 = memref.load %arg1[%722] : memref<512xi32, #tpu.memory_space<smem>>
    %724 = arith.index_cast %723 : i32 to index
    %c0_269 = arith.constant 0 : index
    %725 = vector.load %arg2[%724, %c0_269] : memref<1000x128xf32, #tpu.memory_space<vmem>>, vector<1x128xf32>
    %cst_270 = arith.constant 11.3137083 : f32
    %726 = vector.broadcast %cst_270 : f32 to vector<1x128xf32>
    %727 = arith.mulf %725, %726 : vector<1x128xf32>
    %c90 = arith.constant 90 : index
    %c0_271 = arith.constant 0 : index
    %728 = vector.load %arg3[%c90, %c0_271] : memref<256x128xf32, #tpu.memory_space<vmem>>, vector<1x128xf32>
    tpu.vector_store %arg3[%c90, %c0_271], %727 {strides = array<i32>} : memref<256x128xf32, #tpu.memory_space<vmem>>, vector<1x128xf32>,
    %c91_i32 = arith.constant 91 : i32
    %729 = arith.addi %0, %c91_i32 : i32
    %730 = arith.index_cast %729 : i32 to index
    %731 = memref.load %arg1[%730] : memref<512xi32, #tpu.memory_space<smem>>
    %732 = arith.index_cast %731 : i32 to index
    %c0_272 = arith.constant 0 : index
    %733 = vector.load %arg2[%732, %c0_272] : memref<1000x128xf32, #tpu.memory_space<vmem>>, vector<1x128xf32>
    %cst_273 = arith.constant 11.3137083 : f32
    %734 = vector.broadcast %cst_273 : f32 to vector<1x128xf32>
    %735 = arith.mulf %733, %734 : vector<1x128xf32>
    %c91 = arith.constant 91 : index
    %c0_274 = arith.constant 0 : index
    %736 = vector.load %arg3[%c91, %c0_274] : memref<256x128xf32, #tpu.memory_space<vmem>>, vector<1x128xf32>
    tpu.vector_store %arg3[%c91, %c0_274], %735 {strides = array<i32>} : memref<256x128xf32, #tpu.memory_space<vmem>>, vector<1x128xf32>,
    %c92_i32 = arith.constant 92 : i32
    %737 = arith.addi %0, %c92_i32 : i32
    %738 = arith.index_cast %737 : i32 to index
    %739 = memref.load %arg1[%738] : memref<512xi32, #tpu.memory_space<smem>>
    %740 = arith.index_cast %739 : i32 to index
    %c0_275 = arith.constant 0 : index
    %741 = vector.load %arg2[%740, %c0_275] : memref<1000x128xf32, #tpu.memory_space<vmem>>, vector<1x128xf32>
    %cst_276 = arith.constant 11.3137083 : f32
    %742 = vector.broadcast %cst_276 : f32 to vector<1x128xf32>
    %743 = arith.mulf %741, %742 : vector<1x128xf32>
    %c92 = arith.constant 92 : index
    %c0_277 = arith.constant 0 : index
    %744 = vector.load %arg3[%c92, %c0_277] : memref<256x128xf32, #tpu.memory_space<vmem>>, vector<1x128xf32>
    tpu.vector_store %arg3[%c92, %c0_277], %743 {strides = array<i32>} : memref<256x128xf32, #tpu.memory_space<vmem>>, vector<1x128xf32>,
    %c93_i32 = arith.constant 93 : i32
    %745 = arith.addi %0, %c93_i32 : i32
    %746 = arith.index_cast %745 : i32 to index
    %747 = memref.load %arg1[%746] : memref<512xi32, #tpu.memory_space<smem>>
    %748 = arith.index_cast %747 : i32 to index
    %c0_278 = arith.constant 0 : index
    %749 = vector.load %arg2[%748, %c0_278] : memref<1000x128xf32, #tpu.memory_space<vmem>>, vector<1x128xf32>
    %cst_279 = arith.constant 11.3137083 : f32
    %750 = vector.broadcast %cst_279 : f32 to vector<1x128xf32>
    %751 = arith.mulf %749, %750 : vector<1x128xf32>
    %c93 = arith.constant 93 : index
    %c0_280 = arith.constant 0 : index
    %752 = vector.load %arg3[%c93, %c0_280] : memref<256x128xf32, #tpu.memory_space<vmem>>, vector<1x128xf32>
    tpu.vector_store %arg3[%c93, %c0_280], %751 {strides = array<i32>} : memref<256x128xf32, #tpu.memory_space<vmem>>, vector<1x128xf32>,
    %c94_i32 = arith.constant 94 : i32
    %753 = arith.addi %0, %c94_i32 : i32
    %754 = arith.index_cast %753 : i32 to index
    %755 = memref.load %arg1[%754] : memref<512xi32, #tpu.memory_space<smem>>
    %756 = arith.index_cast %755 : i32 to index
    %c0_281 = arith.constant 0 : index
    %757 = vector.load %arg2[%756, %c0_281] : memref<1000x128xf32, #tpu.memory_space<vmem>>, vector<1x128xf32>
    %cst_282 = arith.constant 11.3137083 : f32
    %758 = vector.broadcast %cst_282 : f32 to vector<1x128xf32>
    %759 = arith.mulf %757, %758 : vector<1x128xf32>
    %c94 = arith.constant 94 : index
    %c0_283 = arith.constant 0 : index
    %760 = vector.load %arg3[%c94, %c0_283] : memref<256x128xf32, #tpu.memory_space<vmem>>, vector<1x128xf32>
    tpu.vector_store %arg3[%c94, %c0_283], %759 {strides = array<i32>} : memref<256x128xf32, #tpu.memory_space<vmem>>, vector<1x128xf32>,
    %c95_i32 = arith.constant 95 : i32
    %761 = arith.addi %0, %c95_i32 : i32
    %762 = arith.index_cast %761 : i32 to index
    %763 = memref.load %arg1[%762] : memref<512xi32, #tpu.memory_space<smem>>
    %764 = arith.index_cast %763 : i32 to index
    %c0_284 = arith.constant 0 : index
    %765 = vector.load %arg2[%764, %c0_284] : memref<1000x128xf32, #tpu.memory_space<vmem>>, vector<1x128xf32>
    %cst_285 = arith.constant 11.3137083 : f32
    %766 = vector.broadcast %cst_285 : f32 to vector<1x128xf32>
    %767 = arith.mulf %765, %766 : vector<1x128xf32>
    %c95 = arith.constant 95 : index
    %c0_286 = arith.constant 0 : index
    %768 = vector.load %arg3[%c95, %c0_286] : memref<256x128xf32, #tpu.memory_space<vmem>>, vector<1x128xf32>
    tpu.vector_store %arg3[%c95, %c0_286], %767 {strides = array<i32>} : memref<256x128xf32, #tpu.memory_space<vmem>>, vector<1x128xf32>,
    %c96_i32 = arith.constant 96 : i32
    %769 = arith.addi %0, %c96_i32 : i32
    %770 = arith.index_cast %769 : i32 to index
    %771 = memref.load %arg1[%770] : memref<512xi32, #tpu.memory_space<smem>>
    %772 = arith.index_cast %771 : i32 to index
    %c0_287 = arith.constant 0 : index
    %773 = vector.load %arg2[%772, %c0_287] : memref<1000x128xf32, #tpu.memory_space<vmem>>, vector<1x128xf32>
    %cst_288 = arith.constant 11.3137083 : f32
    %774 = vector.broadcast %cst_288 : f32 to vector<1x128xf32>
    %775 = arith.mulf %773, %774 : vector<1x128xf32>
    %c96 = arith.constant 96 : index
    %c0_289 = arith.constant 0 : index
    %776 = vector.load %arg3[%c96, %c0_289] : memref<256x128xf32, #tpu.memory_space<vmem>>, vector<1x128xf32>
    tpu.vector_store %arg3[%c96, %c0_289], %775 {strides = array<i32>} : memref<256x128xf32, #tpu.memory_space<vmem>>, vector<1x128xf32>,
    %c97_i32 = arith.constant 97 : i32
    %777 = arith.addi %0, %c97_i32 : i32
    %778 = arith.index_cast %777 : i32 to index
    %779 = memref.load %arg1[%778] : memref<512xi32, #tpu.memory_space<smem>>
    %780 = arith.index_cast %779 : i32 to index
    %c0_290 = arith.constant 0 : index
    %781 = vector.load %arg2[%780, %c0_290] : memref<1000x128xf32, #tpu.memory_space<vmem>>, vector<1x128xf32>
    %cst_291 = arith.constant 11.3137083 : f32
    %782 = vector.broadcast %cst_291 : f32 to vector<1x128xf32>
    %783 = arith.mulf %781, %782 : vector<1x128xf32>
    %c97 = arith.constant 97 : index
    %c0_292 = arith.constant 0 : index
    %784 = vector.load %arg3[%c97, %c0_292] : memref<256x128xf32, #tpu.memory_space<vmem>>, vector<1x128xf32>
    tpu.vector_store %arg3[%c97, %c0_292], %783 {strides = array<i32>} : memref<256x128xf32, #tpu.memory_space<vmem>>, vector<1x128xf32>,
    %c98_i32 = arith.constant 98 : i32
    %785 = arith.addi %0, %c98_i32 : i32
    %786 = arith.index_cast %785 : i32 to index
    %787 = memref.load %arg1[%786] : memref<512xi32, #tpu.memory_space<smem>>
    %788 = arith.index_cast %787 : i32 to index
    %c0_293 = arith.constant 0 : index
    %789 = vector.load %arg2[%788, %c0_293] : memref<1000x128xf32, #tpu.memory_space<vmem>>, vector<1x128xf32>
    %cst_294 = arith.constant 11.3137083 : f32
    %790 = vector.broadcast %cst_294 : f32 to vector<1x128xf32>
    %791 = arith.mulf %789, %790 : vector<1x128xf32>
    %c98 = arith.constant 98 : index
    %c0_295 = arith.constant 0 : index
    %792 = vector.load %arg3[%c98, %c0_295] : memref<256x128xf32, #tpu.memory_space<vmem>>, vector<1x128xf32>
    tpu.vector_store %arg3[%c98, %c0_295], %791 {strides = array<i32>} : memref<256x128xf32, #tpu.memory_space<vmem>>, vector<1x128xf32>,
    %c99_i32 = arith.constant 99 : i32
    %793 = arith.addi %0, %c99_i32 : i32
    %794 = arith.index_cast %793 : i32 to index
    %795 = memref.load %arg1[%794] : memref<512xi32, #tpu.memory_space<smem>>
    %796 = arith.index_cast %795 : i32 to index
    %c0_296 = arith.constant 0 : index
    %797 = vector.load %arg2[%796, %c0_296] : memref<1000x128xf32, #tpu.memory_space<vmem>>, vector<1x128xf32>
    %cst_297 = arith.constant 11.3137083 : f32
    %798 = vector.broadcast %cst_297 : f32 to vector<1x128xf32>
    %799 = arith.mulf %797, %798 : vector<1x128xf32>
    %c99 = arith.constant 99 : index
    %c0_298 = arith.constant 0 : index
    %800 = vector.load %arg3[%c99, %c0_298] : memref<256x128xf32, #tpu.memory_space<vmem>>, vector<1x128xf32>
    tpu.vector_store %arg3[%c99, %c0_298], %799 {strides = array<i32>} : memref<256x128xf32, #tpu.memory_space<vmem>>, vector<1x128xf32>,
    %c100_i32 = arith.constant 100 : i32
    %801 = arith.addi %0, %c100_i32 : i32
    %802 = arith.index_cast %801 : i32 to index
    %803 = memref.load %arg1[%802] : memref<512xi32, #tpu.memory_space<smem>>
    %804 = arith.index_cast %803 : i32 to index
    %c0_299 = arith.constant 0 : index
    %805 = vector.load %arg2[%804, %c0_299] : memref<1000x128xf32, #tpu.memory_space<vmem>>, vector<1x128xf32>
    %cst_300 = arith.constant 11.3137083 : f32
    %806 = vector.broadcast %cst_300 : f32 to vector<1x128xf32>
    %807 = arith.mulf %805, %806 : vector<1x128xf32>
    %c100 = arith.constant 100 : index
    %c0_301 = arith.constant 0 : index
    %808 = vector.load %arg3[%c100, %c0_301] : memref<256x128xf32, #tpu.memory_space<vmem>>, vector<1x128xf32>
    tpu.vector_store %arg3[%c100, %c0_301], %807 {strides = array<i32>} : memref<256x128xf32, #tpu.memory_space<vmem>>, vector<1x128xf32>,
    %c101_i32 = arith.constant 101 : i32
    %809 = arith.addi %0, %c101_i32 : i32
    %810 = arith.index_cast %809 : i32 to index
    %811 = memref.load %arg1[%810] : memref<512xi32, #tpu.memory_space<smem>>
    %812 = arith.index_cast %811 : i32 to index
    %c0_302 = arith.constant 0 : index
    %813 = vector.load %arg2[%812, %c0_302] : memref<1000x128xf32, #tpu.memory_space<vmem>>, vector<1x128xf32>
    %cst_303 = arith.constant 11.3137083 : f32
    %814 = vector.broadcast %cst_303 : f32 to vector<1x128xf32>
    %815 = arith.mulf %813, %814 : vector<1x128xf32>
    %c101 = arith.constant 101 : index
    %c0_304 = arith.constant 0 : index
    %816 = vector.load %arg3[%c101, %c0_304] : memref<256x128xf32, #tpu.memory_space<vmem>>, vector<1x128xf32>
    tpu.vector_store %arg3[%c101, %c0_304], %815 {strides = array<i32>} : memref<256x128xf32, #tpu.memory_space<vmem>>, vector<1x128xf32>,
    %c102_i32 = arith.constant 102 : i32
    %817 = arith.addi %0, %c102_i32 : i32
    %818 = arith.index_cast %817 : i32 to index
    %819 = memref.load %arg1[%818] : memref<512xi32, #tpu.memory_space<smem>>
    %820 = arith.index_cast %819 : i32 to index
    %c0_305 = arith.constant 0 : index
    %821 = vector.load %arg2[%820, %c0_305] : memref<1000x128xf32, #tpu.memory_space<vmem>>, vector<1x128xf32>
    %cst_306 = arith.constant 11.3137083 : f32
    %822 = vector.broadcast %cst_306 : f32 to vector<1x128xf32>
    %823 = arith.mulf %821, %822 : vector<1x128xf32>
    %c102 = arith.constant 102 : index
    %c0_307 = arith.constant 0 : index
    %824 = vector.load %arg3[%c102, %c0_307] : memref<256x128xf32, #tpu.memory_space<vmem>>, vector<1x128xf32>
    tpu.vector_store %arg3[%c102, %c0_307], %823 {strides = array<i32>} : memref<256x128xf32, #tpu.memory_space<vmem>>, vector<1x128xf32>,
    %c103_i32 = arith.constant 103 : i32
    %825 = arith.addi %0, %c103_i32 : i32
    %826 = arith.index_cast %825 : i32 to index
    %827 = memref.load %arg1[%826] : memref<512xi32, #tpu.memory_space<smem>>
    %828 = arith.index_cast %827 : i32 to index
    %c0_308 = arith.constant 0 : index
    %829 = vector.load %arg2[%828, %c0_308] : memref<1000x128xf32, #tpu.memory_space<vmem>>, vector<1x128xf32>
    %cst_309 = arith.constant 11.3137083 : f32
    %830 = vector.broadcast %cst_309 : f32 to vector<1x128xf32>
    %831 = arith.mulf %829, %830 : vector<1x128xf32>
    %c103 = arith.constant 103 : index
    %c0_310 = arith.constant 0 : index
    %832 = vector.load %arg3[%c103, %c0_310] : memref<256x128xf32, #tpu.memory_space<vmem>>, vector<1x128xf32>
    tpu.vector_store %arg3[%c103, %c0_310], %831 {strides = array<i32>} : memref<256x128xf32, #tpu.memory_space<vmem>>, vector<1x128xf32>,
    %c104_i32 = arith.constant 104 : i32
    %833 = arith.addi %0, %c104_i32 : i32
    %834 = arith.index_cast %833 : i32 to index
    %835 = memref.load %arg1[%834] : memref<512xi32, #tpu.memory_space<smem>>
    %836 = arith.index_cast %835 : i32 to index
    %c0_311 = arith.constant 0 : index
    %837 = vector.load %arg2[%836, %c0_311] : memref<1000x128xf32, #tpu.memory_space<vmem>>, vector<1x128xf32>
    %cst_312 = arith.constant 11.3137083 : f32
    %838 = vector.broadcast %cst_312 : f32 to vector<1x128xf32>
    %839 = arith.mulf %837, %838 : vector<1x128xf32>
    %c104 = arith.constant 104 : index
    %c0_313 = arith.constant 0 : index
    %840 = vector.load %arg3[%c104, %c0_313] : memref<256x128xf32, #tpu.memory_space<vmem>>, vector<1x128xf32>
    tpu.vector_store %arg3[%c104, %c0_313], %839 {strides = array<i32>} : memref<256x128xf32, #tpu.memory_space<vmem>>, vector<1x128xf32>,
    %c105_i32 = arith.constant 105 : i32
    %841 = arith.addi %0, %c105_i32 : i32
    %842 = arith.index_cast %841 : i32 to index
    %843 = memref.load %arg1[%842] : memref<512xi32, #tpu.memory_space<smem>>
    %844 = arith.index_cast %843 : i32 to index
    %c0_314 = arith.constant 0 : index
    %845 = vector.load %arg2[%844, %c0_314] : memref<1000x128xf32, #tpu.memory_space<vmem>>, vector<1x128xf32>
    %cst_315 = arith.constant 11.3137083 : f32
    %846 = vector.broadcast %cst_315 : f32 to vector<1x128xf32>
    %847 = arith.mulf %845, %846 : vector<1x128xf32>
    %c105 = arith.constant 105 : index
    %c0_316 = arith.constant 0 : index
    %848 = vector.load %arg3[%c105, %c0_316] : memref<256x128xf32, #tpu.memory_space<vmem>>, vector<1x128xf32>
    tpu.vector_store %arg3[%c105, %c0_316], %847 {strides = array<i32>} : memref<256x128xf32, #tpu.memory_space<vmem>>, vector<1x128xf32>,
    %c106_i32 = arith.constant 106 : i32
    %849 = arith.addi %0, %c106_i32 : i32
    %850 = arith.index_cast %849 : i32 to index
    %851 = memref.load %arg1[%850] : memref<512xi32, #tpu.memory_space<smem>>
    %852 = arith.index_cast %851 : i32 to index
    %c0_317 = arith.constant 0 : index
    %853 = vector.load %arg2[%852, %c0_317] : memref<1000x128xf32, #tpu.memory_space<vmem>>, vector<1x128xf32>
    %cst_318 = arith.constant 11.3137083 : f32
    %854 = vector.broadcast %cst_318 : f32 to vector<1x128xf32>
    %855 = arith.mulf %853, %854 : vector<1x128xf32>
    %c106 = arith.constant 106 : index
    %c0_319 = arith.constant 0 : index
    %856 = vector.load %arg3[%c106, %c0_319] : memref<256x128xf32, #tpu.memory_space<vmem>>, vector<1x128xf32>
    tpu.vector_store %arg3[%c106, %c0_319], %855 {strides = array<i32>} : memref<256x128xf32, #tpu.memory_space<vmem>>, vector<1x128xf32>,
    %c107_i32 = arith.constant 107 : i32
    %857 = arith.addi %0, %c107_i32 : i32
    %858 = arith.index_cast %857 : i32 to index
    %859 = memref.load %arg1[%858] : memref<512xi32, #tpu.memory_space<smem>>
    %860 = arith.index_cast %859 : i32 to index
    %c0_320 = arith.constant 0 : index
    %861 = vector.load %arg2[%860, %c0_320] : memref<1000x128xf32, #tpu.memory_space<vmem>>, vector<1x128xf32>
    %cst_321 = arith.constant 11.3137083 : f32
    %862 = vector.broadcast %cst_321 : f32 to vector<1x128xf32>
    %863 = arith.mulf %861, %862 : vector<1x128xf32>
    %c107 = arith.constant 107 : index
    %c0_322 = arith.constant 0 : index
    %864 = vector.load %arg3[%c107, %c0_322] : memref<256x128xf32, #tpu.memory_space<vmem>>, vector<1x128xf32>
    tpu.vector_store %arg3[%c107, %c0_322], %863 {strides = array<i32>} : memref<256x128xf32, #tpu.memory_space<vmem>>, vector<1x128xf32>,
    %c108_i32 = arith.constant 108 : i32
    %865 = arith.addi %0, %c108_i32 : i32
    %866 = arith.index_cast %865 : i32 to index
    %867 = memref.load %arg1[%866] : memref<512xi32, #tpu.memory_space<smem>>
    %868 = arith.index_cast %867 : i32 to index
    %c0_323 = arith.constant 0 : index
    %869 = vector.load %arg2[%868, %c0_323] : memref<1000x128xf32, #tpu.memory_space<vmem>>, vector<1x128xf32>
    %cst_324 = arith.constant 11.3137083 : f32
    %870 = vector.broadcast %cst_324 : f32 to vector<1x128xf32>
    %871 = arith.mulf %869, %870 : vector<1x128xf32>
    %c108 = arith.constant 108 : index
    %c0_325 = arith.constant 0 : index
    %872 = vector.load %arg3[%c108, %c0_325] : memref<256x128xf32, #tpu.memory_space<vmem>>, vector<1x128xf32>
    tpu.vector_store %arg3[%c108, %c0_325], %871 {strides = array<i32>} : memref<256x128xf32, #tpu.memory_space<vmem>>, vector<1x128xf32>,
    %c109_i32 = arith.constant 109 : i32
    %873 = arith.addi %0, %c109_i32 : i32
    %874 = arith.index_cast %873 : i32 to index
    %875 = memref.load %arg1[%874] : memref<512xi32, #tpu.memory_space<smem>>
    %876 = arith.index_cast %875 : i32 to index
    %c0_326 = arith.constant 0 : index
    %877 = vector.load %arg2[%876, %c0_326] : memref<1000x128xf32, #tpu.memory_space<vmem>>, vector<1x128xf32>
    %cst_327 = arith.constant 11.3137083 : f32
    %878 = vector.broadcast %cst_327 : f32 to vector<1x128xf32>
    %879 = arith.mulf %877, %878 : vector<1x128xf32>
    %c109 = arith.constant 109 : index
    %c0_328 = arith.constant 0 : index
    %880 = vector.load %arg3[%c109, %c0_328] : memref<256x128xf32, #tpu.memory_space<vmem>>, vector<1x128xf32>
    tpu.vector_store %arg3[%c109, %c0_328], %879 {strides = array<i32>} : memref<256x128xf32, #tpu.memory_space<vmem>>, vector<1x128xf32>,
    %c110_i32 = arith.constant 110 : i32
    %881 = arith.addi %0, %c110_i32 : i32
    %882 = arith.index_cast %881 : i32 to index
    %883 = memref.load %arg1[%882] : memref<512xi32, #tpu.memory_space<smem>>
    %884 = arith.index_cast %883 : i32 to index
    %c0_329 = arith.constant 0 : index
    %885 = vector.load %arg2[%884, %c0_329] : memref<1000x128xf32, #tpu.memory_space<vmem>>, vector<1x128xf32>
    %cst_330 = arith.constant 11.3137083 : f32
    %886 = vector.broadcast %cst_330 : f32 to vector<1x128xf32>
    %887 = arith.mulf %885, %886 : vector<1x128xf32>
    %c110 = arith.constant 110 : index
    %c0_331 = arith.constant 0 : index
    %888 = vector.load %arg3[%c110, %c0_331] : memref<256x128xf32, #tpu.memory_space<vmem>>, vector<1x128xf32>
    tpu.vector_store %arg3[%c110, %c0_331], %887 {strides = array<i32>} : memref<256x128xf32, #tpu.memory_space<vmem>>, vector<1x128xf32>,
    %c111_i32 = arith.constant 111 : i32
    %889 = arith.addi %0, %c111_i32 : i32
    %890 = arith.index_cast %889 : i32 to index
    %891 = memref.load %arg1[%890] : memref<512xi32, #tpu.memory_space<smem>>
    %892 = arith.index_cast %891 : i32 to index
    %c0_332 = arith.constant 0 : index
    %893 = vector.load %arg2[%892, %c0_332] : memref<1000x128xf32, #tpu.memory_space<vmem>>, vector<1x128xf32>
    %cst_333 = arith.constant 11.3137083 : f32
    %894 = vector.broadcast %cst_333 : f32 to vector<1x128xf32>
    %895 = arith.mulf %893, %894 : vector<1x128xf32>
    %c111 = arith.constant 111 : index
    %c0_334 = arith.constant 0 : index
    %896 = vector.load %arg3[%c111, %c0_334] : memref<256x128xf32, #tpu.memory_space<vmem>>, vector<1x128xf32>
    tpu.vector_store %arg3[%c111, %c0_334], %895 {strides = array<i32>} : memref<256x128xf32, #tpu.memory_space<vmem>>, vector<1x128xf32>,
    %c112_i32 = arith.constant 112 : i32
    %897 = arith.addi %0, %c112_i32 : i32
    %898 = arith.index_cast %897 : i32 to index
    %899 = memref.load %arg1[%898] : memref<512xi32, #tpu.memory_space<smem>>
    %900 = arith.index_cast %899 : i32 to index
    %c0_335 = arith.constant 0 : index
    %901 = vector.load %arg2[%900, %c0_335] : memref<1000x128xf32, #tpu.memory_space<vmem>>, vector<1x128xf32>
    %cst_336 = arith.constant 11.3137083 : f32
    %902 = vector.broadcast %cst_336 : f32 to vector<1x128xf32>
    %903 = arith.mulf %901, %902 : vector<1x128xf32>
    %c112 = arith.constant 112 : index
    %c0_337 = arith.constant 0 : index
    %904 = vector.load %arg3[%c112, %c0_337] : memref<256x128xf32, #tpu.memory_space<vmem>>, vector<1x128xf32>
    tpu.vector_store %arg3[%c112, %c0_337], %903 {strides = array<i32>} : memref<256x128xf32, #tpu.memory_space<vmem>>, vector<1x128xf32>,
    %c113_i32 = arith.constant 113 : i32
    %905 = arith.addi %0, %c113_i32 : i32
    %906 = arith.index_cast %905 : i32 to index
    %907 = memref.load %arg1[%906] : memref<512xi32, #tpu.memory_space<smem>>
    %908 = arith.index_cast %907 : i32 to index
    %c0_338 = arith.constant 0 : index
    %909 = vector.load %arg2[%908, %c0_338] : memref<1000x128xf32, #tpu.memory_space<vmem>>, vector<1x128xf32>
    %cst_339 = arith.constant 11.3137083 : f32
    %910 = vector.broadcast %cst_339 : f32 to vector<1x128xf32>
    %911 = arith.mulf %909, %910 : vector<1x128xf32>
    %c113 = arith.constant 113 : index
    %c0_340 = arith.constant 0 : index
    %912 = vector.load %arg3[%c113, %c0_340] : memref<256x128xf32, #tpu.memory_space<vmem>>, vector<1x128xf32>
    tpu.vector_store %arg3[%c113, %c0_340], %911 {strides = array<i32>} : memref<256x128xf32, #tpu.memory_space<vmem>>, vector<1x128xf32>,
    %c114_i32 = arith.constant 114 : i32
    %913 = arith.addi %0, %c114_i32 : i32
    %914 = arith.index_cast %913 : i32 to index
    %915 = memref.load %arg1[%914] : memref<512xi32, #tpu.memory_space<smem>>
    %916 = arith.index_cast %915 : i32 to index
    %c0_341 = arith.constant 0 : index
    %917 = vector.load %arg2[%916, %c0_341] : memref<1000x128xf32, #tpu.memory_space<vmem>>, vector<1x128xf32>
    %cst_342 = arith.constant 11.3137083 : f32
    %918 = vector.broadcast %cst_342 : f32 to vector<1x128xf32>
    %919 = arith.mulf %917, %918 : vector<1x128xf32>
    %c114 = arith.constant 114 : index
    %c0_343 = arith.constant 0 : index
    %920 = vector.load %arg3[%c114, %c0_343] : memref<256x128xf32, #tpu.memory_space<vmem>>, vector<1x128xf32>
    tpu.vector_store %arg3[%c114, %c0_343], %919 {strides = array<i32>} : memref<256x128xf32, #tpu.memory_space<vmem>>, vector<1x128xf32>,
    %c115_i32 = arith.constant 115 : i32
    %921 = arith.addi %0, %c115_i32 : i32
    %922 = arith.index_cast %921 : i32 to index
    %923 = memref.load %arg1[%922] : memref<512xi32, #tpu.memory_space<smem>>
    %924 = arith.index_cast %923 : i32 to index
    %c0_344 = arith.constant 0 : index
    %925 = vector.load %arg2[%924, %c0_344] : memref<1000x128xf32, #tpu.memory_space<vmem>>, vector<1x128xf32>
    %cst_345 = arith.constant 11.3137083 : f32
    %926 = vector.broadcast %cst_345 : f32 to vector<1x128xf32>
    %927 = arith.mulf %925, %926 : vector<1x128xf32>
    %c115 = arith.constant 115 : index
    %c0_346 = arith.constant 0 : index
    %928 = vector.load %arg3[%c115, %c0_346] : memref<256x128xf32, #tpu.memory_space<vmem>>, vector<1x128xf32>
    tpu.vector_store %arg3[%c115, %c0_346], %927 {strides = array<i32>} : memref<256x128xf32, #tpu.memory_space<vmem>>, vector<1x128xf32>,
    %c116_i32 = arith.constant 116 : i32
    %929 = arith.addi %0, %c116_i32 : i32
    %930 = arith.index_cast %929 : i32 to index
    %931 = memref.load %arg1[%930] : memref<512xi32, #tpu.memory_space<smem>>
    %932 = arith.index_cast %931 : i32 to index
    %c0_347 = arith.constant 0 : index
    %933 = vector.load %arg2[%932, %c0_347] : memref<1000x128xf32, #tpu.memory_space<vmem>>, vector<1x128xf32>
    %cst_348 = arith.constant 11.3137083 : f32
    %934 = vector.broadcast %cst_348 : f32 to vector<1x128xf32>
    %935 = arith.mulf %933, %934 : vector<1x128xf32>
    %c116 = arith.constant 116 : index
    %c0_349 = arith.constant 0 : index
    %936 = vector.load %arg3[%c116, %c0_349] : memref<256x128xf32, #tpu.memory_space<vmem>>, vector<1x128xf32>
    tpu.vector_store %arg3[%c116, %c0_349], %935 {strides = array<i32>} : memref<256x128xf32, #tpu.memory_space<vmem>>, vector<1x128xf32>,
    %c117_i32 = arith.constant 117 : i32
    %937 = arith.addi %0, %c117_i32 : i32
    %938 = arith.index_cast %937 : i32 to index
    %939 = memref.load %arg1[%938] : memref<512xi32, #tpu.memory_space<smem>>
    %940 = arith.index_cast %939 : i32 to index
    %c0_350 = arith.constant 0 : index
    %941 = vector.load %arg2[%940, %c0_350] : memref<1000x128xf32, #tpu.memory_space<vmem>>, vector<1x128xf32>
    %cst_351 = arith.constant 11.3137083 : f32
    %942 = vector.broadcast %cst_351 : f32 to vector<1x128xf32>
    %943 = arith.mulf %941, %942 : vector<1x128xf32>
    %c117 = arith.constant 117 : index
    %c0_352 = arith.constant 0 : index
    %944 = vector.load %arg3[%c117, %c0_352] : memref<256x128xf32, #tpu.memory_space<vmem>>, vector<1x128xf32>
    tpu.vector_store %arg3[%c117, %c0_352], %943 {strides = array<i32>} : memref<256x128xf32, #tpu.memory_space<vmem>>, vector<1x128xf32>,
    %c118_i32 = arith.constant 118 : i32
    %945 = arith.addi %0, %c118_i32 : i32
    %946 = arith.index_cast %945 : i32 to index
    %947 = memref.load %arg1[%946] : memref<512xi32, #tpu.memory_space<smem>>
    %948 = arith.index_cast %947 : i32 to index
    %c0_353 = arith.constant 0 : index
    %949 = vector.load %arg2[%948, %c0_353] : memref<1000x128xf32, #tpu.memory_space<vmem>>, vector<1x128xf32>
    %cst_354 = arith.constant 11.3137083 : f32
    %950 = vector.broadcast %cst_354 : f32 to vector<1x128xf32>
    %951 = arith.mulf %949, %950 : vector<1x128xf32>
    %c118 = arith.constant 118 : index
    %c0_355 = arith.constant 0 : index
    %952 = vector.load %arg3[%c118, %c0_355] : memref<256x128xf32, #tpu.memory_space<vmem>>, vector<1x128xf32>
    tpu.vector_store %arg3[%c118, %c0_355], %951 {strides = array<i32>} : memref<256x128xf32, #tpu.memory_space<vmem>>, vector<1x128xf32>,
    %c119_i32 = arith.constant 119 : i32
    %953 = arith.addi %0, %c119_i32 : i32
    %954 = arith.index_cast %953 : i32 to index
    %955 = memref.load %arg1[%954] : memref<512xi32, #tpu.memory_space<smem>>
    %956 = arith.index_cast %955 : i32 to index
    %c0_356 = arith.constant 0 : index
    %957 = vector.load %arg2[%956, %c0_356] : memref<1000x128xf32, #tpu.memory_space<vmem>>, vector<1x128xf32>
    %cst_357 = arith.constant 11.3137083 : f32
    %958 = vector.broadcast %cst_357 : f32 to vector<1x128xf32>
    %959 = arith.mulf %957, %958 : vector<1x128xf32>
    %c119 = arith.constant 119 : index
    %c0_358 = arith.constant 0 : index
    %960 = vector.load %arg3[%c119, %c0_358] : memref<256x128xf32, #tpu.memory_space<vmem>>, vector<1x128xf32>
    tpu.vector_store %arg3[%c119, %c0_358], %959 {strides = array<i32>} : memref<256x128xf32, #tpu.memory_space<vmem>>, vector<1x128xf32>,
    %c120_i32 = arith.constant 120 : i32
    %961 = arith.addi %0, %c120_i32 : i32
    %962 = arith.index_cast %961 : i32 to index
    %963 = memref.load %arg1[%962] : memref<512xi32, #tpu.memory_space<smem>>
    %964 = arith.index_cast %963 : i32 to index
    %c0_359 = arith.constant 0 : index
    %965 = vector.load %arg2[%964, %c0_359] : memref<1000x128xf32, #tpu.memory_space<vmem>>, vector<1x128xf32>
    %cst_360 = arith.constant 11.3137083 : f32
    %966 = vector.broadcast %cst_360 : f32 to vector<1x128xf32>
    %967 = arith.mulf %965, %966 : vector<1x128xf32>
    %c120 = arith.constant 120 : index
    %c0_361 = arith.constant 0 : index
    %968 = vector.load %arg3[%c120, %c0_361] : memref<256x128xf32, #tpu.memory_space<vmem>>, vector<1x128xf32>
    tpu.vector_store %arg3[%c120, %c0_361], %967 {strides = array<i32>} : memref<256x128xf32, #tpu.memory_space<vmem>>, vector<1x128xf32>,
    %c121_i32 = arith.constant 121 : i32
    %969 = arith.addi %0, %c121_i32 : i32
    %970 = arith.index_cast %969 : i32 to index
    %971 = memref.load %arg1[%970] : memref<512xi32, #tpu.memory_space<smem>>
    %972 = arith.index_cast %971 : i32 to index
    %c0_362 = arith.constant 0 : index
    %973 = vector.load %arg2[%972, %c0_362] : memref<1000x128xf32, #tpu.memory_space<vmem>>, vector<1x128xf32>
    %cst_363 = arith.constant 11.3137083 : f32
    %974 = vector.broadcast %cst_363 : f32 to vector<1x128xf32>
    %975 = arith.mulf %973, %974 : vector<1x128xf32>
    %c121 = arith.constant 121 : index
    %c0_364 = arith.constant 0 : index
    %976 = vector.load %arg3[%c121, %c0_364] : memref<256x128xf32, #tpu.memory_space<vmem>>, vector<1x128xf32>
    tpu.vector_store %arg3[%c121, %c0_364], %975 {strides = array<i32>} : memref<256x128xf32, #tpu.memory_space<vmem>>, vector<1x128xf32>,
    %c122_i32 = arith.constant 122 : i32
    %977 = arith.addi %0, %c122_i32 : i32
    %978 = arith.index_cast %977 : i32 to index
    %979 = memref.load %arg1[%978] : memref<512xi32, #tpu.memory_space<smem>>
    %980 = arith.index_cast %979 : i32 to index
    %c0_365 = arith.constant 0 : index
    %981 = vector.load %arg2[%980, %c0_365] : memref<1000x128xf32, #tpu.memory_space<vmem>>, vector<1x128xf32>
    %cst_366 = arith.constant 11.3137083 : f32
    %982 = vector.broadcast %cst_366 : f32 to vector<1x128xf32>
    %983 = arith.mulf %981, %982 : vector<1x128xf32>
    %c122 = arith.constant 122 : index
    %c0_367 = arith.constant 0 : index
    %984 = vector.load %arg3[%c122, %c0_367] : memref<256x128xf32, #tpu.memory_space<vmem>>, vector<1x128xf32>
    tpu.vector_store %arg3[%c122, %c0_367], %983 {strides = array<i32>} : memref<256x128xf32, #tpu.memory_space<vmem>>, vector<1x128xf32>,
    %c123_i32 = arith.constant 123 : i32
    %985 = arith.addi %0, %c123_i32 : i32
    %986 = arith.index_cast %985 : i32 to index
    %987 = memref.load %arg1[%986] : memref<512xi32, #tpu.memory_space<smem>>
    %988 = arith.index_cast %987 : i32 to index
    %c0_368 = arith.constant 0 : index
    %989 = vector.load %arg2[%988, %c0_368] : memref<1000x128xf32, #tpu.memory_space<vmem>>, vector<1x128xf32>
    %cst_369 = arith.constant 11.3137083 : f32
    %990 = vector.broadcast %cst_369 : f32 to vector<1x128xf32>
    %991 = arith.mulf %989, %990 : vector<1x128xf32>
    %c123 = arith.constant 123 : index
    %c0_370 = arith.constant 0 : index
    %992 = vector.load %arg3[%c123, %c0_370] : memref<256x128xf32, #tpu.memory_space<vmem>>, vector<1x128xf32>
    tpu.vector_store %arg3[%c123, %c0_370], %991 {strides = array<i32>} : memref<256x128xf32, #tpu.memory_space<vmem>>, vector<1x128xf32>,
    %c124_i32 = arith.constant 124 : i32
    %993 = arith.addi %0, %c124_i32 : i32
    %994 = arith.index_cast %993 : i32 to index
    %995 = memref.load %arg1[%994] : memref<512xi32, #tpu.memory_space<smem>>
    %996 = arith.index_cast %995 : i32 to index
    %c0_371 = arith.constant 0 : index
    %997 = vector.load %arg2[%996, %c0_371] : memref<1000x128xf32, #tpu.memory_space<vmem>>, vector<1x128xf32>
    %cst_372 = arith.constant 11.3137083 : f32
    %998 = vector.broadcast %cst_372 : f32 to vector<1x128xf32>
    %999 = arith.mulf %997, %998 : vector<1x128xf32>
    %c124 = arith.constant 124 : index
    %c0_373 = arith.constant 0 : index
    %1000 = vector.load %arg3[%c124, %c0_373] : memref<256x128xf32, #tpu.memory_space<vmem>>, vector<1x128xf32>
    tpu.vector_store %arg3[%c124, %c0_373], %999 {strides = array<i32>} : memref<256x128xf32, #tpu.memory_space<vmem>>, vector<1x128xf32>,
    %c125_i32 = arith.constant 125 : i32
    %1001 = arith.addi %0, %c125_i32 : i32
    %1002 = arith.index_cast %1001 : i32 to index
    %1003 = memref.load %arg1[%1002] : memref<512xi32, #tpu.memory_space<smem>>
    %1004 = arith.index_cast %1003 : i32 to index
    %c0_374 = arith.constant 0 : index
    %1005 = vector.load %arg2[%1004, %c0_374] : memref<1000x128xf32, #tpu.memory_space<vmem>>, vector<1x128xf32>
    %cst_375 = arith.constant 11.3137083 : f32
    %1006 = vector.broadcast %cst_375 : f32 to vector<1x128xf32>
    %1007 = arith.mulf %1005, %1006 : vector<1x128xf32>
    %c125 = arith.constant 125 : index
    %c0_376 = arith.constant 0 : index
    %1008 = vector.load %arg3[%c125, %c0_376] : memref<256x128xf32, #tpu.memory_space<vmem>>, vector<1x128xf32>
    tpu.vector_store %arg3[%c125, %c0_376], %1007 {strides = array<i32>} : memref<256x128xf32, #tpu.memory_space<vmem>>, vector<1x128xf32>,
    %c126_i32 = arith.constant 126 : i32
    %1009 = arith.addi %0, %c126_i32 : i32
    %1010 = arith.index_cast %1009 : i32 to index
    %1011 = memref.load %arg1[%1010] : memref<512xi32, #tpu.memory_space<smem>>
    %1012 = arith.index_cast %1011 : i32 to index
    %c0_377 = arith.constant 0 : index
    %1013 = vector.load %arg2[%1012, %c0_377] : memref<1000x128xf32, #tpu.memory_space<vmem>>, vector<1x128xf32>
    %cst_378 = arith.constant 11.3137083 : f32
    %1014 = vector.broadcast %cst_378 : f32 to vector<1x128xf32>
    %1015 = arith.mulf %1013, %1014 : vector<1x128xf32>
    %c126 = arith.constant 126 : index
    %c0_379 = arith.constant 0 : index
    %1016 = vector.load %arg3[%c126, %c0_379] : memref<256x128xf32, #tpu.memory_space<vmem>>, vector<1x128xf32>
    tpu.vector_store %arg3[%c126, %c0_379], %1015 {strides = array<i32>} : memref<256x128xf32, #tpu.memory_space<vmem>>, vector<1x128xf32>,
    %c127_i32 = arith.constant 127 : i32
    %1017 = arith.addi %0, %c127_i32 : i32
    %1018 = arith.index_cast %1017 : i32 to index
    %1019 = memref.load %arg1[%1018] : memref<512xi32, #tpu.memory_space<smem>>
    %1020 = arith.index_cast %1019 : i32 to index
    %c0_380 = arith.constant 0 : index
    %1021 = vector.load %arg2[%1020, %c0_380] : memref<1000x128xf32, #tpu.memory_space<vmem>>, vector<1x128xf32>
    %cst_381 = arith.constant 11.3137083 : f32
    %1022 = vector.broadcast %cst_381 : f32 to vector<1x128xf32>
    %1023 = arith.mulf %1021, %1022 : vector<1x128xf32>
    %c127 = arith.constant 127 : index
    %c0_382 = arith.constant 0 : index
    %1024 = vector.load %arg3[%c127, %c0_382] : memref<256x128xf32, #tpu.memory_space<vmem>>, vector<1x128xf32>
    tpu.vector_store %arg3[%c127, %c0_382], %1023 {strides = array<i32>} : memref<256x128xf32, #tpu.memory_space<vmem>>, vector<1x128xf32>,
    %c128_i32 = arith.constant 128 : i32
    %1025 = arith.addi %0, %c128_i32 : i32
    %1026 = arith.index_cast %1025 : i32 to index
    %1027 = memref.load %arg1[%1026] : memref<512xi32, #tpu.memory_space<smem>>
    %1028 = arith.index_cast %1027 : i32 to index
    %c0_383 = arith.constant 0 : index
    %1029 = vector.load %arg2[%1028, %c0_383] : memref<1000x128xf32, #tpu.memory_space<vmem>>, vector<1x128xf32>
    %cst_384 = arith.constant 11.3137083 : f32
    %1030 = vector.broadcast %cst_384 : f32 to vector<1x128xf32>
    %1031 = arith.mulf %1029, %1030 : vector<1x128xf32>
    %c128 = arith.constant 128 : index
    %c0_385 = arith.constant 0 : index
    %1032 = vector.load %arg3[%c128, %c0_385] : memref<256x128xf32, #tpu.memory_space<vmem>>, vector<1x128xf32>
    tpu.vector_store %arg3[%c128, %c0_385], %1031 {strides = array<i32>} : memref<256x128xf32, #tpu.memory_space<vmem>>, vector<1x128xf32>,
    %c129_i32 = arith.constant 129 : i32
    %1033 = arith.addi %0, %c129_i32 : i32
    %1034 = arith.index_cast %1033 : i32 to index
    %1035 = memref.load %arg1[%1034] : memref<512xi32, #tpu.memory_space<smem>>
    %1036 = arith.index_cast %1035 : i32 to index
    %c0_386 = arith.constant 0 : index
    %1037 = vector.load %arg2[%1036, %c0_386] : memref<1000x128xf32, #tpu.memory_space<vmem>>, vector<1x128xf32>
    %cst_387 = arith.constant 11.3137083 : f32
    %1038 = vector.broadcast %cst_387 : f32 to vector<1x128xf32>
    %1039 = arith.mulf %1037, %1038 : vector<1x128xf32>
    %c129 = arith.constant 129 : index
    %c0_388 = arith.constant 0 : index
    %1040 = vector.load %arg3[%c129, %c0_388] : memref<256x128xf32, #tpu.memory_space<vmem>>, vector<1x128xf32>
    tpu.vector_store %arg3[%c129, %c0_388], %1039 {strides = array<i32>} : memref<256x128xf32, #tpu.memory_space<vmem>>, vector<1x128xf32>,
    %c130_i32 = arith.constant 130 : i32
    %1041 = arith.addi %0, %c130_i32 : i32
    %1042 = arith.index_cast %1041 : i32 to index
    %1043 = memref.load %arg1[%1042] : memref<512xi32, #tpu.memory_space<smem>>
    %1044 = arith.index_cast %1043 : i32 to index
    %c0_389 = arith.constant 0 : index
    %1045 = vector.load %arg2[%1044, %c0_389] : memref<1000x128xf32, #tpu.memory_space<vmem>>, vector<1x128xf32>
    %cst_390 = arith.constant 11.3137083 : f32
    %1046 = vector.broadcast %cst_390 : f32 to vector<1x128xf32>
    %1047 = arith.mulf %1045, %1046 : vector<1x128xf32>
    %c130 = arith.constant 130 : index
    %c0_391 = arith.constant 0 : index
    %1048 = vector.load %arg3[%c130, %c0_391] : memref<256x128xf32, #tpu.memory_space<vmem>>, vector<1x128xf32>
    tpu.vector_store %arg3[%c130, %c0_391], %1047 {strides = array<i32>} : memref<256x128xf32, #tpu.memory_space<vmem>>, vector<1x128xf32>,
    %c131_i32 = arith.constant 131 : i32
    %1049 = arith.addi %0, %c131_i32 : i32
    %1050 = arith.index_cast %1049 : i32 to index
    %1051 = memref.load %arg1[%1050] : memref<512xi32, #tpu.memory_space<smem>>
    %1052 = arith.index_cast %1051 : i32 to index
    %c0_392 = arith.constant 0 : index
    %1053 = vector.load %arg2[%1052, %c0_392] : memref<1000x128xf32, #tpu.memory_space<vmem>>, vector<1x128xf32>
    %cst_393 = arith.constant 11.3137083 : f32
    %1054 = vector.broadcast %cst_393 : f32 to vector<1x128xf32>
    %1055 = arith.mulf %1053, %1054 : vector<1x128xf32>
    %c131 = arith.constant 131 : index
    %c0_394 = arith.constant 0 : index
    %1056 = vector.load %arg3[%c131, %c0_394] : memref<256x128xf32, #tpu.memory_space<vmem>>, vector<1x128xf32>
    tpu.vector_store %arg3[%c131, %c0_394], %1055 {strides = array<i32>} : memref<256x128xf32, #tpu.memory_space<vmem>>, vector<1x128xf32>,
    %c132_i32 = arith.constant 132 : i32
    %1057 = arith.addi %0, %c132_i32 : i32
    %1058 = arith.index_cast %1057 : i32 to index
    %1059 = memref.load %arg1[%1058] : memref<512xi32, #tpu.memory_space<smem>>
    %1060 = arith.index_cast %1059 : i32 to index
    %c0_395 = arith.constant 0 : index
    %1061 = vector.load %arg2[%1060, %c0_395] : memref<1000x128xf32, #tpu.memory_space<vmem>>, vector<1x128xf32>
    %cst_396 = arith.constant 11.3137083 : f32
    %1062 = vector.broadcast %cst_396 : f32 to vector<1x128xf32>
    %1063 = arith.mulf %1061, %1062 : vector<1x128xf32>
    %c132 = arith.constant 132 : index
    %c0_397 = arith.constant 0 : index
    %1064 = vector.load %arg3[%c132, %c0_397] : memref<256x128xf32, #tpu.memory_space<vmem>>, vector<1x128xf32>
    tpu.vector_store %arg3[%c132, %c0_397], %1063 {strides = array<i32>} : memref<256x128xf32, #tpu.memory_space<vmem>>, vector<1x128xf32>,
    %c133_i32 = arith.constant 133 : i32
    %1065 = arith.addi %0, %c133_i32 : i32
    %1066 = arith.index_cast %1065 : i32 to index
    %1067 = memref.load %arg1[%1066] : memref<512xi32, #tpu.memory_space<smem>>
    %1068 = arith.index_cast %1067 : i32 to index
    %c0_398 = arith.constant 0 : index
    %1069 = vector.load %arg2[%1068, %c0_398] : memref<1000x128xf32, #tpu.memory_space<vmem>>, vector<1x128xf32>
    %cst_399 = arith.constant 11.3137083 : f32
    %1070 = vector.broadcast %cst_399 : f32 to vector<1x128xf32>
    %1071 = arith.mulf %1069, %1070 : vector<1x128xf32>
    %c133 = arith.constant 133 : index
    %c0_400 = arith.constant 0 : index
    %1072 = vector.load %arg3[%c133, %c0_400] : memref<256x128xf32, #tpu.memory_space<vmem>>, vector<1x128xf32>
    tpu.vector_store %arg3[%c133, %c0_400], %1071 {strides = array<i32>} : memref<256x128xf32, #tpu.memory_space<vmem>>, vector<1x128xf32>,
    %c134_i32 = arith.constant 134 : i32
    %1073 = arith.addi %0, %c134_i32 : i32
    %1074 = arith.index_cast %1073 : i32 to index
    %1075 = memref.load %arg1[%1074] : memref<512xi32, #tpu.memory_space<smem>>
    %1076 = arith.index_cast %1075 : i32 to index
    %c0_401 = arith.constant 0 : index
    %1077 = vector.load %arg2[%1076, %c0_401] : memref<1000x128xf32, #tpu.memory_space<vmem>>, vector<1x128xf32>
    %cst_402 = arith.constant 11.3137083 : f32
    %1078 = vector.broadcast %cst_402 : f32 to vector<1x128xf32>
    %1079 = arith.mulf %1077, %1078 : vector<1x128xf32>
    %c134 = arith.constant 134 : index
    %c0_403 = arith.constant 0 : index
    %1080 = vector.load %arg3[%c134, %c0_403] : memref<256x128xf32, #tpu.memory_space<vmem>>, vector<1x128xf32>
    tpu.vector_store %arg3[%c134, %c0_403], %1079 {strides = array<i32>} : memref<256x128xf32, #tpu.memory_space<vmem>>, vector<1x128xf32>,
    %c135_i32 = arith.constant 135 : i32
    %1081 = arith.addi %0, %c135_i32 : i32
    %1082 = arith.index_cast %1081 : i32 to index
    %1083 = memref.load %arg1[%1082] : memref<512xi32, #tpu.memory_space<smem>>
    %1084 = arith.index_cast %1083 : i32 to index
    %c0_404 = arith.constant 0 : index
    %1085 = vector.load %arg2[%1084, %c0_404] : memref<1000x128xf32, #tpu.memory_space<vmem>>, vector<1x128xf32>
    %cst_405 = arith.constant 11.3137083 : f32
    %1086 = vector.broadcast %cst_405 : f32 to vector<1x128xf32>
    %1087 = arith.mulf %1085, %1086 : vector<1x128xf32>
    %c135 = arith.constant 135 : index
    %c0_406 = arith.constant 0 : index
    %1088 = vector.load %arg3[%c135, %c0_406] : memref<256x128xf32, #tpu.memory_space<vmem>>, vector<1x128xf32>
    tpu.vector_store %arg3[%c135, %c0_406], %1087 {strides = array<i32>} : memref<256x128xf32, #tpu.memory_space<vmem>>, vector<1x128xf32>,
    %c136_i32 = arith.constant 136 : i32
    %1089 = arith.addi %0, %c136_i32 : i32
    %1090 = arith.index_cast %1089 : i32 to index
    %1091 = memref.load %arg1[%1090] : memref<512xi32, #tpu.memory_space<smem>>
    %1092 = arith.index_cast %1091 : i32 to index
    %c0_407 = arith.constant 0 : index
    %1093 = vector.load %arg2[%1092, %c0_407] : memref<1000x128xf32, #tpu.memory_space<vmem>>, vector<1x128xf32>
    %cst_408 = arith.constant 11.3137083 : f32
    %1094 = vector.broadcast %cst_408 : f32 to vector<1x128xf32>
    %1095 = arith.mulf %1093, %1094 : vector<1x128xf32>
    %c136 = arith.constant 136 : index
    %c0_409 = arith.constant 0 : index
    %1096 = vector.load %arg3[%c136, %c0_409] : memref<256x128xf32, #tpu.memory_space<vmem>>, vector<1x128xf32>
    tpu.vector_store %arg3[%c136, %c0_409], %1095 {strides = array<i32>} : memref<256x128xf32, #tpu.memory_space<vmem>>, vector<1x128xf32>,
    %c137_i32 = arith.constant 137 : i32
    %1097 = arith.addi %0, %c137_i32 : i32
    %1098 = arith.index_cast %1097 : i32 to index
    %1099 = memref.load %arg1[%1098] : memref<512xi32, #tpu.memory_space<smem>>
    %1100 = arith.index_cast %1099 : i32 to index
    %c0_410 = arith.constant 0 : index
    %1101 = vector.load %arg2[%1100, %c0_410] : memref<1000x128xf32, #tpu.memory_space<vmem>>, vector<1x128xf32>
    %cst_411 = arith.constant 11.3137083 : f32
    %1102 = vector.broadcast %cst_411 : f32 to vector<1x128xf32>
    %1103 = arith.mulf %1101, %1102 : vector<1x128xf32>
    %c137 = arith.constant 137 : index
    %c0_412 = arith.constant 0 : index
    %1104 = vector.load %arg3[%c137, %c0_412] : memref<256x128xf32, #tpu.memory_space<vmem>>, vector<1x128xf32>
    tpu.vector_store %arg3[%c137, %c0_412], %1103 {strides = array<i32>} : memref<256x128xf32, #tpu.memory_space<vmem>>, vector<1x128xf32>,
    %c138_i32 = arith.constant 138 : i32
    %1105 = arith.addi %0, %c138_i32 : i32
    %1106 = arith.index_cast %1105 : i32 to index
    %1107 = memref.load %arg1[%1106] : memref<512xi32, #tpu.memory_space<smem>>
    %1108 = arith.index_cast %1107 : i32 to index
    %c0_413 = arith.constant 0 : index
    %1109 = vector.load %arg2[%1108, %c0_413] : memref<1000x128xf32, #tpu.memory_space<vmem>>, vector<1x128xf32>
    %cst_414 = arith.constant 11.3137083 : f32
    %1110 = vector.broadcast %cst_414 : f32 to vector<1x128xf32>
    %1111 = arith.mulf %1109, %1110 : vector<1x128xf32>
    %c138 = arith.constant 138 : index
    %c0_415 = arith.constant 0 : index
    %1112 = vector.load %arg3[%c138, %c0_415] : memref<256x128xf32, #tpu.memory_space<vmem>>, vector<1x128xf32>
    tpu.vector_store %arg3[%c138, %c0_415], %1111 {strides = array<i32>} : memref<256x128xf32, #tpu.memory_space<vmem>>, vector<1x128xf32>,
    %c139_i32 = arith.constant 139 : i32
    %1113 = arith.addi %0, %c139_i32 : i32
    %1114 = arith.index_cast %1113 : i32 to index
    %1115 = memref.load %arg1[%1114] : memref<512xi32, #tpu.memory_space<smem>>
    %1116 = arith.index_cast %1115 : i32 to index
    %c0_416 = arith.constant 0 : index
    %1117 = vector.load %arg2[%1116, %c0_416] : memref<1000x128xf32, #tpu.memory_space<vmem>>, vector<1x128xf32>
    %cst_417 = arith.constant 11.3137083 : f32
    %1118 = vector.broadcast %cst_417 : f32 to vector<1x128xf32>
    %1119 = arith.mulf %1117, %1118 : vector<1x128xf32>
    %c139 = arith.constant 139 : index
    %c0_418 = arith.constant 0 : index
    %1120 = vector.load %arg3[%c139, %c0_418] : memref<256x128xf32, #tpu.memory_space<vmem>>, vector<1x128xf32>
    tpu.vector_store %arg3[%c139, %c0_418], %1119 {strides = array<i32>} : memref<256x128xf32, #tpu.memory_space<vmem>>, vector<1x128xf32>,
    %c140_i32 = arith.constant 140 : i32
    %1121 = arith.addi %0, %c140_i32 : i32
    %1122 = arith.index_cast %1121 : i32 to index
    %1123 = memref.load %arg1[%1122] : memref<512xi32, #tpu.memory_space<smem>>
    %1124 = arith.index_cast %1123 : i32 to index
    %c0_419 = arith.constant 0 : index
    %1125 = vector.load %arg2[%1124, %c0_419] : memref<1000x128xf32, #tpu.memory_space<vmem>>, vector<1x128xf32>
    %cst_420 = arith.constant 11.3137083 : f32
    %1126 = vector.broadcast %cst_420 : f32 to vector<1x128xf32>
    %1127 = arith.mulf %1125, %1126 : vector<1x128xf32>
    %c140 = arith.constant 140 : index
    %c0_421 = arith.constant 0 : index
    %1128 = vector.load %arg3[%c140, %c0_421] : memref<256x128xf32, #tpu.memory_space<vmem>>, vector<1x128xf32>
    tpu.vector_store %arg3[%c140, %c0_421], %1127 {strides = array<i32>} : memref<256x128xf32, #tpu.memory_space<vmem>>, vector<1x128xf32>,
    %c141_i32 = arith.constant 141 : i32
    %1129 = arith.addi %0, %c141_i32 : i32
    %1130 = arith.index_cast %1129 : i32 to index
    %1131 = memref.load %arg1[%1130] : memref<512xi32, #tpu.memory_space<smem>>
    %1132 = arith.index_cast %1131 : i32 to index
    %c0_422 = arith.constant 0 : index
    %1133 = vector.load %arg2[%1132, %c0_422] : memref<1000x128xf32, #tpu.memory_space<vmem>>, vector<1x128xf32>
    %cst_423 = arith.constant 11.3137083 : f32
    %1134 = vector.broadcast %cst_423 : f32 to vector<1x128xf32>
    %1135 = arith.mulf %1133, %1134 : vector<1x128xf32>
    %c141 = arith.constant 141 : index
    %c0_424 = arith.constant 0 : index
    %1136 = vector.load %arg3[%c141, %c0_424] : memref<256x128xf32, #tpu.memory_space<vmem>>, vector<1x128xf32>
    tpu.vector_store %arg3[%c141, %c0_424], %1135 {strides = array<i32>} : memref<256x128xf32, #tpu.memory_space<vmem>>, vector<1x128xf32>,
    %c142_i32 = arith.constant 142 : i32
    %1137 = arith.addi %0, %c142_i32 : i32
    %1138 = arith.index_cast %1137 : i32 to index
    %1139 = memref.load %arg1[%1138] : memref<512xi32, #tpu.memory_space<smem>>
    %1140 = arith.index_cast %1139 : i32 to index
    %c0_425 = arith.constant 0 : index
    %1141 = vector.load %arg2[%1140, %c0_425] : memref<1000x128xf32, #tpu.memory_space<vmem>>, vector<1x128xf32>
    %cst_426 = arith.constant 11.3137083 : f32
    %1142 = vector.broadcast %cst_426 : f32 to vector<1x128xf32>
    %1143 = arith.mulf %1141, %1142 : vector<1x128xf32>
    %c142 = arith.constant 142 : index
    %c0_427 = arith.constant 0 : index
    %1144 = vector.load %arg3[%c142, %c0_427] : memref<256x128xf32, #tpu.memory_space<vmem>>, vector<1x128xf32>
    tpu.vector_store %arg3[%c142, %c0_427], %1143 {strides = array<i32>} : memref<256x128xf32, #tpu.memory_space<vmem>>, vector<1x128xf32>,
    %c143_i32 = arith.constant 143 : i32
    %1145 = arith.addi %0, %c143_i32 : i32
    %1146 = arith.index_cast %1145 : i32 to index
    %1147 = memref.load %arg1[%1146] : memref<512xi32, #tpu.memory_space<smem>>
    %1148 = arith.index_cast %1147 : i32 to index
    %c0_428 = arith.constant 0 : index
    %1149 = vector.load %arg2[%1148, %c0_428] : memref<1000x128xf32, #tpu.memory_space<vmem>>, vector<1x128xf32>
    %cst_429 = arith.constant 11.3137083 : f32
    %1150 = vector.broadcast %cst_429 : f32 to vector<1x128xf32>
    %1151 = arith.mulf %1149, %1150 : vector<1x128xf32>
    %c143 = arith.constant 143 : index
    %c0_430 = arith.constant 0 : index
    %1152 = vector.load %arg3[%c143, %c0_430] : memref<256x128xf32, #tpu.memory_space<vmem>>, vector<1x128xf32>
    tpu.vector_store %arg3[%c143, %c0_430], %1151 {strides = array<i32>} : memref<256x128xf32, #tpu.memory_space<vmem>>, vector<1x128xf32>,
    %c144_i32 = arith.constant 144 : i32
    %1153 = arith.addi %0, %c144_i32 : i32
    %1154 = arith.index_cast %1153 : i32 to index
    %1155 = memref.load %arg1[%1154] : memref<512xi32, #tpu.memory_space<smem>>
    %1156 = arith.index_cast %1155 : i32 to index
    %c0_431 = arith.constant 0 : index
    %1157 = vector.load %arg2[%1156, %c0_431] : memref<1000x128xf32, #tpu.memory_space<vmem>>, vector<1x128xf32>
    %cst_432 = arith.constant 11.3137083 : f32
    %1158 = vector.broadcast %cst_432 : f32 to vector<1x128xf32>
    %1159 = arith.mulf %1157, %1158 : vector<1x128xf32>
    %c144 = arith.constant 144 : index
    %c0_433 = arith.constant 0 : index
    %1160 = vector.load %arg3[%c144, %c0_433] : memref<256x128xf32, #tpu.memory_space<vmem>>, vector<1x128xf32>
    tpu.vector_store %arg3[%c144, %c0_433], %1159 {strides = array<i32>} : memref<256x128xf32, #tpu.memory_space<vmem>>, vector<1x128xf32>,
    %c145_i32 = arith.constant 145 : i32
    %1161 = arith.addi %0, %c145_i32 : i32
    %1162 = arith.index_cast %1161 : i32 to index
    %1163 = memref.load %arg1[%1162] : memref<512xi32, #tpu.memory_space<smem>>
    %1164 = arith.index_cast %1163 : i32 to index
    %c0_434 = arith.constant 0 : index
    %1165 = vector.load %arg2[%1164, %c0_434] : memref<1000x128xf32, #tpu.memory_space<vmem>>, vector<1x128xf32>
    %cst_435 = arith.constant 11.3137083 : f32
    %1166 = vector.broadcast %cst_435 : f32 to vector<1x128xf32>
    %1167 = arith.mulf %1165, %1166 : vector<1x128xf32>
    %c145 = arith.constant 145 : index
    %c0_436 = arith.constant 0 : index
    %1168 = vector.load %arg3[%c145, %c0_436] : memref<256x128xf32, #tpu.memory_space<vmem>>, vector<1x128xf32>
    tpu.vector_store %arg3[%c145, %c0_436], %1167 {strides = array<i32>} : memref<256x128xf32, #tpu.memory_space<vmem>>, vector<1x128xf32>,
    %c146_i32 = arith.constant 146 : i32
    %1169 = arith.addi %0, %c146_i32 : i32
    %1170 = arith.index_cast %1169 : i32 to index
    %1171 = memref.load %arg1[%1170] : memref<512xi32, #tpu.memory_space<smem>>
    %1172 = arith.index_cast %1171 : i32 to index
    %c0_437 = arith.constant 0 : index
    %1173 = vector.load %arg2[%1172, %c0_437] : memref<1000x128xf32, #tpu.memory_space<vmem>>, vector<1x128xf32>
    %cst_438 = arith.constant 11.3137083 : f32
    %1174 = vector.broadcast %cst_438 : f32 to vector<1x128xf32>
    %1175 = arith.mulf %1173, %1174 : vector<1x128xf32>
    %c146 = arith.constant 146 : index
    %c0_439 = arith.constant 0 : index
    %1176 = vector.load %arg3[%c146, %c0_439] : memref<256x128xf32, #tpu.memory_space<vmem>>, vector<1x128xf32>
    tpu.vector_store %arg3[%c146, %c0_439], %1175 {strides = array<i32>} : memref<256x128xf32, #tpu.memory_space<vmem>>, vector<1x128xf32>,
    %c147_i32 = arith.constant 147 : i32
    %1177 = arith.addi %0, %c147_i32 : i32
    %1178 = arith.index_cast %1177 : i32 to index
    %1179 = memref.load %arg1[%1178] : memref<512xi32, #tpu.memory_space<smem>>
    %1180 = arith.index_cast %1179 : i32 to index
    %c0_440 = arith.constant 0 : index
    %1181 = vector.load %arg2[%1180, %c0_440] : memref<1000x128xf32, #tpu.memory_space<vmem>>, vector<1x128xf32>
    %cst_441 = arith.constant 11.3137083 : f32
    %1182 = vector.broadcast %cst_441 : f32 to vector<1x128xf32>
    %1183 = arith.mulf %1181, %1182 : vector<1x128xf32>
    %c147 = arith.constant 147 : index
    %c0_442 = arith.constant 0 : index
    %1184 = vector.load %arg3[%c147, %c0_442] : memref<256x128xf32, #tpu.memory_space<vmem>>, vector<1x128xf32>
    tpu.vector_store %arg3[%c147, %c0_442], %1183 {strides = array<i32>} : memref<256x128xf32, #tpu.memory_space<vmem>>, vector<1x128xf32>,
    %c148_i32 = arith.constant 148 : i32
    %1185 = arith.addi %0, %c148_i32 : i32
    %1186 = arith.index_cast %1185 : i32 to index
    %1187 = memref.load %arg1[%1186] : memref<512xi32, #tpu.memory_space<smem>>
    %1188 = arith.index_cast %1187 : i32 to index
    %c0_443 = arith.constant 0 : index
    %1189 = vector.load %arg2[%1188, %c0_443] : memref<1000x128xf32, #tpu.memory_space<vmem>>, vector<1x128xf32>
    %cst_444 = arith.constant 11.3137083 : f32
    %1190 = vector.broadcast %cst_444 : f32 to vector<1x128xf32>
    %1191 = arith.mulf %1189, %1190 : vector<1x128xf32>
    %c148 = arith.constant 148 : index
    %c0_445 = arith.constant 0 : index
    %1192 = vector.load %arg3[%c148, %c0_445] : memref<256x128xf32, #tpu.memory_space<vmem>>, vector<1x128xf32>
    tpu.vector_store %arg3[%c148, %c0_445], %1191 {strides = array<i32>} : memref<256x128xf32, #tpu.memory_space<vmem>>, vector<1x128xf32>,
    %c149_i32 = arith.constant 149 : i32
    %1193 = arith.addi %0, %c149_i32 : i32
    %1194 = arith.index_cast %1193 : i32 to index
    %1195 = memref.load %arg1[%1194] : memref<512xi32, #tpu.memory_space<smem>>
    %1196 = arith.index_cast %1195 : i32 to index
    %c0_446 = arith.constant 0 : index
    %1197 = vector.load %arg2[%1196, %c0_446] : memref<1000x128xf32, #tpu.memory_space<vmem>>, vector<1x128xf32>
    %cst_447 = arith.constant 11.3137083 : f32
    %1198 = vector.broadcast %cst_447 : f32 to vector<1x128xf32>
    %1199 = arith.mulf %1197, %1198 : vector<1x128xf32>
    %c149 = arith.constant 149 : index
    %c0_448 = arith.constant 0 : index
    %1200 = vector.load %arg3[%c149, %c0_448] : memref<256x128xf32, #tpu.memory_space<vmem>>, vector<1x128xf32>
    tpu.vector_store %arg3[%c149, %c0_448], %1199 {strides = array<i32>} : memref<256x128xf32, #tpu.memory_space<vmem>>, vector<1x128xf32>,
    %c150_i32 = arith.constant 150 : i32
    %1201 = arith.addi %0, %c150_i32 : i32
    %1202 = arith.index_cast %1201 : i32 to index
    %1203 = memref.load %arg1[%1202] : memref<512xi32, #tpu.memory_space<smem>>
    %1204 = arith.index_cast %1203 : i32 to index
    %c0_449 = arith.constant 0 : index
    %1205 = vector.load %arg2[%1204, %c0_449] : memref<1000x128xf32, #tpu.memory_space<vmem>>, vector<1x128xf32>
    %cst_450 = arith.constant 11.3137083 : f32
    %1206 = vector.broadcast %cst_450 : f32 to vector<1x128xf32>
    %1207 = arith.mulf %1205, %1206 : vector<1x128xf32>
    %c150 = arith.constant 150 : index
    %c0_451 = arith.constant 0 : index
    %1208 = vector.load %arg3[%c150, %c0_451] : memref<256x128xf32, #tpu.memory_space<vmem>>, vector<1x128xf32>
    tpu.vector_store %arg3[%c150, %c0_451], %1207 {strides = array<i32>} : memref<256x128xf32, #tpu.memory_space<vmem>>, vector<1x128xf32>,
    %c151_i32 = arith.constant 151 : i32
    %1209 = arith.addi %0, %c151_i32 : i32
    %1210 = arith.index_cast %1209 : i32 to index
    %1211 = memref.load %arg1[%1210] : memref<512xi32, #tpu.memory_space<smem>>
    %1212 = arith.index_cast %1211 : i32 to index
    %c0_452 = arith.constant 0 : index
    %1213 = vector.load %arg2[%1212, %c0_452] : memref<1000x128xf32, #tpu.memory_space<vmem>>, vector<1x128xf32>
    %cst_453 = arith.constant 11.3137083 : f32
    %1214 = vector.broadcast %cst_453 : f32 to vector<1x128xf32>
    %1215 = arith.mulf %1213, %1214 : vector<1x128xf32>
    %c151 = arith.constant 151 : index
    %c0_454 = arith.constant 0 : index
    %1216 = vector.load %arg3[%c151, %c0_454] : memref<256x128xf32, #tpu.memory_space<vmem>>, vector<1x128xf32>
    tpu.vector_store %arg3[%c151, %c0_454], %1215 {strides = array<i32>} : memref<256x128xf32, #tpu.memory_space<vmem>>, vector<1x128xf32>,
    %c152_i32 = arith.constant 152 : i32
    %1217 = arith.addi %0, %c152_i32 : i32
    %1218 = arith.index_cast %1217 : i32 to index
    %1219 = memref.load %arg1[%1218] : memref<512xi32, #tpu.memory_space<smem>>
    %1220 = arith.index_cast %1219 : i32 to index
    %c0_455 = arith.constant 0 : index
    %1221 = vector.load %arg2[%1220, %c0_455] : memref<1000x128xf32, #tpu.memory_space<vmem>>, vector<1x128xf32>
    %cst_456 = arith.constant 11.3137083 : f32
    %1222 = vector.broadcast %cst_456 : f32 to vector<1x128xf32>
    %1223 = arith.mulf %1221, %1222 : vector<1x128xf32>
    %c152 = arith.constant 152 : index
    %c0_457 = arith.constant 0 : index
    %1224 = vector.load %arg3[%c152, %c0_457] : memref<256x128xf32, #tpu.memory_space<vmem>>, vector<1x128xf32>
    tpu.vector_store %arg3[%c152, %c0_457], %1223 {strides = array<i32>} : memref<256x128xf32, #tpu.memory_space<vmem>>, vector<1x128xf32>,
    %c153_i32 = arith.constant 153 : i32
    %1225 = arith.addi %0, %c153_i32 : i32
    %1226 = arith.index_cast %1225 : i32 to index
    %1227 = memref.load %arg1[%1226] : memref<512xi32, #tpu.memory_space<smem>>
    %1228 = arith.index_cast %1227 : i32 to index
    %c0_458 = arith.constant 0 : index
    %1229 = vector.load %arg2[%1228, %c0_458] : memref<1000x128xf32, #tpu.memory_space<vmem>>, vector<1x128xf32>
    %cst_459 = arith.constant 11.3137083 : f32
    %1230 = vector.broadcast %cst_459 : f32 to vector<1x128xf32>
    %1231 = arith.mulf %1229, %1230 : vector<1x128xf32>
    %c153 = arith.constant 153 : index
    %c0_460 = arith.constant 0 : index
    %1232 = vector.load %arg3[%c153, %c0_460] : memref<256x128xf32, #tpu.memory_space<vmem>>, vector<1x128xf32>
    tpu.vector_store %arg3[%c153, %c0_460], %1231 {strides = array<i32>} : memref<256x128xf32, #tpu.memory_space<vmem>>, vector<1x128xf32>,
    %c154_i32 = arith.constant 154 : i32
    %1233 = arith.addi %0, %c154_i32 : i32
    %1234 = arith.index_cast %1233 : i32 to index
    %1235 = memref.load %arg1[%1234] : memref<512xi32, #tpu.memory_space<smem>>
    %1236 = arith.index_cast %1235 : i32 to index
    %c0_461 = arith.constant 0 : index
    %1237 = vector.load %arg2[%1236, %c0_461] : memref<1000x128xf32, #tpu.memory_space<vmem>>, vector<1x128xf32>
    %cst_462 = arith.constant 11.3137083 : f32
    %1238 = vector.broadcast %cst_462 : f32 to vector<1x128xf32>
    %1239 = arith.mulf %1237, %1238 : vector<1x128xf32>
    %c154 = arith.constant 154 : index
    %c0_463 = arith.constant 0 : index
    %1240 = vector.load %arg3[%c154, %c0_463] : memref<256x128xf32, #tpu.memory_space<vmem>>, vector<1x128xf32>
    tpu.vector_store %arg3[%c154, %c0_463], %1239 {strides = array<i32>} : memref<256x128xf32, #tpu.memory_space<vmem>>, vector<1x128xf32>,
    %c155_i32 = arith.constant 155 : i32
    %1241 = arith.addi %0, %c155_i32 : i32
    %1242 = arith.index_cast %1241 : i32 to index
    %1243 = memref.load %arg1[%1242] : memref<512xi32, #tpu.memory_space<smem>>
    %1244 = arith.index_cast %1243 : i32 to index
    %c0_464 = arith.constant 0 : index
    %1245 = vector.load %arg2[%1244, %c0_464] : memref<1000x128xf32, #tpu.memory_space<vmem>>, vector<1x128xf32>
    %cst_465 = arith.constant 11.3137083 : f32
    %1246 = vector.broadcast %cst_465 : f32 to vector<1x128xf32>
    %1247 = arith.mulf %1245, %1246 : vector<1x128xf32>
    %c155 = arith.constant 155 : index
    %c0_466 = arith.constant 0 : index
    %1248 = vector.load %arg3[%c155, %c0_466] : memref<256x128xf32, #tpu.memory_space<vmem>>, vector<1x128xf32>
    tpu.vector_store %arg3[%c155, %c0_466], %1247 {strides = array<i32>} : memref<256x128xf32, #tpu.memory_space<vmem>>, vector<1x128xf32>,
    %c156_i32 = arith.constant 156 : i32
    %1249 = arith.addi %0, %c156_i32 : i32
    %1250 = arith.index_cast %1249 : i32 to index
    %1251 = memref.load %arg1[%1250] : memref<512xi32, #tpu.memory_space<smem>>
    %1252 = arith.index_cast %1251 : i32 to index
    %c0_467 = arith.constant 0 : index
    %1253 = vector.load %arg2[%1252, %c0_467] : memref<1000x128xf32, #tpu.memory_space<vmem>>, vector<1x128xf32>
    %cst_468 = arith.constant 11.3137083 : f32
    %1254 = vector.broadcast %cst_468 : f32 to vector<1x128xf32>
    %1255 = arith.mulf %1253, %1254 : vector<1x128xf32>
    %c156 = arith.constant 156 : index
    %c0_469 = arith.constant 0 : index
    %1256 = vector.load %arg3[%c156, %c0_469] : memref<256x128xf32, #tpu.memory_space<vmem>>, vector<1x128xf32>
    tpu.vector_store %arg3[%c156, %c0_469], %1255 {strides = array<i32>} : memref<256x128xf32, #tpu.memory_space<vmem>>, vector<1x128xf32>,
    %c157_i32 = arith.constant 157 : i32
    %1257 = arith.addi %0, %c157_i32 : i32
    %1258 = arith.index_cast %1257 : i32 to index
    %1259 = memref.load %arg1[%1258] : memref<512xi32, #tpu.memory_space<smem>>
    %1260 = arith.index_cast %1259 : i32 to index
    %c0_470 = arith.constant 0 : index
    %1261 = vector.load %arg2[%1260, %c0_470] : memref<1000x128xf32, #tpu.memory_space<vmem>>, vector<1x128xf32>
    %cst_471 = arith.constant 11.3137083 : f32
    %1262 = vector.broadcast %cst_471 : f32 to vector<1x128xf32>
    %1263 = arith.mulf %1261, %1262 : vector<1x128xf32>
    %c157 = arith.constant 157 : index
    %c0_472 = arith.constant 0 : index
    %1264 = vector.load %arg3[%c157, %c0_472] : memref<256x128xf32, #tpu.memory_space<vmem>>, vector<1x128xf32>
    tpu.vector_store %arg3[%c157, %c0_472], %1263 {strides = array<i32>} : memref<256x128xf32, #tpu.memory_space<vmem>>, vector<1x128xf32>,
    %c158_i32 = arith.constant 158 : i32
    %1265 = arith.addi %0, %c158_i32 : i32
    %1266 = arith.index_cast %1265 : i32 to index
    %1267 = memref.load %arg1[%1266] : memref<512xi32, #tpu.memory_space<smem>>
    %1268 = arith.index_cast %1267 : i32 to index
    %c0_473 = arith.constant 0 : index
    %1269 = vector.load %arg2[%1268, %c0_473] : memref<1000x128xf32, #tpu.memory_space<vmem>>, vector<1x128xf32>
    %cst_474 = arith.constant 11.3137083 : f32
    %1270 = vector.broadcast %cst_474 : f32 to vector<1x128xf32>
    %1271 = arith.mulf %1269, %1270 : vector<1x128xf32>
    %c158 = arith.constant 158 : index
    %c0_475 = arith.constant 0 : index
    %1272 = vector.load %arg3[%c158, %c0_475] : memref<256x128xf32, #tpu.memory_space<vmem>>, vector<1x128xf32>
    tpu.vector_store %arg3[%c158, %c0_475], %1271 {strides = array<i32>} : memref<256x128xf32, #tpu.memory_space<vmem>>, vector<1x128xf32>,
    %c159_i32 = arith.constant 159 : i32
    %1273 = arith.addi %0, %c159_i32 : i32
    %1274 = arith.index_cast %1273 : i32 to index
    %1275 = memref.load %arg1[%1274] : memref<512xi32, #tpu.memory_space<smem>>
    %1276 = arith.index_cast %1275 : i32 to index
    %c0_476 = arith.constant 0 : index
    %1277 = vector.load %arg2[%1276, %c0_476] : memref<1000x128xf32, #tpu.memory_space<vmem>>, vector<1x128xf32>
    %cst_477 = arith.constant 11.3137083 : f32
    %1278 = vector.broadcast %cst_477 : f32 to vector<1x128xf32>
    %1279 = arith.mulf %1277, %1278 : vector<1x128xf32>
    %c159 = arith.constant 159 : index
    %c0_478 = arith.constant 0 : index
    %1280 = vector.load %arg3[%c159, %c0_478] : memref<256x128xf32, #tpu.memory_space<vmem>>, vector<1x128xf32>
    tpu.vector_store %arg3[%c159, %c0_478], %1279 {strides = array<i32>} : memref<256x128xf32, #tpu.memory_space<vmem>>, vector<1x128xf32>,
    %c160_i32 = arith.constant 160 : i32
    %1281 = arith.addi %0, %c160_i32 : i32
    %1282 = arith.index_cast %1281 : i32 to index
    %1283 = memref.load %arg1[%1282] : memref<512xi32, #tpu.memory_space<smem>>
    %1284 = arith.index_cast %1283 : i32 to index
    %c0_479 = arith.constant 0 : index
    %1285 = vector.load %arg2[%1284, %c0_479] : memref<1000x128xf32, #tpu.memory_space<vmem>>, vector<1x128xf32>
    %cst_480 = arith.constant 11.3137083 : f32
    %1286 = vector.broadcast %cst_480 : f32 to vector<1x128xf32>
    %1287 = arith.mulf %1285, %1286 : vector<1x128xf32>
    %c160 = arith.constant 160 : index
    %c0_481 = arith.constant 0 : index
    %1288 = vector.load %arg3[%c160, %c0_481] : memref<256x128xf32, #tpu.memory_space<vmem>>, vector<1x128xf32>
    tpu.vector_store %arg3[%c160, %c0_481], %1287 {strides = array<i32>} : memref<256x128xf32, #tpu.memory_space<vmem>>, vector<1x128xf32>,
    %c161_i32 = arith.constant 161 : i32
    %1289 = arith.addi %0, %c161_i32 : i32
    %1290 = arith.index_cast %1289 : i32 to index
    %1291 = memref.load %arg1[%1290] : memref<512xi32, #tpu.memory_space<smem>>
    %1292 = arith.index_cast %1291 : i32 to index
    %c0_482 = arith.constant 0 : index
    %1293 = vector.load %arg2[%1292, %c0_482] : memref<1000x128xf32, #tpu.memory_space<vmem>>, vector<1x128xf32>
    %cst_483 = arith.constant 11.3137083 : f32
    %1294 = vector.broadcast %cst_483 : f32 to vector<1x128xf32>
    %1295 = arith.mulf %1293, %1294 : vector<1x128xf32>
    %c161 = arith.constant 161 : index
    %c0_484 = arith.constant 0 : index
    %1296 = vector.load %arg3[%c161, %c0_484] : memref<256x128xf32, #tpu.memory_space<vmem>>, vector<1x128xf32>
    tpu.vector_store %arg3[%c161, %c0_484], %1295 {strides = array<i32>} : memref<256x128xf32, #tpu.memory_space<vmem>>, vector<1x128xf32>,
    %c162_i32 = arith.constant 162 : i32
    %1297 = arith.addi %0, %c162_i32 : i32
    %1298 = arith.index_cast %1297 : i32 to index
    %1299 = memref.load %arg1[%1298] : memref<512xi32, #tpu.memory_space<smem>>
    %1300 = arith.index_cast %1299 : i32 to index
    %c0_485 = arith.constant 0 : index
    %1301 = vector.load %arg2[%1300, %c0_485] : memref<1000x128xf32, #tpu.memory_space<vmem>>, vector<1x128xf32>
    %cst_486 = arith.constant 11.3137083 : f32
    %1302 = vector.broadcast %cst_486 : f32 to vector<1x128xf32>
    %1303 = arith.mulf %1301, %1302 : vector<1x128xf32>
    %c162 = arith.constant 162 : index
    %c0_487 = arith.constant 0 : index
    %1304 = vector.load %arg3[%c162, %c0_487] : memref<256x128xf32, #tpu.memory_space<vmem>>, vector<1x128xf32>
    tpu.vector_store %arg3[%c162, %c0_487], %1303 {strides = array<i32>} : memref<256x128xf32, #tpu.memory_space<vmem>>, vector<1x128xf32>,
    %c163_i32 = arith.constant 163 : i32
    %1305 = arith.addi %0, %c163_i32 : i32
    %1306 = arith.index_cast %1305 : i32 to index
    %1307 = memref.load %arg1[%1306] : memref<512xi32, #tpu.memory_space<smem>>
    %1308 = arith.index_cast %1307 : i32 to index
    %c0_488 = arith.constant 0 : index
    %1309 = vector.load %arg2[%1308, %c0_488] : memref<1000x128xf32, #tpu.memory_space<vmem>>, vector<1x128xf32>
    %cst_489 = arith.constant 11.3137083 : f32
    %1310 = vector.broadcast %cst_489 : f32 to vector<1x128xf32>
    %1311 = arith.mulf %1309, %1310 : vector<1x128xf32>
    %c163 = arith.constant 163 : index
    %c0_490 = arith.constant 0 : index
    %1312 = vector.load %arg3[%c163, %c0_490] : memref<256x128xf32, #tpu.memory_space<vmem>>, vector<1x128xf32>
    tpu.vector_store %arg3[%c163, %c0_490], %1311 {strides = array<i32>} : memref<256x128xf32, #tpu.memory_space<vmem>>, vector<1x128xf32>,
    %c164_i32 = arith.constant 164 : i32
    %1313 = arith.addi %0, %c164_i32 : i32
    %1314 = arith.index_cast %1313 : i32 to index
    %1315 = memref.load %arg1[%1314] : memref<512xi32, #tpu.memory_space<smem>>
    %1316 = arith.index_cast %1315 : i32 to index
    %c0_491 = arith.constant 0 : index
    %1317 = vector.load %arg2[%1316, %c0_491] : memref<1000x128xf32, #tpu.memory_space<vmem>>, vector<1x128xf32>
    %cst_492 = arith.constant 11.3137083 : f32
    %1318 = vector.broadcast %cst_492 : f32 to vector<1x128xf32>
    %1319 = arith.mulf %1317, %1318 : vector<1x128xf32>
    %c164 = arith.constant 164 : index
    %c0_493 = arith.constant 0 : index
    %1320 = vector.load %arg3[%c164, %c0_493] : memref<256x128xf32, #tpu.memory_space<vmem>>, vector<1x128xf32>
    tpu.vector_store %arg3[%c164, %c0_493], %1319 {strides = array<i32>} : memref<256x128xf32, #tpu.memory_space<vmem>>, vector<1x128xf32>,
    %c165_i32 = arith.constant 165 : i32
    %1321 = arith.addi %0, %c165_i32 : i32
    %1322 = arith.index_cast %1321 : i32 to index
    %1323 = memref.load %arg1[%1322] : memref<512xi32, #tpu.memory_space<smem>>
    %1324 = arith.index_cast %1323 : i32 to index
    %c0_494 = arith.constant 0 : index
    %1325 = vector.load %arg2[%1324, %c0_494] : memref<1000x128xf32, #tpu.memory_space<vmem>>, vector<1x128xf32>
    %cst_495 = arith.constant 11.3137083 : f32
    %1326 = vector.broadcast %cst_495 : f32 to vector<1x128xf32>
    %1327 = arith.mulf %1325, %1326 : vector<1x128xf32>
    %c165 = arith.constant 165 : index
    %c0_496 = arith.constant 0 : index
    %1328 = vector.load %arg3[%c165, %c0_496] : memref<256x128xf32, #tpu.memory_space<vmem>>, vector<1x128xf32>
    tpu.vector_store %arg3[%c165, %c0_496], %1327 {strides = array<i32>} : memref<256x128xf32, #tpu.memory_space<vmem>>, vector<1x128xf32>,
    %c166_i32 = arith.constant 166 : i32
    %1329 = arith.addi %0, %c166_i32 : i32
    %1330 = arith.index_cast %1329 : i32 to index
    %1331 = memref.load %arg1[%1330] : memref<512xi32, #tpu.memory_space<smem>>
    %1332 = arith.index_cast %1331 : i32 to index
    %c0_497 = arith.constant 0 : index
    %1333 = vector.load %arg2[%1332, %c0_497] : memref<1000x128xf32, #tpu.memory_space<vmem>>, vector<1x128xf32>
    %cst_498 = arith.constant 11.3137083 : f32
    %1334 = vector.broadcast %cst_498 : f32 to vector<1x128xf32>
    %1335 = arith.mulf %1333, %1334 : vector<1x128xf32>
    %c166 = arith.constant 166 : index
    %c0_499 = arith.constant 0 : index
    %1336 = vector.load %arg3[%c166, %c0_499] : memref<256x128xf32, #tpu.memory_space<vmem>>, vector<1x128xf32>
    tpu.vector_store %arg3[%c166, %c0_499], %1335 {strides = array<i32>} : memref<256x128xf32, #tpu.memory_space<vmem>>, vector<1x128xf32>,
    %c167_i32 = arith.constant 167 : i32
    %1337 = arith.addi %0, %c167_i32 : i32
    %1338 = arith.index_cast %1337 : i32 to index
    %1339 = memref.load %arg1[%1338] : memref<512xi32, #tpu.memory_space<smem>>
    %1340 = arith.index_cast %1339 : i32 to index
    %c0_500 = arith.constant 0 : index
    %1341 = vector.load %arg2[%1340, %c0_500] : memref<1000x128xf32, #tpu.memory_space<vmem>>, vector<1x128xf32>
    %cst_501 = arith.constant 11.3137083 : f32
    %1342 = vector.broadcast %cst_501 : f32 to vector<1x128xf32>
    %1343 = arith.mulf %1341, %1342 : vector<1x128xf32>
    %c167 = arith.constant 167 : index
    %c0_502 = arith.constant 0 : index
    %1344 = vector.load %arg3[%c167, %c0_502] : memref<256x128xf32, #tpu.memory_space<vmem>>, vector<1x128xf32>
    tpu.vector_store %arg3[%c167, %c0_502], %1343 {strides = array<i32>} : memref<256x128xf32, #tpu.memory_space<vmem>>, vector<1x128xf32>,
    %c168_i32 = arith.constant 168 : i32
    %1345 = arith.addi %0, %c168_i32 : i32
    %1346 = arith.index_cast %1345 : i32 to index
    %1347 = memref.load %arg1[%1346] : memref<512xi32, #tpu.memory_space<smem>>
    %1348 = arith.index_cast %1347 : i32 to index
    %c0_503 = arith.constant 0 : index
    %1349 = vector.load %arg2[%1348, %c0_503] : memref<1000x128xf32, #tpu.memory_space<vmem>>, vector<1x128xf32>
    %cst_504 = arith.constant 11.3137083 : f32
    %1350 = vector.broadcast %cst_504 : f32 to vector<1x128xf32>
    %1351 = arith.mulf %1349, %1350 : vector<1x128xf32>
    %c168 = arith.constant 168 : index
    %c0_505 = arith.constant 0 : index
    %1352 = vector.load %arg3[%c168, %c0_505] : memref<256x128xf32, #tpu.memory_space<vmem>>, vector<1x128xf32>
    tpu.vector_store %arg3[%c168, %c0_505], %1351 {strides = array<i32>} : memref<256x128xf32, #tpu.memory_space<vmem>>, vector<1x128xf32>,
    %c169_i32 = arith.constant 169 : i32
    %1353 = arith.addi %0, %c169_i32 : i32
    %1354 = arith.index_cast %1353 : i32 to index
    %1355 = memref.load %arg1[%1354] : memref<512xi32, #tpu.memory_space<smem>>
    %1356 = arith.index_cast %1355 : i32 to index
    %c0_506 = arith.constant 0 : index
    %1357 = vector.load %arg2[%1356, %c0_506] : memref<1000x128xf32, #tpu.memory_space<vmem>>, vector<1x128xf32>
    %cst_507 = arith.constant 11.3137083 : f32
    %1358 = vector.broadcast %cst_507 : f32 to vector<1x128xf32>
    %1359 = arith.mulf %1357, %1358 : vector<1x128xf32>
    %c169 = arith.constant 169 : index
    %c0_508 = arith.constant 0 : index
    %1360 = vector.load %arg3[%c169, %c0_508] : memref<256x128xf32, #tpu.memory_space<vmem>>, vector<1x128xf32>
    tpu.vector_store %arg3[%c169, %c0_508], %1359 {strides = array<i32>} : memref<256x128xf32, #tpu.memory_space<vmem>>, vector<1x128xf32>,
    %c170_i32 = arith.constant 170 : i32
    %1361 = arith.addi %0, %c170_i32 : i32
    %1362 = arith.index_cast %1361 : i32 to index
    %1363 = memref.load %arg1[%1362] : memref<512xi32, #tpu.memory_space<smem>>
    %1364 = arith.index_cast %1363 : i32 to index
    %c0_509 = arith.constant 0 : index
    %1365 = vector.load %arg2[%1364, %c0_509] : memref<1000x128xf32, #tpu.memory_space<vmem>>, vector<1x128xf32>
    %cst_510 = arith.constant 11.3137083 : f32
    %1366 = vector.broadcast %cst_510 : f32 to vector<1x128xf32>
    %1367 = arith.mulf %1365, %1366 : vector<1x128xf32>
    %c170 = arith.constant 170 : index
    %c0_511 = arith.constant 0 : index
    %1368 = vector.load %arg3[%c170, %c0_511] : memref<256x128xf32, #tpu.memory_space<vmem>>, vector<1x128xf32>
    tpu.vector_store %arg3[%c170, %c0_511], %1367 {strides = array<i32>} : memref<256x128xf32, #tpu.memory_space<vmem>>, vector<1x128xf32>,
    %c171_i32 = arith.constant 171 : i32
    %1369 = arith.addi %0, %c171_i32 : i32
    %1370 = arith.index_cast %1369 : i32 to index
    %1371 = memref.load %arg1[%1370] : memref<512xi32, #tpu.memory_space<smem>>
    %1372 = arith.index_cast %1371 : i32 to index
    %c0_512 = arith.constant 0 : index
    %1373 = vector.load %arg2[%1372, %c0_512] : memref<1000x128xf32, #tpu.memory_space<vmem>>, vector<1x128xf32>
    %cst_513 = arith.constant 11.3137083 : f32
    %1374 = vector.broadcast %cst_513 : f32 to vector<1x128xf32>
    %1375 = arith.mulf %1373, %1374 : vector<1x128xf32>
    %c171 = arith.constant 171 : index
    %c0_514 = arith.constant 0 : index
    %1376 = vector.load %arg3[%c171, %c0_514] : memref<256x128xf32, #tpu.memory_space<vmem>>, vector<1x128xf32>
    tpu.vector_store %arg3[%c171, %c0_514], %1375 {strides = array<i32>} : memref<256x128xf32, #tpu.memory_space<vmem>>, vector<1x128xf32>,
    %c172_i32 = arith.constant 172 : i32
    %1377 = arith.addi %0, %c172_i32 : i32
    %1378 = arith.index_cast %1377 : i32 to index
    %1379 = memref.load %arg1[%1378] : memref<512xi32, #tpu.memory_space<smem>>
    %1380 = arith.index_cast %1379 : i32 to index
    %c0_515 = arith.constant 0 : index
    %1381 = vector.load %arg2[%1380, %c0_515] : memref<1000x128xf32, #tpu.memory_space<vmem>>, vector<1x128xf32>
    %cst_516 = arith.constant 11.3137083 : f32
    %1382 = vector.broadcast %cst_516 : f32 to vector<1x128xf32>
    %1383 = arith.mulf %1381, %1382 : vector<1x128xf32>
    %c172 = arith.constant 172 : index
    %c0_517 = arith.constant 0 : index
    %1384 = vector.load %arg3[%c172, %c0_517] : memref<256x128xf32, #tpu.memory_space<vmem>>, vector<1x128xf32>
    tpu.vector_store %arg3[%c172, %c0_517], %1383 {strides = array<i32>} : memref<256x128xf32, #tpu.memory_space<vmem>>, vector<1x128xf32>,
    %c173_i32 = arith.constant 173 : i32
    %1385 = arith.addi %0, %c173_i32 : i32
    %1386 = arith.index_cast %1385 : i32 to index
    %1387 = memref.load %arg1[%1386] : memref<512xi32, #tpu.memory_space<smem>>
    %1388 = arith.index_cast %1387 : i32 to index
    %c0_518 = arith.constant 0 : index
    %1389 = vector.load %arg2[%1388, %c0_518] : memref<1000x128xf32, #tpu.memory_space<vmem>>, vector<1x128xf32>
    %cst_519 = arith.constant 11.3137083 : f32
    %1390 = vector.broadcast %cst_519 : f32 to vector<1x128xf32>
    %1391 = arith.mulf %1389, %1390 : vector<1x128xf32>
    %c173 = arith.constant 173 : index
    %c0_520 = arith.constant 0 : index
    %1392 = vector.load %arg3[%c173, %c0_520] : memref<256x128xf32, #tpu.memory_space<vmem>>, vector<1x128xf32>
    tpu.vector_store %arg3[%c173, %c0_520], %1391 {strides = array<i32>} : memref<256x128xf32, #tpu.memory_space<vmem>>, vector<1x128xf32>,
    %c174_i32 = arith.constant 174 : i32
    %1393 = arith.addi %0, %c174_i32 : i32
    %1394 = arith.index_cast %1393 : i32 to index
    %1395 = memref.load %arg1[%1394] : memref<512xi32, #tpu.memory_space<smem>>
    %1396 = arith.index_cast %1395 : i32 to index
    %c0_521 = arith.constant 0 : index
    %1397 = vector.load %arg2[%1396, %c0_521] : memref<1000x128xf32, #tpu.memory_space<vmem>>, vector<1x128xf32>
    %cst_522 = arith.constant 11.3137083 : f32
    %1398 = vector.broadcast %cst_522 : f32 to vector<1x128xf32>
    %1399 = arith.mulf %1397, %1398 : vector<1x128xf32>
    %c174 = arith.constant 174 : index
    %c0_523 = arith.constant 0 : index
    %1400 = vector.load %arg3[%c174, %c0_523] : memref<256x128xf32, #tpu.memory_space<vmem>>, vector<1x128xf32>
    tpu.vector_store %arg3[%c174, %c0_523], %1399 {strides = array<i32>} : memref<256x128xf32, #tpu.memory_space<vmem>>, vector<1x128xf32>,
    %c175_i32 = arith.constant 175 : i32
    %1401 = arith.addi %0, %c175_i32 : i32
    %1402 = arith.index_cast %1401 : i32 to index
    %1403 = memref.load %arg1[%1402] : memref<512xi32, #tpu.memory_space<smem>>
    %1404 = arith.index_cast %1403 : i32 to index
    %c0_524 = arith.constant 0 : index
    %1405 = vector.load %arg2[%1404, %c0_524] : memref<1000x128xf32, #tpu.memory_space<vmem>>, vector<1x128xf32>
    %cst_525 = arith.constant 11.3137083 : f32
    %1406 = vector.broadcast %cst_525 : f32 to vector<1x128xf32>
    %1407 = arith.mulf %1405, %1406 : vector<1x128xf32>
    %c175 = arith.constant 175 : index
    %c0_526 = arith.constant 0 : index
    %1408 = vector.load %arg3[%c175, %c0_526] : memref<256x128xf32, #tpu.memory_space<vmem>>, vector<1x128xf32>
    tpu.vector_store %arg3[%c175, %c0_526], %1407 {strides = array<i32>} : memref<256x128xf32, #tpu.memory_space<vmem>>, vector<1x128xf32>,
    %c176_i32 = arith.constant 176 : i32
    %1409 = arith.addi %0, %c176_i32 : i32
    %1410 = arith.index_cast %1409 : i32 to index
    %1411 = memref.load %arg1[%1410] : memref<512xi32, #tpu.memory_space<smem>>
    %1412 = arith.index_cast %1411 : i32 to index
    %c0_527 = arith.constant 0 : index
    %1413 = vector.load %arg2[%1412, %c0_527] : memref<1000x128xf32, #tpu.memory_space<vmem>>, vector<1x128xf32>
    %cst_528 = arith.constant 11.3137083 : f32
    %1414 = vector.broadcast %cst_528 : f32 to vector<1x128xf32>
    %1415 = arith.mulf %1413, %1414 : vector<1x128xf32>
    %c176 = arith.constant 176 : index
    %c0_529 = arith.constant 0 : index
    %1416 = vector.load %arg3[%c176, %c0_529] : memref<256x128xf32, #tpu.memory_space<vmem>>, vector<1x128xf32>
    tpu.vector_store %arg3[%c176, %c0_529], %1415 {strides = array<i32>} : memref<256x128xf32, #tpu.memory_space<vmem>>, vector<1x128xf32>,
    %c177_i32 = arith.constant 177 : i32
    %1417 = arith.addi %0, %c177_i32 : i32
    %1418 = arith.index_cast %1417 : i32 to index
    %1419 = memref.load %arg1[%1418] : memref<512xi32, #tpu.memory_space<smem>>
    %1420 = arith.index_cast %1419 : i32 to index
    %c0_530 = arith.constant 0 : index
    %1421 = vector.load %arg2[%1420, %c0_530] : memref<1000x128xf32, #tpu.memory_space<vmem>>, vector<1x128xf32>
    %cst_531 = arith.constant 11.3137083 : f32
    %1422 = vector.broadcast %cst_531 : f32 to vector<1x128xf32>
    %1423 = arith.mulf %1421, %1422 : vector<1x128xf32>
    %c177 = arith.constant 177 : index
    %c0_532 = arith.constant 0 : index
    %1424 = vector.load %arg3[%c177, %c0_532] : memref<256x128xf32, #tpu.memory_space<vmem>>, vector<1x128xf32>
    tpu.vector_store %arg3[%c177, %c0_532], %1423 {strides = array<i32>} : memref<256x128xf32, #tpu.memory_space<vmem>>, vector<1x128xf32>,
    %c178_i32 = arith.constant 178 : i32
    %1425 = arith.addi %0, %c178_i32 : i32
    %1426 = arith.index_cast %1425 : i32 to index
    %1427 = memref.load %arg1[%1426] : memref<512xi32, #tpu.memory_space<smem>>
    %1428 = arith.index_cast %1427 : i32 to index
    %c0_533 = arith.constant 0 : index
    %1429 = vector.load %arg2[%1428, %c0_533] : memref<1000x128xf32, #tpu.memory_space<vmem>>, vector<1x128xf32>
    %cst_534 = arith.constant 11.3137083 : f32
    %1430 = vector.broadcast %cst_534 : f32 to vector<1x128xf32>
    %1431 = arith.mulf %1429, %1430 : vector<1x128xf32>
    %c178 = arith.constant 178 : index
    %c0_535 = arith.constant 0 : index
    %1432 = vector.load %arg3[%c178, %c0_535] : memref<256x128xf32, #tpu.memory_space<vmem>>, vector<1x128xf32>
    tpu.vector_store %arg3[%c178, %c0_535], %1431 {strides = array<i32>} : memref<256x128xf32, #tpu.memory_space<vmem>>, vector<1x128xf32>,
    %c179_i32 = arith.constant 179 : i32
    %1433 = arith.addi %0, %c179_i32 : i32
    %1434 = arith.index_cast %1433 : i32 to index
    %1435 = memref.load %arg1[%1434] : memref<512xi32, #tpu.memory_space<smem>>
    %1436 = arith.index_cast %1435 : i32 to index
    %c0_536 = arith.constant 0 : index
    %1437 = vector.load %arg2[%1436, %c0_536] : memref<1000x128xf32, #tpu.memory_space<vmem>>, vector<1x128xf32>
    %cst_537 = arith.constant 11.3137083 : f32
    %1438 = vector.broadcast %cst_537 : f32 to vector<1x128xf32>
    %1439 = arith.mulf %1437, %1438 : vector<1x128xf32>
    %c179 = arith.constant 179 : index
    %c0_538 = arith.constant 0 : index
    %1440 = vector.load %arg3[%c179, %c0_538] : memref<256x128xf32, #tpu.memory_space<vmem>>, vector<1x128xf32>
    tpu.vector_store %arg3[%c179, %c0_538], %1439 {strides = array<i32>} : memref<256x128xf32, #tpu.memory_space<vmem>>, vector<1x128xf32>,
    %c180_i32 = arith.constant 180 : i32
    %1441 = arith.addi %0, %c180_i32 : i32
    %1442 = arith.index_cast %1441 : i32 to index
    %1443 = memref.load %arg1[%1442] : memref<512xi32, #tpu.memory_space<smem>>
    %1444 = arith.index_cast %1443 : i32 to index
    %c0_539 = arith.constant 0 : index
    %1445 = vector.load %arg2[%1444, %c0_539] : memref<1000x128xf32, #tpu.memory_space<vmem>>, vector<1x128xf32>
    %cst_540 = arith.constant 11.3137083 : f32
    %1446 = vector.broadcast %cst_540 : f32 to vector<1x128xf32>
    %1447 = arith.mulf %1445, %1446 : vector<1x128xf32>
    %c180 = arith.constant 180 : index
    %c0_541 = arith.constant 0 : index
    %1448 = vector.load %arg3[%c180, %c0_541] : memref<256x128xf32, #tpu.memory_space<vmem>>, vector<1x128xf32>
    tpu.vector_store %arg3[%c180, %c0_541], %1447 {strides = array<i32>} : memref<256x128xf32, #tpu.memory_space<vmem>>, vector<1x128xf32>,
    %c181_i32 = arith.constant 181 : i32
    %1449 = arith.addi %0, %c181_i32 : i32
    %1450 = arith.index_cast %1449 : i32 to index
    %1451 = memref.load %arg1[%1450] : memref<512xi32, #tpu.memory_space<smem>>
    %1452 = arith.index_cast %1451 : i32 to index
    %c0_542 = arith.constant 0 : index
    %1453 = vector.load %arg2[%1452, %c0_542] : memref<1000x128xf32, #tpu.memory_space<vmem>>, vector<1x128xf32>
    %cst_543 = arith.constant 11.3137083 : f32
    %1454 = vector.broadcast %cst_543 : f32 to vector<1x128xf32>
    %1455 = arith.mulf %1453, %1454 : vector<1x128xf32>
    %c181 = arith.constant 181 : index
    %c0_544 = arith.constant 0 : index
    %1456 = vector.load %arg3[%c181, %c0_544] : memref<256x128xf32, #tpu.memory_space<vmem>>, vector<1x128xf32>
    tpu.vector_store %arg3[%c181, %c0_544], %1455 {strides = array<i32>} : memref<256x128xf32, #tpu.memory_space<vmem>>, vector<1x128xf32>,
    %c182_i32 = arith.constant 182 : i32
    %1457 = arith.addi %0, %c182_i32 : i32
    %1458 = arith.index_cast %1457 : i32 to index
    %1459 = memref.load %arg1[%1458] : memref<512xi32, #tpu.memory_space<smem>>
    %1460 = arith.index_cast %1459 : i32 to index
    %c0_545 = arith.constant 0 : index
    %1461 = vector.load %arg2[%1460, %c0_545] : memref<1000x128xf32, #tpu.memory_space<vmem>>, vector<1x128xf32>
    %cst_546 = arith.constant 11.3137083 : f32
    %1462 = vector.broadcast %cst_546 : f32 to vector<1x128xf32>
    %1463 = arith.mulf %1461, %1462 : vector<1x128xf32>
    %c182 = arith.constant 182 : index
    %c0_547 = arith.constant 0 : index
    %1464 = vector.load %arg3[%c182, %c0_547] : memref<256x128xf32, #tpu.memory_space<vmem>>, vector<1x128xf32>
    tpu.vector_store %arg3[%c182, %c0_547], %1463 {strides = array<i32>} : memref<256x128xf32, #tpu.memory_space<vmem>>, vector<1x128xf32>,
    %c183_i32 = arith.constant 183 : i32
    %1465 = arith.addi %0, %c183_i32 : i32
    %1466 = arith.index_cast %1465 : i32 to index
    %1467 = memref.load %arg1[%1466] : memref<512xi32, #tpu.memory_space<smem>>
    %1468 = arith.index_cast %1467 : i32 to index
    %c0_548 = arith.constant 0 : index
    %1469 = vector.load %arg2[%1468, %c0_548] : memref<1000x128xf32, #tpu.memory_space<vmem>>, vector<1x128xf32>
    %cst_549 = arith.constant 11.3137083 : f32
    %1470 = vector.broadcast %cst_549 : f32 to vector<1x128xf32>
    %1471 = arith.mulf %1469, %1470 : vector<1x128xf32>
    %c183 = arith.constant 183 : index
    %c0_550 = arith.constant 0 : index
    %1472 = vector.load %arg3[%c183, %c0_550] : memref<256x128xf32, #tpu.memory_space<vmem>>, vector<1x128xf32>
    tpu.vector_store %arg3[%c183, %c0_550], %1471 {strides = array<i32>} : memref<256x128xf32, #tpu.memory_space<vmem>>, vector<1x128xf32>,
    %c184_i32 = arith.constant 184 : i32
    %1473 = arith.addi %0, %c184_i32 : i32
    %1474 = arith.index_cast %1473 : i32 to index
    %1475 = memref.load %arg1[%1474] : memref<512xi32, #tpu.memory_space<smem>>
    %1476 = arith.index_cast %1475 : i32 to index
    %c0_551 = arith.constant 0 : index
    %1477 = vector.load %arg2[%1476, %c0_551] : memref<1000x128xf32, #tpu.memory_space<vmem>>, vector<1x128xf32>
    %cst_552 = arith.constant 11.3137083 : f32
    %1478 = vector.broadcast %cst_552 : f32 to vector<1x128xf32>
    %1479 = arith.mulf %1477, %1478 : vector<1x128xf32>
    %c184 = arith.constant 184 : index
    %c0_553 = arith.constant 0 : index
    %1480 = vector.load %arg3[%c184, %c0_553] : memref<256x128xf32, #tpu.memory_space<vmem>>, vector<1x128xf32>
    tpu.vector_store %arg3[%c184, %c0_553], %1479 {strides = array<i32>} : memref<256x128xf32, #tpu.memory_space<vmem>>, vector<1x128xf32>,
    %c185_i32 = arith.constant 185 : i32
    %1481 = arith.addi %0, %c185_i32 : i32
    %1482 = arith.index_cast %1481 : i32 to index
    %1483 = memref.load %arg1[%1482] : memref<512xi32, #tpu.memory_space<smem>>
    %1484 = arith.index_cast %1483 : i32 to index
    %c0_554 = arith.constant 0 : index
    %1485 = vector.load %arg2[%1484, %c0_554] : memref<1000x128xf32, #tpu.memory_space<vmem>>, vector<1x128xf32>
    %cst_555 = arith.constant 11.3137083 : f32
    %1486 = vector.broadcast %cst_555 : f32 to vector<1x128xf32>
    %1487 = arith.mulf %1485, %1486 : vector<1x128xf32>
    %c185 = arith.constant 185 : index
    %c0_556 = arith.constant 0 : index
    %1488 = vector.load %arg3[%c185, %c0_556] : memref<256x128xf32, #tpu.memory_space<vmem>>, vector<1x128xf32>
    tpu.vector_store %arg3[%c185, %c0_556], %1487 {strides = array<i32>} : memref<256x128xf32, #tpu.memory_space<vmem>>, vector<1x128xf32>,
    %c186_i32 = arith.constant 186 : i32
    %1489 = arith.addi %0, %c186_i32 : i32
    %1490 = arith.index_cast %1489 : i32 to index
    %1491 = memref.load %arg1[%1490] : memref<512xi32, #tpu.memory_space<smem>>
    %1492 = arith.index_cast %1491 : i32 to index
    %c0_557 = arith.constant 0 : index
    %1493 = vector.load %arg2[%1492, %c0_557] : memref<1000x128xf32, #tpu.memory_space<vmem>>, vector<1x128xf32>
    %cst_558 = arith.constant 11.3137083 : f32
    %1494 = vector.broadcast %cst_558 : f32 to vector<1x128xf32>
    %1495 = arith.mulf %1493, %1494 : vector<1x128xf32>
    %c186 = arith.constant 186 : index
    %c0_559 = arith.constant 0 : index
    %1496 = vector.load %arg3[%c186, %c0_559] : memref<256x128xf32, #tpu.memory_space<vmem>>, vector<1x128xf32>
    tpu.vector_store %arg3[%c186, %c0_559], %1495 {strides = array<i32>} : memref<256x128xf32, #tpu.memory_space<vmem>>, vector<1x128xf32>,
    %c187_i32 = arith.constant 187 : i32
    %1497 = arith.addi %0, %c187_i32 : i32
    %1498 = arith.index_cast %1497 : i32 to index
    %1499 = memref.load %arg1[%1498] : memref<512xi32, #tpu.memory_space<smem>>
    %1500 = arith.index_cast %1499 : i32 to index
    %c0_560 = arith.constant 0 : index
    %1501 = vector.load %arg2[%1500, %c0_560] : memref<1000x128xf32, #tpu.memory_space<vmem>>, vector<1x128xf32>
    %cst_561 = arith.constant 11.3137083 : f32
    %1502 = vector.broadcast %cst_561 : f32 to vector<1x128xf32>
    %1503 = arith.mulf %1501, %1502 : vector<1x128xf32>
    %c187 = arith.constant 187 : index
    %c0_562 = arith.constant 0 : index
    %1504 = vector.load %arg3[%c187, %c0_562] : memref<256x128xf32, #tpu.memory_space<vmem>>, vector<1x128xf32>
    tpu.vector_store %arg3[%c187, %c0_562], %1503 {strides = array<i32>} : memref<256x128xf32, #tpu.memory_space<vmem>>, vector<1x128xf32>,
    %c188_i32 = arith.constant 188 : i32
    %1505 = arith.addi %0, %c188_i32 : i32
    %1506 = arith.index_cast %1505 : i32 to index
    %1507 = memref.load %arg1[%1506] : memref<512xi32, #tpu.memory_space<smem>>
    %1508 = arith.index_cast %1507 : i32 to index
    %c0_563 = arith.constant 0 : index
    %1509 = vector.load %arg2[%1508, %c0_563] : memref<1000x128xf32, #tpu.memory_space<vmem>>, vector<1x128xf32>
    %cst_564 = arith.constant 11.3137083 : f32
    %1510 = vector.broadcast %cst_564 : f32 to vector<1x128xf32>
    %1511 = arith.mulf %1509, %1510 : vector<1x128xf32>
    %c188 = arith.constant 188 : index
    %c0_565 = arith.constant 0 : index
    %1512 = vector.load %arg3[%c188, %c0_565] : memref<256x128xf32, #tpu.memory_space<vmem>>, vector<1x128xf32>
    tpu.vector_store %arg3[%c188, %c0_565], %1511 {strides = array<i32>} : memref<256x128xf32, #tpu.memory_space<vmem>>, vector<1x128xf32>,
    %c189_i32 = arith.constant 189 : i32
    %1513 = arith.addi %0, %c189_i32 : i32
    %1514 = arith.index_cast %1513 : i32 to index
    %1515 = memref.load %arg1[%1514] : memref<512xi32, #tpu.memory_space<smem>>
    %1516 = arith.index_cast %1515 : i32 to index
    %c0_566 = arith.constant 0 : index
    %1517 = vector.load %arg2[%1516, %c0_566] : memref<1000x128xf32, #tpu.memory_space<vmem>>, vector<1x128xf32>
    %cst_567 = arith.constant 11.3137083 : f32
    %1518 = vector.broadcast %cst_567 : f32 to vector<1x128xf32>
    %1519 = arith.mulf %1517, %1518 : vector<1x128xf32>
    %c189 = arith.constant 189 : index
    %c0_568 = arith.constant 0 : index
    %1520 = vector.load %arg3[%c189, %c0_568] : memref<256x128xf32, #tpu.memory_space<vmem>>, vector<1x128xf32>
    tpu.vector_store %arg3[%c189, %c0_568], %1519 {strides = array<i32>} : memref<256x128xf32, #tpu.memory_space<vmem>>, vector<1x128xf32>,
    %c190_i32 = arith.constant 190 : i32
    %1521 = arith.addi %0, %c190_i32 : i32
    %1522 = arith.index_cast %1521 : i32 to index
    %1523 = memref.load %arg1[%1522] : memref<512xi32, #tpu.memory_space<smem>>
    %1524 = arith.index_cast %1523 : i32 to index
    %c0_569 = arith.constant 0 : index
    %1525 = vector.load %arg2[%1524, %c0_569] : memref<1000x128xf32, #tpu.memory_space<vmem>>, vector<1x128xf32>
    %cst_570 = arith.constant 11.3137083 : f32
    %1526 = vector.broadcast %cst_570 : f32 to vector<1x128xf32>
    %1527 = arith.mulf %1525, %1526 : vector<1x128xf32>
    %c190 = arith.constant 190 : index
    %c0_571 = arith.constant 0 : index
    %1528 = vector.load %arg3[%c190, %c0_571] : memref<256x128xf32, #tpu.memory_space<vmem>>, vector<1x128xf32>
    tpu.vector_store %arg3[%c190, %c0_571], %1527 {strides = array<i32>} : memref<256x128xf32, #tpu.memory_space<vmem>>, vector<1x128xf32>,
    %c191_i32 = arith.constant 191 : i32
    %1529 = arith.addi %0, %c191_i32 : i32
    %1530 = arith.index_cast %1529 : i32 to index
    %1531 = memref.load %arg1[%1530] : memref<512xi32, #tpu.memory_space<smem>>
    %1532 = arith.index_cast %1531 : i32 to index
    %c0_572 = arith.constant 0 : index
    %1533 = vector.load %arg2[%1532, %c0_572] : memref<1000x128xf32, #tpu.memory_space<vmem>>, vector<1x128xf32>
    %cst_573 = arith.constant 11.3137083 : f32
    %1534 = vector.broadcast %cst_573 : f32 to vector<1x128xf32>
    %1535 = arith.mulf %1533, %1534 : vector<1x128xf32>
    %c191 = arith.constant 191 : index
    %c0_574 = arith.constant 0 : index
    %1536 = vector.load %arg3[%c191, %c0_574] : memref<256x128xf32, #tpu.memory_space<vmem>>, vector<1x128xf32>
    tpu.vector_store %arg3[%c191, %c0_574], %1535 {strides = array<i32>} : memref<256x128xf32, #tpu.memory_space<vmem>>, vector<1x128xf32>,
    %c192_i32 = arith.constant 192 : i32
    %1537 = arith.addi %0, %c192_i32 : i32
    %1538 = arith.index_cast %1537 : i32 to index
    %1539 = memref.load %arg1[%1538] : memref<512xi32, #tpu.memory_space<smem>>
    %1540 = arith.index_cast %1539 : i32 to index
    %c0_575 = arith.constant 0 : index
    %1541 = vector.load %arg2[%1540, %c0_575] : memref<1000x128xf32, #tpu.memory_space<vmem>>, vector<1x128xf32>
    %cst_576 = arith.constant 11.3137083 : f32
    %1542 = vector.broadcast %cst_576 : f32 to vector<1x128xf32>
    %1543 = arith.mulf %1541, %1542 : vector<1x128xf32>
    %c192 = arith.constant 192 : index
    %c0_577 = arith.constant 0 : index
    %1544 = vector.load %arg3[%c192, %c0_577] : memref<256x128xf32, #tpu.memory_space<vmem>>, vector<1x128xf32>
    tpu.vector_store %arg3[%c192, %c0_577], %1543 {strides = array<i32>} : memref<256x128xf32, #tpu.memory_space<vmem>>, vector<1x128xf32>,
    %c193_i32 = arith.constant 193 : i32
    %1545 = arith.addi %0, %c193_i32 : i32
    %1546 = arith.index_cast %1545 : i32 to index
    %1547 = memref.load %arg1[%1546] : memref<512xi32, #tpu.memory_space<smem>>
    %1548 = arith.index_cast %1547 : i32 to index
    %c0_578 = arith.constant 0 : index
    %1549 = vector.load %arg2[%1548, %c0_578] : memref<1000x128xf32, #tpu.memory_space<vmem>>, vector<1x128xf32>
    %cst_579 = arith.constant 11.3137083 : f32
    %1550 = vector.broadcast %cst_579 : f32 to vector<1x128xf32>
    %1551 = arith.mulf %1549, %1550 : vector<1x128xf32>
    %c193 = arith.constant 193 : index
    %c0_580 = arith.constant 0 : index
    %1552 = vector.load %arg3[%c193, %c0_580] : memref<256x128xf32, #tpu.memory_space<vmem>>, vector<1x128xf32>
    tpu.vector_store %arg3[%c193, %c0_580], %1551 {strides = array<i32>} : memref<256x128xf32, #tpu.memory_space<vmem>>, vector<1x128xf32>,
    %c194_i32 = arith.constant 194 : i32
    %1553 = arith.addi %0, %c194_i32 : i32
    %1554 = arith.index_cast %1553 : i32 to index
    %1555 = memref.load %arg1[%1554] : memref<512xi32, #tpu.memory_space<smem>>
    %1556 = arith.index_cast %1555 : i32 to index
    %c0_581 = arith.constant 0 : index
    %1557 = vector.load %arg2[%1556, %c0_581] : memref<1000x128xf32, #tpu.memory_space<vmem>>, vector<1x128xf32>
    %cst_582 = arith.constant 11.3137083 : f32
    %1558 = vector.broadcast %cst_582 : f32 to vector<1x128xf32>
    %1559 = arith.mulf %1557, %1558 : vector<1x128xf32>
    %c194 = arith.constant 194 : index
    %c0_583 = arith.constant 0 : index
    %1560 = vector.load %arg3[%c194, %c0_583] : memref<256x128xf32, #tpu.memory_space<vmem>>, vector<1x128xf32>
    tpu.vector_store %arg3[%c194, %c0_583], %1559 {strides = array<i32>} : memref<256x128xf32, #tpu.memory_space<vmem>>, vector<1x128xf32>,
    %c195_i32 = arith.constant 195 : i32
    %1561 = arith.addi %0, %c195_i32 : i32
    %1562 = arith.index_cast %1561 : i32 to index
    %1563 = memref.load %arg1[%1562] : memref<512xi32, #tpu.memory_space<smem>>
    %1564 = arith.index_cast %1563 : i32 to index
    %c0_584 = arith.constant 0 : index
    %1565 = vector.load %arg2[%1564, %c0_584] : memref<1000x128xf32, #tpu.memory_space<vmem>>, vector<1x128xf32>
    %cst_585 = arith.constant 11.3137083 : f32
    %1566 = vector.broadcast %cst_585 : f32 to vector<1x128xf32>
    %1567 = arith.mulf %1565, %1566 : vector<1x128xf32>
    %c195 = arith.constant 195 : index
    %c0_586 = arith.constant 0 : index
    %1568 = vector.load %arg3[%c195, %c0_586] : memref<256x128xf32, #tpu.memory_space<vmem>>, vector<1x128xf32>
    tpu.vector_store %arg3[%c195, %c0_586], %1567 {strides = array<i32>} : memref<256x128xf32, #tpu.memory_space<vmem>>, vector<1x128xf32>,
    %c196_i32 = arith.constant 196 : i32
    %1569 = arith.addi %0, %c196_i32 : i32
    %1570 = arith.index_cast %1569 : i32 to index
    %1571 = memref.load %arg1[%1570] : memref<512xi32, #tpu.memory_space<smem>>
    %1572 = arith.index_cast %1571 : i32 to index
    %c0_587 = arith.constant 0 : index
    %1573 = vector.load %arg2[%1572, %c0_587] : memref<1000x128xf32, #tpu.memory_space<vmem>>, vector<1x128xf32>
    %cst_588 = arith.constant 11.3137083 : f32
    %1574 = vector.broadcast %cst_588 : f32 to vector<1x128xf32>
    %1575 = arith.mulf %1573, %1574 : vector<1x128xf32>
    %c196 = arith.constant 196 : index
    %c0_589 = arith.constant 0 : index
    %1576 = vector.load %arg3[%c196, %c0_589] : memref<256x128xf32, #tpu.memory_space<vmem>>, vector<1x128xf32>
    tpu.vector_store %arg3[%c196, %c0_589], %1575 {strides = array<i32>} : memref<256x128xf32, #tpu.memory_space<vmem>>, vector<1x128xf32>,
    %c197_i32 = arith.constant 197 : i32
    %1577 = arith.addi %0, %c197_i32 : i32
    %1578 = arith.index_cast %1577 : i32 to index
    %1579 = memref.load %arg1[%1578] : memref<512xi32, #tpu.memory_space<smem>>
    %1580 = arith.index_cast %1579 : i32 to index
    %c0_590 = arith.constant 0 : index
    %1581 = vector.load %arg2[%1580, %c0_590] : memref<1000x128xf32, #tpu.memory_space<vmem>>, vector<1x128xf32>
    %cst_591 = arith.constant 11.3137083 : f32
    %1582 = vector.broadcast %cst_591 : f32 to vector<1x128xf32>
    %1583 = arith.mulf %1581, %1582 : vector<1x128xf32>
    %c197 = arith.constant 197 : index
    %c0_592 = arith.constant 0 : index
    %1584 = vector.load %arg3[%c197, %c0_592] : memref<256x128xf32, #tpu.memory_space<vmem>>, vector<1x128xf32>
    tpu.vector_store %arg3[%c197, %c0_592], %1583 {strides = array<i32>} : memref<256x128xf32, #tpu.memory_space<vmem>>, vector<1x128xf32>,
    %c198_i32 = arith.constant 198 : i32
    %1585 = arith.addi %0, %c198_i32 : i32
    %1586 = arith.index_cast %1585 : i32 to index
    %1587 = memref.load %arg1[%1586] : memref<512xi32, #tpu.memory_space<smem>>
    %1588 = arith.index_cast %1587 : i32 to index
    %c0_593 = arith.constant 0 : index
    %1589 = vector.load %arg2[%1588, %c0_593] : memref<1000x128xf32, #tpu.memory_space<vmem>>, vector<1x128xf32>
    %cst_594 = arith.constant 11.3137083 : f32
    %1590 = vector.broadcast %cst_594 : f32 to vector<1x128xf32>
    %1591 = arith.mulf %1589, %1590 : vector<1x128xf32>
    %c198 = arith.constant 198 : index
    %c0_595 = arith.constant 0 : index
    %1592 = vector.load %arg3[%c198, %c0_595] : memref<256x128xf32, #tpu.memory_space<vmem>>, vector<1x128xf32>
    tpu.vector_store %arg3[%c198, %c0_595], %1591 {strides = array<i32>} : memref<256x128xf32, #tpu.memory_space<vmem>>, vector<1x128xf32>,
    %c199_i32 = arith.constant 199 : i32
    %1593 = arith.addi %0, %c199_i32 : i32
    %1594 = arith.index_cast %1593 : i32 to index
    %1595 = memref.load %arg1[%1594] : memref<512xi32, #tpu.memory_space<smem>>
    %1596 = arith.index_cast %1595 : i32 to index
    %c0_596 = arith.constant 0 : index
    %1597 = vector.load %arg2[%1596, %c0_596] : memref<1000x128xf32, #tpu.memory_space<vmem>>, vector<1x128xf32>
    %cst_597 = arith.constant 11.3137083 : f32
    %1598 = vector.broadcast %cst_597 : f32 to vector<1x128xf32>
    %1599 = arith.mulf %1597, %1598 : vector<1x128xf32>
    %c199 = arith.constant 199 : index
    %c0_598 = arith.constant 0 : index
    %1600 = vector.load %arg3[%c199, %c0_598] : memref<256x128xf32, #tpu.memory_space<vmem>>, vector<1x128xf32>
    tpu.vector_store %arg3[%c199, %c0_598], %1599 {strides = array<i32>} : memref<256x128xf32, #tpu.memory_space<vmem>>, vector<1x128xf32>,
    %c200_i32 = arith.constant 200 : i32
    %1601 = arith.addi %0, %c200_i32 : i32
    %1602 = arith.index_cast %1601 : i32 to index
    %1603 = memref.load %arg1[%1602] : memref<512xi32, #tpu.memory_space<smem>>
    %1604 = arith.index_cast %1603 : i32 to index
    %c0_599 = arith.constant 0 : index
    %1605 = vector.load %arg2[%1604, %c0_599] : memref<1000x128xf32, #tpu.memory_space<vmem>>, vector<1x128xf32>
    %cst_600 = arith.constant 11.3137083 : f32
    %1606 = vector.broadcast %cst_600 : f32 to vector<1x128xf32>
    %1607 = arith.mulf %1605, %1606 : vector<1x128xf32>
    %c200 = arith.constant 200 : index
    %c0_601 = arith.constant 0 : index
    %1608 = vector.load %arg3[%c200, %c0_601] : memref<256x128xf32, #tpu.memory_space<vmem>>, vector<1x128xf32>
    tpu.vector_store %arg3[%c200, %c0_601], %1607 {strides = array<i32>} : memref<256x128xf32, #tpu.memory_space<vmem>>, vector<1x128xf32>,
    %c201_i32 = arith.constant 201 : i32
    %1609 = arith.addi %0, %c201_i32 : i32
    %1610 = arith.index_cast %1609 : i32 to index
    %1611 = memref.load %arg1[%1610] : memref<512xi32, #tpu.memory_space<smem>>
    %1612 = arith.index_cast %1611 : i32 to index
    %c0_602 = arith.constant 0 : index
    %1613 = vector.load %arg2[%1612, %c0_602] : memref<1000x128xf32, #tpu.memory_space<vmem>>, vector<1x128xf32>
    %cst_603 = arith.constant 11.3137083 : f32
    %1614 = vector.broadcast %cst_603 : f32 to vector<1x128xf32>
    %1615 = arith.mulf %1613, %1614 : vector<1x128xf32>
    %c201 = arith.constant 201 : index
    %c0_604 = arith.constant 0 : index
    %1616 = vector.load %arg3[%c201, %c0_604] : memref<256x128xf32, #tpu.memory_space<vmem>>, vector<1x128xf32>
    tpu.vector_store %arg3[%c201, %c0_604], %1615 {strides = array<i32>} : memref<256x128xf32, #tpu.memory_space<vmem>>, vector<1x128xf32>,
    %c202_i32 = arith.constant 202 : i32
    %1617 = arith.addi %0, %c202_i32 : i32
    %1618 = arith.index_cast %1617 : i32 to index
    %1619 = memref.load %arg1[%1618] : memref<512xi32, #tpu.memory_space<smem>>
    %1620 = arith.index_cast %1619 : i32 to index
    %c0_605 = arith.constant 0 : index
    %1621 = vector.load %arg2[%1620, %c0_605] : memref<1000x128xf32, #tpu.memory_space<vmem>>, vector<1x128xf32>
    %cst_606 = arith.constant 11.3137083 : f32
    %1622 = vector.broadcast %cst_606 : f32 to vector<1x128xf32>
    %1623 = arith.mulf %1621, %1622 : vector<1x128xf32>
    %c202 = arith.constant 202 : index
    %c0_607 = arith.constant 0 : index
    %1624 = vector.load %arg3[%c202, %c0_607] : memref<256x128xf32, #tpu.memory_space<vmem>>, vector<1x128xf32>
    tpu.vector_store %arg3[%c202, %c0_607], %1623 {strides = array<i32>} : memref<256x128xf32, #tpu.memory_space<vmem>>, vector<1x128xf32>,
    %c203_i32 = arith.constant 203 : i32
    %1625 = arith.addi %0, %c203_i32 : i32
    %1626 = arith.index_cast %1625 : i32 to index
    %1627 = memref.load %arg1[%1626] : memref<512xi32, #tpu.memory_space<smem>>
    %1628 = arith.index_cast %1627 : i32 to index
    %c0_608 = arith.constant 0 : index
    %1629 = vector.load %arg2[%1628, %c0_608] : memref<1000x128xf32, #tpu.memory_space<vmem>>, vector<1x128xf32>
    %cst_609 = arith.constant 11.3137083 : f32
    %1630 = vector.broadcast %cst_609 : f32 to vector<1x128xf32>
    %1631 = arith.mulf %1629, %1630 : vector<1x128xf32>
    %c203 = arith.constant 203 : index
    %c0_610 = arith.constant 0 : index
    %1632 = vector.load %arg3[%c203, %c0_610] : memref<256x128xf32, #tpu.memory_space<vmem>>, vector<1x128xf32>
    tpu.vector_store %arg3[%c203, %c0_610], %1631 {strides = array<i32>} : memref<256x128xf32, #tpu.memory_space<vmem>>, vector<1x128xf32>,
    %c204_i32 = arith.constant 204 : i32
    %1633 = arith.addi %0, %c204_i32 : i32
    %1634 = arith.index_cast %1633 : i32 to index
    %1635 = memref.load %arg1[%1634] : memref<512xi32, #tpu.memory_space<smem>>
    %1636 = arith.index_cast %1635 : i32 to index
    %c0_611 = arith.constant 0 : index
    %1637 = vector.load %arg2[%1636, %c0_611] : memref<1000x128xf32, #tpu.memory_space<vmem>>, vector<1x128xf32>
    %cst_612 = arith.constant 11.3137083 : f32
    %1638 = vector.broadcast %cst_612 : f32 to vector<1x128xf32>
    %1639 = arith.mulf %1637, %1638 : vector<1x128xf32>
    %c204 = arith.constant 204 : index
    %c0_613 = arith.constant 0 : index
    %1640 = vector.load %arg3[%c204, %c0_613] : memref<256x128xf32, #tpu.memory_space<vmem>>, vector<1x128xf32>
    tpu.vector_store %arg3[%c204, %c0_613], %1639 {strides = array<i32>} : memref<256x128xf32, #tpu.memory_space<vmem>>, vector<1x128xf32>,
    %c205_i32 = arith.constant 205 : i32
    %1641 = arith.addi %0, %c205_i32 : i32
    %1642 = arith.index_cast %1641 : i32 to index
    %1643 = memref.load %arg1[%1642] : memref<512xi32, #tpu.memory_space<smem>>
    %1644 = arith.index_cast %1643 : i32 to index
    %c0_614 = arith.constant 0 : index
    %1645 = vector.load %arg2[%1644, %c0_614] : memref<1000x128xf32, #tpu.memory_space<vmem>>, vector<1x128xf32>
    %cst_615 = arith.constant 11.3137083 : f32
    %1646 = vector.broadcast %cst_615 : f32 to vector<1x128xf32>
    %1647 = arith.mulf %1645, %1646 : vector<1x128xf32>
    %c205 = arith.constant 205 : index
    %c0_616 = arith.constant 0 : index
    %1648 = vector.load %arg3[%c205, %c0_616] : memref<256x128xf32, #tpu.memory_space<vmem>>, vector<1x128xf32>
    tpu.vector_store %arg3[%c205, %c0_616], %1647 {strides = array<i32>} : memref<256x128xf32, #tpu.memory_space<vmem>>, vector<1x128xf32>,
    %c206_i32 = arith.constant 206 : i32
    %1649 = arith.addi %0, %c206_i32 : i32
    %1650 = arith.index_cast %1649 : i32 to index
    %1651 = memref.load %arg1[%1650] : memref<512xi32, #tpu.memory_space<smem>>
    %1652 = arith.index_cast %1651 : i32 to index
    %c0_617 = arith.constant 0 : index
    %1653 = vector.load %arg2[%1652, %c0_617] : memref<1000x128xf32, #tpu.memory_space<vmem>>, vector<1x128xf32>
    %cst_618 = arith.constant 11.3137083 : f32
    %1654 = vector.broadcast %cst_618 : f32 to vector<1x128xf32>
    %1655 = arith.mulf %1653, %1654 : vector<1x128xf32>
    %c206 = arith.constant 206 : index
    %c0_619 = arith.constant 0 : index
    %1656 = vector.load %arg3[%c206, %c0_619] : memref<256x128xf32, #tpu.memory_space<vmem>>, vector<1x128xf32>
    tpu.vector_store %arg3[%c206, %c0_619], %1655 {strides = array<i32>} : memref<256x128xf32, #tpu.memory_space<vmem>>, vector<1x128xf32>,
    %c207_i32 = arith.constant 207 : i32
    %1657 = arith.addi %0, %c207_i32 : i32
    %1658 = arith.index_cast %1657 : i32 to index
    %1659 = memref.load %arg1[%1658] : memref<512xi32, #tpu.memory_space<smem>>
    %1660 = arith.index_cast %1659 : i32 to index
    %c0_620 = arith.constant 0 : index
    %1661 = vector.load %arg2[%1660, %c0_620] : memref<1000x128xf32, #tpu.memory_space<vmem>>, vector<1x128xf32>
    %cst_621 = arith.constant 11.3137083 : f32
    %1662 = vector.broadcast %cst_621 : f32 to vector<1x128xf32>
    %1663 = arith.mulf %1661, %1662 : vector<1x128xf32>
    %c207 = arith.constant 207 : index
    %c0_622 = arith.constant 0 : index
    %1664 = vector.load %arg3[%c207, %c0_622] : memref<256x128xf32, #tpu.memory_space<vmem>>, vector<1x128xf32>
    tpu.vector_store %arg3[%c207, %c0_622], %1663 {strides = array<i32>} : memref<256x128xf32, #tpu.memory_space<vmem>>, vector<1x128xf32>,
    %c208_i32 = arith.constant 208 : i32
    %1665 = arith.addi %0, %c208_i32 : i32
    %1666 = arith.index_cast %1665 : i32 to index
    %1667 = memref.load %arg1[%1666] : memref<512xi32, #tpu.memory_space<smem>>
    %1668 = arith.index_cast %1667 : i32 to index
    %c0_623 = arith.constant 0 : index
    %1669 = vector.load %arg2[%1668, %c0_623] : memref<1000x128xf32, #tpu.memory_space<vmem>>, vector<1x128xf32>
    %cst_624 = arith.constant 11.3137083 : f32
    %1670 = vector.broadcast %cst_624 : f32 to vector<1x128xf32>
    %1671 = arith.mulf %1669, %1670 : vector<1x128xf32>
    %c208 = arith.constant 208 : index
    %c0_625 = arith.constant 0 : index
    %1672 = vector.load %arg3[%c208, %c0_625] : memref<256x128xf32, #tpu.memory_space<vmem>>, vector<1x128xf32>
    tpu.vector_store %arg3[%c208, %c0_625], %1671 {strides = array<i32>} : memref<256x128xf32, #tpu.memory_space<vmem>>, vector<1x128xf32>,
    %c209_i32 = arith.constant 209 : i32
    %1673 = arith.addi %0, %c209_i32 : i32
    %1674 = arith.index_cast %1673 : i32 to index
    %1675 = memref.load %arg1[%1674] : memref<512xi32, #tpu.memory_space<smem>>
    %1676 = arith.index_cast %1675 : i32 to index
    %c0_626 = arith.constant 0 : index
    %1677 = vector.load %arg2[%1676, %c0_626] : memref<1000x128xf32, #tpu.memory_space<vmem>>, vector<1x128xf32>
    %cst_627 = arith.constant 11.3137083 : f32
    %1678 = vector.broadcast %cst_627 : f32 to vector<1x128xf32>
    %1679 = arith.mulf %1677, %1678 : vector<1x128xf32>
    %c209 = arith.constant 209 : index
    %c0_628 = arith.constant 0 : index
    %1680 = vector.load %arg3[%c209, %c0_628] : memref<256x128xf32, #tpu.memory_space<vmem>>, vector<1x128xf32>
    tpu.vector_store %arg3[%c209, %c0_628], %1679 {strides = array<i32>} : memref<256x128xf32, #tpu.memory_space<vmem>>, vector<1x128xf32>,
    %c210_i32 = arith.constant 210 : i32
    %1681 = arith.addi %0, %c210_i32 : i32
    %1682 = arith.index_cast %1681 : i32 to index
    %1683 = memref.load %arg1[%1682] : memref<512xi32, #tpu.memory_space<smem>>
    %1684 = arith.index_cast %1683 : i32 to index
    %c0_629 = arith.constant 0 : index
    %1685 = vector.load %arg2[%1684, %c0_629] : memref<1000x128xf32, #tpu.memory_space<vmem>>, vector<1x128xf32>
    %cst_630 = arith.constant 11.3137083 : f32
    %1686 = vector.broadcast %cst_630 : f32 to vector<1x128xf32>
    %1687 = arith.mulf %1685, %1686 : vector<1x128xf32>
    %c210 = arith.constant 210 : index
    %c0_631 = arith.constant 0 : index
    %1688 = vector.load %arg3[%c210, %c0_631] : memref<256x128xf32, #tpu.memory_space<vmem>>, vector<1x128xf32>
    tpu.vector_store %arg3[%c210, %c0_631], %1687 {strides = array<i32>} : memref<256x128xf32, #tpu.memory_space<vmem>>, vector<1x128xf32>,
    %c211_i32 = arith.constant 211 : i32
    %1689 = arith.addi %0, %c211_i32 : i32
    %1690 = arith.index_cast %1689 : i32 to index
    %1691 = memref.load %arg1[%1690] : memref<512xi32, #tpu.memory_space<smem>>
    %1692 = arith.index_cast %1691 : i32 to index
    %c0_632 = arith.constant 0 : index
    %1693 = vector.load %arg2[%1692, %c0_632] : memref<1000x128xf32, #tpu.memory_space<vmem>>, vector<1x128xf32>
    %cst_633 = arith.constant 11.3137083 : f32
    %1694 = vector.broadcast %cst_633 : f32 to vector<1x128xf32>
    %1695 = arith.mulf %1693, %1694 : vector<1x128xf32>
    %c211 = arith.constant 211 : index
    %c0_634 = arith.constant 0 : index
    %1696 = vector.load %arg3[%c211, %c0_634] : memref<256x128xf32, #tpu.memory_space<vmem>>, vector<1x128xf32>
    tpu.vector_store %arg3[%c211, %c0_634], %1695 {strides = array<i32>} : memref<256x128xf32, #tpu.memory_space<vmem>>, vector<1x128xf32>,
    %c212_i32 = arith.constant 212 : i32
    %1697 = arith.addi %0, %c212_i32 : i32
    %1698 = arith.index_cast %1697 : i32 to index
    %1699 = memref.load %arg1[%1698] : memref<512xi32, #tpu.memory_space<smem>>
    %1700 = arith.index_cast %1699 : i32 to index
    %c0_635 = arith.constant 0 : index
    %1701 = vector.load %arg2[%1700, %c0_635] : memref<1000x128xf32, #tpu.memory_space<vmem>>, vector<1x128xf32>
    %cst_636 = arith.constant 11.3137083 : f32
    %1702 = vector.broadcast %cst_636 : f32 to vector<1x128xf32>
    %1703 = arith.mulf %1701, %1702 : vector<1x128xf32>
    %c212 = arith.constant 212 : index
    %c0_637 = arith.constant 0 : index
    %1704 = vector.load %arg3[%c212, %c0_637] : memref<256x128xf32, #tpu.memory_space<vmem>>, vector<1x128xf32>
    tpu.vector_store %arg3[%c212, %c0_637], %1703 {strides = array<i32>} : memref<256x128xf32, #tpu.memory_space<vmem>>, vector<1x128xf32>,
    %c213_i32 = arith.constant 213 : i32
    %1705 = arith.addi %0, %c213_i32 : i32
    %1706 = arith.index_cast %1705 : i32 to index
    %1707 = memref.load %arg1[%1706] : memref<512xi32, #tpu.memory_space<smem>>
    %1708 = arith.index_cast %1707 : i32 to index
    %c0_638 = arith.constant 0 : index
    %1709 = vector.load %arg2[%1708, %c0_638] : memref<1000x128xf32, #tpu.memory_space<vmem>>, vector<1x128xf32>
    %cst_639 = arith.constant 11.3137083 : f32
    %1710 = vector.broadcast %cst_639 : f32 to vector<1x128xf32>
    %1711 = arith.mulf %1709, %1710 : vector<1x128xf32>
    %c213 = arith.constant 213 : index
    %c0_640 = arith.constant 0 : index
    %1712 = vector.load %arg3[%c213, %c0_640] : memref<256x128xf32, #tpu.memory_space<vmem>>, vector<1x128xf32>
    tpu.vector_store %arg3[%c213, %c0_640], %1711 {strides = array<i32>} : memref<256x128xf32, #tpu.memory_space<vmem>>, vector<1x128xf32>,
    %c214_i32 = arith.constant 214 : i32
    %1713 = arith.addi %0, %c214_i32 : i32
    %1714 = arith.index_cast %1713 : i32 to index
    %1715 = memref.load %arg1[%1714] : memref<512xi32, #tpu.memory_space<smem>>
    %1716 = arith.index_cast %1715 : i32 to index
    %c0_641 = arith.constant 0 : index
    %1717 = vector.load %arg2[%1716, %c0_641] : memref<1000x128xf32, #tpu.memory_space<vmem>>, vector<1x128xf32>
    %cst_642 = arith.constant 11.3137083 : f32
    %1718 = vector.broadcast %cst_642 : f32 to vector<1x128xf32>
    %1719 = arith.mulf %1717, %1718 : vector<1x128xf32>
    %c214 = arith.constant 214 : index
    %c0_643 = arith.constant 0 : index
    %1720 = vector.load %arg3[%c214, %c0_643] : memref<256x128xf32, #tpu.memory_space<vmem>>, vector<1x128xf32>
    tpu.vector_store %arg3[%c214, %c0_643], %1719 {strides = array<i32>} : memref<256x128xf32, #tpu.memory_space<vmem>>, vector<1x128xf32>,
    %c215_i32 = arith.constant 215 : i32
    %1721 = arith.addi %0, %c215_i32 : i32
    %1722 = arith.index_cast %1721 : i32 to index
    %1723 = memref.load %arg1[%1722] : memref<512xi32, #tpu.memory_space<smem>>
    %1724 = arith.index_cast %1723 : i32 to index
    %c0_644 = arith.constant 0 : index
    %1725 = vector.load %arg2[%1724, %c0_644] : memref<1000x128xf32, #tpu.memory_space<vmem>>, vector<1x128xf32>
    %cst_645 = arith.constant 11.3137083 : f32
    %1726 = vector.broadcast %cst_645 : f32 to vector<1x128xf32>
    %1727 = arith.mulf %1725, %1726 : vector<1x128xf32>
    %c215 = arith.constant 215 : index
    %c0_646 = arith.constant 0 : index
    %1728 = vector.load %arg3[%c215, %c0_646] : memref<256x128xf32, #tpu.memory_space<vmem>>, vector<1x128xf32>
    tpu.vector_store %arg3[%c215, %c0_646], %1727 {strides = array<i32>} : memref<256x128xf32, #tpu.memory_space<vmem>>, vector<1x128xf32>,
    %c216_i32 = arith.constant 216 : i32
    %1729 = arith.addi %0, %c216_i32 : i32
    %1730 = arith.index_cast %1729 : i32 to index
    %1731 = memref.load %arg1[%1730] : memref<512xi32, #tpu.memory_space<smem>>
    %1732 = arith.index_cast %1731 : i32 to index
    %c0_647 = arith.constant 0 : index
    %1733 = vector.load %arg2[%1732, %c0_647] : memref<1000x128xf32, #tpu.memory_space<vmem>>, vector<1x128xf32>
    %cst_648 = arith.constant 11.3137083 : f32
    %1734 = vector.broadcast %cst_648 : f32 to vector<1x128xf32>
    %1735 = arith.mulf %1733, %1734 : vector<1x128xf32>
    %c216 = arith.constant 216 : index
    %c0_649 = arith.constant 0 : index
    %1736 = vector.load %arg3[%c216, %c0_649] : memref<256x128xf32, #tpu.memory_space<vmem>>, vector<1x128xf32>
    tpu.vector_store %arg3[%c216, %c0_649], %1735 {strides = array<i32>} : memref<256x128xf32, #tpu.memory_space<vmem>>, vector<1x128xf32>,
    %c217_i32 = arith.constant 217 : i32
    %1737 = arith.addi %0, %c217_i32 : i32
    %1738 = arith.index_cast %1737 : i32 to index
    %1739 = memref.load %arg1[%1738] : memref<512xi32, #tpu.memory_space<smem>>
    %1740 = arith.index_cast %1739 : i32 to index
    %c0_650 = arith.constant 0 : index
    %1741 = vector.load %arg2[%1740, %c0_650] : memref<1000x128xf32, #tpu.memory_space<vmem>>, vector<1x128xf32>
    %cst_651 = arith.constant 11.3137083 : f32
    %1742 = vector.broadcast %cst_651 : f32 to vector<1x128xf32>
    %1743 = arith.mulf %1741, %1742 : vector<1x128xf32>
    %c217 = arith.constant 217 : index
    %c0_652 = arith.constant 0 : index
    %1744 = vector.load %arg3[%c217, %c0_652] : memref<256x128xf32, #tpu.memory_space<vmem>>, vector<1x128xf32>
    tpu.vector_store %arg3[%c217, %c0_652], %1743 {strides = array<i32>} : memref<256x128xf32, #tpu.memory_space<vmem>>, vector<1x128xf32>,
    %c218_i32 = arith.constant 218 : i32
    %1745 = arith.addi %0, %c218_i32 : i32
    %1746 = arith.index_cast %1745 : i32 to index
    %1747 = memref.load %arg1[%1746] : memref<512xi32, #tpu.memory_space<smem>>
    %1748 = arith.index_cast %1747 : i32 to index
    %c0_653 = arith.constant 0 : index
    %1749 = vector.load %arg2[%1748, %c0_653] : memref<1000x128xf32, #tpu.memory_space<vmem>>, vector<1x128xf32>
    %cst_654 = arith.constant 11.3137083 : f32
    %1750 = vector.broadcast %cst_654 : f32 to vector<1x128xf32>
    %1751 = arith.mulf %1749, %1750 : vector<1x128xf32>
    %c218 = arith.constant 218 : index
    %c0_655 = arith.constant 0 : index
    %1752 = vector.load %arg3[%c218, %c0_655] : memref<256x128xf32, #tpu.memory_space<vmem>>, vector<1x128xf32>
    tpu.vector_store %arg3[%c218, %c0_655], %1751 {strides = array<i32>} : memref<256x128xf32, #tpu.memory_space<vmem>>, vector<1x128xf32>,
    %c219_i32 = arith.constant 219 : i32
    %1753 = arith.addi %0, %c219_i32 : i32
    %1754 = arith.index_cast %1753 : i32 to index
    %1755 = memref.load %arg1[%1754] : memref<512xi32, #tpu.memory_space<smem>>
    %1756 = arith.index_cast %1755 : i32 to index
    %c0_656 = arith.constant 0 : index
    %1757 = vector.load %arg2[%1756, %c0_656] : memref<1000x128xf32, #tpu.memory_space<vmem>>, vector<1x128xf32>
    %cst_657 = arith.constant 11.3137083 : f32
    %1758 = vector.broadcast %cst_657 : f32 to vector<1x128xf32>
    %1759 = arith.mulf %1757, %1758 : vector<1x128xf32>
    %c219 = arith.constant 219 : index
    %c0_658 = arith.constant 0 : index
    %1760 = vector.load %arg3[%c219, %c0_658] : memref<256x128xf32, #tpu.memory_space<vmem>>, vector<1x128xf32>
    tpu.vector_store %arg3[%c219, %c0_658], %1759 {strides = array<i32>} : memref<256x128xf32, #tpu.memory_space<vmem>>, vector<1x128xf32>,
    %c220_i32 = arith.constant 220 : i32
    %1761 = arith.addi %0, %c220_i32 : i32
    %1762 = arith.index_cast %1761 : i32 to index
    %1763 = memref.load %arg1[%1762] : memref<512xi32, #tpu.memory_space<smem>>
    %1764 = arith.index_cast %1763 : i32 to index
    %c0_659 = arith.constant 0 : index
    %1765 = vector.load %arg2[%1764, %c0_659] : memref<1000x128xf32, #tpu.memory_space<vmem>>, vector<1x128xf32>
    %cst_660 = arith.constant 11.3137083 : f32
    %1766 = vector.broadcast %cst_660 : f32 to vector<1x128xf32>
    %1767 = arith.mulf %1765, %1766 : vector<1x128xf32>
    %c220 = arith.constant 220 : index
    %c0_661 = arith.constant 0 : index
    %1768 = vector.load %arg3[%c220, %c0_661] : memref<256x128xf32, #tpu.memory_space<vmem>>, vector<1x128xf32>
    tpu.vector_store %arg3[%c220, %c0_661], %1767 {strides = array<i32>} : memref<256x128xf32, #tpu.memory_space<vmem>>, vector<1x128xf32>,
    %c221_i32 = arith.constant 221 : i32
    %1769 = arith.addi %0, %c221_i32 : i32
    %1770 = arith.index_cast %1769 : i32 to index
    %1771 = memref.load %arg1[%1770] : memref<512xi32, #tpu.memory_space<smem>>
    %1772 = arith.index_cast %1771 : i32 to index
    %c0_662 = arith.constant 0 : index
    %1773 = vector.load %arg2[%1772, %c0_662] : memref<1000x128xf32, #tpu.memory_space<vmem>>, vector<1x128xf32>
    %cst_663 = arith.constant 11.3137083 : f32
    %1774 = vector.broadcast %cst_663 : f32 to vector<1x128xf32>
    %1775 = arith.mulf %1773, %1774 : vector<1x128xf32>
    %c221 = arith.constant 221 : index
    %c0_664 = arith.constant 0 : index
    %1776 = vector.load %arg3[%c221, %c0_664] : memref<256x128xf32, #tpu.memory_space<vmem>>, vector<1x128xf32>
    tpu.vector_store %arg3[%c221, %c0_664], %1775 {strides = array<i32>} : memref<256x128xf32, #tpu.memory_space<vmem>>, vector<1x128xf32>,
    %c222_i32 = arith.constant 222 : i32
    %1777 = arith.addi %0, %c222_i32 : i32
    %1778 = arith.index_cast %1777 : i32 to index
    %1779 = memref.load %arg1[%1778] : memref<512xi32, #tpu.memory_space<smem>>
    %1780 = arith.index_cast %1779 : i32 to index
    %c0_665 = arith.constant 0 : index
    %1781 = vector.load %arg2[%1780, %c0_665] : memref<1000x128xf32, #tpu.memory_space<vmem>>, vector<1x128xf32>
    %cst_666 = arith.constant 11.3137083 : f32
    %1782 = vector.broadcast %cst_666 : f32 to vector<1x128xf32>
    %1783 = arith.mulf %1781, %1782 : vector<1x128xf32>
    %c222 = arith.constant 222 : index
    %c0_667 = arith.constant 0 : index
    %1784 = vector.load %arg3[%c222, %c0_667] : memref<256x128xf32, #tpu.memory_space<vmem>>, vector<1x128xf32>
    tpu.vector_store %arg3[%c222, %c0_667], %1783 {strides = array<i32>} : memref<256x128xf32, #tpu.memory_space<vmem>>, vector<1x128xf32>,
    %c223_i32 = arith.constant 223 : i32
    %1785 = arith.addi %0, %c223_i32 : i32
    %1786 = arith.index_cast %1785 : i32 to index
    %1787 = memref.load %arg1[%1786] : memref<512xi32, #tpu.memory_space<smem>>
    %1788 = arith.index_cast %1787 : i32 to index
    %c0_668 = arith.constant 0 : index
    %1789 = vector.load %arg2[%1788, %c0_668] : memref<1000x128xf32, #tpu.memory_space<vmem>>, vector<1x128xf32>
    %cst_669 = arith.constant 11.3137083 : f32
    %1790 = vector.broadcast %cst_669 : f32 to vector<1x128xf32>
    %1791 = arith.mulf %1789, %1790 : vector<1x128xf32>
    %c223 = arith.constant 223 : index
    %c0_670 = arith.constant 0 : index
    %1792 = vector.load %arg3[%c223, %c0_670] : memref<256x128xf32, #tpu.memory_space<vmem>>, vector<1x128xf32>
    tpu.vector_store %arg3[%c223, %c0_670], %1791 {strides = array<i32>} : memref<256x128xf32, #tpu.memory_space<vmem>>, vector<1x128xf32>,
    %c224_i32 = arith.constant 224 : i32
    %1793 = arith.addi %0, %c224_i32 : i32
    %1794 = arith.index_cast %1793 : i32 to index
    %1795 = memref.load %arg1[%1794] : memref<512xi32, #tpu.memory_space<smem>>
    %1796 = arith.index_cast %1795 : i32 to index
    %c0_671 = arith.constant 0 : index
    %1797 = vector.load %arg2[%1796, %c0_671] : memref<1000x128xf32, #tpu.memory_space<vmem>>, vector<1x128xf32>
    %cst_672 = arith.constant 11.3137083 : f32
    %1798 = vector.broadcast %cst_672 : f32 to vector<1x128xf32>
    %1799 = arith.mulf %1797, %1798 : vector<1x128xf32>
    %c224 = arith.constant 224 : index
    %c0_673 = arith.constant 0 : index
    %1800 = vector.load %arg3[%c224, %c0_673] : memref<256x128xf32, #tpu.memory_space<vmem>>, vector<1x128xf32>
    tpu.vector_store %arg3[%c224, %c0_673], %1799 {strides = array<i32>} : memref<256x128xf32, #tpu.memory_space<vmem>>, vector<1x128xf32>,
    %c225_i32 = arith.constant 225 : i32
    %1801 = arith.addi %0, %c225_i32 : i32
    %1802 = arith.index_cast %1801 : i32 to index
    %1803 = memref.load %arg1[%1802] : memref<512xi32, #tpu.memory_space<smem>>
    %1804 = arith.index_cast %1803 : i32 to index
    %c0_674 = arith.constant 0 : index
    %1805 = vector.load %arg2[%1804, %c0_674] : memref<1000x128xf32, #tpu.memory_space<vmem>>, vector<1x128xf32>
    %cst_675 = arith.constant 11.3137083 : f32
    %1806 = vector.broadcast %cst_675 : f32 to vector<1x128xf32>
    %1807 = arith.mulf %1805, %1806 : vector<1x128xf32>
    %c225 = arith.constant 225 : index
    %c0_676 = arith.constant 0 : index
    %1808 = vector.load %arg3[%c225, %c0_676] : memref<256x128xf32, #tpu.memory_space<vmem>>, vector<1x128xf32>
    tpu.vector_store %arg3[%c225, %c0_676], %1807 {strides = array<i32>} : memref<256x128xf32, #tpu.memory_space<vmem>>, vector<1x128xf32>,
    %c226_i32 = arith.constant 226 : i32
    %1809 = arith.addi %0, %c226_i32 : i32
    %1810 = arith.index_cast %1809 : i32 to index
    %1811 = memref.load %arg1[%1810] : memref<512xi32, #tpu.memory_space<smem>>
    %1812 = arith.index_cast %1811 : i32 to index
    %c0_677 = arith.constant 0 : index
    %1813 = vector.load %arg2[%1812, %c0_677] : memref<1000x128xf32, #tpu.memory_space<vmem>>, vector<1x128xf32>
    %cst_678 = arith.constant 11.3137083 : f32
    %1814 = vector.broadcast %cst_678 : f32 to vector<1x128xf32>
    %1815 = arith.mulf %1813, %1814 : vector<1x128xf32>
    %c226 = arith.constant 226 : index
    %c0_679 = arith.constant 0 : index
    %1816 = vector.load %arg3[%c226, %c0_679] : memref<256x128xf32, #tpu.memory_space<vmem>>, vector<1x128xf32>
    tpu.vector_store %arg3[%c226, %c0_679], %1815 {strides = array<i32>} : memref<256x128xf32, #tpu.memory_space<vmem>>, vector<1x128xf32>,
    %c227_i32 = arith.constant 227 : i32
    %1817 = arith.addi %0, %c227_i32 : i32
    %1818 = arith.index_cast %1817 : i32 to index
    %1819 = memref.load %arg1[%1818] : memref<512xi32, #tpu.memory_space<smem>>
    %1820 = arith.index_cast %1819 : i32 to index
    %c0_680 = arith.constant 0 : index
    %1821 = vector.load %arg2[%1820, %c0_680] : memref<1000x128xf32, #tpu.memory_space<vmem>>, vector<1x128xf32>
    %cst_681 = arith.constant 11.3137083 : f32
    %1822 = vector.broadcast %cst_681 : f32 to vector<1x128xf32>
    %1823 = arith.mulf %1821, %1822 : vector<1x128xf32>
    %c227 = arith.constant 227 : index
    %c0_682 = arith.constant 0 : index
    %1824 = vector.load %arg3[%c227, %c0_682] : memref<256x128xf32, #tpu.memory_space<vmem>>, vector<1x128xf32>
    tpu.vector_store %arg3[%c227, %c0_682], %1823 {strides = array<i32>} : memref<256x128xf32, #tpu.memory_space<vmem>>, vector<1x128xf32>,
    %c228_i32 = arith.constant 228 : i32
    %1825 = arith.addi %0, %c228_i32 : i32
    %1826 = arith.index_cast %1825 : i32 to index
    %1827 = memref.load %arg1[%1826] : memref<512xi32, #tpu.memory_space<smem>>
    %1828 = arith.index_cast %1827 : i32 to index
    %c0_683 = arith.constant 0 : index
    %1829 = vector.load %arg2[%1828, %c0_683] : memref<1000x128xf32, #tpu.memory_space<vmem>>, vector<1x128xf32>
    %cst_684 = arith.constant 11.3137083 : f32
    %1830 = vector.broadcast %cst_684 : f32 to vector<1x128xf32>
    %1831 = arith.mulf %1829, %1830 : vector<1x128xf32>
    %c228 = arith.constant 228 : index
    %c0_685 = arith.constant 0 : index
    %1832 = vector.load %arg3[%c228, %c0_685] : memref<256x128xf32, #tpu.memory_space<vmem>>, vector<1x128xf32>
    tpu.vector_store %arg3[%c228, %c0_685], %1831 {strides = array<i32>} : memref<256x128xf32, #tpu.memory_space<vmem>>, vector<1x128xf32>,
    %c229_i32 = arith.constant 229 : i32
    %1833 = arith.addi %0, %c229_i32 : i32
    %1834 = arith.index_cast %1833 : i32 to index
    %1835 = memref.load %arg1[%1834] : memref<512xi32, #tpu.memory_space<smem>>
    %1836 = arith.index_cast %1835 : i32 to index
    %c0_686 = arith.constant 0 : index
    %1837 = vector.load %arg2[%1836, %c0_686] : memref<1000x128xf32, #tpu.memory_space<vmem>>, vector<1x128xf32>
    %cst_687 = arith.constant 11.3137083 : f32
    %1838 = vector.broadcast %cst_687 : f32 to vector<1x128xf32>
    %1839 = arith.mulf %1837, %1838 : vector<1x128xf32>
    %c229 = arith.constant 229 : index
    %c0_688 = arith.constant 0 : index
    %1840 = vector.load %arg3[%c229, %c0_688] : memref<256x128xf32, #tpu.memory_space<vmem>>, vector<1x128xf32>
    tpu.vector_store %arg3[%c229, %c0_688], %1839 {strides = array<i32>} : memref<256x128xf32, #tpu.memory_space<vmem>>, vector<1x128xf32>,
    %c230_i32 = arith.constant 230 : i32
    %1841 = arith.addi %0, %c230_i32 : i32
    %1842 = arith.index_cast %1841 : i32 to index
    %1843 = memref.load %arg1[%1842] : memref<512xi32, #tpu.memory_space<smem>>
    %1844 = arith.index_cast %1843 : i32 to index
    %c0_689 = arith.constant 0 : index
    %1845 = vector.load %arg2[%1844, %c0_689] : memref<1000x128xf32, #tpu.memory_space<vmem>>, vector<1x128xf32>
    %cst_690 = arith.constant 11.3137083 : f32
    %1846 = vector.broadcast %cst_690 : f32 to vector<1x128xf32>
    %1847 = arith.mulf %1845, %1846 : vector<1x128xf32>
    %c230 = arith.constant 230 : index
    %c0_691 = arith.constant 0 : index
    %1848 = vector.load %arg3[%c230, %c0_691] : memref<256x128xf32, #tpu.memory_space<vmem>>, vector<1x128xf32>
    tpu.vector_store %arg3[%c230, %c0_691], %1847 {strides = array<i32>} : memref<256x128xf32, #tpu.memory_space<vmem>>, vector<1x128xf32>,
    %c231_i32 = arith.constant 231 : i32
    %1849 = arith.addi %0, %c231_i32 : i32
    %1850 = arith.index_cast %1849 : i32 to index
    %1851 = memref.load %arg1[%1850] : memref<512xi32, #tpu.memory_space<smem>>
    %1852 = arith.index_cast %1851 : i32 to index
    %c0_692 = arith.constant 0 : index
    %1853 = vector.load %arg2[%1852, %c0_692] : memref<1000x128xf32, #tpu.memory_space<vmem>>, vector<1x128xf32>
    %cst_693 = arith.constant 11.3137083 : f32
    %1854 = vector.broadcast %cst_693 : f32 to vector<1x128xf32>
    %1855 = arith.mulf %1853, %1854 : vector<1x128xf32>
    %c231 = arith.constant 231 : index
    %c0_694 = arith.constant 0 : index
    %1856 = vector.load %arg3[%c231, %c0_694] : memref<256x128xf32, #tpu.memory_space<vmem>>, vector<1x128xf32>
    tpu.vector_store %arg3[%c231, %c0_694], %1855 {strides = array<i32>} : memref<256x128xf32, #tpu.memory_space<vmem>>, vector<1x128xf32>,
    %c232_i32 = arith.constant 232 : i32
    %1857 = arith.addi %0, %c232_i32 : i32
    %1858 = arith.index_cast %1857 : i32 to index
    %1859 = memref.load %arg1[%1858] : memref<512xi32, #tpu.memory_space<smem>>
    %1860 = arith.index_cast %1859 : i32 to index
    %c0_695 = arith.constant 0 : index
    %1861 = vector.load %arg2[%1860, %c0_695] : memref<1000x128xf32, #tpu.memory_space<vmem>>, vector<1x128xf32>
    %cst_696 = arith.constant 11.3137083 : f32
    %1862 = vector.broadcast %cst_696 : f32 to vector<1x128xf32>
    %1863 = arith.mulf %1861, %1862 : vector<1x128xf32>
    %c232 = arith.constant 232 : index
    %c0_697 = arith.constant 0 : index
    %1864 = vector.load %arg3[%c232, %c0_697] : memref<256x128xf32, #tpu.memory_space<vmem>>, vector<1x128xf32>
    tpu.vector_store %arg3[%c232, %c0_697], %1863 {strides = array<i32>} : memref<256x128xf32, #tpu.memory_space<vmem>>, vector<1x128xf32>,
    %c233_i32 = arith.constant 233 : i32
    %1865 = arith.addi %0, %c233_i32 : i32
    %1866 = arith.index_cast %1865 : i32 to index
    %1867 = memref.load %arg1[%1866] : memref<512xi32, #tpu.memory_space<smem>>
    %1868 = arith.index_cast %1867 : i32 to index
    %c0_698 = arith.constant 0 : index
    %1869 = vector.load %arg2[%1868, %c0_698] : memref<1000x128xf32, #tpu.memory_space<vmem>>, vector<1x128xf32>
    %cst_699 = arith.constant 11.3137083 : f32
    %1870 = vector.broadcast %cst_699 : f32 to vector<1x128xf32>
    %1871 = arith.mulf %1869, %1870 : vector<1x128xf32>
    %c233 = arith.constant 233 : index
    %c0_700 = arith.constant 0 : index
    %1872 = vector.load %arg3[%c233, %c0_700] : memref<256x128xf32, #tpu.memory_space<vmem>>, vector<1x128xf32>
    tpu.vector_store %arg3[%c233, %c0_700], %1871 {strides = array<i32>} : memref<256x128xf32, #tpu.memory_space<vmem>>, vector<1x128xf32>,
    %c234_i32 = arith.constant 234 : i32
    %1873 = arith.addi %0, %c234_i32 : i32
    %1874 = arith.index_cast %1873 : i32 to index
    %1875 = memref.load %arg1[%1874] : memref<512xi32, #tpu.memory_space<smem>>
    %1876 = arith.index_cast %1875 : i32 to index
    %c0_701 = arith.constant 0 : index
    %1877 = vector.load %arg2[%1876, %c0_701] : memref<1000x128xf32, #tpu.memory_space<vmem>>, vector<1x128xf32>
    %cst_702 = arith.constant 11.3137083 : f32
    %1878 = vector.broadcast %cst_702 : f32 to vector<1x128xf32>
    %1879 = arith.mulf %1877, %1878 : vector<1x128xf32>
    %c234 = arith.constant 234 : index
    %c0_703 = arith.constant 0 : index
    %1880 = vector.load %arg3[%c234, %c0_703] : memref<256x128xf32, #tpu.memory_space<vmem>>, vector<1x128xf32>
    tpu.vector_store %arg3[%c234, %c0_703], %1879 {strides = array<i32>} : memref<256x128xf32, #tpu.memory_space<vmem>>, vector<1x128xf32>,
    %c235_i32 = arith.constant 235 : i32
    %1881 = arith.addi %0, %c235_i32 : i32
    %1882 = arith.index_cast %1881 : i32 to index
    %1883 = memref.load %arg1[%1882] : memref<512xi32, #tpu.memory_space<smem>>
    %1884 = arith.index_cast %1883 : i32 to index
    %c0_704 = arith.constant 0 : index
    %1885 = vector.load %arg2[%1884, %c0_704] : memref<1000x128xf32, #tpu.memory_space<vmem>>, vector<1x128xf32>
    %cst_705 = arith.constant 11.3137083 : f32
    %1886 = vector.broadcast %cst_705 : f32 to vector<1x128xf32>
    %1887 = arith.mulf %1885, %1886 : vector<1x128xf32>
    %c235 = arith.constant 235 : index
    %c0_706 = arith.constant 0 : index
    %1888 = vector.load %arg3[%c235, %c0_706] : memref<256x128xf32, #tpu.memory_space<vmem>>, vector<1x128xf32>
    tpu.vector_store %arg3[%c235, %c0_706], %1887 {strides = array<i32>} : memref<256x128xf32, #tpu.memory_space<vmem>>, vector<1x128xf32>,
    %c236_i32 = arith.constant 236 : i32
    %1889 = arith.addi %0, %c236_i32 : i32
    %1890 = arith.index_cast %1889 : i32 to index
    %1891 = memref.load %arg1[%1890] : memref<512xi32, #tpu.memory_space<smem>>
    %1892 = arith.index_cast %1891 : i32 to index
    %c0_707 = arith.constant 0 : index
    %1893 = vector.load %arg2[%1892, %c0_707] : memref<1000x128xf32, #tpu.memory_space<vmem>>, vector<1x128xf32>
    %cst_708 = arith.constant 11.3137083 : f32
    %1894 = vector.broadcast %cst_708 : f32 to vector<1x128xf32>
    %1895 = arith.mulf %1893, %1894 : vector<1x128xf32>
    %c236 = arith.constant 236 : index
    %c0_709 = arith.constant 0 : index
    %1896 = vector.load %arg3[%c236, %c0_709] : memref<256x128xf32, #tpu.memory_space<vmem>>, vector<1x128xf32>
    tpu.vector_store %arg3[%c236, %c0_709], %1895 {strides = array<i32>} : memref<256x128xf32, #tpu.memory_space<vmem>>, vector<1x128xf32>,
    %c237_i32 = arith.constant 237 : i32
    %1897 = arith.addi %0, %c237_i32 : i32
    %1898 = arith.index_cast %1897 : i32 to index
    %1899 = memref.load %arg1[%1898] : memref<512xi32, #tpu.memory_space<smem>>
    %1900 = arith.index_cast %1899 : i32 to index
    %c0_710 = arith.constant 0 : index
    %1901 = vector.load %arg2[%1900, %c0_710] : memref<1000x128xf32, #tpu.memory_space<vmem>>, vector<1x128xf32>
    %cst_711 = arith.constant 11.3137083 : f32
    %1902 = vector.broadcast %cst_711 : f32 to vector<1x128xf32>
    %1903 = arith.mulf %1901, %1902 : vector<1x128xf32>
    %c237 = arith.constant 237 : index
    %c0_712 = arith.constant 0 : index
    %1904 = vector.load %arg3[%c237, %c0_712] : memref<256x128xf32, #tpu.memory_space<vmem>>, vector<1x128xf32>
    tpu.vector_store %arg3[%c237, %c0_712], %1903 {strides = array<i32>} : memref<256x128xf32, #tpu.memory_space<vmem>>, vector<1x128xf32>,
    %c238_i32 = arith.constant 238 : i32
    %1905 = arith.addi %0, %c238_i32 : i32
    %1906 = arith.index_cast %1905 : i32 to index
    %1907 = memref.load %arg1[%1906] : memref<512xi32, #tpu.memory_space<smem>>
    %1908 = arith.index_cast %1907 : i32 to index
    %c0_713 = arith.constant 0 : index
    %1909 = vector.load %arg2[%1908, %c0_713] : memref<1000x128xf32, #tpu.memory_space<vmem>>, vector<1x128xf32>
    %cst_714 = arith.constant 11.3137083 : f32
    %1910 = vector.broadcast %cst_714 : f32 to vector<1x128xf32>
    %1911 = arith.mulf %1909, %1910 : vector<1x128xf32>
    %c238 = arith.constant 238 : index
    %c0_715 = arith.constant 0 : index
    %1912 = vector.load %arg3[%c238, %c0_715] : memref<256x128xf32, #tpu.memory_space<vmem>>, vector<1x128xf32>
    tpu.vector_store %arg3[%c238, %c0_715], %1911 {strides = array<i32>} : memref<256x128xf32, #tpu.memory_space<vmem>>, vector<1x128xf32>,
    %c239_i32 = arith.constant 239 : i32
    %1913 = arith.addi %0, %c239_i32 : i32
    %1914 = arith.index_cast %1913 : i32 to index
    %1915 = memref.load %arg1[%1914] : memref<512xi32, #tpu.memory_space<smem>>
    %1916 = arith.index_cast %1915 : i32 to index
    %c0_716 = arith.constant 0 : index
    %1917 = vector.load %arg2[%1916, %c0_716] : memref<1000x128xf32, #tpu.memory_space<vmem>>, vector<1x128xf32>
    %cst_717 = arith.constant 11.3137083 : f32
    %1918 = vector.broadcast %cst_717 : f32 to vector<1x128xf32>
    %1919 = arith.mulf %1917, %1918 : vector<1x128xf32>
    %c239 = arith.constant 239 : index
    %c0_718 = arith.constant 0 : index
    %1920 = vector.load %arg3[%c239, %c0_718] : memref<256x128xf32, #tpu.memory_space<vmem>>, vector<1x128xf32>
    tpu.vector_store %arg3[%c239, %c0_718], %1919 {strides = array<i32>} : memref<256x128xf32, #tpu.memory_space<vmem>>, vector<1x128xf32>,
    %c240_i32 = arith.constant 240 : i32
    %1921 = arith.addi %0, %c240_i32 : i32
    %1922 = arith.index_cast %1921 : i32 to index
    %1923 = memref.load %arg1[%1922] : memref<512xi32, #tpu.memory_space<smem>>
    %1924 = arith.index_cast %1923 : i32 to index
    %c0_719 = arith.constant 0 : index
    %1925 = vector.load %arg2[%1924, %c0_719] : memref<1000x128xf32, #tpu.memory_space<vmem>>, vector<1x128xf32>
    %cst_720 = arith.constant 11.3137083 : f32
    %1926 = vector.broadcast %cst_720 : f32 to vector<1x128xf32>
    %1927 = arith.mulf %1925, %1926 : vector<1x128xf32>
    %c240 = arith.constant 240 : index
    %c0_721 = arith.constant 0 : index
    %1928 = vector.load %arg3[%c240, %c0_721] : memref<256x128xf32, #tpu.memory_space<vmem>>, vector<1x128xf32>
    tpu.vector_store %arg3[%c240, %c0_721], %1927 {strides = array<i32>} : memref<256x128xf32, #tpu.memory_space<vmem>>, vector<1x128xf32>,
    %c241_i32 = arith.constant 241 : i32
    %1929 = arith.addi %0, %c241_i32 : i32
    %1930 = arith.index_cast %1929 : i32 to index
    %1931 = memref.load %arg1[%1930] : memref<512xi32, #tpu.memory_space<smem>>
    %1932 = arith.index_cast %1931 : i32 to index
    %c0_722 = arith.constant 0 : index
    %1933 = vector.load %arg2[%1932, %c0_722] : memref<1000x128xf32, #tpu.memory_space<vmem>>, vector<1x128xf32>
    %cst_723 = arith.constant 11.3137083 : f32
    %1934 = vector.broadcast %cst_723 : f32 to vector<1x128xf32>
    %1935 = arith.mulf %1933, %1934 : vector<1x128xf32>
    %c241 = arith.constant 241 : index
    %c0_724 = arith.constant 0 : index
    %1936 = vector.load %arg3[%c241, %c0_724] : memref<256x128xf32, #tpu.memory_space<vmem>>, vector<1x128xf32>
    tpu.vector_store %arg3[%c241, %c0_724], %1935 {strides = array<i32>} : memref<256x128xf32, #tpu.memory_space<vmem>>, vector<1x128xf32>,
    %c242_i32 = arith.constant 242 : i32
    %1937 = arith.addi %0, %c242_i32 : i32
    %1938 = arith.index_cast %1937 : i32 to index
    %1939 = memref.load %arg1[%1938] : memref<512xi32, #tpu.memory_space<smem>>
    %1940 = arith.index_cast %1939 : i32 to index
    %c0_725 = arith.constant 0 : index
    %1941 = vector.load %arg2[%1940, %c0_725] : memref<1000x128xf32, #tpu.memory_space<vmem>>, vector<1x128xf32>
    %cst_726 = arith.constant 11.3137083 : f32
    %1942 = vector.broadcast %cst_726 : f32 to vector<1x128xf32>
    %1943 = arith.mulf %1941, %1942 : vector<1x128xf32>
    %c242 = arith.constant 242 : index
    %c0_727 = arith.constant 0 : index
    %1944 = vector.load %arg3[%c242, %c0_727] : memref<256x128xf32, #tpu.memory_space<vmem>>, vector<1x128xf32>
    tpu.vector_store %arg3[%c242, %c0_727], %1943 {strides = array<i32>} : memref<256x128xf32, #tpu.memory_space<vmem>>, vector<1x128xf32>,
    %c243_i32 = arith.constant 243 : i32
    %1945 = arith.addi %0, %c243_i32 : i32
    %1946 = arith.index_cast %1945 : i32 to index
    %1947 = memref.load %arg1[%1946] : memref<512xi32, #tpu.memory_space<smem>>
    %1948 = arith.index_cast %1947 : i32 to index
    %c0_728 = arith.constant 0 : index
    %1949 = vector.load %arg2[%1948, %c0_728] : memref<1000x128xf32, #tpu.memory_space<vmem>>, vector<1x128xf32>
    %cst_729 = arith.constant 11.3137083 : f32
    %1950 = vector.broadcast %cst_729 : f32 to vector<1x128xf32>
    %1951 = arith.mulf %1949, %1950 : vector<1x128xf32>
    %c243 = arith.constant 243 : index
    %c0_730 = arith.constant 0 : index
    %1952 = vector.load %arg3[%c243, %c0_730] : memref<256x128xf32, #tpu.memory_space<vmem>>, vector<1x128xf32>
    tpu.vector_store %arg3[%c243, %c0_730], %1951 {strides = array<i32>} : memref<256x128xf32, #tpu.memory_space<vmem>>, vector<1x128xf32>,
    %c244_i32 = arith.constant 244 : i32
    %1953 = arith.addi %0, %c244_i32 : i32
    %1954 = arith.index_cast %1953 : i32 to index
    %1955 = memref.load %arg1[%1954] : memref<512xi32, #tpu.memory_space<smem>>
    %1956 = arith.index_cast %1955 : i32 to index
    %c0_731 = arith.constant 0 : index
    %1957 = vector.load %arg2[%1956, %c0_731] : memref<1000x128xf32, #tpu.memory_space<vmem>>, vector<1x128xf32>
    %cst_732 = arith.constant 11.3137083 : f32
    %1958 = vector.broadcast %cst_732 : f32 to vector<1x128xf32>
    %1959 = arith.mulf %1957, %1958 : vector<1x128xf32>
    %c244 = arith.constant 244 : index
    %c0_733 = arith.constant 0 : index
    %1960 = vector.load %arg3[%c244, %c0_733] : memref<256x128xf32, #tpu.memory_space<vmem>>, vector<1x128xf32>
    tpu.vector_store %arg3[%c244, %c0_733], %1959 {strides = array<i32>} : memref<256x128xf32, #tpu.memory_space<vmem>>, vector<1x128xf32>,
    %c245_i32 = arith.constant 245 : i32
    %1961 = arith.addi %0, %c245_i32 : i32
    %1962 = arith.index_cast %1961 : i32 to index
    %1963 = memref.load %arg1[%1962] : memref<512xi32, #tpu.memory_space<smem>>
    %1964 = arith.index_cast %1963 : i32 to index
    %c0_734 = arith.constant 0 : index
    %1965 = vector.load %arg2[%1964, %c0_734] : memref<1000x128xf32, #tpu.memory_space<vmem>>, vector<1x128xf32>
    %cst_735 = arith.constant 11.3137083 : f32
    %1966 = vector.broadcast %cst_735 : f32 to vector<1x128xf32>
    %1967 = arith.mulf %1965, %1966 : vector<1x128xf32>
    %c245 = arith.constant 245 : index
    %c0_736 = arith.constant 0 : index
    %1968 = vector.load %arg3[%c245, %c0_736] : memref<256x128xf32, #tpu.memory_space<vmem>>, vector<1x128xf32>
    tpu.vector_store %arg3[%c245, %c0_736], %1967 {strides = array<i32>} : memref<256x128xf32, #tpu.memory_space<vmem>>, vector<1x128xf32>,
    %c246_i32 = arith.constant 246 : i32
    %1969 = arith.addi %0, %c246_i32 : i32
    %1970 = arith.index_cast %1969 : i32 to index
    %1971 = memref.load %arg1[%1970] : memref<512xi32, #tpu.memory_space<smem>>
    %1972 = arith.index_cast %1971 : i32 to index
    %c0_737 = arith.constant 0 : index
    %1973 = vector.load %arg2[%1972, %c0_737] : memref<1000x128xf32, #tpu.memory_space<vmem>>, vector<1x128xf32>
    %cst_738 = arith.constant 11.3137083 : f32
    %1974 = vector.broadcast %cst_738 : f32 to vector<1x128xf32>
    %1975 = arith.mulf %1973, %1974 : vector<1x128xf32>
    %c246 = arith.constant 246 : index
    %c0_739 = arith.constant 0 : index
    %1976 = vector.load %arg3[%c246, %c0_739] : memref<256x128xf32, #tpu.memory_space<vmem>>, vector<1x128xf32>
    tpu.vector_store %arg3[%c246, %c0_739], %1975 {strides = array<i32>} : memref<256x128xf32, #tpu.memory_space<vmem>>, vector<1x128xf32>,
    %c247_i32 = arith.constant 247 : i32
    %1977 = arith.addi %0, %c247_i32 : i32
    %1978 = arith.index_cast %1977 : i32 to index
    %1979 = memref.load %arg1[%1978] : memref<512xi32, #tpu.memory_space<smem>>
    %1980 = arith.index_cast %1979 : i32 to index
    %c0_740 = arith.constant 0 : index
    %1981 = vector.load %arg2[%1980, %c0_740] : memref<1000x128xf32, #tpu.memory_space<vmem>>, vector<1x128xf32>
    %cst_741 = arith.constant 11.3137083 : f32
    %1982 = vector.broadcast %cst_741 : f32 to vector<1x128xf32>
    %1983 = arith.mulf %1981, %1982 : vector<1x128xf32>
    %c247 = arith.constant 247 : index
    %c0_742 = arith.constant 0 : index
    %1984 = vector.load %arg3[%c247, %c0_742] : memref<256x128xf32, #tpu.memory_space<vmem>>, vector<1x128xf32>
    tpu.vector_store %arg3[%c247, %c0_742], %1983 {strides = array<i32>} : memref<256x128xf32, #tpu.memory_space<vmem>>, vector<1x128xf32>,
    %c248_i32 = arith.constant 248 : i32
    %1985 = arith.addi %0, %c248_i32 : i32
    %1986 = arith.index_cast %1985 : i32 to index
    %1987 = memref.load %arg1[%1986] : memref<512xi32, #tpu.memory_space<smem>>
    %1988 = arith.index_cast %1987 : i32 to index
    %c0_743 = arith.constant 0 : index
    %1989 = vector.load %arg2[%1988, %c0_743] : memref<1000x128xf32, #tpu.memory_space<vmem>>, vector<1x128xf32>
    %cst_744 = arith.constant 11.3137083 : f32
    %1990 = vector.broadcast %cst_744 : f32 to vector<1x128xf32>
    %1991 = arith.mulf %1989, %1990 : vector<1x128xf32>
    %c248 = arith.constant 248 : index
    %c0_745 = arith.constant 0 : index
    %1992 = vector.load %arg3[%c248, %c0_745] : memref<256x128xf32, #tpu.memory_space<vmem>>, vector<1x128xf32>
    tpu.vector_store %arg3[%c248, %c0_745], %1991 {strides = array<i32>} : memref<256x128xf32, #tpu.memory_space<vmem>>, vector<1x128xf32>,
    %c249_i32 = arith.constant 249 : i32
    %1993 = arith.addi %0, %c249_i32 : i32
    %1994 = arith.index_cast %1993 : i32 to index
    %1995 = memref.load %arg1[%1994] : memref<512xi32, #tpu.memory_space<smem>>
    %1996 = arith.index_cast %1995 : i32 to index
    %c0_746 = arith.constant 0 : index
    %1997 = vector.load %arg2[%1996, %c0_746] : memref<1000x128xf32, #tpu.memory_space<vmem>>, vector<1x128xf32>
    %cst_747 = arith.constant 11.3137083 : f32
    %1998 = vector.broadcast %cst_747 : f32 to vector<1x128xf32>
    %1999 = arith.mulf %1997, %1998 : vector<1x128xf32>
    %c249 = arith.constant 249 : index
    %c0_748 = arith.constant 0 : index
    %2000 = vector.load %arg3[%c249, %c0_748] : memref<256x128xf32, #tpu.memory_space<vmem>>, vector<1x128xf32>
    tpu.vector_store %arg3[%c249, %c0_748], %1999 {strides = array<i32>} : memref<256x128xf32, #tpu.memory_space<vmem>>, vector<1x128xf32>,
    %c250_i32 = arith.constant 250 : i32
    %2001 = arith.addi %0, %c250_i32 : i32
    %2002 = arith.index_cast %2001 : i32 to index
    %2003 = memref.load %arg1[%2002] : memref<512xi32, #tpu.memory_space<smem>>
    %2004 = arith.index_cast %2003 : i32 to index
    %c0_749 = arith.constant 0 : index
    %2005 = vector.load %arg2[%2004, %c0_749] : memref<1000x128xf32, #tpu.memory_space<vmem>>, vector<1x128xf32>
    %cst_750 = arith.constant 11.3137083 : f32
    %2006 = vector.broadcast %cst_750 : f32 to vector<1x128xf32>
    %2007 = arith.mulf %2005, %2006 : vector<1x128xf32>
    %c250 = arith.constant 250 : index
    %c0_751 = arith.constant 0 : index
    %2008 = vector.load %arg3[%c250, %c0_751] : memref<256x128xf32, #tpu.memory_space<vmem>>, vector<1x128xf32>
    tpu.vector_store %arg3[%c250, %c0_751], %2007 {strides = array<i32>} : memref<256x128xf32, #tpu.memory_space<vmem>>, vector<1x128xf32>,
    %c251_i32 = arith.constant 251 : i32
    %2009 = arith.addi %0, %c251_i32 : i32
    %2010 = arith.index_cast %2009 : i32 to index
    %2011 = memref.load %arg1[%2010] : memref<512xi32, #tpu.memory_space<smem>>
    %2012 = arith.index_cast %2011 : i32 to index
    %c0_752 = arith.constant 0 : index
    %2013 = vector.load %arg2[%2012, %c0_752] : memref<1000x128xf32, #tpu.memory_space<vmem>>, vector<1x128xf32>
    %cst_753 = arith.constant 11.3137083 : f32
    %2014 = vector.broadcast %cst_753 : f32 to vector<1x128xf32>
    %2015 = arith.mulf %2013, %2014 : vector<1x128xf32>
    %c251 = arith.constant 251 : index
    %c0_754 = arith.constant 0 : index
    %2016 = vector.load %arg3[%c251, %c0_754] : memref<256x128xf32, #tpu.memory_space<vmem>>, vector<1x128xf32>
    tpu.vector_store %arg3[%c251, %c0_754], %2015 {strides = array<i32>} : memref<256x128xf32, #tpu.memory_space<vmem>>, vector<1x128xf32>,
    %c252_i32 = arith.constant 252 : i32
    %2017 = arith.addi %0, %c252_i32 : i32
    %2018 = arith.index_cast %2017 : i32 to index
    %2019 = memref.load %arg1[%2018] : memref<512xi32, #tpu.memory_space<smem>>
    %2020 = arith.index_cast %2019 : i32 to index
    %c0_755 = arith.constant 0 : index
    %2021 = vector.load %arg2[%2020, %c0_755] : memref<1000x128xf32, #tpu.memory_space<vmem>>, vector<1x128xf32>
    %cst_756 = arith.constant 11.3137083 : f32
    %2022 = vector.broadcast %cst_756 : f32 to vector<1x128xf32>
    %2023 = arith.mulf %2021, %2022 : vector<1x128xf32>
    %c252 = arith.constant 252 : index
    %c0_757 = arith.constant 0 : index
    %2024 = vector.load %arg3[%c252, %c0_757] : memref<256x128xf32, #tpu.memory_space<vmem>>, vector<1x128xf32>
    tpu.vector_store %arg3[%c252, %c0_757], %2023 {strides = array<i32>} : memref<256x128xf32, #tpu.memory_space<vmem>>, vector<1x128xf32>,
    %c253_i32 = arith.constant 253 : i32
    %2025 = arith.addi %0, %c253_i32 : i32
    %2026 = arith.index_cast %2025 : i32 to index
    %2027 = memref.load %arg1[%2026] : memref<512xi32, #tpu.memory_space<smem>>
    %2028 = arith.index_cast %2027 : i32 to index
    %c0_758 = arith.constant 0 : index
    %2029 = vector.load %arg2[%2028, %c0_758] : memref<1000x128xf32, #tpu.memory_space<vmem>>, vector<1x128xf32>
    %cst_759 = arith.constant 11.3137083 : f32
    %2030 = vector.broadcast %cst_759 : f32 to vector<1x128xf32>
    %2031 = arith.mulf %2029, %2030 : vector<1x128xf32>
    %c253 = arith.constant 253 : index
    %c0_760 = arith.constant 0 : index
    %2032 = vector.load %arg3[%c253, %c0_760] : memref<256x128xf32, #tpu.memory_space<vmem>>, vector<1x128xf32>
    tpu.vector_store %arg3[%c253, %c0_760], %2031 {strides = array<i32>} : memref<256x128xf32, #tpu.memory_space<vmem>>, vector<1x128xf32>,
    %c254_i32 = arith.constant 254 : i32
    %2033 = arith.addi %0, %c254_i32 : i32
    %2034 = arith.index_cast %2033 : i32 to index
    %2035 = memref.load %arg1[%2034] : memref<512xi32, #tpu.memory_space<smem>>
    %2036 = arith.index_cast %2035 : i32 to index
    %c0_761 = arith.constant 0 : index
    %2037 = vector.load %arg2[%2036, %c0_761] : memref<1000x128xf32, #tpu.memory_space<vmem>>, vector<1x128xf32>
    %cst_762 = arith.constant 11.3137083 : f32
    %2038 = vector.broadcast %cst_762 : f32 to vector<1x128xf32>
    %2039 = arith.mulf %2037, %2038 : vector<1x128xf32>
    %c254 = arith.constant 254 : index
    %c0_763 = arith.constant 0 : index
    %2040 = vector.load %arg3[%c254, %c0_763] : memref<256x128xf32, #tpu.memory_space<vmem>>, vector<1x128xf32>
    tpu.vector_store %arg3[%c254, %c0_763], %2039 {strides = array<i32>} : memref<256x128xf32, #tpu.memory_space<vmem>>, vector<1x128xf32>,
    %c255_i32 = arith.constant 255 : i32
    %2041 = arith.addi %0, %c255_i32 : i32
    %2042 = arith.index_cast %2041 : i32 to index
    %2043 = memref.load %arg1[%2042] : memref<512xi32, #tpu.memory_space<smem>>
    %2044 = arith.index_cast %2043 : i32 to index
    %c0_764 = arith.constant 0 : index
    %2045 = vector.load %arg2[%2044, %c0_764] : memref<1000x128xf32, #tpu.memory_space<vmem>>, vector<1x128xf32>
    %cst_765 = arith.constant 11.3137083 : f32
    %2046 = vector.broadcast %cst_765 : f32 to vector<1x128xf32>
    %2047 = arith.mulf %2045, %2046 : vector<1x128xf32>
    %c255 = arith.constant 255 : index
    %c0_766 = arith.constant 0 : index
    %2048 = vector.load %arg3[%c255, %c0_766] : memref<256x128xf32, #tpu.memory_space<vmem>>, vector<1x128xf32>
    tpu.vector_store %arg3[%c255, %c0_766], %2047 {strides = array<i32>} : memref<256x128xf32, #tpu.memory_space<vmem>>, vector<1x128xf32>,
    return
  }
  func.func @transform_0(%arg0: i32, %arg1: memref<512xi32, #tpu.memory_space<smem>>) -> (i32, i32) {
    %c0_i32 = arith.constant 0 : i32
    %c0_i32_0 = arith.constant 0 : i32
    %c0_i32_1 = arith.constant 0 : i32
    return %c0_i32, %c0_i32_0 : i32, i32
  }
  func.func @transform_1(%arg0: i32, %arg1: memref<512xi32, #tpu.memory_space<smem>>) -> (i32, i32) {
    %c0_i32 = arith.constant 0 : i32
    %c0_i32_0 = arith.constant 0 : i32
    return %arg0, %c0_i32 : i32, i32
  }
}

</mosaic_0001>

<llo_original>
// kernel: tpu_custom_call.1
$region0: #{tpu_custom_call.1}
  #allocation0 [shape = 'u32[]', space=smem, size = 0x4, offset = 0x4, fixed_abs, tag = 'smem constant byte address 0x4 - core index']
  #allocation1 [shape = 'u32[144,128]{1,0:T(1,128)}', space=vmem, size = 0x12000, scoped, tag = 'internal scratch']
  #allocation2 [shape = 's32[1]{0}', space=sflag, size = 0x4, scoped, tag = 'scoped memory for tpu_custom_call.1']
  #allocation3 [shape = 'u8[2048]{0}', space=smem, size = 0x800, scoped, tag = 'prefetched SMEM operand 0']
  %s0 = inlined_call_operand.hbm [shape: s32[512], index: 0, kind: input, shape index: {}]
  %s1 = inlined_call_operand.hbm [shape: f32[1000,128], index: 1, kind: input, shape index: {}]
  %s2 = inlined_call_operand.hbm [shape: f32[512,128], index: 2, kind: output, shape index: {}]
  %s3 = sld [smem:[#allocation0]]
  $region41: #{tpu_custom_call.1} parent=0
    _
  %s5 = ssub.s32 1, %s3
  %s6 = scalar_select 0, %s5, %s3
  %8 = dma.hbm_to_smem %s0, 64, [#allocation3], [#allocation2]
  %9 = dma.done [#allocation2], 64
  %10 = sfence
  $region1: #{tpu_custom_call.1} parent=0
    #allocation4 [shape = 'u8[512000]{0}', space=vmem, size = 0x7d000, scoped, tag = 'input window, operand 1, single buffered']
    #allocation5 [shape = 's32[2]{0}', space=sflag, size = 0x8, scoped, tag = 'scoped memory for tpu_custom_call.1']
    #allocation6 [shape = 's32[2]{0}', space=sflag, size = 0x8, scoped, tag = 'scoped memory for tpu_custom_call.1']
    #allocation7 [shape = 'u8[262144]{0}', space=vmem, size = 0x40000, scoped, tag = 'output window, operand 0']
    %11 = vsyncpa [#allocation5], 0
    %12 = vsyncpa [#allocation6], 0
    %s13 = scalar_lea.sflag [#allocation6], 1
    %14 = vsyncpa %s13, 0
    loop: start=0, step=1, limit=4
    $region2: #{tpu_custom_call.1} parent=1 // loop_pre_header
      _
    $region3: #{tpu_custom_call.1} parent=1 // loop_header
      %s16 = sphi 0, %s20
      %p17 = scmp.ge.s32.totalorder %s16, 4
      %s24 = sphi 0, %s24
      %s26 = sphi 0, %s24
      %s27 = sphi 0, %s26
      %s41 = sphi 0, %s27
      %s47 = sphi 0, %s49
      %s50 = sphi 0, %s47
      %s51 = sphi 0, %s50
      %s67 = sphi 0, %s51
    $region4: #{tpu_custom_call.1} parent=1 // loop_header_branch
      %19 = sbr.rel (%p17) target = $region8
    $region5: #{tpu_custom_call.1} parent=1 // loop_body
      %s21 = ssub.s32 %s16, 1
      %s22 = ssub.s32 %s16, 2
      %s23 = sadd.s32 %s16, 1
      %s25 = sadd.s32 %s24, 1
      %p28 = scmp.eq.s32.totalorder %s16, 1
      %p29 = scmp.ne.s32.totalorder %s24, %s26
      %p30 = scmp.eq.s32.totalorder %s16, 0
      %p31 = por %p29, %p30
      %p32 = scmp.ne.s32.totalorder %s24, %s26
      %p33 = scmp.eq.s32.totalorder %s21, 1
      %p34 = por %p32, %p33
      %p35 = scmp.ne.s32.totalorder %s26, %s27
      %p36 = scmp.eq.s32.totalorder %s21, 0
      %p37 = por %p35, %p36
      %p38 = scmp.ne.s32.totalorder %s26, %s27
      %p39 = scmp.eq.s32.totalorder %s22, 1
      %p40 = por %p38, %p39
      %p42 = scmp.ne.s32.totalorder %s27, %s41
      %p43 = scmp.eq.s32.totalorder %s22, 0
      %p44 = por %p42, %p43
      %s45 = ssub.s32 %s16, %s23
      %p46 = scmp.eq.s32.totalorder %s45, 0
      %s48 = sadd.s32 %s47, 1
      %s49 = scalar_select %p46, %s47, %s48
      %p52 = pneg %p46
      %p53 = scmp.eq.s32.totalorder %s16, 1
      %p54 = por %p52, %p53
      %p55 = scmp.ne.s32.totalorder %s47, %s50
      %p56 = scmp.eq.s32.totalorder %s16, 0
      %p57 = por %p55, %p56
      %p58 = scmp.ne.s32.totalorder %s47, %s50
      %p59 = scmp.eq.s32.totalorder %s21, 1
      %p60 = por %p58, %p59
      %p61 = scmp.ne.s32.totalorder %s50, %s51
      %p62 = scmp.eq.s32.totalorder %s21, 0
      %p63 = por %p61, %p62
      %p64 = scmp.ne.s32.totalorder %s50, %s51
      %p65 = scmp.eq.s32.totalorder %s22, 1
      %p66 = por %p64, %p65
      %p68 = scmp.ne.s32.totalorder %s51, %s67
      %p69 = scmp.eq.s32.totalorder %s22, 0
      %p70 = por %p68, %p69
      %p71 = scmp.le.s32.totalorder 1, %s16
      %p72 = scmp.lt.s32.totalorder %s16, 3
      %p73 = pnand %p71, %p72
      %p74 = pneg %p73
      // Predicated region
      $region9: #{tpu_custom_call.1} parent=5 // pred_check
        _
      $region10: #{tpu_custom_call.1} parent=5 // pred_check_branch
        %76 = sbr.rel (%p73) target = $region12
      $region11: #{tpu_custom_call.1} parent=5 // pred_region
        %s77 = ssub.s32 %s16, 1
        // Predicated region
        $region13: #{tpu_custom_call.1} parent=11 // pred_check
          %p78 = pneg %p37
        $region14: #{tpu_custom_call.1} parent=11 // pred_check_branch
          %80 = sbr.rel (%p78) target = $region16
        $region15: #{tpu_custom_call.1} parent=11 // pred_region
          %s82 = ssub.s32 16000, 16000
          %83 = vsyncadd [#allocation5], %s82
          %s84 = sshll.u32 [#allocation4], 4
          %s85 = int_to_ptr.vmem [resolvable:$true] %s84
          %90 = dma.hbm_to_vmem [thread:$0]  %s1, 16000, %s85, [#allocation5], 128, 128, 8
        $region16: #{tpu_custom_call.1} parent=11 // pred_fallthru
          _
      $region12: #{tpu_custom_call.1} parent=5 // pred_fallthru
        _
      %p91 = scmp.lt.s32.totalorder %s16, 2
      // Predicated region
      $region17: #{tpu_custom_call.1} parent=5 // pred_check
        %p92 = pneg %p91
      $region18: #{tpu_custom_call.1} parent=5 // pred_check_branch
        %94 = sbr.rel (%p92) target = $region20
      $region19: #{tpu_custom_call.1} parent=5 // pred_region
        _
      $region20: #{tpu_custom_call.1} parent=5 // pred_fallthru
        _
      %p95 = scmp.le.s32.totalorder 1, %s16
      %p96 = scmp.lt.s32.totalorder %s16, 3
      %p97 = pnand %p95, %p96
      %p98 = pneg %p97
      // Predicated region
      $region21: #{tpu_custom_call.1} parent=5 // pred_check
        _
      $region22: #{tpu_custom_call.1} parent=5 // pred_check_branch
        %100 = sbr.rel (%p97) target = $region24
      $region23: #{tpu_custom_call.1} parent=5 // pred_region
        %s101 = ssub.s32 %s16, 1
        // Predicated region
        $region25: #{tpu_custom_call.1} parent=23 // pred_check
          %p102 = pneg %p37
        $region26: #{tpu_custom_call.1} parent=23 // pred_check_branch
          %104 = sbr.rel (%p102) target = $region28
        $region27: #{tpu_custom_call.1} parent=23 // pred_region
          %105 = dma.done [#allocation5], 16000
        $region28: #{tpu_custom_call.1} parent=23 // pred_fallthru
          _
        %p106 = pneg %p37
        %p107 = pneg %p34
        %p108 = pneg %p63
        %p109 = pneg %p60
        %s110 = sand.u32 %s50, 1
        %s111 = scalar_lea.sflag [#allocation6], %s110
        %s112 = sand.u32 %s50, 1
        %s113 = smul.addr %s112, 256
        %s114 = scalar_lea.vmem [#allocation7], %s113
        %s115 = smul.u32 32, %s21
        %s116 = smul.u32 %s21, 256
        %s117 = sld [smem:[#allocation3 + %s116]]
        %s118 = scalar_lea.vmem [#allocation4], %s117
        %v119 = vld [vmem:[%s118] sm:$0x1]
        %v120 = vmul.f32 %v119, 11.313708
        %121 = vst [vmem:[%s114] sm:$0x1] %v120
        %s122 = sadd.s32 %s116, 1
        %s123 = sld [smem:[#allocation3 + %s122]]
        %s124 = scalar_lea.vmem [#allocation4], %s123
        %v125 = vld [vmem:[%s124] sm:$0x1]
        %v126 = vmul.f32 %v125, 11.313708
        %127 = vst [vmem:[%s114 + $0x1] sm:$0x1] %v126
        %s128 = sadd.s32 %s116, 2
        %s129 = sld [smem:[#allocation3 + %s128]]
        %s130 = scalar_lea.vmem [#allocation4], %s129
        %v131 = vld [vmem:[%s130] sm:$0x1]
        %v132 = vmul.f32 %v131, 11.313708
        %133 = vst [vmem:[%s114 + $0x2] sm:$0x1] %v132
        %s134 = sadd.s32 %s116, 3
        %s135 = sld [smem:[#allocation3 + %s134]]
        %s136 = scalar_lea.vmem [#allocation4], %s135
        %v137 = vld [vmem:[%s136] sm:$0x1]
        %v138 = vmul.f32 %v137, 11.313708
        %139 = vst [vmem:[%s114 + $0x3] sm:$0x1] %v138
        %s140 = sadd.s32 %s116, 4
        %s141 = sld [smem:[#allocation3 + %s140]]
        %s142 = scalar_lea.vmem [#allocation4], %s141
        %v143 = vld [vmem:[%s142] sm:$0x1]
        %v144 = vmul.f32 %v143, 11.313708
        %145 = vst [vmem:[%s114 + $0x4] sm:$0x1] %v144
        %s146 = sadd.s32 %s116, 5
        %s147 = sld [smem:[#allocation3 + %s146]]
        %s148 = scalar_lea.vmem [#allocation4], %s147
        %v149 = vld [vmem:[%s148] sm:$0x1]
        %v150 = vmul.f32 %v149, 11.313708
        %151 = vst [vmem:[%s114 + $0x5] sm:$0x1] %v150
        %s152 = sadd.s32 %s116, 6
        %s153 = sld [smem:[#allocation3 + %s152]]
        %s154 = scalar_lea.vmem [#allocation4], %s153
        %v155 = vld [vmem:[%s154] sm:$0x1]
        %v156 = vmul.f32 %v155, 11.313708
        %157 = vst [vmem:[%s114 + $0x6] sm:$0x1] %v156
        %s158 = sadd.s32 %s116, 7
        %s159 = sld [smem:[#allocation3 + %s158]]
        %s160 = scalar_lea.vmem [#allocation4], %s159
        %v161 = vld [vmem:[%s160] sm:$0x1]
        %v162 = vmul.f32 %v161, 11.313708
        %163 = vst [vmem:[%s114 + $0x7] sm:$0x1] %v162
        %s164 = sadd.s32 %s116, 8
        %s165 = sld [smem:[#allocation3 + %s164]]
        %s166 = scalar_lea.vmem [#allocation4], %s165
        %v167 = vld [vmem:[%s166] sm:$0x1]
        %v168 = vmul.f32 %v167, 11.313708
        %169 = vst [vmem:[%s114 + $0x8] sm:$0x1] %v168
        %s170 = sadd.s32 %s116, 9
        %s171 = sld [smem:[#allocation3 + %s170]]
        %s172 = scalar_lea.vmem [#allocation4], %s171
        %v173 = vld [vmem:[%s172] sm:$0x1]
        %v174 = vmul.f32 %v173, 11.313708
        %175 = vst [vmem:[%s114 + $0x9] sm:$0x1] %v174
        %s176 = sadd.s32 %s116, 10
        %s177 = sld [smem:[#allocation3 + %s176]]
        %s178 = scalar_lea.vmem [#allocation4], %s177
        %v179 = vld [vmem:[%s178] sm:$0x1]
        %v180 = vmul.f32 %v179, 11.313708
        %181 = vst [vmem:[%s114 + $0xa] sm:$0x1] %v180
        %s182 = sadd.s32 %s116, 11
        %s183 = sld [smem:[#allocation3 + %s182]]
        %s184 = scalar_lea.vmem [#allocation4], %s183
        %v185 = vld [vmem:[%s184] sm:$0x1]
        %v186 = vmul.f32 %v185, 11.313708
        %187 = vst [vmem:[%s114 + $0xb] sm:$0x1] %v186
        %s188 = sadd.s32 %s116, 12
        %s189 = sld [smem:[#allocation3 + %s188]]
        %s190 = scalar_lea.vmem [#allocation4], %s189
        %v191 = vld [vmem:[%s190] sm:$0x1]
        %v192 = vmul.f32 %v191, 11.313708
        %193 = vst [vmem:[%s114 + $0xc] sm:$0x1] %v192
        %s194 = sadd.s32 %s116, 13
        %s195 = sld [smem:[#allocation3 + %s194]]
        %s196 = scalar_lea.vmem [#allocation4], %s195
        %v197 = vld [vmem:[%s196] sm:$0x1]
        %v198 = vmul.f32 %v197, 11.313708
        %199 = vst [vmem:[%s114 + $0xd] sm:$0x1] %v198
        %s200 = sadd.s32 %s116, 14
        %s201 = sld [smem:[#allocation3 + %s200]]
        %s202 = scalar_lea.vmem [#allocation4], %s201
        %v203 = vld [vmem:[%s202] sm:$0x1]
        %v204 = vmul.f32 %v203, 11.313708
        %205 = vst [vmem:[%s114 + $0xe] sm:$0x1] %v204
        %s206 = sadd.s32 %s116, 15
        %s207 = sld [smem:[#allocation3 + %s206]]
        %s208 = scalar_lea.vmem [#allocation4], %s207
        %v209 = vld [vmem:[%s208] sm:$0x1]
        %v210 = vmul.f32 %v209, 11.313708
        %211 = vst [vmem:[%s114 + $0xf] sm:$0x1] %v210
        %s212 = sadd.s32 %s116, 16
        %s213 = sld [smem:[#allocation3 + %s212]]
        %s214 = scalar_lea.vmem [#allocation4], %s213
        %v215 = vld [vmem:[%s214] sm:$0x1]
        %v216 = vmul.f32 %v215, 11.313708
        %217 = vst [vmem:[%s114 + $0x10] sm:$0x1] %v216
        %s218 = sadd.s32 %s116, 17
        %s219 = sld [smem:[#allocation3 + %s218]]
        %s220 = scalar_lea.vmem [#allocation4], %s219
        %v221 = vld [vmem:[%s220] sm:$0x1]
        %v222 = vmul.f32 %v221, 11.313708
        %223 = vst [vmem:[%s114 + $0x11] sm:$0x1] %v222
        %s224 = sadd.s32 %s116, 18
        %s225 = sld [smem:[#allocation3 + %s224]]
        %s226 = scalar_lea.vmem [#allocation4], %s225
        %v227 = vld [vmem:[%s226] sm:$0x1]
        %v228 = vmul.f32 %v227, 11.313708
        %229 = vst [vmem:[%s114 + $0x12] sm:$0x1] %v228
        %s230 = sadd.s32 %s116, 19
        %s231 = sld [smem:[#allocation3 + %s230]]
        %s232 = scalar_lea.vmem [#allocation4], %s231
        %v233 = vld [vmem:[%s232] sm:$0x1]
        %v234 = vmul.f32 %v233, 11.313708
        %235 = vst [vmem:[%s114 + $0x13] sm:$0x1] %v234
        %s236 = sadd.s32 %s116, 20
        %s237 = sld [smem:[#allocation3 + %s236]]
        %s238 = scalar_lea.vmem [#allocation4], %s237
        %v239 = vld [vmem:[%s238] sm:$0x1]
        %v240 = vmul.f32 %v239, 11.313708
        %241 = vst [vmem:[%s114 + $0x14] sm:$0x1] %v240
        %s242 = sadd.s32 %s116, 21
        %s243 = sld [smem:[#allocation3 + %s242]]
        %s244 = scalar_lea.vmem [#allocation4], %s243
        %v245 = vld [vmem:[%s244] sm:$0x1]
        %v246 = vmul.f32 %v245, 11.313708
        %247 = vst [vmem:[%s114 + $0x15] sm:$0x1] %v246
        %s248 = sadd.s32 %s116, 22
        %s249 = sld [smem:[#allocation3 + %s248]]
        %s250 = scalar_lea.vmem [#allocation4], %s249
        %v251 = vld [vmem:[%s250] sm:$0x1]
        %v252 = vmul.f32 %v251, 11.313708
        %253 = vst [vmem:[%s114 + $0x16] sm:$0x1] %v252
        %s254 = sadd.s32 %s116, 23
        %s255 = sld [smem:[#allocation3 + %s254]]
        %s256 = scalar_lea.vmem [#allocation4], %s255
        %v257 = vld [vmem:[%s256] sm:$0x1]
        %v258 = vmul.f32 %v257, 11.313708
        %259 = vst [vmem:[%s114 + $0x17] sm:$0x1] %v258
        %s260 = sadd.s32 %s116, 24
        %s261 = sld [smem:[#allocation3 + %s260]]
        %s262 = scalar_lea.vmem [#allocation4], %s261
        %v263 = vld [vmem:[%s262] sm:$0x1]
        %v264 = vmul.f32 %v263, 11.313708
        %265 = vst [vmem:[%s114 + $0x18] sm:$0x1] %v264
        %s266 = sadd.s32 %s116, 25
        %s267 = sld [smem:[#allocation3 + %s266]]
        %s268 = scalar_lea.vmem [#allocation4], %s267
        %v269 = vld [vmem:[%s268] sm:$0x1]
        %v270 = vmul.f32 %v269, 11.313708
        %271 = vst [vmem:[%s114 + $0x19] sm:$0x1] %v270
        %s272 = sadd.s32 %s116, 26
        %s273 = sld [smem:[#allocation3 + %s272]]
        %s274 = scalar_lea.vmem [#allocation4], %s273
        %v275 = vld [vmem:[%s274] sm:$0x1]
        %v276 = vmul.f32 %v275, 11.313708
        %277 = vst [vmem:[%s114 + $0x1a] sm:$0x1] %v276
        %s278 = sadd.s32 %s116, 27
        %s279 = sld [smem:[#allocation3 + %s278]]
        %s280 = scalar_lea.vmem [#allocation4], %s279
        %v281 = vld [vmem:[%s280] sm:$0x1]
        %v282 = vmul.f32 %v281, 11.313708
        %283 = vst [vmem:[%s114 + $0x1b] sm:$0x1] %v282
        %s284 = sadd.s32 %s116, 28
        %s285 = sld [smem:[#allocation3 + %s284]]
        %s286 = scalar_lea.vmem [#allocation4], %s285
        %v287 = vld [vmem:[%s286] sm:$0x1]
        %v288 = vmul.f32 %v287, 11.313708
        %289 = vst [vmem:[%s114 + $0x1c] sm:$0x1] %v288
        %s290 = sadd.s32 %s116, 29
        %s291 = sld [smem:[#allocation3 + %s290]]
        %s292 = scalar_lea.vmem [#allocation4], %s291
        %v293 = vld [vmem:[%s292] sm:$0x1]
        %v294 = vmul.f32 %v293, 11.313708
        %295 = vst [vmem:[%s114 + $0x1d] sm:$0x1] %v294
        %s296 = sadd.s32 %s116, 30
        %s297 = sld [smem:[#allocation3 + %s296]]
        %s298 = scalar_lea.vmem [#allocation4], %s297
        %v299 = vld [vmem:[%s298] sm:$0x1]
        %v300 = vmul.f32 %v299, 11.313708
        %301 = vst [vmem:[%s114 + $0x1e] sm:$0x1] %v300
        %s302 = sadd.s32 %s116, 31
        %s303 = sld [smem:[#allocation3 + %s302]]
        %s304 = scalar_lea.vmem [#allocation4], %s303
        %v305 = vld [vmem:[%s304] sm:$0x1]
        %v306 = vmul.f32 %v305, 11.313708
        %307 = vst [vmem:[%s114 + $0x1f] sm:$0x1] %v306
        %s308 = sadd.s32 %s116, 32
        %s309 = sld [smem:[#allocation3 + %s308]]
        %s310 = scalar_lea.vmem [#allocation4], %s309
        %v311 = vld [vmem:[%s310] sm:$0x1]
        %v312 = vmul.f32 %v311, 11.313708
        %313 = vst [vmem:[%s114 + $0x20] sm:$0x1] %v312
        %s314 = sadd.s32 %s116, 33
        %s315 = sld [smem:[#allocation3 + %s314]]
        %s316 = scalar_lea.vmem [#allocation4], %s315
        %v317 = vld [vmem:[%s316] sm:$0x1]
        %v318 = vmul.f32 %v317, 11.313708
        %319 = vst [vmem:[%s114 + $0x21] sm:$0x1] %v318
        %s320 = sadd.s32 %s116, 34
        %s321 = sld [smem:[#allocation3 + %s320]]
        %s322 = scalar_lea.vmem [#allocation4], %s321
        %v323 = vld [vmem:[%s322] sm:$0x1]
        %v324 = vmul.f32 %v323, 11.313708
        %325 = vst [vmem:[%s114 + $0x22] sm:$0x1] %v324
        %s326 = sadd.s32 %s116, 35
        %s327 = sld [smem:[#allocation3 + %s326]]
        %s328 = scalar_lea.vmem [#allocation4], %s327
        %v329 = vld [vmem:[%s328] sm:$0x1]
        %v330 = vmul.f32 %v329, 11.313708
        %331 = vst [vmem:[%s114 + $0x23] sm:$0x1] %v330
        %s332 = sadd.s32 %s116, 36
        %s333 = sld [smem:[#allocation3 + %s332]]
        %s334 = scalar_lea.vmem [#allocation4], %s333
        %v335 = vld [vmem:[%s334] sm:$0x1]
        %v336 = vmul.f32 %v335, 11.313708
        %337 = vst [vmem:[%s114 + $0x24] sm:$0x1] %v336
        %s338 = sadd.s32 %s116, 37
        %s339 = sld [smem:[#allocation3 + %s338]]
        %s340 = scalar_lea.vmem [#allocation4], %s339
        %v341 = vld [vmem:[%s340] sm:$0x1]
        %v342 = vmul.f32 %v341, 11.313708
        %343 = vst [vmem:[%s114 + $0x25] sm:$0x1] %v342
        %s344 = sadd.s32 %s116, 38
        %s345 = sld [smem:[#allocation3 + %s344]]
        %s346 = scalar_lea.vmem [#allocation4], %s345
        %v347 = vld [vmem:[%s346] sm:$0x1]
        %v348 = vmul.f32 %v347, 11.313708
        %349 = vst [vmem:[%s114 + $0x26] sm:$0x1] %v348
        %s350 = sadd.s32 %s116, 39
        %s351 = sld [smem:[#allocation3 + %s350]]
        %s352 = scalar_lea.vmem [#allocation4], %s351
        %v353 = vld [vmem:[%s352] sm:$0x1]
        %v354 = vmul.f32 %v353, 11.313708
        %355 = vst [vmem:[%s114 + $0x27] sm:$0x1] %v354
        %s356 = sadd.s32 %s116, 40
        %s357 = sld [smem:[#allocation3 + %s356]]
        %s358 = scalar_lea.vmem [#allocation4], %s357
        %v359 = vld [vmem:[%s358] sm:$0x1]
        %v360 = vmul.f32 %v359, 11.313708
        %361 = vst [vmem:[%s114 + $0x28] sm:$0x1] %v360
        %s362 = sadd.s32 %s116, 41
        %s363 = sld [smem:[#allocation3 + %s362]]
        %s364 = scalar_lea.vmem [#allocation4], %s363
        %v365 = vld [vmem:[%s364] sm:$0x1]
        %v366 = vmul.f32 %v365, 11.313708
        %367 = vst [vmem:[%s114 + $0x29] sm:$0x1] %v366
        %s368 = sadd.s32 %s116, 42
        %s369 = sld [smem:[#allocation3 + %s368]]
        %s370 = scalar_lea.vmem [#allocation4], %s369
        %v371 = vld [vmem:[%s370] sm:$0x1]
        %v372 = vmul.f32 %v371, 11.313708
        %373 = vst [vmem:[%s114 + $0x2a] sm:$0x1] %v372
        %s374 = sadd.s32 %s116, 43
        %s375 = sld [smem:[#allocation3 + %s374]]
        %s376 = scalar_lea.vmem [#allocation4], %s375
        %v377 = vld [vmem:[%s376] sm:$0x1]
        %v378 = vmul.f32 %v377, 11.313708
        %379 = vst [vmem:[%s114 + $0x2b] sm:$0x1] %v378
        %s380 = sadd.s32 %s116, 44
        %s381 = sld [smem:[#allocation3 + %s380]]
        %s382 = scalar_lea.vmem [#allocation4], %s381
        %v383 = vld [vmem:[%s382] sm:$0x1]
        %v384 = vmul.f32 %v383, 11.313708
        %385 = vst [vmem:[%s114 + $0x2c] sm:$0x1] %v384
        %s386 = sadd.s32 %s116, 45
        %s387 = sld [smem:[#allocation3 + %s386]]
        %s388 = scalar_lea.vmem [#allocation4], %s387
        %v389 = vld [vmem:[%s388] sm:$0x1]
        %v390 = vmul.f32 %v389, 11.313708
        %391 = vst [vmem:[%s114 + $0x2d] sm:$0x1] %v390
        %s392 = sadd.s32 %s116, 46
        %s393 = sld [smem:[#allocation3 + %s392]]
        %s394 = scalar_lea.vmem [#allocation4], %s393
        %v395 = vld [vmem:[%s394] sm:$0x1]
        %v396 = vmul.f32 %v395, 11.313708
        %397 = vst [vmem:[%s114 + $0x2e] sm:$0x1] %v396
        %s398 = sadd.s32 %s116, 47
        %s399 = sld [smem:[#allocation3 + %s398]]
        %s400 = scalar_lea.vmem [#allocation4], %s399
        %v401 = vld [vmem:[%s400] sm:$0x1]
        %v402 = vmul.f32 %v401, 11.313708
        %403 = vst [vmem:[%s114 + $0x2f] sm:$0x1] %v402
        %s404 = sadd.s32 %s116, 48
        %s405 = sld [smem:[#allocation3 + %s404]]
        %s406 = scalar_lea.vmem [#allocation4], %s405
        %v407 = vld [vmem:[%s406] sm:$0x1]
        %v408 = vmul.f32 %v407, 11.313708
        %409 = vst [vmem:[%s114 + $0x30] sm:$0x1] %v408
        %s410 = sadd.s32 %s116, 49
        %s411 = sld [smem:[#allocation3 + %s410]]
        %s412 = scalar_lea.vmem [#allocation4], %s411
        %v413 = vld [vmem:[%s412] sm:$0x1]
        %v414 = vmul.f32 %v413, 11.313708
        %415 = vst [vmem:[%s114 + $0x31] sm:$0x1] %v414
        %s416 = sadd.s32 %s116, 50
        %s417 = sld [smem:[#allocation3 + %s416]]
        %s418 = scalar_lea.vmem [#allocation4], %s417
        %v419 = vld [vmem:[%s418] sm:$0x1]
        %v420 = vmul.f32 %v419, 11.313708
        %421 = vst [vmem:[%s114 + $0x32] sm:$0x1] %v420
        %s422 = sadd.s32 %s116, 51
        %s423 = sld [smem:[#allocation3 + %s422]]
        %s424 = scalar_lea.vmem [#allocation4], %s423
        %v425 = vld [vmem:[%s424] sm:$0x1]
        %v426 = vmul.f32 %v425, 11.313708
        %427 = vst [vmem:[%s114 + $0x33] sm:$0x1] %v426
        %s428 = sadd.s32 %s116, 52
        %s429 = sld [smem:[#allocation3 + %s428]]
        %s430 = scalar_lea.vmem [#allocation4], %s429
        %v431 = vld [vmem:[%s430] sm:$0x1]
        %v432 = vmul.f32 %v431, 11.313708
        %433 = vst [vmem:[%s114 + $0x34] sm:$0x1] %v432
        %s434 = sadd.s32 %s116, 53
        %s435 = sld [smem:[#allocation3 + %s434]]
        %s436 = scalar_lea.vmem [#allocation4], %s435
        %v437 = vld [vmem:[%s436] sm:$0x1]
        %v438 = vmul.f32 %v437, 11.313708
        %439 = vst [vmem:[%s114 + $0x35] sm:$0x1] %v438
        %s440 = sadd.s32 %s116, 54
        %s441 = sld [smem:[#allocation3 + %s440]]
        %s442 = scalar_lea.vmem [#allocation4], %s441
        %v443 = vld [vmem:[%s442] sm:$0x1]
        %v444 = vmul.f32 %v443, 11.313708
        %445 = vst [vmem:[%s114 + $0x36] sm:$0x1] %v444
        %s446 = sadd.s32 %s116, 55
        %s447 = sld [smem:[#allocation3 + %s446]]
        %s448 = scalar_lea.vmem [#allocation4], %s447
        %v449 = vld [vmem:[%s448] sm:$0x1]
        %v450 = vmul.f32 %v449, 11.313708
        %451 = vst [vmem:[%s114 + $0x37] sm:$0x1] %v450
        %s452 = sadd.s32 %s116, 56
        %s453 = sld [smem:[#allocation3 + %s452]]
        %s454 = scalar_lea.vmem [#allocation4], %s453
        %v455 = vld [vmem:[%s454] sm:$0x1]
        %v456 = vmul.f32 %v455, 11.313708
        %457 = vst [vmem:[%s114 + $0x38] sm:$0x1] %v456
        %s458 = sadd.s32 %s116, 57
        %s459 = sld [smem:[#allocation3 + %s458]]
        %s460 = scalar_lea.vmem [#allocation4], %s459
        %v461 = vld [vmem:[%s460] sm:$0x1]
        %v462 = vmul.f32 %v461, 11.313708
        %463 = vst [vmem:[%s114 + $0x39] sm:$0x1] %v462
        %s464 = sadd.s32 %s116, 58
        %s465 = sld [smem:[#allocation3 + %s464]]
        %s466 = scalar_lea.vmem [#allocation4], %s465
        %v467 = vld [vmem:[%s466] sm:$0x1]
        %v468 = vmul.f32 %v467, 11.313708
        %469 = vst [vmem:[%s114 + $0x3a] sm:$0x1] %v468
        %s470 = sadd.s32 %s116, 59
        %s471 = sld [smem:[#allocation3 + %s470]]
        %s472 = scalar_lea.vmem [#allocation4], %s471
        %v473 = vld [vmem:[%s472] sm:$0x1]
        %v474 = vmul.f32 %v473, 11.313708
        %475 = vst [vmem:[%s114 + $0x3b] sm:$0x1] %v474
        %s476 = sadd.s32 %s116, 60
        %s477 = sld [smem:[#allocation3 + %s476]]
        %s478 = scalar_lea.vmem [#allocation4], %s477
        %v479 = vld [vmem:[%s478] sm:$0x1]
        %v480 = vmul.f32 %v479, 11.313708
        %481 = vst [vmem:[%s114 + $0x3c] sm:$0x1] %v480
        %s482 = sadd.s32 %s116, 61
        %s483 = sld [smem:[#allocation3 + %s482]]
        %s484 = scalar_lea.vmem [#allocation4], %s483
        %v485 = vld [vmem:[%s484] sm:$0x1]
        %v486 = vmul.f32 %v485, 11.313708
        %487 = vst [vmem:[%s114 + $0x3d] sm:$0x1] %v486
        %s488 = sadd.s32 %s116, 62
        %s489 = sld [smem:[#allocation3 + %s488]]
        %s490 = scalar_lea.vmem [#allocation4], %s489
        %v491 = vld [vmem:[%s490] sm:$0x1]
        %v492 = vmul.f32 %v491, 11.313708
        %493 = vst [vmem:[%s114 + $0x3e] sm:$0x1] %v492
        %s494 = sadd.s32 %s116, 63
        %s495 = sld [smem:[#allocation3 + %s494]]
        %s496 = scalar_lea.vmem [#allocation4], %s495
        %v497 = vld [vmem:[%s496] sm:$0x1]
        %v498 = vmul.f32 %v497, 11.313708
        %499 = vst [vmem:[%s114 + $0x3f] sm:$0x1] %v498
        %s500 = sadd.s32 %s116, 64
        %s501 = sld [smem:[#allocation3 + %s500]]
        %s502 = scalar_lea.vmem [#allocation4], %s501
        %v503 = vld [vmem:[%s502] sm:$0x1]
        %v504 = vmul.f32 %v503, 11.313708
        %505 = vst [vmem:[%s114 + $0x40] sm:$0x1] %v504
        %s506 = sadd.s32 %s116, 65
        %s507 = sld [smem:[#allocation3 + %s506]]
        %s508 = scalar_lea.vmem [#allocation4], %s507
        %v509 = vld [vmem:[%s508] sm:$0x1]
        %v510 = vmul.f32 %v509, 11.313708
        %511 = vst [vmem:[%s114 + $0x41] sm:$0x1] %v510
        %s512 = sadd.s32 %s116, 66
        %s513 = sld [smem:[#allocation3 + %s512]]
        %s514 = scalar_lea.vmem [#allocation4], %s513
        %v515 = vld [vmem:[%s514] sm:$0x1]
        %v516 = vmul.f32 %v515, 11.313708
        %517 = vst [vmem:[%s114 + $0x42] sm:$0x1] %v516
        %s518 = sadd.s32 %s116, 67
        %s519 = sld [smem:[#allocation3 + %s518]]
        %s520 = scalar_lea.vmem [#allocation4], %s519
        %v521 = vld [vmem:[%s520] sm:$0x1]
        %v522 = vmul.f32 %v521, 11.313708
        %523 = vst [vmem:[%s114 + $0x43] sm:$0x1] %v522
        %s524 = sadd.s32 %s116, 68
        %s525 = sld [smem:[#allocation3 + %s524]]
        %s526 = scalar_lea.vmem [#allocation4], %s525
        %v527 = vld [vmem:[%s526] sm:$0x1]
        %v528 = vmul.f32 %v527, 11.313708
        %529 = vst [vmem:[%s114 + $0x44] sm:$0x1] %v528
        %s530 = sadd.s32 %s116, 69
        %s531 = sld [smem:[#allocation3 + %s530]]
        %s532 = scalar_lea.vmem [#allocation4], %s531
        %v533 = vld [vmem:[%s532] sm:$0x1]
        %v534 = vmul.f32 %v533, 11.313708
        %535 = vst [vmem:[%s114 + $0x45] sm:$0x1] %v534
        %s536 = sadd.s32 %s116, 70
        %s537 = sld [smem:[#allocation3 + %s536]]
        %s538 = scalar_lea.vmem [#allocation4], %s537
        %v539 = vld [vmem:[%s538] sm:$0x1]
        %v540 = vmul.f32 %v539, 11.313708
        %541 = vst [vmem:[%s114 + $0x46] sm:$0x1] %v540
        %s542 = sadd.s32 %s116, 71
        %s543 = sld [smem:[#allocation3 + %s542]]
        %s544 = scalar_lea.vmem [#allocation4], %s543
        %v545 = vld [vmem:[%s544] sm:$0x1]
        %v546 = vmul.f32 %v545, 11.313708
        %547 = vst [vmem:[%s114 + $0x47] sm:$0x1] %v546
        %s548 = sadd.s32 %s116, 72
        %s549 = sld [smem:[#allocation3 + %s548]]
        %s550 = scalar_lea.vmem [#allocation4], %s549
        %v551 = vld [vmem:[%s550] sm:$0x1]
        %v552 = vmul.f32 %v551, 11.313708
        %553 = vst [vmem:[%s114 + $0x48] sm:$0x1] %v552
        %s554 = sadd.s32 %s116, 73
        %s555 = sld [smem:[#allocation3 + %s554]]
        %s556 = scalar_lea.vmem [#allocation4], %s555
        %v557 = vld [vmem:[%s556] sm:$0x1]
        %v558 = vmul.f32 %v557, 11.313708
        %559 = vst [vmem:[%s114 + $0x49] sm:$0x1] %v558
        %s560 = sadd.s32 %s116, 74
        %s561 = sld [smem:[#allocation3 + %s560]]
        %s562 = scalar_lea.vmem [#allocation4], %s561
        %v563 = vld [vmem:[%s562] sm:$0x1]
        %v564 = vmul.f32 %v563, 11.313708
        %565 = vst [vmem:[%s114 + $0x4a] sm:$0x1] %v564
        %s566 = sadd.s32 %s116, 75
        %s567 = sld [smem:[#allocation3 + %s566]]
        %s568 = scalar_lea.vmem [#allocation4], %s567
        %v569 = vld [vmem:[%s568] sm:$0x1]
        %v570 = vmul.f32 %v569, 11.313708
        %571 = vst [vmem:[%s114 + $0x4b] sm:$0x1] %v570
        %s572 = sadd.s32 %s116, 76
        %s573 = sld [smem:[#allocation3 + %s572]]
        %s574 = scalar_lea.vmem [#allocation4], %s573
        %v575 = vld [vmem:[%s574] sm:$0x1]
        %v576 = vmul.f32 %v575, 11.313708
        %577 = vst [vmem:[%s114 + $0x4c] sm:$0x1] %v576
        %s578 = sadd.s32 %s116, 77
        %s579 = sld [smem:[#allocation3 + %s578]]
        %s580 = scalar_lea.vmem [#allocation4], %s579
        %v581 = vld [vmem:[%s580] sm:$0x1]
        %v582 = vmul.f32 %v581, 11.313708
        %583 = vst [vmem:[%s114 + $0x4d] sm:$0x1] %v582
        %s584 = sadd.s32 %s116, 78
        %s585 = sld [smem:[#allocation3 + %s584]]
        %s586 = scalar_lea.vmem [#allocation4], %s585
        %v587 = vld [vmem:[%s586] sm:$0x1]
        %v588 = vmul.f32 %v587, 11.313708
        %589 = vst [vmem:[%s114 + $0x4e] sm:$0x1] %v588
        %s590 = sadd.s32 %s116, 79
        %s591 = sld [smem:[#allocation3 + %s590]]
        %s592 = scalar_lea.vmem [#allocation4], %s591
        %v593 = vld [vmem:[%s592] sm:$0x1]
        %v594 = vmul.f32 %v593, 11.313708
        %595 = vst [vmem:[%s114 + $0x4f] sm:$0x1] %v594
        %s596 = sadd.s32 %s116, 80
        %s597 = sld [smem:[#allocation3 + %s596]]
        %s598 = scalar_lea.vmem [#allocation4], %s597
        %v599 = vld [vmem:[%s598] sm:$0x1]
        %v600 = vmul.f32 %v599, 11.313708
        %601 = vst [vmem:[%s114 + $0x50] sm:$0x1] %v600
        %s602 = sadd.s32 %s116, 81
        %s603 = sld [smem:[#allocation3 + %s602]]
        %s604 = scalar_lea.vmem [#allocation4], %s603
        %v605 = vld [vmem:[%s604] sm:$0x1]
        %v606 = vmul.f32 %v605, 11.313708
        %607 = vst [vmem:[%s114 + $0x51] sm:$0x1] %v606
        %s608 = sadd.s32 %s116, 82
        %s609 = sld [smem:[#allocation3 + %s608]]
        %s610 = scalar_lea.vmem [#allocation4], %s609
        %v611 = vld [vmem:[%s610] sm:$0x1]
        %v612 = vmul.f32 %v611, 11.313708
        %613 = vst [vmem:[%s114 + $0x52] sm:$0x1] %v612
        %s614 = sadd.s32 %s116, 83
        %s615 = sld [smem:[#allocation3 + %s614]]
        %s616 = scalar_lea.vmem [#allocation4], %s615
        %v617 = vld [vmem:[%s616] sm:$0x1]
        %v618 = vmul.f32 %v617, 11.313708
        %619 = vst [vmem:[%s114 + $0x53] sm:$0x1] %v618
        %s620 = sadd.s32 %s116, 84
        %s621 = sld [smem:[#allocation3 + %s620]]
        %s622 = scalar_lea.vmem [#allocation4], %s621
        %v623 = vld [vmem:[%s622] sm:$0x1]
        %v624 = vmul.f32 %v623, 11.313708
        %625 = vst [vmem:[%s114 + $0x54] sm:$0x1] %v624
        %s626 = sadd.s32 %s116, 85
        %s627 = sld [smem:[#allocation3 + %s626]]
        %s628 = scalar_lea.vmem [#allocation4], %s627
        %v629 = vld [vmem:[%s628] sm:$0x1]
        %v630 = vmul.f32 %v629, 11.313708
        %631 = vst [vmem:[%s114 + $0x55] sm:$0x1] %v630
        %s632 = sadd.s32 %s116, 86
        %s633 = sld [smem:[#allocation3 + %s632]]
        %s634 = scalar_lea.vmem [#allocation4], %s633
        %v635 = vld [vmem:[%s634] sm:$0x1]
        %v636 = vmul.f32 %v635, 11.313708
        %637 = vst [vmem:[%s114 + $0x56] sm:$0x1] %v636
        %s638 = sadd.s32 %s116, 87
        %s639 = sld [smem:[#allocation3 + %s638]]
        %s640 = scalar_lea.vmem [#allocation4], %s639
        %v641 = vld [vmem:[%s640] sm:$0x1]
        %v642 = vmul.f32 %v641, 11.313708
        %643 = vst [vmem:[%s114 + $0x57] sm:$0x1] %v642
        %s644 = sadd.s32 %s116, 88
        %s645 = sld [smem:[#allocation3 + %s644]]
        %s646 = scalar_lea.vmem [#allocation4], %s645
        %v647 = vld [vmem:[%s646] sm:$0x1]
        %v648 = vmul.f32 %v647, 11.313708
        %649 = vst [vmem:[%s114 + $0x58] sm:$0x1] %v648
        %s650 = sadd.s32 %s116, 89
        %s651 = sld [smem:[#allocation3 + %s650]]
        %s652 = scalar_lea.vmem [#allocation4], %s651
        %v653 = vld [vmem:[%s652] sm:$0x1]
        %v654 = vmul.f32 %v653, 11.313708
        %655 = vst [vmem:[%s114 + $0x59] sm:$0x1] %v654
        %s656 = sadd.s32 %s116, 90
        %s657 = sld [smem:[#allocation3 + %s656]]
        %s658 = scalar_lea.vmem [#allocation4], %s657
        %v659 = vld [vmem:[%s658] sm:$0x1]
        %v660 = vmul.f32 %v659, 11.313708
        %661 = vst [vmem:[%s114 + $0x5a] sm:$0x1] %v660
        %s662 = sadd.s32 %s116, 91
        %s663 = sld [smem:[#allocation3 + %s662]]
        %s664 = scalar_lea.vmem [#allocation4], %s663
        %v665 = vld [vmem:[%s664] sm:$0x1]
        %v666 = vmul.f32 %v665, 11.313708
        %667 = vst [vmem:[%s114 + $0x5b] sm:$0x1] %v666
        %s668 = sadd.s32 %s116, 92
        %s669 = sld [smem:[#allocation3 + %s668]]
        %s670 = scalar_lea.vmem [#allocation4], %s669
        %v671 = vld [vmem:[%s670] sm:$0x1]
        %v672 = vmul.f32 %v671, 11.313708
        %673 = vst [vmem:[%s114 + $0x5c] sm:$0x1] %v672
        %s674 = sadd.s32 %s116, 93
        %s675 = sld [smem:[#allocation3 + %s674]]
        %s676 = scalar_lea.vmem [#allocation4], %s675
        %v677 = vld [vmem:[%s676] sm:$0x1]
        %v678 = vmul.f32 %v677, 11.313708
        %679 = vst [vmem:[%s114 + $0x5d] sm:$0x1] %v678
        %s680 = sadd.s32 %s116, 94
        %s681 = sld [smem:[#allocation3 + %s680]]
        %s682 = scalar_lea.vmem [#allocation4], %s681
        %v683 = vld [vmem:[%s682] sm:$0x1]
        %v684 = vmul.f32 %v683, 11.313708
        %685 = vst [vmem:[%s114 + $0x5e] sm:$0x1] %v684
        %s686 = sadd.s32 %s116, 95
        %s687 = sld [smem:[#allocation3 + %s686]]
        %s688 = scalar_lea.vmem [#allocation4], %s687
        %v689 = vld [vmem:[%s688] sm:$0x1]
        %v690 = vmul.f32 %v689, 11.313708
        %691 = vst [vmem:[%s114 + $0x5f] sm:$0x1] %v690
        %s692 = sadd.s32 %s116, 96
        %s693 = sld [smem:[#allocation3 + %s692]]
        %s694 = scalar_lea.vmem [#allocation4], %s693
        %v695 = vld [vmem:[%s694] sm:$0x1]
        %v696 = vmul.f32 %v695, 11.313708
        %697 = vst [vmem:[%s114 + $0x60] sm:$0x1] %v696
        %s698 = sadd.s32 %s116, 97
        %s699 = sld [smem:[#allocation3 + %s698]]
        %s700 = scalar_lea.vmem [#allocation4], %s699
        %v701 = vld [vmem:[%s700] sm:$0x1]
        %v702 = vmul.f32 %v701, 11.313708
        %703 = vst [vmem:[%s114 + $0x61] sm:$0x1] %v702
        %s704 = sadd.s32 %s116, 98
        %s705 = sld [smem:[#allocation3 + %s704]]
        %s706 = scalar_lea.vmem [#allocation4], %s705
        %v707 = vld [vmem:[%s706] sm:$0x1]
        %v708 = vmul.f32 %v707, 11.313708
        %709 = vst [vmem:[%s114 + $0x62] sm:$0x1] %v708
        %s710 = sadd.s32 %s116, 99
        %s711 = sld [smem:[#allocation3 + %s710]]
        %s712 = scalar_lea.vmem [#allocation4], %s711
        %v713 = vld [vmem:[%s712] sm:$0x1]
        %v714 = vmul.f32 %v713, 11.313708
        %715 = vst [vmem:[%s114 + $0x63] sm:$0x1] %v714
        %s716 = sadd.s32 %s116, 100
        %s717 = sld [smem:[#allocation3 + %s716]]
        %s718 = scalar_lea.vmem [#allocation4], %s717
        %v719 = vld [vmem:[%s718] sm:$0x1]
        %v720 = vmul.f32 %v719, 11.313708
        %721 = vst [vmem:[%s114 + $0x64] sm:$0x1] %v720
        %s722 = sadd.s32 %s116, 101
        %s723 = sld [smem:[#allocation3 + %s722]]
        %s724 = scalar_lea.vmem [#allocation4], %s723
        %v725 = vld [vmem:[%s724] sm:$0x1]
        %v726 = vmul.f32 %v725, 11.313708
        %727 = vst [vmem:[%s114 + $0x65] sm:$0x1] %v726
        %s728 = sadd.s32 %s116, 102
        %s729 = sld [smem:[#allocation3 + %s728]]
        %s730 = scalar_lea.vmem [#allocation4], %s729
        %v731 = vld [vmem:[%s730] sm:$0x1]
        %v732 = vmul.f32 %v731, 11.313708
        %733 = vst [vmem:[%s114 + $0x66] sm:$0x1] %v732
        %s734 = sadd.s32 %s116, 103
        %s735 = sld [smem:[#allocation3 + %s734]]
        %s736 = scalar_lea.vmem [#allocation4], %s735
        %v737 = vld [vmem:[%s736] sm:$0x1]
        %v738 = vmul.f32 %v737, 11.313708
        %739 = vst [vmem:[%s114 + $0x67] sm:$0x1] %v738
        %s740 = sadd.s32 %s116, 104
        %s741 = sld [smem:[#allocation3 + %s740]]
        %s742 = scalar_lea.vmem [#allocation4], %s741
        %v743 = vld [vmem:[%s742] sm:$0x1]
        %v744 = vmul.f32 %v743, 11.313708
        %745 = vst [vmem:[%s114 + $0x68] sm:$0x1] %v744
        %s746 = sadd.s32 %s116, 105
        %s747 = sld [smem:[#allocation3 + %s746]]
        %s748 = scalar_lea.vmem [#allocation4], %s747
        %v749 = vld [vmem:[%s748] sm:$0x1]
        %v750 = vmul.f32 %v749, 11.313708
        %751 = vst [vmem:[%s114 + $0x69] sm:$0x1] %v750
        %s752 = sadd.s32 %s116, 106
        %s753 = sld [smem:[#allocation3 + %s752]]
        %s754 = scalar_lea.vmem [#allocation4], %s753
        %v755 = vld [vmem:[%s754] sm:$0x1]
        %v756 = vmul.f32 %v755, 11.313708
        %757 = vst [vmem:[%s114 + $0x6a] sm:$0x1] %v756
        %s758 = sadd.s32 %s116, 107
        %s759 = sld [smem:[#allocation3 + %s758]]
        %s760 = scalar_lea.vmem [#allocation4], %s759
        %v761 = vld [vmem:[%s760] sm:$0x1]
        %v762 = vmul.f32 %v761, 11.313708
        %763 = vst [vmem:[%s114 + $0x6b] sm:$0x1] %v762
        %s764 = sadd.s32 %s116, 108
        %s765 = sld [smem:[#allocation3 + %s764]]
        %s766 = scalar_lea.vmem [#allocation4], %s765
        %v767 = vld [vmem:[%s766] sm:$0x1]
        %v768 = vmul.f32 %v767, 11.313708
        %769 = vst [vmem:[%s114 + $0x6c] sm:$0x1] %v768
        %s770 = sadd.s32 %s116, 109
        %s771 = sld [smem:[#allocation3 + %s770]]
        %s772 = scalar_lea.vmem [#allocation4], %s771
        %v773 = vld [vmem:[%s772] sm:$0x1]
        %v774 = vmul.f32 %v773, 11.313708
        %775 = vst [vmem:[%s114 + $0x6d] sm:$0x1] %v774
        %s776 = sadd.s32 %s116, 110
        %s777 = sld [smem:[#allocation3 + %s776]]
        %s778 = scalar_lea.vmem [#allocation4], %s777
        %v779 = vld [vmem:[%s778] sm:$0x1]
        %v780 = vmul.f32 %v779, 11.313708
        %781 = vst [vmem:[%s114 + $0x6e] sm:$0x1] %v780
        %s782 = sadd.s32 %s116, 111
        %s783 = sld [smem:[#allocation3 + %s782]]
        %s784 = scalar_lea.vmem [#allocation4], %s783
        %v785 = vld [vmem:[%s784] sm:$0x1]
        %v786 = vmul.f32 %v785, 11.313708
        %787 = vst [vmem:[%s114 + $0x6f] sm:$0x1] %v786
        %s788 = sadd.s32 %s116, 112
        %s789 = sld [smem:[#allocation3 + %s788]]
        %s790 = scalar_lea.vmem [#allocation4], %s789
        %v791 = vld [vmem:[%s790] sm:$0x1]
        %v792 = vmul.f32 %v791, 11.313708
        %793 = vst [vmem:[%s114 + $0x70] sm:$0x1] %v792
        %s794 = sadd.s32 %s116, 113
        %s795 = sld [smem:[#allocation3 + %s794]]
        %s796 = scalar_lea.vmem [#allocation4], %s795
        %v797 = vld [vmem:[%s796] sm:$0x1]
        %v798 = vmul.f32 %v797, 11.313708
        %799 = vst [vmem:[%s114 + $0x71] sm:$0x1] %v798
        %s800 = sadd.s32 %s116, 114
        %s801 = sld [smem:[#allocation3 + %s800]]
        %s802 = scalar_lea.vmem [#allocation4], %s801
        %v803 = vld [vmem:[%s802] sm:$0x1]
        %v804 = vmul.f32 %v803, 11.313708
        %805 = vst [vmem:[%s114 + $0x72] sm:$0x1] %v804
        %s806 = sadd.s32 %s116, 115
        %s807 = sld [smem:[#allocation3 + %s806]]
        %s808 = scalar_lea.vmem [#allocation4], %s807
        %v809 = vld [vmem:[%s808] sm:$0x1]
        %v810 = vmul.f32 %v809, 11.313708
        %811 = vst [vmem:[%s114 + $0x73] sm:$0x1] %v810
        %s812 = sadd.s32 %s116, 116
        %s813 = sld [smem:[#allocation3 + %s812]]
        %s814 = scalar_lea.vmem [#allocation4], %s813
        %v815 = vld [vmem:[%s814] sm:$0x1]
        %v816 = vmul.f32 %v815, 11.313708
        %817 = vst [vmem:[%s114 + $0x74] sm:$0x1] %v816
        %s818 = sadd.s32 %s116, 117
        %s819 = sld [smem:[#allocation3 + %s818]]
        %s820 = scalar_lea.vmem [#allocation4], %s819
        %v821 = vld [vmem:[%s820] sm:$0x1]
        %v822 = vmul.f32 %v821, 11.313708
        %823 = vst [vmem:[%s114 + $0x75] sm:$0x1] %v822
        %s824 = sadd.s32 %s116, 118
        %s825 = sld [smem:[#allocation3 + %s824]]
        %s826 = scalar_lea.vmem [#allocation4], %s825
        %v827 = vld [vmem:[%s826] sm:$0x1]
        %v828 = vmul.f32 %v827, 11.313708
        %829 = vst [vmem:[%s114 + $0x76] sm:$0x1] %v828
        %s830 = sadd.s32 %s116, 119
        %s831 = sld [smem:[#allocation3 + %s830]]
        %s832 = scalar_lea.vmem [#allocation4], %s831
        %v833 = vld [vmem:[%s832] sm:$0x1]
        %v834 = vmul.f32 %v833, 11.313708
        %835 = vst [vmem:[%s114 + $0x77] sm:$0x1] %v834
        %s836 = sadd.s32 %s116, 120
        %s837 = sld [smem:[#allocation3 + %s836]]
        %s838 = scalar_lea.vmem [#allocation4], %s837
        %v839 = vld [vmem:[%s838] sm:$0x1]
        %v840 = vmul.f32 %v839, 11.313708
        %841 = vst [vmem:[%s114 + $0x78] sm:$0x1] %v840
        %s842 = sadd.s32 %s116, 121
        %s843 = sld [smem:[#allocation3 + %s842]]
        %s844 = scalar_lea.vmem [#allocation4], %s843
        %v845 = vld [vmem:[%s844] sm:$0x1]
        %v846 = vmul.f32 %v845, 11.313708
        %847 = vst [vmem:[%s114 + $0x79] sm:$0x1] %v846
        %s848 = sadd.s32 %s116, 122
        %s849 = sld [smem:[#allocation3 + %s848]]
        %s850 = scalar_lea.vmem [#allocation4], %s849
        %v851 = vld [vmem:[%s850] sm:$0x1]
        %v852 = vmul.f32 %v851, 11.313708
        %853 = vst [vmem:[%s114 + $0x7a] sm:$0x1] %v852
        %s854 = sadd.s32 %s116, 123
        %s855 = sld [smem:[#allocation3 + %s854]]
        %s856 = scalar_lea.vmem [#allocation4], %s855
        %v857 = vld [vmem:[%s856] sm:$0x1]
        %v858 = vmul.f32 %v857, 11.313708
        %859 = vst [vmem:[%s114 + $0x7b] sm:$0x1] %v858
        %s860 = sadd.s32 %s116, 124
        %s861 = sld [smem:[#allocation3 + %s860]]
        %s862 = scalar_lea.vmem [#allocation4], %s861
        %v863 = vld [vmem:[%s862] sm:$0x1]
        %v864 = vmul.f32 %v863, 11.313708
        %865 = vst [vmem:[%s114 + $0x7c] sm:$0x1] %v864
        %s866 = sadd.s32 %s116, 125
        %s867 = sld [smem:[#allocation3 + %s866]]
        %s868 = scalar_lea.vmem [#allocation4], %s867
        %v869 = vld [vmem:[%s868] sm:$0x1]
        %v870 = vmul.f32 %v869, 11.313708
        %871 = vst [vmem:[%s114 + $0x7d] sm:$0x1] %v870
        %s872 = sadd.s32 %s116, 126
        %s873 = sld [smem:[#allocation3 + %s872]]
        %s874 = scalar_lea.vmem [#allocation4], %s873
        %v875 = vld [vmem:[%s874] sm:$0x1]
        %v876 = vmul.f32 %v875, 11.313708
        %877 = vst [vmem:[%s114 + $0x7e] sm:$0x1] %v876
        %s878 = sadd.s32 %s116, 127
        %s879 = sld [smem:[#allocation3 + %s878]]
        %s880 = scalar_lea.vmem [#allocation4], %s879
        %v881 = vld [vmem:[%s880] sm:$0x1]
        %v882 = vmul.f32 %v881, 11.313708
        %883 = vst [vmem:[%s114 + $0x7f] sm:$0x1] %v882
        %s884 = sadd.s32 %s116, 128
        %s885 = sld [smem:[#allocation3 + %s884]]
        %s886 = scalar_lea.vmem [#allocation4], %s885
        %v887 = vld [vmem:[%s886] sm:$0x1]
        %v888 = vmul.f32 %v887, 11.313708
        %889 = vst [vmem:[%s114 + $0x80] sm:$0x1] %v888
        %s890 = sadd.s32 %s116, 129
        %s891 = sld [smem:[#allocation3 + %s890]]
        %s892 = scalar_lea.vmem [#allocation4], %s891
        %v893 = vld [vmem:[%s892] sm:$0x1]
        %v894 = vmul.f32 %v893, 11.313708
        %895 = vst [vmem:[%s114 + $0x81] sm:$0x1] %v894
        %s896 = sadd.s32 %s116, 130
        %s897 = sld [smem:[#allocation3 + %s896]]
        %s898 = scalar_lea.vmem [#allocation4], %s897
        %v899 = vld [vmem:[%s898] sm:$0x1]
        %v900 = vmul.f32 %v899, 11.313708
        %901 = vst [vmem:[%s114 + $0x82] sm:$0x1] %v900
        %s902 = sadd.s32 %s116, 131
        %s903 = sld [smem:[#allocation3 + %s902]]
        %s904 = scalar_lea.vmem [#allocation4], %s903
        %v905 = vld [vmem:[%s904] sm:$0x1]
        %v906 = vmul.f32 %v905, 11.313708
        %907 = vst [vmem:[%s114 + $0x83] sm:$0x1] %v906
        %s908 = sadd.s32 %s116, 132
        %s909 = sld [smem:[#allocation3 + %s908]]
        %s910 = scalar_lea.vmem [#allocation4], %s909
        %v911 = vld [vmem:[%s910] sm:$0x1]
        %v912 = vmul.f32 %v911, 11.313708
        %913 = vst [vmem:[%s114 + $0x84] sm:$0x1] %v912
        %s914 = sadd.s32 %s116, 133
        %s915 = sld [smem:[#allocation3 + %s914]]
        %s916 = scalar_lea.vmem [#allocation4], %s915
        %v917 = vld [vmem:[%s916] sm:$0x1]
        %v918 = vmul.f32 %v917, 11.313708
        %919 = vst [vmem:[%s114 + $0x85] sm:$0x1] %v918
        %s920 = sadd.s32 %s116, 134
        %s921 = sld [smem:[#allocation3 + %s920]]
        %s922 = scalar_lea.vmem [#allocation4], %s921
        %v923 = vld [vmem:[%s922] sm:$0x1]
        %v924 = vmul.f32 %v923, 11.313708
        %925 = vst [vmem:[%s114 + $0x86] sm:$0x1] %v924
        %s926 = sadd.s32 %s116, 135
        %s927 = sld [smem:[#allocation3 + %s926]]
        %s928 = scalar_lea.vmem [#allocation4], %s927
        %v929 = vld [vmem:[%s928] sm:$0x1]
        %v930 = vmul.f32 %v929, 11.313708
        %931 = vst [vmem:[%s114 + $0x87] sm:$0x1] %v930
        %s932 = sadd.s32 %s116, 136
        %s933 = sld [smem:[#allocation3 + %s932]]
        %s934 = scalar_lea.vmem [#allocation4], %s933
        %v935 = vld [vmem:[%s934] sm:$0x1]
        %v936 = vmul.f32 %v935, 11.313708
        %937 = vst [vmem:[%s114 + $0x88] sm:$0x1] %v936
        %s938 = sadd.s32 %s116, 137
        %s939 = sld [smem:[#allocation3 + %s938]]
        %s940 = scalar_lea.vmem [#allocation4], %s939
        %v941 = vld [vmem:[%s940] sm:$0x1]
        %v942 = vmul.f32 %v941, 11.313708
        %943 = vst [vmem:[%s114 + $0x89] sm:$0x1] %v942
        %s944 = sadd.s32 %s116, 138
        %s945 = sld [smem:[#allocation3 + %s944]]
        %s946 = scalar_lea.vmem [#allocation4], %s945
        %v947 = vld [vmem:[%s946] sm:$0x1]
        %v948 = vmul.f32 %v947, 11.313708
        %949 = vst [vmem:[%s114 + $0x8a] sm:$0x1] %v948
        %s950 = sadd.s32 %s116, 139
        %s951 = sld [smem:[#allocation3 + %s950]]
        %s952 = scalar_lea.vmem [#allocation4], %s951
        %v953 = vld [vmem:[%s952] sm:$0x1]
        %v954 = vmul.f32 %v953, 11.313708
        %955 = vst [vmem:[%s114 + $0x8b] sm:$0x1] %v954
        %s956 = sadd.s32 %s116, 140
        %s957 = sld [smem:[#allocation3 + %s956]]
        %s958 = scalar_lea.vmem [#allocation4], %s957
        %v959 = vld [vmem:[%s958] sm:$0x1]
        %v960 = vmul.f32 %v959, 11.313708
        %961 = vst [vmem:[%s114 + $0x8c] sm:$0x1] %v960
        %s962 = sadd.s32 %s116, 141
        %s963 = sld [smem:[#allocation3 + %s962]]
        %s964 = scalar_lea.vmem [#allocation4], %s963
        %v965 = vld [vmem:[%s964] sm:$0x1]
        %v966 = vmul.f32 %v965, 11.313708
        %967 = vst [vmem:[%s114 + $0x8d] sm:$0x1] %v966
        %s968 = sadd.s32 %s116, 142
        %s969 = sld [smem:[#allocation3 + %s968]]
        %s970 = scalar_lea.vmem [#allocation4], %s969
        %v971 = vld [vmem:[%s970] sm:$0x1]
        %v972 = vmul.f32 %v971, 11.313708
        %973 = vst [vmem:[%s114 + $0x8e] sm:$0x1] %v972
        %s974 = sadd.s32 %s116, 143
        %s975 = sld [smem:[#allocation3 + %s974]]
        %s976 = scalar_lea.vmem [#allocation4], %s975
        %v977 = vld [vmem:[%s976] sm:$0x1]
        %v978 = vmul.f32 %v977, 11.313708
        %979 = vst [vmem:[%s114 + $0x8f] sm:$0x1] %v978
        %s980 = sadd.s32 %s116, 144
        %s981 = sld [smem:[#allocation3 + %s980]]
        %s982 = scalar_lea.vmem [#allocation4], %s981
        %v983 = vld [vmem:[%s982] sm:$0x1]
        %v984 = vmul.f32 %v983, 11.313708
        %985 = vst [vmem:[%s114 + $0x90] sm:$0x1] %v984
        %s986 = sadd.s32 %s116, 145
        %s987 = sld [smem:[#allocation3 + %s986]]
        %s988 = scalar_lea.vmem [#allocation4], %s987
        %v989 = vld [vmem:[%s988] sm:$0x1]
        %v990 = vmul.f32 %v989, 11.313708
        %991 = vst [vmem:[%s114 + $0x91] sm:$0x1] %v990
        %s992 = sadd.s32 %s116, 146
        %s993 = sld [smem:[#allocation3 + %s992]]
        %s994 = scalar_lea.vmem [#allocation4], %s993
        %v995 = vld [vmem:[%s994] sm:$0x1]
        %v996 = vmul.f32 %v995, 11.313708
        %997 = vst [vmem:[%s114 + $0x92] sm:$0x1] %v996
        %s998 = sadd.s32 %s116, 147
        %s999 = sld [smem:[#allocation3 + %s998]]
        %s1000 = scalar_lea.vmem [#allocation4], %s999
        %v1001 = vld [vmem:[%s1000] sm:$0x1]
        %v1002 = vmul.f32 %v1001, 11.313708
        %1003 = vst [vmem:[%s114 + $0x93] sm:$0x1] %v1002
        %s1004 = sadd.s32 %s116, 148
        %s1005 = sld [smem:[#allocation3 + %s1004]]
        %s1006 = scalar_lea.vmem [#allocation4], %s1005
        %v1007 = vld [vmem:[%s1006] sm:$0x1]
        %v1008 = vmul.f32 %v1007, 11.313708
        %1009 = vst [vmem:[%s114 + $0x94] sm:$0x1] %v1008
        %s1010 = sadd.s32 %s116, 149
        %s1011 = sld [smem:[#allocation3 + %s1010]]
        %s1012 = scalar_lea.vmem [#allocation4], %s1011
        %v1013 = vld [vmem:[%s1012] sm:$0x1]
        %v1014 = vmul.f32 %v1013, 11.313708
        %1015 = vst [vmem:[%s114 + $0x95] sm:$0x1] %v1014
        %s1016 = sadd.s32 %s116, 150
        %s1017 = sld [smem:[#allocation3 + %s1016]]
        %s1018 = scalar_lea.vmem [#allocation4], %s1017
        %v1019 = vld [vmem:[%s1018] sm:$0x1]
        %v1020 = vmul.f32 %v1019, 11.313708
        %1021 = vst [vmem:[%s114 + $0x96] sm:$0x1] %v1020
        %s1022 = sadd.s32 %s116, 151
        %s1023 = sld [smem:[#allocation3 + %s1022]]
        %s1024 = scalar_lea.vmem [#allocation4], %s1023
        %v1025 = vld [vmem:[%s1024] sm:$0x1]
        %v1026 = vmul.f32 %v1025, 11.313708
        %1027 = vst [vmem:[%s114 + $0x97] sm:$0x1] %v1026
        %s1028 = sadd.s32 %s116, 152
        %s1029 = sld [smem:[#allocation3 + %s1028]]
        %s1030 = scalar_lea.vmem [#allocation4], %s1029
        %v1031 = vld [vmem:[%s1030] sm:$0x1]
        %v1032 = vmul.f32 %v1031, 11.313708
        %1033 = vst [vmem:[%s114 + $0x98] sm:$0x1] %v1032
        %s1034 = sadd.s32 %s116, 153
        %s1035 = sld [smem:[#allocation3 + %s1034]]
        %s1036 = scalar_lea.vmem [#allocation4], %s1035
        %v1037 = vld [vmem:[%s1036] sm:$0x1]
        %v1038 = vmul.f32 %v1037, 11.313708
        %1039 = vst [vmem:[%s114 + $0x99] sm:$0x1] %v1038
        %s1040 = sadd.s32 %s116, 154
        %s1041 = sld [smem:[#allocation3 + %s1040]]
        %s1042 = scalar_lea.vmem [#allocation4], %s1041
        %v1043 = vld [vmem:[%s1042] sm:$0x1]
        %v1044 = vmul.f32 %v1043, 11.313708
        %1045 = vst [vmem:[%s114 + $0x9a] sm:$0x1] %v1044
        %s1046 = sadd.s32 %s116, 155
        %s1047 = sld [smem:[#allocation3 + %s1046]]
        %s1048 = scalar_lea.vmem [#allocation4], %s1047
        %v1049 = vld [vmem:[%s1048] sm:$0x1]
        %v1050 = vmul.f32 %v1049, 11.313708
        %1051 = vst [vmem:[%s114 + $0x9b] sm:$0x1] %v1050
        %s1052 = sadd.s32 %s116, 156
        %s1053 = sld [smem:[#allocation3 + %s1052]]
        %s1054 = scalar_lea.vmem [#allocation4], %s1053
        %v1055 = vld [vmem:[%s1054] sm:$0x1]
        %v1056 = vmul.f32 %v1055, 11.313708
        %1057 = vst [vmem:[%s114 + $0x9c] sm:$0x1] %v1056
        %s1058 = sadd.s32 %s116, 157
        %s1059 = sld [smem:[#allocation3 + %s1058]]
        %s1060 = scalar_lea.vmem [#allocation4], %s1059
        %v1061 = vld [vmem:[%s1060] sm:$0x1]
        %v1062 = vmul.f32 %v1061, 11.313708
        %1063 = vst [vmem:[%s114 + $0x9d] sm:$0x1] %v1062
        %s1064 = sadd.s32 %s116, 158
        %s1065 = sld [smem:[#allocation3 + %s1064]]
        %s1066 = scalar_lea.vmem [#allocation4], %s1065
        %v1067 = vld [vmem:[%s1066] sm:$0x1]
        %v1068 = vmul.f32 %v1067, 11.313708
        %1069 = vst [vmem:[%s114 + $0x9e] sm:$0x1] %v1068
        %s1070 = sadd.s32 %s116, 159
        %s1071 = sld [smem:[#allocation3 + %s1070]]
        %s1072 = scalar_lea.vmem [#allocation4], %s1071
        %v1073 = vld [vmem:[%s1072] sm:$0x1]
        %v1074 = vmul.f32 %v1073, 11.313708
        %1075 = vst [vmem:[%s114 + $0x9f] sm:$0x1] %v1074
        %s1076 = sadd.s32 %s116, 160
        %s1077 = sld [smem:[#allocation3 + %s1076]]
        %s1078 = scalar_lea.vmem [#allocation4], %s1077
        %v1079 = vld [vmem:[%s1078] sm:$0x1]
        %v1080 = vmul.f32 %v1079, 11.313708
        %1081 = vst [vmem:[%s114 + $0xa0] sm:$0x1] %v1080
        %s1082 = sadd.s32 %s116, 161
        %s1083 = sld [smem:[#allocation3 + %s1082]]
        %s1084 = scalar_lea.vmem [#allocation4], %s1083
        %v1085 = vld [vmem:[%s1084] sm:$0x1]
        %v1086 = vmul.f32 %v1085, 11.313708
        %1087 = vst [vmem:[%s114 + $0xa1] sm:$0x1] %v1086
        %s1088 = sadd.s32 %s116, 162
        %s1089 = sld [smem:[#allocation3 + %s1088]]
        %s1090 = scalar_lea.vmem [#allocation4], %s1089
        %v1091 = vld [vmem:[%s1090] sm:$0x1]
        %v1092 = vmul.f32 %v1091, 11.313708
        %1093 = vst [vmem:[%s114 + $0xa2] sm:$0x1] %v1092
        %s1094 = sadd.s32 %s116, 163
        %s1095 = sld [smem:[#allocation3 + %s1094]]
        %s1096 = scalar_lea.vmem [#allocation4], %s1095
        %v1097 = vld [vmem:[%s1096] sm:$0x1]
        %v1098 = vmul.f32 %v1097, 11.313708
        %1099 = vst [vmem:[%s114 + $0xa3] sm:$0x1] %v1098
        %s1100 = sadd.s32 %s116, 164
        %s1101 = sld [smem:[#allocation3 + %s1100]]
        %s1102 = scalar_lea.vmem [#allocation4], %s1101
        %v1103 = vld [vmem:[%s1102] sm:$0x1]
        %v1104 = vmul.f32 %v1103, 11.313708
        %1105 = vst [vmem:[%s114 + $0xa4] sm:$0x1] %v1104
        %s1106 = sadd.s32 %s116, 165
        %s1107 = sld [smem:[#allocation3 + %s1106]]
        %s1108 = scalar_lea.vmem [#allocation4], %s1107
        %v1109 = vld [vmem:[%s1108] sm:$0x1]
        %v1110 = vmul.f32 %v1109, 11.313708
        %1111 = vst [vmem:[%s114 + $0xa5] sm:$0x1] %v1110
        %s1112 = sadd.s32 %s116, 166
        %s1113 = sld [smem:[#allocation3 + %s1112]]
        %s1114 = scalar_lea.vmem [#allocation4], %s1113
        %v1115 = vld [vmem:[%s1114] sm:$0x1]
        %v1116 = vmul.f32 %v1115, 11.313708
        %1117 = vst [vmem:[%s114 + $0xa6] sm:$0x1] %v1116
        %s1118 = sadd.s32 %s116, 167
        %s1119 = sld [smem:[#allocation3 + %s1118]]
        %s1120 = scalar_lea.vmem [#allocation4], %s1119
        %v1121 = vld [vmem:[%s1120] sm:$0x1]
        %v1122 = vmul.f32 %v1121, 11.313708
        %1123 = vst [vmem:[%s114 + $0xa7] sm:$0x1] %v1122
        %s1124 = sadd.s32 %s116, 168
        %s1125 = sld [smem:[#allocation3 + %s1124]]
        %s1126 = scalar_lea.vmem [#allocation4], %s1125
        %v1127 = vld [vmem:[%s1126] sm:$0x1]
        %v1128 = vmul.f32 %v1127, 11.313708
        %1129 = vst [vmem:[%s114 + $0xa8] sm:$0x1] %v1128
        %s1130 = sadd.s32 %s116, 169
        %s1131 = sld [smem:[#allocation3 + %s1130]]
        %s1132 = scalar_lea.vmem [#allocation4], %s1131
        %v1133 = vld [vmem:[%s1132] sm:$0x1]
        %v1134 = vmul.f32 %v1133, 11.313708
        %1135 = vst [vmem:[%s114 + $0xa9] sm:$0x1] %v1134
        %s1136 = sadd.s32 %s116, 170
        %s1137 = sld [smem:[#allocation3 + %s1136]]
        %s1138 = scalar_lea.vmem [#allocation4], %s1137
        %v1139 = vld [vmem:[%s1138] sm:$0x1]
        %v1140 = vmul.f32 %v1139, 11.313708
        %1141 = vst [vmem:[%s114 + $0xaa] sm:$0x1] %v1140
        %s1142 = sadd.s32 %s116, 171
        %s1143 = sld [smem:[#allocation3 + %s1142]]
        %s1144 = scalar_lea.vmem [#allocation4], %s1143
        %v1145 = vld [vmem:[%s1144] sm:$0x1]
        %v1146 = vmul.f32 %v1145, 11.313708
        %1147 = vst [vmem:[%s114 + $0xab] sm:$0x1] %v1146
        %s1148 = sadd.s32 %s116, 172
        %s1149 = sld [smem:[#allocation3 + %s1148]]
        %s1150 = scalar_lea.vmem [#allocation4], %s1149
        %v1151 = vld [vmem:[%s1150] sm:$0x1]
        %v1152 = vmul.f32 %v1151, 11.313708
        %1153 = vst [vmem:[%s114 + $0xac] sm:$0x1] %v1152
        %s1154 = sadd.s32 %s116, 173
        %s1155 = sld [smem:[#allocation3 + %s1154]]
        %s1156 = scalar_lea.vmem [#allocation4], %s1155
        %v1157 = vld [vmem:[%s1156] sm:$0x1]
        %v1158 = vmul.f32 %v1157, 11.313708
        %1159 = vst [vmem:[%s114 + $0xad] sm:$0x1] %v1158
        %s1160 = sadd.s32 %s116, 174
        %s1161 = sld [smem:[#allocation3 + %s1160]]
        %s1162 = scalar_lea.vmem [#allocation4], %s1161
        %v1163 = vld [vmem:[%s1162] sm:$0x1]
        %v1164 = vmul.f32 %v1163, 11.313708
        %1165 = vst [vmem:[%s114 + $0xae] sm:$0x1] %v1164
        %s1166 = sadd.s32 %s116, 175
        %s1167 = sld [smem:[#allocation3 + %s1166]]
        %s1168 = scalar_lea.vmem [#allocation4], %s1167
        %v1169 = vld [vmem:[%s1168] sm:$0x1]
        %v1170 = vmul.f32 %v1169, 11.313708
        %1171 = vst [vmem:[%s114 + $0xaf] sm:$0x1] %v1170
        %s1172 = sadd.s32 %s116, 176
        %s1173 = sld [smem:[#allocation3 + %s1172]]
        %s1174 = scalar_lea.vmem [#allocation4], %s1173
        %v1175 = vld [vmem:[%s1174] sm:$0x1]
        %v1176 = vmul.f32 %v1175, 11.313708
        %1177 = vst [vmem:[%s114 + $0xb0] sm:$0x1] %v1176
        %s1178 = sadd.s32 %s116, 177
        %s1179 = sld [smem:[#allocation3 + %s1178]]
        %s1180 = scalar_lea.vmem [#allocation4], %s1179
        %v1181 = vld [vmem:[%s1180] sm:$0x1]
        %v1182 = vmul.f32 %v1181, 11.313708
        %1183 = vst [vmem:[%s114 + $0xb1] sm:$0x1] %v1182
        %s1184 = sadd.s32 %s116, 178
        %s1185 = sld [smem:[#allocation3 + %s1184]]
        %s1186 = scalar_lea.vmem [#allocation4], %s1185
        %v1187 = vld [vmem:[%s1186] sm:$0x1]
        %v1188 = vmul.f32 %v1187, 11.313708
        %1189 = vst [vmem:[%s114 + $0xb2] sm:$0x1] %v1188
        %s1190 = sadd.s32 %s116, 179
        %s1191 = sld [smem:[#allocation3 + %s1190]]
        %s1192 = scalar_lea.vmem [#allocation4], %s1191
        %v1193 = vld [vmem:[%s1192] sm:$0x1]
        %v1194 = vmul.f32 %v1193, 11.313708
        %1195 = vst [vmem:[%s114 + $0xb3] sm:$0x1] %v1194
        %s1196 = sadd.s32 %s116, 180
        %s1197 = sld [smem:[#allocation3 + %s1196]]
        %s1198 = scalar_lea.vmem [#allocation4], %s1197
        %v1199 = vld [vmem:[%s1198] sm:$0x1]
        %v1200 = vmul.f32 %v1199, 11.313708
        %1201 = vst [vmem:[%s114 + $0xb4] sm:$0x1] %v1200
        %s1202 = sadd.s32 %s116, 181
        %s1203 = sld [smem:[#allocation3 + %s1202]]
        %s1204 = scalar_lea.vmem [#allocation4], %s1203
        %v1205 = vld [vmem:[%s1204] sm:$0x1]
        %v1206 = vmul.f32 %v1205, 11.313708
        %1207 = vst [vmem:[%s114 + $0xb5] sm:$0x1] %v1206
        %s1208 = sadd.s32 %s116, 182
        %s1209 = sld [smem:[#allocation3 + %s1208]]
        %s1210 = scalar_lea.vmem [#allocation4], %s1209
        %v1211 = vld [vmem:[%s1210] sm:$0x1]
        %v1212 = vmul.f32 %v1211, 11.313708
        %1213 = vst [vmem:[%s114 + $0xb6] sm:$0x1] %v1212
        %s1214 = sadd.s32 %s116, 183
        %s1215 = sld [smem:[#allocation3 + %s1214]]
        %s1216 = scalar_lea.vmem [#allocation4], %s1215
        %v1217 = vld [vmem:[%s1216] sm:$0x1]
        %v1218 = vmul.f32 %v1217, 11.313708
        %1219 = vst [vmem:[%s114 + $0xb7] sm:$0x1] %v1218
        %s1220 = sadd.s32 %s116, 184
        %s1221 = sld [smem:[#allocation3 + %s1220]]
        %s1222 = scalar_lea.vmem [#allocation4], %s1221
        %v1223 = vld [vmem:[%s1222] sm:$0x1]
        %v1224 = vmul.f32 %v1223, 11.313708
        %1225 = vst [vmem:[%s114 + $0xb8] sm:$0x1] %v1224
        %s1226 = sadd.s32 %s116, 185
        %s1227 = sld [smem:[#allocation3 + %s1226]]
        %s1228 = scalar_lea.vmem [#allocation4], %s1227
        %v1229 = vld [vmem:[%s1228] sm:$0x1]
        %v1230 = vmul.f32 %v1229, 11.313708
        %1231 = vst [vmem:[%s114 + $0xb9] sm:$0x1] %v1230
        %s1232 = sadd.s32 %s116, 186
        %s1233 = sld [smem:[#allocation3 + %s1232]]
        %s1234 = scalar_lea.vmem [#allocation4], %s1233
        %v1235 = vld [vmem:[%s1234] sm:$0x1]
        %v1236 = vmul.f32 %v1235, 11.313708
        %1237 = vst [vmem:[%s114 + $0xba] sm:$0x1] %v1236
        %s1238 = sadd.s32 %s116, 187
        %s1239 = sld [smem:[#allocation3 + %s1238]]
        %s1240 = scalar_lea.vmem [#allocation4], %s1239
        %v1241 = vld [vmem:[%s1240] sm:$0x1]
        %v1242 = vmul.f32 %v1241, 11.313708
        %1243 = vst [vmem:[%s114 + $0xbb] sm:$0x1] %v1242
        %s1244 = sadd.s32 %s116, 188
        %s1245 = sld [smem:[#allocation3 + %s1244]]
        %s1246 = scalar_lea.vmem [#allocation4], %s1245
        %v1247 = vld [vmem:[%s1246] sm:$0x1]
        %v1248 = vmul.f32 %v1247, 11.313708
        %1249 = vst [vmem:[%s114 + $0xbc] sm:$0x1] %v1248
        %s1250 = sadd.s32 %s116, 189
        %s1251 = sld [smem:[#allocation3 + %s1250]]
        %s1252 = scalar_lea.vmem [#allocation4], %s1251
        %v1253 = vld [vmem:[%s1252] sm:$0x1]
        %v1254 = vmul.f32 %v1253, 11.313708
        %1255 = vst [vmem:[%s114 + $0xbd] sm:$0x1] %v1254
        %s1256 = sadd.s32 %s116, 190
        %s1257 = sld [smem:[#allocation3 + %s1256]]
        %s1258 = scalar_lea.vmem [#allocation4], %s1257
        %v1259 = vld [vmem:[%s1258] sm:$0x1]
        %v1260 = vmul.f32 %v1259, 11.313708
        %1261 = vst [vmem:[%s114 + $0xbe] sm:$0x1] %v1260
        %s1262 = sadd.s32 %s116, 191
        %s1263 = sld [smem:[#allocation3 + %s1262]]
        %s1264 = scalar_lea.vmem [#allocation4], %s1263
        %v1265 = vld [vmem:[%s1264] sm:$0x1]
        %v1266 = vmul.f32 %v1265, 11.313708
        %1267 = vst [vmem:[%s114 + $0xbf] sm:$0x1] %v1266
        %s1268 = sadd.s32 %s116, 192
        %s1269 = sld [smem:[#allocation3 + %s1268]]
        %s1270 = scalar_lea.vmem [#allocation4], %s1269
        %v1271 = vld [vmem:[%s1270] sm:$0x1]
        %v1272 = vmul.f32 %v1271, 11.313708
        %1273 = vst [vmem:[%s114 + $0xc0] sm:$0x1] %v1272
        %s1274 = sadd.s32 %s116, 193
        %s1275 = sld [smem:[#allocation3 + %s1274]]
        %s1276 = scalar_lea.vmem [#allocation4], %s1275
        %v1277 = vld [vmem:[%s1276] sm:$0x1]
        %v1278 = vmul.f32 %v1277, 11.313708
        %1279 = vst [vmem:[%s114 + $0xc1] sm:$0x1] %v1278
        %s1280 = sadd.s32 %s116, 194
        %s1281 = sld [smem:[#allocation3 + %s1280]]
        %s1282 = scalar_lea.vmem [#allocation4], %s1281
        %v1283 = vld [vmem:[%s1282] sm:$0x1]
        %v1284 = vmul.f32 %v1283, 11.313708
        %1285 = vst [vmem:[%s114 + $0xc2] sm:$0x1] %v1284
        %s1286 = sadd.s32 %s116, 195
        %s1287 = sld [smem:[#allocation3 + %s1286]]
        %s1288 = scalar_lea.vmem [#allocation4], %s1287
        %v1289 = vld [vmem:[%s1288] sm:$0x1]
        %v1290 = vmul.f32 %v1289, 11.313708
        %1291 = vst [vmem:[%s114 + $0xc3] sm:$0x1] %v1290
        %s1292 = sadd.s32 %s116, 196
        %s1293 = sld [smem:[#allocation3 + %s1292]]
        %s1294 = scalar_lea.vmem [#allocation4], %s1293
        %v1295 = vld [vmem:[%s1294] sm:$0x1]
        %v1296 = vmul.f32 %v1295, 11.313708
        %1297 = vst [vmem:[%s114 + $0xc4] sm:$0x1] %v1296
        %s1298 = sadd.s32 %s116, 197
        %s1299 = sld [smem:[#allocation3 + %s1298]]
        %s1300 = scalar_lea.vmem [#allocation4], %s1299
        %v1301 = vld [vmem:[%s1300] sm:$0x1]
        %v1302 = vmul.f32 %v1301, 11.313708
        %1303 = vst [vmem:[%s114 + $0xc5] sm:$0x1] %v1302
        %s1304 = sadd.s32 %s116, 198
        %s1305 = sld [smem:[#allocation3 + %s1304]]
        %s1306 = scalar_lea.vmem [#allocation4], %s1305
        %v1307 = vld [vmem:[%s1306] sm:$0x1]
        %v1308 = vmul.f32 %v1307, 11.313708
        %1309 = vst [vmem:[%s114 + $0xc6] sm:$0x1] %v1308
        %s1310 = sadd.s32 %s116, 199
        %s1311 = sld [smem:[#allocation3 + %s1310]]
        %s1312 = scalar_lea.vmem [#allocation4], %s1311
        %v1313 = vld [vmem:[%s1312] sm:$0x1]
        %v1314 = vmul.f32 %v1313, 11.313708
        %1315 = vst [vmem:[%s114 + $0xc7] sm:$0x1] %v1314
        %s1316 = sadd.s32 %s116, 200
        %s1317 = sld [smem:[#allocation3 + %s1316]]
        %s1318 = scalar_lea.vmem [#allocation4], %s1317
        %v1319 = vld [vmem:[%s1318] sm:$0x1]
        %v1320 = vmul.f32 %v1319, 11.313708
        %1321 = vst [vmem:[%s114 + $0xc8] sm:$0x1] %v1320
        %s1322 = sadd.s32 %s116, 201
        %s1323 = sld [smem:[#allocation3 + %s1322]]
        %s1324 = scalar_lea.vmem [#allocation4], %s1323
        %v1325 = vld [vmem:[%s1324] sm:$0x1]
        %v1326 = vmul.f32 %v1325, 11.313708
        %1327 = vst [vmem:[%s114 + $0xc9] sm:$0x1] %v1326
        %s1328 = sadd.s32 %s116, 202
        %s1329 = sld [smem:[#allocation3 + %s1328]]
        %s1330 = scalar_lea.vmem [#allocation4], %s1329
        %v1331 = vld [vmem:[%s1330] sm:$0x1]
        %v1332 = vmul.f32 %v1331, 11.313708
        %1333 = vst [vmem:[%s114 + $0xca] sm:$0x1] %v1332
        %s1334 = sadd.s32 %s116, 203
        %s1335 = sld [smem:[#allocation3 + %s1334]]
        %s1336 = scalar_lea.vmem [#allocation4], %s1335
        %v1337 = vld [vmem:[%s1336] sm:$0x1]
        %v1338 = vmul.f32 %v1337, 11.313708
        %1339 = vst [vmem:[%s114 + $0xcb] sm:$0x1] %v1338
        %s1340 = sadd.s32 %s116, 204
        %s1341 = sld [smem:[#allocation3 + %s1340]]
        %s1342 = scalar_lea.vmem [#allocation4], %s1341
        %v1343 = vld [vmem:[%s1342] sm:$0x1]
        %v1344 = vmul.f32 %v1343, 11.313708
        %1345 = vst [vmem:[%s114 + $0xcc] sm:$0x1] %v1344
        %s1346 = sadd.s32 %s116, 205
        %s1347 = sld [smem:[#allocation3 + %s1346]]
        %s1348 = scalar_lea.vmem [#allocation4], %s1347
        %v1349 = vld [vmem:[%s1348] sm:$0x1]
        %v1350 = vmul.f32 %v1349, 11.313708
        %1351 = vst [vmem:[%s114 + $0xcd] sm:$0x1] %v1350
        %s1352 = sadd.s32 %s116, 206
        %s1353 = sld [smem:[#allocation3 + %s1352]]
        %s1354 = scalar_lea.vmem [#allocation4], %s1353
        %v1355 = vld [vmem:[%s1354] sm:$0x1]
        %v1356 = vmul.f32 %v1355, 11.313708
        %1357 = vst [vmem:[%s114 + $0xce] sm:$0x1] %v1356
        %s1358 = sadd.s32 %s116, 207
        %s1359 = sld [smem:[#allocation3 + %s1358]]
        %s1360 = scalar_lea.vmem [#allocation4], %s1359
        %v1361 = vld [vmem:[%s1360] sm:$0x1]
        %v1362 = vmul.f32 %v1361, 11.313708
        %1363 = vst [vmem:[%s114 + $0xcf] sm:$0x1] %v1362
        %s1364 = sadd.s32 %s116, 208
        %s1365 = sld [smem:[#allocation3 + %s1364]]
        %s1366 = scalar_lea.vmem [#allocation4], %s1365
        %v1367 = vld [vmem:[%s1366] sm:$0x1]
        %v1368 = vmul.f32 %v1367, 11.313708
        %1369 = vst [vmem:[%s114 + $0xd0] sm:$0x1] %v1368
        %s1370 = sadd.s32 %s116, 209
        %s1371 = sld [smem:[#allocation3 + %s1370]]
        %s1372 = scalar_lea.vmem [#allocation4], %s1371
        %v1373 = vld [vmem:[%s1372] sm:$0x1]
        %v1374 = vmul.f32 %v1373, 11.313708
        %1375 = vst [vmem:[%s114 + $0xd1] sm:$0x1] %v1374
        %s1376 = sadd.s32 %s116, 210
        %s1377 = sld [smem:[#allocation3 + %s1376]]
        %s1378 = scalar_lea.vmem [#allocation4], %s1377
        %v1379 = vld [vmem:[%s1378] sm:$0x1]
        %v1380 = vmul.f32 %v1379, 11.313708
        %1381 = vst [vmem:[%s114 + $0xd2] sm:$0x1] %v1380
        %s1382 = sadd.s32 %s116, 211
        %s1383 = sld [smem:[#allocation3 + %s1382]]
        %s1384 = scalar_lea.vmem [#allocation4], %s1383
        %v1385 = vld [vmem:[%s1384] sm:$0x1]
        %v1386 = vmul.f32 %v1385, 11.313708
        %1387 = vst [vmem:[%s114 + $0xd3] sm:$0x1] %v1386
        %s1388 = sadd.s32 %s116, 212
        %s1389 = sld [smem:[#allocation3 + %s1388]]
        %s1390 = scalar_lea.vmem [#allocation4], %s1389
        %v1391 = vld [vmem:[%s1390] sm:$0x1]
        %v1392 = vmul.f32 %v1391, 11.313708
        %1393 = vst [vmem:[%s114 + $0xd4] sm:$0x1] %v1392
        %s1394 = sadd.s32 %s116, 213
        %s1395 = sld [smem:[#allocation3 + %s1394]]
        %s1396 = scalar_lea.vmem [#allocation4], %s1395
        %v1397 = vld [vmem:[%s1396] sm:$0x1]
        %v1398 = vmul.f32 %v1397, 11.313708
        %1399 = vst [vmem:[%s114 + $0xd5] sm:$0x1] %v1398
        %s1400 = sadd.s32 %s116, 214
        %s1401 = sld [smem:[#allocation3 + %s1400]]
        %s1402 = scalar_lea.vmem [#allocation4], %s1401
        %v1403 = vld [vmem:[%s1402] sm:$0x1]
        %v1404 = vmul.f32 %v1403, 11.313708
        %1405 = vst [vmem:[%s114 + $0xd6] sm:$0x1] %v1404
        %s1406 = sadd.s32 %s116, 215
        %s1407 = sld [smem:[#allocation3 + %s1406]]
        %s1408 = scalar_lea.vmem [#allocation4], %s1407
        %v1409 = vld [vmem:[%s1408] sm:$0x1]
        %v1410 = vmul.f32 %v1409, 11.313708
        %1411 = vst [vmem:[%s114 + $0xd7] sm:$0x1] %v1410
        %s1412 = sadd.s32 %s116, 216
        %s1413 = sld [smem:[#allocation3 + %s1412]]
        %s1414 = scalar_lea.vmem [#allocation4], %s1413
        %v1415 = vld [vmem:[%s1414] sm:$0x1]
        %v1416 = vmul.f32 %v1415, 11.313708
        %1417 = vst [vmem:[%s114 + $0xd8] sm:$0x1] %v1416
        %s1418 = sadd.s32 %s116, 217
        %s1419 = sld [smem:[#allocation3 + %s1418]]
        %s1420 = scalar_lea.vmem [#allocation4], %s1419
        %v1421 = vld [vmem:[%s1420] sm:$0x1]
        %v1422 = vmul.f32 %v1421, 11.313708
        %1423 = vst [vmem:[%s114 + $0xd9] sm:$0x1] %v1422
        %s1424 = sadd.s32 %s116, 218
        %s1425 = sld [smem:[#allocation3 + %s1424]]
        %s1426 = scalar_lea.vmem [#allocation4], %s1425
        %v1427 = vld [vmem:[%s1426] sm:$0x1]
        %v1428 = vmul.f32 %v1427, 11.313708
        %1429 = vst [vmem:[%s114 + $0xda] sm:$0x1] %v1428
        %s1430 = sadd.s32 %s116, 219
        %s1431 = sld [smem:[#allocation3 + %s1430]]
        %s1432 = scalar_lea.vmem [#allocation4], %s1431
        %v1433 = vld [vmem:[%s1432] sm:$0x1]
        %v1434 = vmul.f32 %v1433, 11.313708
        %1435 = vst [vmem:[%s114 + $0xdb] sm:$0x1] %v1434
        %s1436 = sadd.s32 %s116, 220
        %s1437 = sld [smem:[#allocation3 + %s1436]]
        %s1438 = scalar_lea.vmem [#allocation4], %s1437
        %v1439 = vld [vmem:[%s1438] sm:$0x1]
        %v1440 = vmul.f32 %v1439, 11.313708
        %1441 = vst [vmem:[%s114 + $0xdc] sm:$0x1] %v1440
        %s1442 = sadd.s32 %s116, 221
        %s1443 = sld [smem:[#allocation3 + %s1442]]
        %s1444 = scalar_lea.vmem [#allocation4], %s1443
        %v1445 = vld [vmem:[%s1444] sm:$0x1]
        %v1446 = vmul.f32 %v1445, 11.313708
        %1447 = vst [vmem:[%s114 + $0xdd] sm:$0x1] %v1446
        %s1448 = sadd.s32 %s116, 222
        %s1449 = sld [smem:[#allocation3 + %s1448]]
        %s1450 = scalar_lea.vmem [#allocation4], %s1449
        %v1451 = vld [vmem:[%s1450] sm:$0x1]
        %v1452 = vmul.f32 %v1451, 11.313708
        %1453 = vst [vmem:[%s114 + $0xde] sm:$0x1] %v1452
        %s1454 = sadd.s32 %s116, 223
        %s1455 = sld [smem:[#allocation3 + %s1454]]
        %s1456 = scalar_lea.vmem [#allocation4], %s1455
        %v1457 = vld [vmem:[%s1456] sm:$0x1]
        %v1458 = vmul.f32 %v1457, 11.313708
        %1459 = vst [vmem:[%s114 + $0xdf] sm:$0x1] %v1458
        %s1460 = sadd.s32 %s116, 224
        %s1461 = sld [smem:[#allocation3 + %s1460]]
        %s1462 = scalar_lea.vmem [#allocation4], %s1461
        %v1463 = vld [vmem:[%s1462] sm:$0x1]
        %v1464 = vmul.f32 %v1463, 11.313708
        %1465 = vst [vmem:[%s114 + $0xe0] sm:$0x1] %v1464
        %s1466 = sadd.s32 %s116, 225
        %s1467 = sld [smem:[#allocation3 + %s1466]]
        %s1468 = scalar_lea.vmem [#allocation4], %s1467
        %v1469 = vld [vmem:[%s1468] sm:$0x1]
        %v1470 = vmul.f32 %v1469, 11.313708
        %1471 = vst [vmem:[%s114 + $0xe1] sm:$0x1] %v1470
        %s1472 = sadd.s32 %s116, 226
        %s1473 = sld [smem:[#allocation3 + %s1472]]
        %s1474 = scalar_lea.vmem [#allocation4], %s1473
        %v1475 = vld [vmem:[%s1474] sm:$0x1]
        %v1476 = vmul.f32 %v1475, 11.313708
        %1477 = vst [vmem:[%s114 + $0xe2] sm:$0x1] %v1476
        %s1478 = sadd.s32 %s116, 227
        %s1479 = sld [smem:[#allocation3 + %s1478]]
        %s1480 = scalar_lea.vmem [#allocation4], %s1479
        %v1481 = vld [vmem:[%s1480] sm:$0x1]
        %v1482 = vmul.f32 %v1481, 11.313708
        %1483 = vst [vmem:[%s114 + $0xe3] sm:$0x1] %v1482
        %s1484 = sadd.s32 %s116, 228
        %s1485 = sld [smem:[#allocation3 + %s1484]]
        %s1486 = scalar_lea.vmem [#allocation4], %s1485
        %v1487 = vld [vmem:[%s1486] sm:$0x1]
        %v1488 = vmul.f32 %v1487, 11.313708
        %1489 = vst [vmem:[%s114 + $0xe4] sm:$0x1] %v1488
        %s1490 = sadd.s32 %s116, 229
        %s1491 = sld [smem:[#allocation3 + %s1490]]
        %s1492 = scalar_lea.vmem [#allocation4], %s1491
        %v1493 = vld [vmem:[%s1492] sm:$0x1]
        %v1494 = vmul.f32 %v1493, 11.313708
        %1495 = vst [vmem:[%s114 + $0xe5] sm:$0x1] %v1494
        %s1496 = sadd.s32 %s116, 230
        %s1497 = sld [smem:[#allocation3 + %s1496]]
        %s1498 = scalar_lea.vmem [#allocation4], %s1497
        %v1499 = vld [vmem:[%s1498] sm:$0x1]
        %v1500 = vmul.f32 %v1499, 11.313708
        %1501 = vst [vmem:[%s114 + $0xe6] sm:$0x1] %v1500
        %s1502 = sadd.s32 %s116, 231
        %s1503 = sld [smem:[#allocation3 + %s1502]]
        %s1504 = scalar_lea.vmem [#allocation4], %s1503
        %v1505 = vld [vmem:[%s1504] sm:$0x1]
        %v1506 = vmul.f32 %v1505, 11.313708
        %1507 = vst [vmem:[%s114 + $0xe7] sm:$0x1] %v1506
        %s1508 = sadd.s32 %s116, 232
        %s1509 = sld [smem:[#allocation3 + %s1508]]
        %s1510 = scalar_lea.vmem [#allocation4], %s1509
        %v1511 = vld [vmem:[%s1510] sm:$0x1]
        %v1512 = vmul.f32 %v1511, 11.313708
        %1513 = vst [vmem:[%s114 + $0xe8] sm:$0x1] %v1512
        %s1514 = sadd.s32 %s116, 233
        %s1515 = sld [smem:[#allocation3 + %s1514]]
        %s1516 = scalar_lea.vmem [#allocation4], %s1515
        %v1517 = vld [vmem:[%s1516] sm:$0x1]
        %v1518 = vmul.f32 %v1517, 11.313708
        %1519 = vst [vmem:[%s114 + $0xe9] sm:$0x1] %v1518
        %s1520 = sadd.s32 %s116, 234
        %s1521 = sld [smem:[#allocation3 + %s1520]]
        %s1522 = scalar_lea.vmem [#allocation4], %s1521
        %v1523 = vld [vmem:[%s1522] sm:$0x1]
        %v1524 = vmul.f32 %v1523, 11.313708
        %1525 = vst [vmem:[%s114 + $0xea] sm:$0x1] %v1524
        %s1526 = sadd.s32 %s116, 235
        %s1527 = sld [smem:[#allocation3 + %s1526]]
        %s1528 = scalar_lea.vmem [#allocation4], %s1527
        %v1529 = vld [vmem:[%s1528] sm:$0x1]
        %v1530 = vmul.f32 %v1529, 11.313708
        %1531 = vst [vmem:[%s114 + $0xeb] sm:$0x1] %v1530
        %s1532 = sadd.s32 %s116, 236
        %s1533 = sld [smem:[#allocation3 + %s1532]]
        %s1534 = scalar_lea.vmem [#allocation4], %s1533
        %v1535 = vld [vmem:[%s1534] sm:$0x1]
        %v1536 = vmul.f32 %v1535, 11.313708
        %1537 = vst [vmem:[%s114 + $0xec] sm:$0x1] %v1536
        %s1538 = sadd.s32 %s116, 237
        %s1539 = sld [smem:[#allocation3 + %s1538]]
        %s1540 = scalar_lea.vmem [#allocation4], %s1539
        %v1541 = vld [vmem:[%s1540] sm:$0x1]
        %v1542 = vmul.f32 %v1541, 11.313708
        %1543 = vst [vmem:[%s114 + $0xed] sm:$0x1] %v1542
        %s1544 = sadd.s32 %s116, 238
        %s1545 = sld [smem:[#allocation3 + %s1544]]
        %s1546 = scalar_lea.vmem [#allocation4], %s1545
        %v1547 = vld [vmem:[%s1546] sm:$0x1]
        %v1548 = vmul.f32 %v1547, 11.313708
        %1549 = vst [vmem:[%s114 + $0xee] sm:$0x1] %v1548
        %s1550 = sadd.s32 %s116, 239
        %s1551 = sld [smem:[#allocation3 + %s1550]]
        %s1552 = scalar_lea.vmem [#allocation4], %s1551
        %v1553 = vld [vmem:[%s1552] sm:$0x1]
        %v1554 = vmul.f32 %v1553, 11.313708
        %1555 = vst [vmem:[%s114 + $0xef] sm:$0x1] %v1554
        %s1556 = sadd.s32 %s116, 240
        %s1557 = sld [smem:[#allocation3 + %s1556]]
        %s1558 = scalar_lea.vmem [#allocation4], %s1557
        %v1559 = vld [vmem:[%s1558] sm:$0x1]
        %v1560 = vmul.f32 %v1559, 11.313708
        %1561 = vst [vmem:[%s114 + $0xf0] sm:$0x1] %v1560
        %s1562 = sadd.s32 %s116, 241
        %s1563 = sld [smem:[#allocation3 + %s1562]]
        %s1564 = scalar_lea.vmem [#allocation4], %s1563
        %v1565 = vld [vmem:[%s1564] sm:$0x1]
        %v1566 = vmul.f32 %v1565, 11.313708
        %1567 = vst [vmem:[%s114 + $0xf1] sm:$0x1] %v1566
        %s1568 = sadd.s32 %s116, 242
        %s1569 = sld [smem:[#allocation3 + %s1568]]
        %s1570 = scalar_lea.vmem [#allocation4], %s1569
        %v1571 = vld [vmem:[%s1570] sm:$0x1]
        %v1572 = vmul.f32 %v1571, 11.313708
        %1573 = vst [vmem:[%s114 + $0xf2] sm:$0x1] %v1572
        %s1574 = sadd.s32 %s116, 243
        %s1575 = sld [smem:[#allocation3 + %s1574]]
        %s1576 = scalar_lea.vmem [#allocation4], %s1575
        %v1577 = vld [vmem:[%s1576] sm:$0x1]
        %v1578 = vmul.f32 %v1577, 11.313708
        %1579 = vst [vmem:[%s114 + $0xf3] sm:$0x1] %v1578
        %s1580 = sadd.s32 %s116, 244
        %s1581 = sld [smem:[#allocation3 + %s1580]]
        %s1582 = scalar_lea.vmem [#allocation4], %s1581
        %v1583 = vld [vmem:[%s1582] sm:$0x1]
        %v1584 = vmul.f32 %v1583, 11.313708
        %1585 = vst [vmem:[%s114 + $0xf4] sm:$0x1] %v1584
        %s1586 = sadd.s32 %s116, 245
        %s1587 = sld [smem:[#allocation3 + %s1586]]
        %s1588 = scalar_lea.vmem [#allocation4], %s1587
        %v1589 = vld [vmem:[%s1588] sm:$0x1]
        %v1590 = vmul.f32 %v1589, 11.313708
        %1591 = vst [vmem:[%s114 + $0xf5] sm:$0x1] %v1590
        %s1592 = sadd.s32 %s116, 246
        %s1593 = sld [smem:[#allocation3 + %s1592]]
        %s1594 = scalar_lea.vmem [#allocation4], %s1593
        %v1595 = vld [vmem:[%s1594] sm:$0x1]
        %v1596 = vmul.f32 %v1595, 11.313708
        %1597 = vst [vmem:[%s114 + $0xf6] sm:$0x1] %v1596
        %s1598 = sadd.s32 %s116, 247
        %s1599 = sld [smem:[#allocation3 + %s1598]]
        %s1600 = scalar_lea.vmem [#allocation4], %s1599
        %v1601 = vld [vmem:[%s1600] sm:$0x1]
        %v1602 = vmul.f32 %v1601, 11.313708
        %1603 = vst [vmem:[%s114 + $0xf7] sm:$0x1] %v1602
        %s1604 = sadd.s32 %s116, 248
        %s1605 = sld [smem:[#allocation3 + %s1604]]
        %s1606 = scalar_lea.vmem [#allocation4], %s1605
        %v1607 = vld [vmem:[%s1606] sm:$0x1]
        %v1608 = vmul.f32 %v1607, 11.313708
        %1609 = vst [vmem:[%s114 + $0xf8] sm:$0x1] %v1608
        %s1610 = sadd.s32 %s116, 249
        %s1611 = sld [smem:[#allocation3 + %s1610]]
        %s1612 = scalar_lea.vmem [#allocation4], %s1611
        %v1613 = vld [vmem:[%s1612] sm:$0x1]
        %v1614 = vmul.f32 %v1613, 11.313708
        %1615 = vst [vmem:[%s114 + $0xf9] sm:$0x1] %v1614
        %s1616 = sadd.s32 %s116, 250
        %s1617 = sld [smem:[#allocation3 + %s1616]]
        %s1618 = scalar_lea.vmem [#allocation4], %s1617
        %v1619 = vld [vmem:[%s1618] sm:$0x1]
        %v1620 = vmul.f32 %v1619, 11.313708
        %1621 = vst [vmem:[%s114 + $0xfa] sm:$0x1] %v1620
        %s1622 = sadd.s32 %s116, 251
        %s1623 = sld [smem:[#allocation3 + %s1622]]
        %s1624 = scalar_lea.vmem [#allocation4], %s1623
        %v1625 = vld [vmem:[%s1624] sm:$0x1]
        %v1626 = vmul.f32 %v1625, 11.313708
        %1627 = vst [vmem:[%s114 + $0xfb] sm:$0x1] %v1626
        %s1628 = sadd.s32 %s116, 252
        %s1629 = sld [smem:[#allocation3 + %s1628]]
        %s1630 = scalar_lea.vmem [#allocation4], %s1629
        %v1631 = vld [vmem:[%s1630] sm:$0x1]
        %v1632 = vmul.f32 %v1631, 11.313708
        %1633 = vst [vmem:[%s114 + $0xfc] sm:$0x1] %v1632
        %s1634 = sadd.s32 %s116, 253
        %s1635 = sld [smem:[#allocation3 + %s1634]]
        %s1636 = scalar_lea.vmem [#allocation4], %s1635
        %v1637 = vld [vmem:[%s1636] sm:$0x1]
        %v1638 = vmul.f32 %v1637, 11.313708
        %1639 = vst [vmem:[%s114 + $0xfd] sm:$0x1] %v1638
        %s1640 = sadd.s32 %s116, 254
        %s1641 = sld [smem:[#allocation3 + %s1640]]
        %s1642 = scalar_lea.vmem [#allocation4], %s1641
        %v1643 = vld [vmem:[%s1642] sm:$0x1]
        %v1644 = vmul.f32 %v1643, 11.313708
        %1645 = vst [vmem:[%s114 + $0xfe] sm:$0x1] %v1644
        %s1646 = sadd.s32 %s116, 255
        %s1647 = sld [smem:[#allocation3 + %s1646]]
        %s1648 = scalar_lea.vmem [#allocation4], %s1647
        %v1649 = vld [vmem:[%s1648] sm:$0x1]
        %v1650 = vmul.f32 %v1649, 11.313708
        %1651 = vst [vmem:[%s114 + $0xff] sm:$0x1] %v1650
        %s1652 = sand.u32 %s50, 1
        %s1653 = scalar_lea.sflag [#allocation6], %s1652
        %s1654 = sand.u32 %s50, 1
        %s1655 = smul.addr %s1654, 256
        %s1656 = scalar_lea.vmem [#allocation7], %s1655
        // Predicated region
        $region29: #{tpu_custom_call.1} parent=23 // pred_check
          %p1657 = pneg %p60
        $region30: #{tpu_custom_call.1} parent=23 // pred_check_branch
          %1659 = sbr.rel (%p1657) target = $region32
        $region31: #{tpu_custom_call.1} parent=23 // pred_region
          %s1660 = smul.u32 32, %s21
          %s1662 = ssub.s32 4096, 4096
          %1663 = vsyncadd %s1653, %s1662
          %s1664 = smul.addr %s1660, 128
          %s1665 = scalar_lea.hbm %s2, %s1664
          %s1666 = sshll.u32 %s1656, 4
          %s1667 = int_to_ptr.vmem [resolvable:$true] %s1666
          %1672 = dma.vmem_to_hbm [thread:$0]  %s1667, 4096, %s1665, %s1653, 128, 128, 8
        $region32: #{tpu_custom_call.1} parent=23 // pred_fallthru
          _
      $region24: #{tpu_custom_call.1} parent=5 // pred_fallthru
        _
      %p1673 = scmp.le.s32.totalorder 2, %s16
      // Predicated region
      $region33: #{tpu_custom_call.1} parent=5 // pred_check
        %p1674 = pneg %p1673
      $region34: #{tpu_custom_call.1} parent=5 // pred_check_branch
        %1676 = sbr.rel (%p1674) target = $region36
      $region35: #{tpu_custom_call.1} parent=5 // pred_region
        %s1677 = ssub.s32 %s16, 2
        // Predicated region
        $region37: #{tpu_custom_call.1} parent=35 // pred_check
          %p1678 = pneg %p66
        $region38: #{tpu_custom_call.1} parent=35 // pred_check_branch
          %1680 = sbr.rel (%p1678) target = $region40
        $region39: #{tpu_custom_call.1} parent=35 // pred_region
          %s1681 = sand.u32 %s51, 1
          %s1682 = scalar_lea.sflag [#allocation6], %s1681
          %s1683 = sand.u32 %s51, 1
          %s1684 = smul.addr %s1683, 256
          %s1685 = scalar_lea.vmem [#allocation7], %s1684
          %1686 = dma.done %s1682, 4096
        $region40: #{tpu_custom_call.1} parent=35 // pred_fallthru
          _
      $region36: #{tpu_custom_call.1} parent=5 // pred_fallthru
        _
    $region6: #{tpu_custom_call.1} parent=1 // loop_footer
      %s20 = sadd.s32 1, %s16
    $region7: #{tpu_custom_call.1} parent=1 // loop_footer_branch
      %15 = sbr.rel target = $region3
    $region8: #{tpu_custom_call.1} parent=1 // loop_exit
      _
    %1687 = vsyncpa [#allocation5], 1
    %s1688 = scalar_lea.sflag [#allocation5], 1
    %1689 = vsyncpa %s1688, 1
    %1690 = vsyncpa [#allocation6], 1
    %s1691 = scalar_lea.sflag [#allocation6], 1
    %1692 = vsyncpa %s1691, 1

</llo_original>
